<compile_context>
chip_gen: v6e
topology: v6e:2x2x1
jax: 0.10.0
libtpu: 0.0.40
codegen_flags: <defaults>
</compile_context>

<pallas_src>
import numpy as np
import jax
import jax.numpy as jnp
from jax.experimental import pallas as pl
from jax.experimental.pallas import tpu as pltpu

# ---- module constants (globals of the reference file, scaled to a small M) ----
M = 64                    # field size (reference global M=250; pad to 256 host-side
                          # at full size so 2*M stays a multiple of 128)
B = 2                     # batch
NLAYERS = 5               # propagation+modulation repeats
L = 0.2
LMBDA = 5e-7
Z = 100
SQ = round(M / 20)        # square_size = round(M/20)
START_ROW = np.zeros(10, dtype=int)   # module globals: all-zero detector offsets
START_COL = np.zeros(10, dtype=int)

OUT_LANES = 128           # lane-dense imaging output width
BM = B * M                # sublane-stacked batch rows


# ---------------------------------------------------------------------------
# fused kernel: 5 x (propagation + modulation) + imaging epilogue, whole batch
# ---------------------------------------------------------------------------
def optical_net_kernel(x_ref, ca_ref, cb_ref, wat_ref, wbt_ref,
                       hr_ref, hs_ref, mr_ref, ms_ref, sgn_ref,
                       cm_ref, rm_ref,
                       norm_ref, raw_ref, inten_ref):
    X   = x_ref[...]                         # (B*M, 2M) packed field, batch on sublanes
    CA  = ca_ref[...]                        # (2*B*M, B*M) stacked block-diag [Ar; Ai]
    CB  = cb_ref[...]                        # (2*B*M, B*M) stacked block-diag [Br; Bi]
    WAT = wat_ref[...]                       # (2M, 2M) real embedding of (.) @ A^T
    WBT = wbt_ref[...]                       # (2M, 2M) real embedding of (.) @ Binv^T
    HR  = hr_ref[...]                        # (B*M, 2M) packed transfer function (real part)
    HS  = hs_ref[...]                        # (B*M, 2M) packed transfer function (swap part)
    SGN = sgn_ref[...]                       # (B*M, 2M) host-precomputed [-1 | +1] sign plane

    def cswap(v):                            # [re | im] -> [im | re] per row (XLU lane roll)
        return pltpu.roll(v, shift=M, axis=1)

    def left_cmul(cab, v):                   # (Cr + i*Ci) @ u_b for every sample, ONE matmul
        res = jnp.dot(cab, v, preferred_element_type=jnp.float32)   # (2*B*M, 2M)
        return res[:BM] + SGN * cswap(res[BM:])

    for l in range(NLAYERS):                 # statically unrolled, 5 layers
        # propagation:  Binv @ (Hs * (A @ u @ A^T)) @ Binv^T
        X = left_cmul(CA, X)                                        # A @ u       (all samples)
        X = jnp.dot(X, WAT, preferred_element_type=jnp.float32)     # ... @ A^T
        X = HR * X + HS * cswap(X)                                  # Hs hadamard
        X = left_cmul(CB, X)                                        # Binv @ ...
        X = jnp.dot(X, WBT, preferred_element_type=jnp.float32)     # ... @ Binv^T
        # modulation:  exp(i*2*pi*phase) * u   (pre-packed, batch-tiled per layer)
        X = mr_ref[l] * X + ms_ref[l] * cswap(X)

    # ---- imaging epilogue: |u|^2, detector windows via mask contraction, L2 norm ----
    X2 = X * X                                                      # re^2 / im^2 planes
    Wd = jnp.dot(X2, cm_ref[...], preferred_element_type=jnp.float32)  # (B*M, 128) col-window sums
    P  = rm_ref[...] * Wd                                           # row-window mask
    for b in range(B):                                              # B=2, static
        sums = jnp.sum(P[b * M:(b + 1) * M, :], axis=0, keepdims=True)   # (1,128) lanes 0..9 live
        inv  = jax.lax.rsqrt(jnp.sum(sums * sums, keepdims=True))        # (1,1), matches torch (no eps)
        norm_ref[b] = jnp.broadcast_to(sums * inv, (8, OUT_LANES))
        raw_ref[b]  = jnp.broadcast_to(sums, (8, OUT_LANES))
    # intensity of sample 0 (the reference module's `inten` global side effect)
    inten_ref[...] = X2[0:M, 0:M] + X2[0:M, M:2 * M]


def optical_network(x_re, x_im, mod_re, mod_im, consts):
    """Full forward pass in a single kernel launch.
    Returns (norm_out (B,8,128), raw_out (B,8,128), inten0 (M,M)):
      norm_out[:,0,:10]  -> module output (L2-normalized detector values)
      raw_out[:,0,:10]   -> unnormalized detector sums (validation)
      inten0             -> |u|^2 of sample 0 (reference module's global `inten`)."""
    CABA, CABB, WAT, WBT, HR2F, HS2F, SGN, CMASK, RMASKF = consts
    assert x_re.shape[0] == B and (2 * M) % 128 == 0 and M % 8 == 0

    # field: (B, M, M)+(B, M, M) -> (B*M, 2M), batch stacked along sublanes
    Xp = jnp.concatenate([x_re, x_im], axis=-1).reshape(BM, 2 * M)
    # modulation planes, packed [re|im-swap] along lanes, tiled over batch sublanes
    MRF = jnp.tile(jnp.concatenate([mod_re, mod_re], axis=-1), (1, B, 1))    # (NL, B*M, 2M)
    MSF = jnp.tile(jnp.concatenate([-mod_im, mod_im], axis=-1), (1, B, 1))   # (NL, B*M, 2M)

    full2 = lambda shape: pl.BlockSpec(shape, lambda i: (0, 0))
    full3 = lambda shape: pl.BlockSpec(shape, lambda i: (0, 0, 0))

    return pl.pallas_call(
        optical_net_kernel,
        out_shape=(jax.ShapeDtypeStruct((B, 8, OUT_LANES), jnp.float32),
                   jax.ShapeDtypeStruct((B, 8, OUT_LANES), jnp.float32),
                   jax.ShapeDtypeStruct((M, M), jnp.float32)),
        grid_spec=pltpu.PrefetchScalarGridSpec(
            num_scalar_prefetch=0,
            grid=(1,),                                   # single step: whole batch at once
            in_specs=[full2((BM, 2 * M)),                # Xp
                      full2((2 * BM, BM)),               # CABA
                      full2((2 * BM, BM)),               # CABB
                      full2((2 * M, 2 * M)),             # WAT
                      full2((2 * M, 2 * M)),             # WBT
                      full2((BM, 2 * M)),                # HR2F
                      full2((BM, 2 * M)),                # HS2F
                      full3((NLAYERS, BM, 2 * M)),       # MRF
                      full3((NLAYERS, BM, 2 * M)),       # MSF
                      full2((BM, 2 * M)),                # SGN
                      full2((2 * M, OUT_LANES)),         # CMASK
                      full2((BM, OUT_LANES))],           # RMASKF
            out_specs=[full3((B, 8, OUT_LANES)),
                       full3((B, 8, OUT_LANES)),
                       full2((M, M))]),
        compiler_params=pltpu.CompilerParams(
            dimension_semantics=("arbitrary",)),
    )(Xp, CABA, CABB, WAT, WBT, HR2F, HS2F, MRF, MSF, SGN, CMASK, RMASKF)


# ---------------------------------------------------------------------------
# constant / parameter setup (plain numpy/JAX glue)
# ---------------------------------------------------------------------------
def make_constants():
    h = M // 2
    n = np.arange(M)
    F  = np.exp(-2j * np.pi * np.outer(n, n) / M)        # forward DFT matrix
    Fi = np.exp( 2j * np.pi * np.outer(n, n) / M) / M    # inverse DFT matrix
    A    = np.roll(F,  h, axis=1)    # F @ S    (fftshift folded into input transform)
    Binv = np.roll(Fi, -h, axis=0)   # S @ F^-1 (ifftshift folded into output transform)

    # transfer function H (exactly as propagation_layer.forward), then fftshift it
    dx = L / M
    kwav = 2 * np.pi / LMBDA
    fx = np.linspace(-1 / (2 * dx), 1 / (2 * dx) - 1 / L, M)
    FX, FY = np.meshgrid(fx, fx, indexing="ij")
    H = np.exp(-1j * np.pi * LMBDA * Z * (FX ** 2 + FY ** 2)) * np.exp(1j * kwav * Z)
    Hs = np.fft.fftshift(H, axes=(-2, -1))

    def stacked_bd(C):
        # [diag_B(Cr); diag_B(Ci)] : one-matmul fused left complex multiply for the batch
        bd = lambda R: np.kron(np.eye(B), R)
        return np.concatenate([bd(C.real), bd(C.imag)], axis=0)     # (2*B*M, B*M)

    def emb_rightT(D):
        # packed right-multiply by D^T: [xr | xi] @ W == [(xD^T)_re | (xD^T)_im]
        Dr, Di = D.real, D.imag
        return np.block([[Dr.T, Di.T], [-Di.T, Dr.T]])               # (2M, 2M)

    HR2F = np.tile(np.concatenate([Hs.real, Hs.real], axis=1), (B, 1))     # (B*M, 2M)
    HS2F = np.tile(np.concatenate([-Hs.imag, Hs.imag], axis=1), (B, 1))
    SGN  = np.concatenate([-np.ones((BM, M)), np.ones((BM, M))], axis=1)   # (B*M, 2M)

    # imaging masks: detector i -> lane i; column window (re+im halves) / row window
    CMASK = np.zeros((2 * M, OUT_LANES))
    RMASK = np.zeros((M, OUT_LANES))
    for i in range(10):
        r0, c0 = int(START_ROW[i]), int(START_COL[i])
        CMASK[c0:c0 + SQ, i] = 1.0
        CMASK[M + c0:M + c0 + SQ, i] = 1.0
        RMASK[r0:r0 + SQ, i] = 1.0
    RMASKF = np.tile(RMASK, (B, 1))                                        # (B*M, 128)

    f32 = lambda a: jnp.asarray(np.asarray(a, dtype=np.float32))
    consts = (f32(stacked_bd(A)), f32(stacked_bd(Binv)),
              f32(emb_rightT(A)), f32(emb_rightT(Binv)),
              f32(HR2F), f32(HS2F), f32(SGN), f32(CMASK), f32(RMASKF))
    return consts, Hs


if __name__ == "__main__":
    key = jax.random.PRNGKey(0)
    k_phase, k_re, k_im = jax.random.split(key, 3)

    # modulation_layer parameters: 5 layers of (M, M) phases, uniform in [0, 2)
    phases = jax.random.uniform(k_phase, (NLAYERS, M, M), minval=0.0, maxval=2.0)
    mod_re = jnp.cos(2.0 * np.pi * phases).astype(jnp.float32)
    mod_im = jnp.sin(2.0 * np.pi * phases).astype(jnp.float32)

    # deterministic complex input field u0, shape (B, M, M)
    x_re = jax.random.normal(k_re, (B, M, M), dtype=jnp.float32)
    x_im = jax.random.normal(k_im, (B, M, M), dtype=jnp.float32)

    consts, Hs_np = make_constants()

    norm_out, raw_out, inten0 = jax.jit(optical_network)(x_re, x_im, mod_re, mod_im, consts)
    norm_out = jax.block_until_ready(norm_out)
    raw_out = jax.block_until_ready(raw_out)
    inten0 = jax.block_until_ready(inten0)
    out = np.asarray(norm_out[:, 0, :10])    # module output: normalized detector values
    raw = np.asarray(raw_out[:, 0, :10])     # unnormalized window sums (validation)

    # pure-JAX FFT reference for sanity
    u = (x_re + 1j * x_im).astype(jnp.complex64)
    Hc = jnp.asarray(Hs_np, dtype=jnp.complex64)
    for l in range(NLAYERS):
        U1 = jnp.fft.fft2(jnp.fft.fftshift(u, axes=(-2, -1)))
        u = jnp.fft.ifftshift(jnp.fft.ifft2(Hc * U1), axes=(-2, -1))
        u = u * (mod_re[l] + 1j * mod_im[l]).astype(jnp.complex64)
    inten = jnp.abs(u) ** 2
    vals = jnp.stack([jnp.sum(inten[:, START_ROW[i]:START_ROW[i] + SQ,
                                    START_COL[i]:START_COL[i] + SQ], axis=(1, 2))
                      for i in range(10)], axis=1)
    ref_norm = vals / jnp.sqrt(jnp.sum(vals * vals, axis=1, keepdims=True))

    np.testing.assert_allclose(raw, np.asarray(vals), rtol=1e-3, atol=1e-3)
    np.testing.assert_allclose(out, np.asarray(ref_norm), rtol=1e-3, atol=1e-3)
    np.testing.assert_allclose(np.asarray(inten0), np.asarray(inten[0]), rtol=5e-3, atol=5e-3)
    print("KERNEL_OK")
</pallas_src>

<mosaic_0001>
module attributes {stable_mosaic.version = 11 : i64} {
  func.func @optical_net_kernel(%arg0: i32, %arg1: memref<128x128xf32, #tpu.memory_space<vmem>>, %arg2: memref<256x128xf32, #tpu.memory_space<vmem>>, %arg3: memref<256x128xf32, #tpu.memory_space<vmem>>, %arg4: memref<128x128xf32, #tpu.memory_space<vmem>>, %arg5: memref<128x128xf32, #tpu.memory_space<vmem>>, %arg6: memref<128x128xf32, #tpu.memory_space<vmem>>, %arg7: memref<128x128xf32, #tpu.memory_space<vmem>>, %arg8: memref<5x128x128xf32, #tpu.memory_space<vmem>>, %arg9: memref<5x128x128xf32, #tpu.memory_space<vmem>>, %arg10: memref<128x128xf32, #tpu.memory_space<vmem>>, %arg11: memref<128x128xf32, #tpu.memory_space<vmem>>, %arg12: memref<128x128xf32, #tpu.memory_space<vmem>>, %arg13: memref<2x8x128xf32, #tpu.memory_space<vmem>>, %arg14: memref<2x8x128xf32, #tpu.memory_space<vmem>>, %arg15: memref<64x64xf32, #tpu.memory_space<vmem>>) attributes {dimension_semantics = [#tpu.dimension_semantics<arbitrary>], iteration_bounds = array<i64: 1>, scalar_prefetch = 0 : i64, scratch_operands = 0 : i64, tpu.core_type = #tpu.core_type<tc>, window_params = [{pipeline_mode = #tpu.pipeline_mode<synchronous>, transform_indices = @transform_0, window_bounds = array<i64: 128, 128>}, {pipeline_mode = #tpu.pipeline_mode<synchronous>, transform_indices = @transform_1, window_bounds = array<i64: 256, 128>}, {pipeline_mode = #tpu.pipeline_mode<synchronous>, transform_indices = @transform_2, window_bounds = array<i64: 256, 128>}, {pipeline_mode = #tpu.pipeline_mode<synchronous>, transform_indices = @transform_3, window_bounds = array<i64: 128, 128>}, {pipeline_mode = #tpu.pipeline_mode<synchronous>, transform_indices = @transform_4, window_bounds = array<i64: 128, 128>}, {pipeline_mode = #tpu.pipeline_mode<synchronous>, transform_indices = @transform_5, window_bounds = array<i64: 128, 128>}, {pipeline_mode = #tpu.pipeline_mode<synchronous>, transform_indices = @transform_6, window_bounds = array<i64: 128, 128>}, {pipeline_mode = #tpu.pipeline_mode<synchronous>, transform_indices = @transform_7, window_bounds = array<i64: 5, 128, 128>}, {pipeline_mode = #tpu.pipeline_mode<synchronous>, transform_indices = @transform_8, window_bounds = array<i64: 5, 128, 128>}, {pipeline_mode = #tpu.pipeline_mode<synchronous>, transform_indices = @transform_9, window_bounds = array<i64: 128, 128>}, {pipeline_mode = #tpu.pipeline_mode<synchronous>, transform_indices = @transform_10, window_bounds = array<i64: 128, 128>}, {pipeline_mode = #tpu.pipeline_mode<synchronous>, transform_indices = @transform_11, window_bounds = array<i64: 128, 128>}, {pipeline_mode = #tpu.pipeline_mode<synchronous>, transform_indices = @transform_12, window_bounds = array<i64: 2, 8, 128>}, {pipeline_mode = #tpu.pipeline_mode<synchronous>, transform_indices = @transform_13, window_bounds = array<i64: 2, 8, 128>}, {pipeline_mode = #tpu.pipeline_mode<synchronous>, transform_indices = @transform_14, window_bounds = array<i64: 64, 64>}]} {
    %c0 = arith.constant 0 : index
    %c0_0 = arith.constant 0 : index
    %0 = vector.load %arg1[%c0, %c0_0] : memref<128x128xf32, #tpu.memory_space<vmem>>, vector<128x128xf32>
    %c0_1 = arith.constant 0 : index
    %c0_2 = arith.constant 0 : index
    %1 = vector.load %arg2[%c0_1, %c0_2] : memref<256x128xf32, #tpu.memory_space<vmem>>, vector<256x128xf32>
    %c0_3 = arith.constant 0 : index
    %c0_4 = arith.constant 0 : index
    %2 = vector.load %arg3[%c0_3, %c0_4] : memref<256x128xf32, #tpu.memory_space<vmem>>, vector<256x128xf32>
    %c0_5 = arith.constant 0 : index
    %c0_6 = arith.constant 0 : index
    %3 = vector.load %arg4[%c0_5, %c0_6] : memref<128x128xf32, #tpu.memory_space<vmem>>, vector<128x128xf32>
    %c0_7 = arith.constant 0 : index
    %c0_8 = arith.constant 0 : index
    %4 = vector.load %arg5[%c0_7, %c0_8] : memref<128x128xf32, #tpu.memory_space<vmem>>, vector<128x128xf32>
    %c0_9 = arith.constant 0 : index
    %c0_10 = arith.constant 0 : index
    %5 = vector.load %arg6[%c0_9, %c0_10] : memref<128x128xf32, #tpu.memory_space<vmem>>, vector<128x128xf32>
    %c0_11 = arith.constant 0 : index
    %c0_12 = arith.constant 0 : index
    %6 = vector.load %arg7[%c0_11, %c0_12] : memref<128x128xf32, #tpu.memory_space<vmem>>, vector<128x128xf32>
    %c0_13 = arith.constant 0 : index
    %c0_14 = arith.constant 0 : index
    %7 = vector.load %arg10[%c0_13, %c0_14] : memref<128x128xf32, #tpu.memory_space<vmem>>, vector<128x128xf32>
    %cst = arith.constant dense<0.000000e+00> : vector<256x128xf32>
    %8 = tpu.matmul %1, %0, %cst {dimension_numbers = #tpu.dot_dimension_numbers<[1], [0], [0], [1], [0, 0, 1, 1], [], []>} : vector<256x128xf32>, vector<128x128xf32>, vector<256x128xf32> -> vector<256x128xf32>
    %9 = vector.extract_strided_slice %8 {offsets = [0, 0], sizes = [128, 128], strides = [1, 1]} : vector<256x128xf32> to vector<128x128xf32>
    %10 = vector.extract_strided_slice %8 {offsets = [128, 0], sizes = [128, 128], strides = [1, 1]} : vector<256x128xf32> to vector<128x128xf32>
    %c64_i32 = arith.constant 64 : i32
    %11 = tpu.dynamic_rotate %10 by %c64_i32 dim 1 : vector<128x128xf32>, i32 -> vector<128x128xf32>
    %12 = arith.mulf %7, %11 : vector<128x128xf32>
    %13 = arith.addf %9, %12 : vector<128x128xf32>
    %cst_15 = arith.constant dense<0.000000e+00> : vector<128x128xf32>
    %14 = tpu.matmul %13, %3, %cst_15 {dimension_numbers = #tpu.dot_dimension_numbers<[1], [0], [0], [1], [0, 0, 1, 1], [], []>} : vector<128x128xf32>, vector<128x128xf32>, vector<128x128xf32> -> vector<128x128xf32>
    %15 = arith.mulf %5, %14 : vector<128x128xf32>
    %c64_i32_16 = arith.constant 64 : i32
    %16 = tpu.dynamic_rotate %14 by %c64_i32_16 dim 1 : vector<128x128xf32>, i32 -> vector<128x128xf32>
    %17 = arith.mulf %6, %16 : vector<128x128xf32>
    %18 = arith.addf %15, %17 : vector<128x128xf32>
    %cst_17 = arith.constant dense<0.000000e+00> : vector<256x128xf32>
    %19 = tpu.matmul %2, %18, %cst_17 {dimension_numbers = #tpu.dot_dimension_numbers<[1], [0], [0], [1], [0, 0, 1, 1], [], []>} : vector<256x128xf32>, vector<128x128xf32>, vector<256x128xf32> -> vector<256x128xf32>
    %20 = vector.extract_strided_slice %19 {offsets = [0, 0], sizes = [128, 128], strides = [1, 1]} : vector<256x128xf32> to vector<128x128xf32>
    %21 = vector.extract_strided_slice %19 {offsets = [128, 0], sizes = [128, 128], strides = [1, 1]} : vector<256x128xf32> to vector<128x128xf32>
    %c64_i32_18 = arith.constant 64 : i32
    %22 = tpu.dynamic_rotate %21 by %c64_i32_18 dim 1 : vector<128x128xf32>, i32 -> vector<128x128xf32>
    %23 = arith.mulf %7, %22 : vector<128x128xf32>
    %24 = arith.addf %20, %23 : vector<128x128xf32>
    %cst_19 = arith.constant dense<0.000000e+00> : vector<128x128xf32>
    %25 = tpu.matmul %24, %4, %cst_19 {dimension_numbers = #tpu.dot_dimension_numbers<[1], [0], [0], [1], [0, 0, 1, 1], [], []>} : vector<128x128xf32>, vector<128x128xf32>, vector<128x128xf32> -> vector<128x128xf32>
    %c0_20 = arith.constant 0 : index
    %c0_21 = arith.constant 0 : index
    %c0_22 = arith.constant 0 : index
    %26 = vector.load %arg8[%c0_20, %c0_21, %c0_22] : memref<5x128x128xf32, #tpu.memory_space<vmem>>, vector<1x128x128xf32>
    %27 = vector.shape_cast %26 : vector<1x128x128xf32> to vector<128x128xf32>
    %28 = arith.mulf %27, %25 : vector<128x128xf32>
    %c0_23 = arith.constant 0 : index
    %c0_24 = arith.constant 0 : index
    %c0_25 = arith.constant 0 : index
    %29 = vector.load %arg9[%c0_23, %c0_24, %c0_25] : memref<5x128x128xf32, #tpu.memory_space<vmem>>, vector<1x128x128xf32>
    %30 = vector.shape_cast %29 : vector<1x128x128xf32> to vector<128x128xf32>
    %c64_i32_26 = arith.constant 64 : i32
    %31 = tpu.dynamic_rotate %25 by %c64_i32_26 dim 1 : vector<128x128xf32>, i32 -> vector<128x128xf32>
    %32 = arith.mulf %30, %31 : vector<128x128xf32>
    %33 = arith.addf %28, %32 : vector<128x128xf32>
    %cst_27 = arith.constant dense<0.000000e+00> : vector<256x128xf32>
    %34 = tpu.matmul %1, %33, %cst_27 {dimension_numbers = #tpu.dot_dimension_numbers<[1], [0], [0], [1], [0, 0, 1, 1], [], []>} : vector<256x128xf32>, vector<128x128xf32>, vector<256x128xf32> -> vector<256x128xf32>
    %35 = vector.extract_strided_slice %34 {offsets = [0, 0], sizes = [128, 128], strides = [1, 1]} : vector<256x128xf32> to vector<128x128xf32>
    %36 = vector.extract_strided_slice %34 {offsets = [128, 0], sizes = [128, 128], strides = [1, 1]} : vector<256x128xf32> to vector<128x128xf32>
    %c64_i32_28 = arith.constant 64 : i32
    %37 = tpu.dynamic_rotate %36 by %c64_i32_28 dim 1 : vector<128x128xf32>, i32 -> vector<128x128xf32>
    %38 = arith.mulf %7, %37 : vector<128x128xf32>
    %39 = arith.addf %35, %38 : vector<128x128xf32>
    %cst_29 = arith.constant dense<0.000000e+00> : vector<128x128xf32>
    %40 = tpu.matmul %39, %3, %cst_29 {dimension_numbers = #tpu.dot_dimension_numbers<[1], [0], [0], [1], [0, 0, 1, 1], [], []>} : vector<128x128xf32>, vector<128x128xf32>, vector<128x128xf32> -> vector<128x128xf32>
    %41 = arith.mulf %5, %40 : vector<128x128xf32>
    %c64_i32_30 = arith.constant 64 : i32
    %42 = tpu.dynamic_rotate %40 by %c64_i32_30 dim 1 : vector<128x128xf32>, i32 -> vector<128x128xf32>
    %43 = arith.mulf %6, %42 : vector<128x128xf32>
    %44 = arith.addf %41, %43 : vector<128x128xf32>
    %cst_31 = arith.constant dense<0.000000e+00> : vector<256x128xf32>
    %45 = tpu.matmul %2, %44, %cst_31 {dimension_numbers = #tpu.dot_dimension_numbers<[1], [0], [0], [1], [0, 0, 1, 1], [], []>} : vector<256x128xf32>, vector<128x128xf32>, vector<256x128xf32> -> vector<256x128xf32>
    %46 = vector.extract_strided_slice %45 {offsets = [0, 0], sizes = [128, 128], strides = [1, 1]} : vector<256x128xf32> to vector<128x128xf32>
    %47 = vector.extract_strided_slice %45 {offsets = [128, 0], sizes = [128, 128], strides = [1, 1]} : vector<256x128xf32> to vector<128x128xf32>
    %c64_i32_32 = arith.constant 64 : i32
    %48 = tpu.dynamic_rotate %47 by %c64_i32_32 dim 1 : vector<128x128xf32>, i32 -> vector<128x128xf32>
    %49 = arith.mulf %7, %48 : vector<128x128xf32>
    %50 = arith.addf %46, %49 : vector<128x128xf32>
    %cst_33 = arith.constant dense<0.000000e+00> : vector<128x128xf32>
    %51 = tpu.matmul %50, %4, %cst_33 {dimension_numbers = #tpu.dot_dimension_numbers<[1], [0], [0], [1], [0, 0, 1, 1], [], []>} : vector<128x128xf32>, vector<128x128xf32>, vector<128x128xf32> -> vector<128x128xf32>
    %c1 = arith.constant 1 : index
    %c0_34 = arith.constant 0 : index
    %c0_35 = arith.constant 0 : index
    %52 = vector.load %arg8[%c1, %c0_34, %c0_35] : memref<5x128x128xf32, #tpu.memory_space<vmem>>, vector<1x128x128xf32>
    %53 = vector.shape_cast %52 : vector<1x128x128xf32> to vector<128x128xf32>
    %54 = arith.mulf %53, %51 : vector<128x128xf32>
    %c1_36 = arith.constant 1 : index
    %c0_37 = arith.constant 0 : index
    %c0_38 = arith.constant 0 : index
    %55 = vector.load %arg9[%c1_36, %c0_37, %c0_38] : memref<5x128x128xf32, #tpu.memory_space<vmem>>, vector<1x128x128xf32>
    %56 = vector.shape_cast %55 : vector<1x128x128xf32> to vector<128x128xf32>
    %c64_i32_39 = arith.constant 64 : i32
    %57 = tpu.dynamic_rotate %51 by %c64_i32_39 dim 1 : vector<128x128xf32>, i32 -> vector<128x128xf32>
    %58 = arith.mulf %56, %57 : vector<128x128xf32>
    %59 = arith.addf %54, %58 : vector<128x128xf32>
    %cst_40 = arith.constant dense<0.000000e+00> : vector<256x128xf32>
    %60 = tpu.matmul %1, %59, %cst_40 {dimension_numbers = #tpu.dot_dimension_numbers<[1], [0], [0], [1], [0, 0, 1, 1], [], []>} : vector<256x128xf32>, vector<128x128xf32>, vector<256x128xf32> -> vector<256x128xf32>
    %61 = vector.extract_strided_slice %60 {offsets = [0, 0], sizes = [128, 128], strides = [1, 1]} : vector<256x128xf32> to vector<128x128xf32>
    %62 = vector.extract_strided_slice %60 {offsets = [128, 0], sizes = [128, 128], strides = [1, 1]} : vector<256x128xf32> to vector<128x128xf32>
    %c64_i32_41 = arith.constant 64 : i32
    %63 = tpu.dynamic_rotate %62 by %c64_i32_41 dim 1 : vector<128x128xf32>, i32 -> vector<128x128xf32>
    %64 = arith.mulf %7, %63 : vector<128x128xf32>
    %65 = arith.addf %61, %64 : vector<128x128xf32>
    %cst_42 = arith.constant dense<0.000000e+00> : vector<128x128xf32>
    %66 = tpu.matmul %65, %3, %cst_42 {dimension_numbers = #tpu.dot_dimension_numbers<[1], [0], [0], [1], [0, 0, 1, 1], [], []>} : vector<128x128xf32>, vector<128x128xf32>, vector<128x128xf32> -> vector<128x128xf32>
    %67 = arith.mulf %5, %66 : vector<128x128xf32>
    %c64_i32_43 = arith.constant 64 : i32
    %68 = tpu.dynamic_rotate %66 by %c64_i32_43 dim 1 : vector<128x128xf32>, i32 -> vector<128x128xf32>
    %69 = arith.mulf %6, %68 : vector<128x128xf32>
    %70 = arith.addf %67, %69 : vector<128x128xf32>
    %cst_44 = arith.constant dense<0.000000e+00> : vector<256x128xf32>
    %71 = tpu.matmul %2, %70, %cst_44 {dimension_numbers = #tpu.dot_dimension_numbers<[1], [0], [0], [1], [0, 0, 1, 1], [], []>} : vector<256x128xf32>, vector<128x128xf32>, vector<256x128xf32> -> vector<256x128xf32>
    %72 = vector.extract_strided_slice %71 {offsets = [0, 0], sizes = [128, 128], strides = [1, 1]} : vector<256x128xf32> to vector<128x128xf32>
    %73 = vector.extract_strided_slice %71 {offsets = [128, 0], sizes = [128, 128], strides = [1, 1]} : vector<256x128xf32> to vector<128x128xf32>
    %c64_i32_45 = arith.constant 64 : i32
    %74 = tpu.dynamic_rotate %73 by %c64_i32_45 dim 1 : vector<128x128xf32>, i32 -> vector<128x128xf32>
    %75 = arith.mulf %7, %74 : vector<128x128xf32>
    %76 = arith.addf %72, %75 : vector<128x128xf32>
    %cst_46 = arith.constant dense<0.000000e+00> : vector<128x128xf32>
    %77 = tpu.matmul %76, %4, %cst_46 {dimension_numbers = #tpu.dot_dimension_numbers<[1], [0], [0], [1], [0, 0, 1, 1], [], []>} : vector<128x128xf32>, vector<128x128xf32>, vector<128x128xf32> -> vector<128x128xf32>
    %c2 = arith.constant 2 : index
    %c0_47 = arith.constant 0 : index
    %c0_48 = arith.constant 0 : index
    %78 = vector.load %arg8[%c2, %c0_47, %c0_48] : memref<5x128x128xf32, #tpu.memory_space<vmem>>, vector<1x128x128xf32>
    %79 = vector.shape_cast %78 : vector<1x128x128xf32> to vector<128x128xf32>
    %80 = arith.mulf %79, %77 : vector<128x128xf32>
    %c2_49 = arith.constant 2 : index
    %c0_50 = arith.constant 0 : index
    %c0_51 = arith.constant 0 : index
    %81 = vector.load %arg9[%c2_49, %c0_50, %c0_51] : memref<5x128x128xf32, #tpu.memory_space<vmem>>, vector<1x128x128xf32>
    %82 = vector.shape_cast %81 : vector<1x128x128xf32> to vector<128x128xf32>
    %c64_i32_52 = arith.constant 64 : i32
    %83 = tpu.dynamic_rotate %77 by %c64_i32_52 dim 1 : vector<128x128xf32>, i32 -> vector<128x128xf32>
    %84 = arith.mulf %82, %83 : vector<128x128xf32>
    %85 = arith.addf %80, %84 : vector<128x128xf32>
    %cst_53 = arith.constant dense<0.000000e+00> : vector<256x128xf32>
    %86 = tpu.matmul %1, %85, %cst_53 {dimension_numbers = #tpu.dot_dimension_numbers<[1], [0], [0], [1], [0, 0, 1, 1], [], []>} : vector<256x128xf32>, vector<128x128xf32>, vector<256x128xf32> -> vector<256x128xf32>
    %87 = vector.extract_strided_slice %86 {offsets = [0, 0], sizes = [128, 128], strides = [1, 1]} : vector<256x128xf32> to vector<128x128xf32>
    %88 = vector.extract_strided_slice %86 {offsets = [128, 0], sizes = [128, 128], strides = [1, 1]} : vector<256x128xf32> to vector<128x128xf32>
    %c64_i32_54 = arith.constant 64 : i32
    %89 = tpu.dynamic_rotate %88 by %c64_i32_54 dim 1 : vector<128x128xf32>, i32 -> vector<128x128xf32>
    %90 = arith.mulf %7, %89 : vector<128x128xf32>
    %91 = arith.addf %87, %90 : vector<128x128xf32>
    %cst_55 = arith.constant dense<0.000000e+00> : vector<128x128xf32>
    %92 = tpu.matmul %91, %3, %cst_55 {dimension_numbers = #tpu.dot_dimension_numbers<[1], [0], [0], [1], [0, 0, 1, 1], [], []>} : vector<128x128xf32>, vector<128x128xf32>, vector<128x128xf32> -> vector<128x128xf32>
    %93 = arith.mulf %5, %92 : vector<128x128xf32>
    %c64_i32_56 = arith.constant 64 : i32
    %94 = tpu.dynamic_rotate %92 by %c64_i32_56 dim 1 : vector<128x128xf32>, i32 -> vector<128x128xf32>
    %95 = arith.mulf %6, %94 : vector<128x128xf32>
    %96 = arith.addf %93, %95 : vector<128x128xf32>
    %cst_57 = arith.constant dense<0.000000e+00> : vector<256x128xf32>
    %97 = tpu.matmul %2, %96, %cst_57 {dimension_numbers = #tpu.dot_dimension_numbers<[1], [0], [0], [1], [0, 0, 1, 1], [], []>} : vector<256x128xf32>, vector<128x128xf32>, vector<256x128xf32> -> vector<256x128xf32>
    %98 = vector.extract_strided_slice %97 {offsets = [0, 0], sizes = [128, 128], strides = [1, 1]} : vector<256x128xf32> to vector<128x128xf32>
    %99 = vector.extract_strided_slice %97 {offsets = [128, 0], sizes = [128, 128], strides = [1, 1]} : vector<256x128xf32> to vector<128x128xf32>
    %c64_i32_58 = arith.constant 64 : i32
    %100 = tpu.dynamic_rotate %99 by %c64_i32_58 dim 1 : vector<128x128xf32>, i32 -> vector<128x128xf32>
    %101 = arith.mulf %7, %100 : vector<128x128xf32>
    %102 = arith.addf %98, %101 : vector<128x128xf32>
    %cst_59 = arith.constant dense<0.000000e+00> : vector<128x128xf32>
    %103 = tpu.matmul %102, %4, %cst_59 {dimension_numbers = #tpu.dot_dimension_numbers<[1], [0], [0], [1], [0, 0, 1, 1], [], []>} : vector<128x128xf32>, vector<128x128xf32>, vector<128x128xf32> -> vector<128x128xf32>
    %c3 = arith.constant 3 : index
    %c0_60 = arith.constant 0 : index
    %c0_61 = arith.constant 0 : index
    %104 = vector.load %arg8[%c3, %c0_60, %c0_61] : memref<5x128x128xf32, #tpu.memory_space<vmem>>, vector<1x128x128xf32>
    %105 = vector.shape_cast %104 : vector<1x128x128xf32> to vector<128x128xf32>
    %106 = arith.mulf %105, %103 : vector<128x128xf32>
    %c3_62 = arith.constant 3 : index
    %c0_63 = arith.constant 0 : index
    %c0_64 = arith.constant 0 : index
    %107 = vector.load %arg9[%c3_62, %c0_63, %c0_64] : memref<5x128x128xf32, #tpu.memory_space<vmem>>, vector<1x128x128xf32>
    %108 = vector.shape_cast %107 : vector<1x128x128xf32> to vector<128x128xf32>
    %c64_i32_65 = arith.constant 64 : i32
    %109 = tpu.dynamic_rotate %103 by %c64_i32_65 dim 1 : vector<128x128xf32>, i32 -> vector<128x128xf32>
    %110 = arith.mulf %108, %109 : vector<128x128xf32>
    %111 = arith.addf %106, %110 : vector<128x128xf32>
    %cst_66 = arith.constant dense<0.000000e+00> : vector<256x128xf32>
    %112 = tpu.matmul %1, %111, %cst_66 {dimension_numbers = #tpu.dot_dimension_numbers<[1], [0], [0], [1], [0, 0, 1, 1], [], []>} : vector<256x128xf32>, vector<128x128xf32>, vector<256x128xf32> -> vector<256x128xf32>
    %113 = vector.extract_strided_slice %112 {offsets = [0, 0], sizes = [128, 128], strides = [1, 1]} : vector<256x128xf32> to vector<128x128xf32>
    %114 = vector.extract_strided_slice %112 {offsets = [128, 0], sizes = [128, 128], strides = [1, 1]} : vector<256x128xf32> to vector<128x128xf32>
    %c64_i32_67 = arith.constant 64 : i32
    %115 = tpu.dynamic_rotate %114 by %c64_i32_67 dim 1 : vector<128x128xf32>, i32 -> vector<128x128xf32>
    %116 = arith.mulf %7, %115 : vector<128x128xf32>
    %117 = arith.addf %113, %116 : vector<128x128xf32>
    %cst_68 = arith.constant dense<0.000000e+00> : vector<128x128xf32>
    %118 = tpu.matmul %117, %3, %cst_68 {dimension_numbers = #tpu.dot_dimension_numbers<[1], [0], [0], [1], [0, 0, 1, 1], [], []>} : vector<128x128xf32>, vector<128x128xf32>, vector<128x128xf32> -> vector<128x128xf32>
    %119 = arith.mulf %5, %118 : vector<128x128xf32>
    %c64_i32_69 = arith.constant 64 : i32
    %120 = tpu.dynamic_rotate %118 by %c64_i32_69 dim 1 : vector<128x128xf32>, i32 -> vector<128x128xf32>
    %121 = arith.mulf %6, %120 : vector<128x128xf32>
    %122 = arith.addf %119, %121 : vector<128x128xf32>
    %cst_70 = arith.constant dense<0.000000e+00> : vector<256x128xf32>
    %123 = tpu.matmul %2, %122, %cst_70 {dimension_numbers = #tpu.dot_dimension_numbers<[1], [0], [0], [1], [0, 0, 1, 1], [], []>} : vector<256x128xf32>, vector<128x128xf32>, vector<256x128xf32> -> vector<256x128xf32>
    %124 = vector.extract_strided_slice %123 {offsets = [0, 0], sizes = [128, 128], strides = [1, 1]} : vector<256x128xf32> to vector<128x128xf32>
    %125 = vector.extract_strided_slice %123 {offsets = [128, 0], sizes = [128, 128], strides = [1, 1]} : vector<256x128xf32> to vector<128x128xf32>
    %c64_i32_71 = arith.constant 64 : i32
    %126 = tpu.dynamic_rotate %125 by %c64_i32_71 dim 1 : vector<128x128xf32>, i32 -> vector<128x128xf32>
    %127 = arith.mulf %7, %126 : vector<128x128xf32>
    %128 = arith.addf %124, %127 : vector<128x128xf32>
    %cst_72 = arith.constant dense<0.000000e+00> : vector<128x128xf32>
    %129 = tpu.matmul %128, %4, %cst_72 {dimension_numbers = #tpu.dot_dimension_numbers<[1], [0], [0], [1], [0, 0, 1, 1], [], []>} : vector<128x128xf32>, vector<128x128xf32>, vector<128x128xf32> -> vector<128x128xf32>
    %c4 = arith.constant 4 : index
    %c0_73 = arith.constant 0 : index
    %c0_74 = arith.constant 0 : index
    %130 = vector.load %arg8[%c4, %c0_73, %c0_74] : memref<5x128x128xf32, #tpu.memory_space<vmem>>, vector<1x128x128xf32>
    %131 = vector.shape_cast %130 : vector<1x128x128xf32> to vector<128x128xf32>
    %132 = arith.mulf %131, %129 : vector<128x128xf32>
    %c4_75 = arith.constant 4 : index
    %c0_76 = arith.constant 0 : index
    %c0_77 = arith.constant 0 : index
    %133 = vector.load %arg9[%c4_75, %c0_76, %c0_77] : memref<5x128x128xf32, #tpu.memory_space<vmem>>, vector<1x128x128xf32>
    %134 = vector.shape_cast %133 : vector<1x128x128xf32> to vector<128x128xf32>
    %c64_i32_78 = arith.constant 64 : i32
    %135 = tpu.dynamic_rotate %129 by %c64_i32_78 dim 1 : vector<128x128xf32>, i32 -> vector<128x128xf32>
    %136 = arith.mulf %134, %135 : vector<128x128xf32>
    %137 = arith.addf %132, %136 : vector<128x128xf32>
    %138 = arith.mulf %137, %137 : vector<128x128xf32>
    %c0_79 = arith.constant 0 : index
    %c0_80 = arith.constant 0 : index
    %139 = vector.load %arg11[%c0_79, %c0_80] : memref<128x128xf32, #tpu.memory_space<vmem>>, vector<128x128xf32>
    %cst_81 = arith.constant dense<0.000000e+00> : vector<128x128xf32>
    %140 = tpu.matmul %138, %139, %cst_81 {dimension_numbers = #tpu.dot_dimension_numbers<[1], [0], [0], [1], [0, 0, 1, 1], [], []>} : vector<128x128xf32>, vector<128x128xf32>, vector<128x128xf32> -> vector<128x128xf32>
    %c0_82 = arith.constant 0 : index
    %c0_83 = arith.constant 0 : index
    %141 = vector.load %arg12[%c0_82, %c0_83] : memref<128x128xf32, #tpu.memory_space<vmem>>, vector<128x128xf32>
    %142 = arith.mulf %141, %140 : vector<128x128xf32>
    %143 = vector.extract_strided_slice %142 {offsets = [0, 0], sizes = [64, 128], strides = [1, 1]} : vector<128x128xf32> to vector<64x128xf32>
    %cst_84 = arith.constant dense<0.000000e+00> : vector<128xf32>
    %144 = vector.multi_reduction <add>, %143, %cst_84 [0] : vector<64x128xf32> to vector<128xf32>
    %145 = vector.shape_cast %144 : vector<128xf32> to vector<1x128xf32>
    %146 = arith.mulf %145, %145 : vector<1x128xf32>
    %147 = vector.shape_cast %146 : vector<1x128xf32> to vector<1x1x128xf32>
    %cst_85 = arith.constant dense<0.000000e+00> : vector<1xf32>
    %148 = vector.multi_reduction <add>, %147, %cst_85 [1, 2] : vector<1x1x128xf32> to vector<1xf32>
    %149 = vector.shape_cast %148 : vector<1xf32> to vector<1x1x1xf32>
    %150 = vector.extract %149[0, 0, 0] : f32 from vector<1x1x1xf32>
    %151 = vector.broadcast %150 : f32 to vector<1x1xf32>
    %152 = math.rsqrt %151 : vector<1x1xf32>
    %153 = vector.broadcast %152 : vector<1x1xf32> to vector<1x128xf32>
    %154 = arith.mulf %145, %153 : vector<1x128xf32>
    %155 = vector.shape_cast %154 : vector<1x128xf32> to vector<1x128xf32>
    %156 = vector.broadcast %155 : vector<1x128xf32> to vector<8x128xf32>
    %c0_86 = arith.constant 0 : index
    %c0_87 = arith.constant 0 : index
    %c0_88 = arith.constant 0 : index
    %157 = vector.load %arg13[%c0_86, %c0_87, %c0_88] : memref<2x8x128xf32, #tpu.memory_space<vmem>>, vector<1x8x128xf32>
    %158 = vector.shape_cast %157 : vector<1x8x128xf32> to vector<8x128xf32>
    %159 = vector.shape_cast %156 : vector<8x128xf32> to vector<1x8x128xf32>
    tpu.vector_store %arg13[%c0_86, %c0_87, %c0_88], %159 {strides = array<i32>} : memref<2x8x128xf32, #tpu.memory_space<vmem>>, vector<1x8x128xf32>,
    %160 = vector.shape_cast %145 : vector<1x128xf32> to vector<1x128xf32>
    %161 = vector.broadcast %160 : vector<1x128xf32> to vector<8x128xf32>
    %c0_89 = arith.constant 0 : index
    %c0_90 = arith.constant 0 : index
    %c0_91 = arith.constant 0 : index
    %162 = vector.load %arg14[%c0_89, %c0_90, %c0_91] : memref<2x8x128xf32, #tpu.memory_space<vmem>>, vector<1x8x128xf32>
    %163 = vector.shape_cast %162 : vector<1x8x128xf32> to vector<8x128xf32>
    %164 = vector.shape_cast %161 : vector<8x128xf32> to vector<1x8x128xf32>
    tpu.vector_store %arg14[%c0_89, %c0_90, %c0_91], %164 {strides = array<i32>} : memref<2x8x128xf32, #tpu.memory_space<vmem>>, vector<1x8x128xf32>,
    %165 = vector.extract_strided_slice %142 {offsets = [64, 0], sizes = [64, 128], strides = [1, 1]} : vector<128x128xf32> to vector<64x128xf32>
    %cst_92 = arith.constant dense<0.000000e+00> : vector<128xf32>
    %166 = vector.multi_reduction <add>, %165, %cst_92 [0] : vector<64x128xf32> to vector<128xf32>
    %167 = vector.shape_cast %166 : vector<128xf32> to vector<1x128xf32>
    %168 = arith.mulf %167, %167 : vector<1x128xf32>
    %169 = vector.shape_cast %168 : vector<1x128xf32> to vector<1x1x128xf32>
    %cst_93 = arith.constant dense<0.000000e+00> : vector<1xf32>
    %170 = vector.multi_reduction <add>, %169, %cst_93 [1, 2] : vector<1x1x128xf32> to vector<1xf32>
    %171 = vector.shape_cast %170 : vector<1xf32> to vector<1x1x1xf32>
    %172 = vector.extract %171[0, 0, 0] : f32 from vector<1x1x1xf32>
    %173 = vector.broadcast %172 : f32 to vector<1x1xf32>
    %174 = math.rsqrt %173 : vector<1x1xf32>
    %175 = vector.broadcast %174 : vector<1x1xf32> to vector<1x128xf32>
    %176 = arith.mulf %167, %175 : vector<1x128xf32>
    %177 = vector.shape_cast %176 : vector<1x128xf32> to vector<1x128xf32>
    %178 = vector.broadcast %177 : vector<1x128xf32> to vector<8x128xf32>
    %c1_94 = arith.constant 1 : index
    %c0_95 = arith.constant 0 : index
    %c0_96 = arith.constant 0 : index
    %179 = vector.load %arg13[%c1_94, %c0_95, %c0_96] : memref<2x8x128xf32, #tpu.memory_space<vmem>>, vector<1x8x128xf32>
    %180 = vector.shape_cast %179 : vector<1x8x128xf32> to vector<8x128xf32>
    %181 = vector.shape_cast %178 : vector<8x128xf32> to vector<1x8x128xf32>
    tpu.vector_store %arg13[%c1_94, %c0_95, %c0_96], %181 {strides = array<i32>} : memref<2x8x128xf32, #tpu.memory_space<vmem>>, vector<1x8x128xf32>,
    %182 = vector.shape_cast %167 : vector<1x128xf32> to vector<1x128xf32>
    %183 = vector.broadcast %182 : vector<1x128xf32> to vector<8x128xf32>
    %c1_97 = arith.constant 1 : index
    %c0_98 = arith.constant 0 : index
    %c0_99 = arith.constant 0 : index
    %184 = vector.load %arg14[%c1_97, %c0_98, %c0_99] : memref<2x8x128xf32, #tpu.memory_space<vmem>>, vector<1x8x128xf32>
    %185 = vector.shape_cast %184 : vector<1x8x128xf32> to vector<8x128xf32>
    %186 = vector.shape_cast %183 : vector<8x128xf32> to vector<1x8x128xf32>
    tpu.vector_store %arg14[%c1_97, %c0_98, %c0_99], %186 {strides = array<i32>} : memref<2x8x128xf32, #tpu.memory_space<vmem>>, vector<1x8x128xf32>,
    %187 = vector.extract_strided_slice %138 {offsets = [0, 0], sizes = [64, 64], strides = [1, 1]} : vector<128x128xf32> to vector<64x64xf32>
    %188 = vector.extract_strided_slice %138 {offsets = [0, 64], sizes = [64, 64], strides = [1, 1]} : vector<128x128xf32> to vector<64x64xf32>
    %189 = arith.addf %187, %188 : vector<64x64xf32>
    %c0_100 = arith.constant 0 : index
    %c0_101 = arith.constant 0 : index
    %190 = vector.load %arg15[%c0_100, %c0_101] : memref<64x64xf32, #tpu.memory_space<vmem>>, vector<64x64xf32>
    tpu.vector_store %arg15[%c0_100, %c0_101], %189 {strides = array<i32>} : memref<64x64xf32, #tpu.memory_space<vmem>>, vector<64x64xf32>,
    return
  }
  func.func @transform_0(%arg0: i32) -> (i32, i32) {
    %c0_i32 = arith.constant 0 : i32
    %c0_i32_0 = arith.constant 0 : i32
    %c0_i32_1 = arith.constant 0 : i32
    return %c0_i32, %c0_i32_0 : i32, i32
  }
  func.func @transform_1(%arg0: i32) -> (i32, i32) {
    %c0_i32 = arith.constant 0 : i32
    %c0_i32_0 = arith.constant 0 : i32
    %c0_i32_1 = arith.constant 0 : i32
    return %c0_i32, %c0_i32_0 : i32, i32
  }
  func.func @transform_2(%arg0: i32) -> (i32, i32) {
    %c0_i32 = arith.constant 0 : i32
    %c0_i32_0 = arith.constant 0 : i32
    %c0_i32_1 = arith.constant 0 : i32
    return %c0_i32, %c0_i32_0 : i32, i32
  }
  func.func @transform_3(%arg0: i32) -> (i32, i32) {
    %c0_i32 = arith.constant 0 : i32
    %c0_i32_0 = arith.constant 0 : i32
    %c0_i32_1 = arith.constant 0 : i32
    return %c0_i32, %c0_i32_0 : i32, i32
  }
  func.func @transform_4(%arg0: i32) -> (i32, i32) {
    %c0_i32 = arith.constant 0 : i32
    %c0_i32_0 = arith.constant 0 : i32
    %c0_i32_1 = arith.constant 0 : i32
    return %c0_i32, %c0_i32_0 : i32, i32
  }
  func.func @transform_5(%arg0: i32) -> (i32, i32) {
    %c0_i32 = arith.constant 0 : i32
    %c0_i32_0 = arith.constant 0 : i32
    %c0_i32_1 = arith.constant 0 : i32
    return %c0_i32, %c0_i32_0 : i32, i32
  }
  func.func @transform_6(%arg0: i32) -> (i32, i32) {
    %c0_i32 = arith.constant 0 : i32
    %c0_i32_0 = arith.constant 0 : i32
    %c0_i32_1 = arith.constant 0 : i32
    return %c0_i32, %c0_i32_0 : i32, i32
  }
  func.func @transform_7(%arg0: i32) -> (i32, i32, i32) {
    %c0_i32 = arith.constant 0 : i32
    %c0_i32_0 = arith.constant 0 : i32
    %c0_i32_1 = arith.constant 0 : i32
    %c0_i32_2 = arith.constant 0 : i32
    return %c0_i32, %c0_i32_0, %c0_i32_1 : i32, i32, i32
  }
  func.func @transform_8(%arg0: i32) -> (i32, i32, i32) {
    %c0_i32 = arith.constant 0 : i32
    %c0_i32_0 = arith.constant 0 : i32
    %c0_i32_1 = arith.constant 0 : i32
    %c0_i32_2 = arith.constant 0 : i32
    return %c0_i32, %c0_i32_0, %c0_i32_1 : i32, i32, i32
  }
  func.func @transform_9(%arg0: i32) -> (i32, i32) {
    %c0_i32 = arith.constant 0 : i32
    %c0_i32_0 = arith.constant 0 : i32
    %c0_i32_1 = arith.constant 0 : i32
    return %c0_i32, %c0_i32_0 : i32, i32
  }
  func.func @transform_10(%arg0: i32) -> (i32, i32) {
    %c0_i32 = arith.constant 0 : i32
    %c0_i32_0 = arith.constant 0 : i32
    %c0_i32_1 = arith.constant 0 : i32
    return %c0_i32, %c0_i32_0 : i32, i32
  }
  func.func @transform_11(%arg0: i32) -> (i32, i32) {
    %c0_i32 = arith.constant 0 : i32
    %c0_i32_0 = arith.constant 0 : i32
    %c0_i32_1 = arith.constant 0 : i32
    return %c0_i32, %c0_i32_0 : i32, i32
  }
  func.func @transform_12(%arg0: i32) -> (i32, i32, i32) {
    %c0_i32 = arith.constant 0 : i32
    %c0_i32_0 = arith.constant 0 : i32
    %c0_i32_1 = arith.constant 0 : i32
    %c0_i32_2 = arith.constant 0 : i32
    return %c0_i32, %c0_i32_0, %c0_i32_1 : i32, i32, i32
  }
  func.func @transform_13(%arg0: i32) -> (i32, i32, i32) {
    %c0_i32 = arith.constant 0 : i32
    %c0_i32_0 = arith.constant 0 : i32
    %c0_i32_1 = arith.constant 0 : i32
    %c0_i32_2 = arith.constant 0 : i32
    return %c0_i32, %c0_i32_0, %c0_i32_1 : i32, i32, i32
  }
  func.func @transform_14(%arg0: i32) -> (i32, i32) {
    %c0_i32 = arith.constant 0 : i32
    %c0_i32_0 = arith.constant 0 : i32
    %c0_i32_1 = arith.constant 0 : i32
    return %c0_i32, %c0_i32_0 : i32, i32
  }
}

</mosaic_0001>

<llo_original>
// kernel: neg.1
$region0: #{neg.1}
  #allocation2 [shape = 's32[1]{0}', space=sflag, size = 0x4, scoped, tag = 'scoped memory for neg.1']
  %s0 = inlined_call_operand.hbm [shape: f32[5,64,64], index: 0, kind: input, shape index: {}]
  %s1 = inlined_call_operand.vmem [shape: f32[5,64,64], index: 1, kind: output, shape index: {}]
  $region1: #{neg.1} parent=0
    #allocation0 [shape = 'u8[163840]{0}', space=vmem, size = 0x28000, scoped, tag = 'operand span for operand 0']
    #allocation1 [shape = 's32[1]{0}', space=sflag, size = 0x4, scoped, tag = 'scoped memory for neg.1']
    %2 = vsyncpa [#allocation1], 0
    %s4 = ssub.s32 5120, 5120
    %5 = vsyncadd [#allocation1], %s4
    %s6 = sshll.u32 [#allocation0], 4
    %s7 = int_to_ptr.vmem [resolvable:$true] %s6
    %12 = dma.hbm_to_vmem [thread:$0]  %s0, 5120, %s7, [#allocation1], 128, 128, 8
    %13 = dma.done [#allocation1], 5120
    %v14 = vld [vmem:[#allocation0] sm:$0xff]
    %15 = xla_tuple %v14
    %16 = xla_tuple %15
    %v17 = vxor.u32 %v14, 2147483648
    %18 = xla_tuple %v17
    %19 = vst [vmem:[%s1] sm:$0xff] %v17
    %s20 = scalar_lea.vmem [#allocation0], 64
    %v21 = vld [vmem:[%s20] sm:$0xff]
    %22 = xla_tuple %v21
    %23 = xla_tuple %22
    %v24 = vxor.u32 %v21, 2147483648
    %25 = xla_tuple %v24
    %s26 = scalar_lea.vmem %s1, 64
    %27 = vst [vmem:[%s26] sm:$0xff] %v24
    %s28 = scalar_lea.vmem [#allocation0], 128
    %v29 = vld [vmem:[%s28] sm:$0xff]
    %30 = xla_tuple %v29
    %31 = xla_tuple %30
    %v32 = vxor.u32 %v29, 2147483648
    %33 = xla_tuple %v32
    %s34 = scalar_lea.vmem %s1, 128
    %35 = vst [vmem:[%s34] sm:$0xff] %v32
    %s36 = scalar_lea.vmem [#allocation0], 192
    %v37 = vld [vmem:[%s36] sm:$0xff]
    %38 = xla_tuple %v37
    %39 = xla_tuple %38
    %v40 = vxor.u32 %v37, 2147483648
    %41 = xla_tuple %v40
    %s42 = scalar_lea.vmem %s1, 192
    %43 = vst [vmem:[%s42] sm:$0xff] %v40
    %s44 = scalar_lea.vmem [#allocation0], 256
    %v45 = vld [vmem:[%s44] sm:$0xff]
    %46 = xla_tuple %v45
    %47 = xla_tuple %46
    %v48 = vxor.u32 %v45, 2147483648
    %49 = xla_tuple %v48
    %s50 = scalar_lea.vmem %s1, 256
    %51 = vst [vmem:[%s50] sm:$0xff] %v48
    %s52 = scalar_lea.vmem [#allocation0], 8
    %v53 = vld [vmem:[%s52] sm:$0xff]
    %54 = xla_tuple %v53
    %55 = xla_tuple %54
    %v56 = vxor.u32 %v53, 2147483648
    %57 = xla_tuple %v56
    %s58 = scalar_lea.vmem %s1, 8
    %59 = vst [vmem:[%s58] sm:$0xff] %v56
    %s60 = scalar_lea.vmem [#allocation0], 72
    %v61 = vld [vmem:[%s60] sm:$0xff]
    %62 = xla_tuple %v61
    %63 = xla_tuple %62
    %v64 = vxor.u32 %v61, 2147483648
    %65 = xla_tuple %v64
    %s66 = scalar_lea.vmem %s1, 72
    %67 = vst [vmem:[%s66] sm:$0xff] %v64
    %s68 = scalar_lea.vmem [#allocation0], 136
    %v69 = vld [vmem:[%s68] sm:$0xff]
    %70 = xla_tuple %v69
    %71 = xla_tuple %70
    %v72 = vxor.u32 %v69, 2147483648
    %73 = xla_tuple %v72
    %s74 = scalar_lea.vmem %s1, 136
    %75 = vst [vmem:[%s74] sm:$0xff] %v72
    %s76 = scalar_lea.vmem [#allocation0], 200
    %v77 = vld [vmem:[%s76] sm:$0xff]
    %78 = xla_tuple %v77
    %79 = xla_tuple %78
    %v80 = vxor.u32 %v77, 2147483648
    %81 = xla_tuple %v80
    %s82 = scalar_lea.vmem %s1, 200
    %83 = vst [vmem:[%s82] sm:$0xff] %v80
    %s84 = scalar_lea.vmem [#allocation0], 264
    %v85 = vld [vmem:[%s84] sm:$0xff]
    %86 = xla_tuple %v85
    %87 = xla_tuple %86
    %v88 = vxor.u32 %v85, 2147483648
    %89 = xla_tuple %v88
    %s90 = scalar_lea.vmem %s1, 264
    %91 = vst [vmem:[%s90] sm:$0xff] %v88
    %s92 = scalar_lea.vmem [#allocation0], 16
    %v93 = vld [vmem:[%s92] sm:$0xff]
    %94 = xla_tuple %v93
    %95 = xla_tuple %94
    %v96 = vxor.u32 %v93, 2147483648
    %97 = xla_tuple %v96
    %s98 = scalar_lea.vmem %s1, 16
    %99 = vst [vmem:[%s98] sm:$0xff] %v96
    %s100 = scalar_lea.vmem [#allocation0], 80
    %v101 = vld [vmem:[%s100] sm:$0xff]
    %102 = xla_tuple %v101
    %103 = xla_tuple %102
    %v104 = vxor.u32 %v101, 2147483648
    %105 = xla_tuple %v104
    %s106 = scalar_lea.vmem %s1, 80
    %107 = vst [vmem:[%s106] sm:$0xff] %v104
    %s108 = scalar_lea.vmem [#allocation0], 144
    %v109 = vld [vmem:[%s108] sm:$0xff]
    %110 = xla_tuple %v109
    %111 = xla_tuple %110
    %v112 = vxor.u32 %v109, 2147483648
    %113 = xla_tuple %v112
    %s114 = scalar_lea.vmem %s1, 144
    %115 = vst [vmem:[%s114] sm:$0xff] %v112
    %s116 = scalar_lea.vmem [#allocation0], 208
    %v117 = vld [vmem:[%s116] sm:$0xff]
    %118 = xla_tuple %v117
    %119 = xla_tuple %118
    %v120 = vxor.u32 %v117, 2147483648
    %121 = xla_tuple %v120
    %s122 = scalar_lea.vmem %s1, 208
    %123 = vst [vmem:[%s122] sm:$0xff] %v120
    %s124 = scalar_lea.vmem [#allocation0], 272
    %v125 = vld [vmem:[%s124] sm:$0xff]
    %126 = xla_tuple %v125
    %127 = xla_tuple %126
    %v128 = vxor.u32 %v125, 2147483648
    %129 = xla_tuple %v128
    %s130 = scalar_lea.vmem %s1, 272
    %131 = vst [vmem:[%s130] sm:$0xff] %v128
    %s132 = scalar_lea.vmem [#allocation0], 24
    %v133 = vld [vmem:[%s132] sm:$0xff]
    %134 = xla_tuple %v133
    %135 = xla_tuple %134
    %v136 = vxor.u32 %v133, 2147483648
    %137 = xla_tuple %v136
    %s138 = scalar_lea.vmem %s1, 24
    %139 = vst [vmem:[%s138] sm:$0xff] %v136
    %s140 = scalar_lea.vmem [#allocation0], 88
    %v141 = vld [vmem:[%s140] sm:$0xff]
    %142 = xla_tuple %v141
    %143 = xla_tuple %142
    %v144 = vxor.u32 %v141, 2147483648
    %145 = xla_tuple %v144
    %s146 = scalar_lea.vmem %s1, 88
    %147 = vst [vmem:[%s146] sm:$0xff] %v144
    %s148 = scalar_lea.vmem [#allocation0], 152
    %v149 = vld [vmem:[%s148] sm:$0xff]
    %150 = xla_tuple %v149
    %151 = xla_tuple %150
    %v152 = vxor.u32 %v149, 2147483648
    %153 = xla_tuple %v152
    %s154 = scalar_lea.vmem %s1, 152
    %155 = vst [vmem:[%s154] sm:$0xff] %v152
    %s156 = scalar_lea.vmem [#allocation0], 216
    %v157 = vld [vmem:[%s156] sm:$0xff]
    %158 = xla_tuple %v157
    %159 = xla_tuple %158
    %v160 = vxor.u32 %v157, 2147483648
    %161 = xla_tuple %v160
    %s162 = scalar_lea.vmem %s1, 216
    %163 = vst [vmem:[%s162] sm:$0xff] %v160
    %s164 = scalar_lea.vmem [#allocation0], 280
    %v165 = vld [vmem:[%s164] sm:$0xff]
    %166 = xla_tuple %v165
    %167 = xla_tuple %166
    %v168 = vxor.u32 %v165, 2147483648
    %169 = xla_tuple %v168
    %s170 = scalar_lea.vmem %s1, 280
    %171 = vst [vmem:[%s170] sm:$0xff] %v168
    %s172 = scalar_lea.vmem [#allocation0], 32
    %v173 = vld [vmem:[%s172] sm:$0xff]
    %174 = xla_tuple %v173
    %175 = xla_tuple %174
    %v176 = vxor.u32 %v173, 2147483648
    %177 = xla_tuple %v176
    %s178 = scalar_lea.vmem %s1, 32
    %179 = vst [vmem:[%s178] sm:$0xff] %v176
    %s180 = scalar_lea.vmem [#allocation0], 96
    %v181 = vld [vmem:[%s180] sm:$0xff]
    %182 = xla_tuple %v181
    %183 = xla_tuple %182
    %v184 = vxor.u32 %v181, 2147483648
    %185 = xla_tuple %v184
    %s186 = scalar_lea.vmem %s1, 96
    %187 = vst [vmem:[%s186] sm:$0xff] %v184
    %s188 = scalar_lea.vmem [#allocation0], 160
    %v189 = vld [vmem:[%s188] sm:$0xff]
    %190 = xla_tuple %v189
    %191 = xla_tuple %190
    %v192 = vxor.u32 %v189, 2147483648
    %193 = xla_tuple %v192
    %s194 = scalar_lea.vmem %s1, 160
    %195 = vst [vmem:[%s194] sm:$0xff] %v192
    %s196 = scalar_lea.vmem [#allocation0], 224
    %v197 = vld [vmem:[%s196] sm:$0xff]
    %198 = xla_tuple %v197
    %199 = xla_tuple %198
    %v200 = vxor.u32 %v197, 2147483648
    %201 = xla_tuple %v200
    %s202 = scalar_lea.vmem %s1, 224
    %203 = vst [vmem:[%s202] sm:$0xff] %v200
    %s204 = scalar_lea.vmem [#allocation0], 288
    %v205 = vld [vmem:[%s204] sm:$0xff]
    %206 = xla_tuple %v205
    %207 = xla_tuple %206
    %v208 = vxor.u32 %v205, 2147483648
    %209 = xla_tuple %v208
    %s210 = scalar_lea.vmem %s1, 288
    %211 = vst [vmem:[%s210] sm:$0xff] %v208
    %s212 = scalar_lea.vmem [#allocation0], 40
    %v213 = vld [vmem:[%s212] sm:$0xff]
    %214 = xla_tuple %v213
    %215 = xla_tuple %214
    %v216 = vxor.u32 %v213, 2147483648
    %217 = xla_tuple %v216
    %s218 = scalar_lea.vmem %s1, 40
    %219 = vst [vmem:[%s218] sm:$0xff] %v216
    %s220 = scalar_lea.vmem [#allocation0], 104
    %v221 = vld [vmem:[%s220] sm:$0xff]
    %222 = xla_tuple %v221
    %223 = xla_tuple %222
    %v224 = vxor.u32 %v221, 2147483648
    %225 = xla_tuple %v224
    %s226 = scalar_lea.vmem %s1, 104
    %227 = vst [vmem:[%s226] sm:$0xff] %v224
    %s228 = scalar_lea.vmem [#allocation0], 168
    %v229 = vld [vmem:[%s228] sm:$0xff]
    %230 = xla_tuple %v229
    %231 = xla_tuple %230
    %v232 = vxor.u32 %v229, 2147483648
    %233 = xla_tuple %v232
    %s234 = scalar_lea.vmem %s1, 168
    %235 = vst [vmem:[%s234] sm:$0xff] %v232
    %s236 = scalar_lea.vmem [#allocation0], 232
    %v237 = vld [vmem:[%s236] sm:$0xff]
    %238 = xla_tuple %v237
    %239 = xla_tuple %238
    %v240 = vxor.u32 %v237, 2147483648
    %241 = xla_tuple %v240
    %s242 = scalar_lea.vmem %s1, 232
    %243 = vst [vmem:[%s242] sm:$0xff] %v240
    %s244 = scalar_lea.vmem [#allocation0], 296
    %v245 = vld [vmem:[%s244] sm:$0xff]
    %246 = xla_tuple %v245
    %247 = xla_tuple %246
    %v248 = vxor.u32 %v245, 2147483648
    %249 = xla_tuple %v248
    %s250 = scalar_lea.vmem %s1, 296
    %251 = vst [vmem:[%s250] sm:$0xff] %v248
    %s252 = scalar_lea.vmem [#allocation0], 48
    %v253 = vld [vmem:[%s252] sm:$0xff]
    %254 = xla_tuple %v253
    %255 = xla_tuple %254
    %v256 = vxor.u32 %v253, 2147483648
    %257 = xla_tuple %v256
    %s258 = scalar_lea.vmem %s1, 48
    %259 = vst [vmem:[%s258] sm:$0xff] %v256
    %s260 = scalar_lea.vmem [#allocation0], 112
    %v261 = vld [vmem:[%s260] sm:$0xff]
    %262 = xla_tuple %v261
    %263 = xla_tuple %262
    %v264 = vxor.u32 %v261, 2147483648
    %265 = xla_tuple %v264
    %s266 = scalar_lea.vmem %s1, 112
    %267 = vst [vmem:[%s266] sm:$0xff] %v264
    %s268 = scalar_lea.vmem [#allocation0], 176
    %v269 = vld [vmem:[%s268] sm:$0xff]
    %270 = xla_tuple %v269
    %271 = xla_tuple %270
    %v272 = vxor.u32 %v269, 2147483648
    %273 = xla_tuple %v272
    %s274 = scalar_lea.vmem %s1, 176
    %275 = vst [vmem:[%s274] sm:$0xff] %v272
    %s276 = scalar_lea.vmem [#allocation0], 240
    %v277 = vld [vmem:[%s276] sm:$0xff]
    %278 = xla_tuple %v277
    %279 = xla_tuple %278
    %v280 = vxor.u32 %v277, 2147483648
    %281 = xla_tuple %v280
    %s282 = scalar_lea.vmem %s1, 240
    %283 = vst [vmem:[%s282] sm:$0xff] %v280
    %s284 = scalar_lea.vmem [#allocation0], 304
    %v285 = vld [vmem:[%s284] sm:$0xff]
    %286 = xla_tuple %v285
    %287 = xla_tuple %286
    %v288 = vxor.u32 %v285, 2147483648
    %289 = xla_tuple %v288
    %s290 = scalar_lea.vmem %s1, 304
    %291 = vst [vmem:[%s290] sm:$0xff] %v288
    %s292 = scalar_lea.vmem [#allocation0], 56
    %v293 = vld [vmem:[%s292] sm:$0xff]
    %294 = xla_tuple %v293
    %295 = xla_tuple %294
    %v296 = vxor.u32 %v293, 2147483648
    %297 = xla_tuple %v296
    %s298 = scalar_lea.vmem %s1, 56
    %299 = vst [vmem:[%s298] sm:$0xff] %v296
    %s300 = scalar_lea.vmem [#allocation0], 120
    %v301 = vld [vmem:[%s300] sm:$0xff]
    %302 = xla_tuple %v301
    %303 = xla_tuple %302
    %v304 = vxor.u32 %v301, 2147483648
    %305 = xla_tuple %v304
    %s306 = scalar_lea.vmem %s1, 120
    %307 = vst [vmem:[%s306] sm:$0xff] %v304
    %s308 = scalar_lea.vmem [#allocation0], 184
    %v309 = vld [vmem:[%s308] sm:$0xff]
    %310 = xla_tuple %v309
    %311 = xla_tuple %310
    %v312 = vxor.u32 %v309, 2147483648
    %313 = xla_tuple %v312
    %s314 = scalar_lea.vmem %s1, 184
    %315 = vst [vmem:[%s314] sm:$0xff] %v312
    %s316 = scalar_lea.vmem [#allocation0], 248
    %v317 = vld [vmem:[%s316] sm:$0xff]
    %318 = xla_tuple %v317
    %319 = xla_tuple %318
    %v320 = vxor.u32 %v317, 2147483648
    %321 = xla_tuple %v320
    %s322 = scalar_lea.vmem %s1, 248
    %323 = vst [vmem:[%s322] sm:$0xff] %v320
    %s324 = scalar_lea.vmem [#allocation0], 312
    %v325 = vld [vmem:[%s324] sm:$0xff]
    %326 = xla_tuple %v325
    %327 = xla_tuple %326
    %v328 = vxor.u32 %v325, 2147483648
    %329 = xla_tuple %v328
    %s330 = scalar_lea.vmem %s1, 312
    %331 = vst [vmem:[%s330] sm:$0xff] %v328
    %332 = vsyncpa [#allocation1], 1

// kernel: optical_network.1
$region0: #{optical_network.1}
  #allocation0 [shape = 'u32[]', space=smem, size = 0x4, offset = 0x4, fixed_abs, tag = 'smem constant byte address 0x4 - core index']
  #allocation1 [shape = 'u32[144,128]{1,0:T(1,128)}', space=vmem, size = 0x12000, scoped, tag = 'internal scratch']
  %s0 = inlined_call_operand.vmem [shape: f32[128,128], index: 0, kind: input, shape index: {}]
  %s1 = inlined_call_operand.vmem [shape: f32[256,128], index: 1, kind: input, shape index: {}]
  %s2 = inlined_call_operand.vmem [shape: f32[256,128], index: 2, kind: input, shape index: {}]
  %s3 = inlined_call_operand.vmem [shape: f32[128,128], index: 3, kind: input, shape index: {}]
  %s4 = inlined_call_operand.vmem [shape: f32[128,128], index: 4, kind: input, shape index: {}]
  %s5 = inlined_call_operand.vmem [shape: f32[128,128], index: 5, kind: input, shape index: {}]
  %s6 = inlined_call_operand.vmem [shape: f32[128,128], index: 6, kind: input, shape index: {}]
  %s7 = inlined_call_operand.vmem [shape: f32[5,128,128], index: 7, kind: input, shape index: {}]
  %s8 = inlined_call_operand.vmem [shape: f32[5,128,128], index: 8, kind: input, shape index: {}]
  %s9 = inlined_call_operand.vmem [shape: f32[128,128], index: 9, kind: input, shape index: {}]
  %s10 = inlined_call_operand.vmem [shape: f32[128,128], index: 10, kind: input, shape index: {}]
  %s11 = inlined_call_operand.vmem [shape: f32[128,128], index: 11, kind: input, shape index: {}]
  %s12 = inlined_call_operand.hbm [shape: f32[2,8,128], index: 12, kind: output, shape index: {0}]
  %s13 = inlined_call_operand.hbm [shape: f32[2,8,128], index: 13, kind: output, shape index: {1}]
  %s14 = inlined_call_operand.hbm [shape: f32[64,64], index: 14, kind: output, shape index: {2}]
  %15 = xla_tuple %s12, %s13, %s14
  %s16 = sld [smem:[#allocation0]]
  $region74: #{optical_network.1} parent=0
    _
  %s18 = ssub.s32 1, %s16
  %s19 = scalar_select 0, %s18, %s16
  $region1: #{optical_network.1} parent=0
    #allocation2 [shape = 'u8[8192]{0}', space=vmem, size = 0x2000, scoped, tag = 'output window, operand 0, single buffered']
    #allocation3 [shape = 's32[1]{0}', space=sflag, size = 0x4, scoped, tag = 'scoped memory for optical_network.1']
    #allocation4 [shape = 'u8[8192]{0}', space=vmem, size = 0x2000, scoped, tag = 'output window, operand 1, single buffered']
    #allocation5 [shape = 's32[1]{0}', space=sflag, size = 0x4, scoped, tag = 'scoped memory for optical_network.1']
    #allocation6 [shape = 'u8[32768]{0}', space=vmem, size = 0x8000, scoped, tag = 'output window, operand 2, single buffered']
    %20 = vsyncpa [#allocation3], 0
    %21 = vsyncpa [#allocation5], 0
    // Predicated region
    $region2: #{optical_network.1} parent=1 // pred_check
      _
    $region3: #{optical_network.1} parent=1 // pred_check_branch
      %23 = sbr.rel (0) target = $region5
    $region4: #{optical_network.1} parent=1 // pred_region
      _
    $region5: #{optical_network.1} parent=1 // pred_fallthru
      _
    // Predicated region
    $region6: #{optical_network.1} parent=1 // pred_check
      _
    $region7: #{optical_network.1} parent=1 // pred_check_branch
      %25 = sbr.rel (0) target = $region9
    $region8: #{optical_network.1} parent=1 // pred_region
      _
    $region9: #{optical_network.1} parent=1 // pred_fallthru
      _
    // Predicated region
    $region10: #{optical_network.1} parent=1 // pred_check
      _
    $region11: #{optical_network.1} parent=1 // pred_check_branch
      %27 = sbr.rel (0) target = $region13
    $region12: #{optical_network.1} parent=1 // pred_region
      _
    $region13: #{optical_network.1} parent=1 // pred_fallthru
      _
    // Predicated region
    $region14: #{optical_network.1} parent=1 // pred_check
      _
    $region15: #{optical_network.1} parent=1 // pred_check_branch
      %29 = sbr.rel (0) target = $region17
    $region16: #{optical_network.1} parent=1 // pred_region
      _
    $region17: #{optical_network.1} parent=1 // pred_fallthru
      _
    // Predicated region
    $region18: #{optical_network.1} parent=1 // pred_check
      _
    $region19: #{optical_network.1} parent=1 // pred_check_branch
      %31 = sbr.rel (0) target = $region21
    $region20: #{optical_network.1} parent=1 // pred_region
      _
    $region21: #{optical_network.1} parent=1 // pred_fallthru
      _
    // Predicated region
    $region22: #{optical_network.1} parent=1 // pred_check
      _
    $region23: #{optical_network.1} parent=1 // pred_check_branch
      %33 = sbr.rel (0) target = $region25
    $region24: #{optical_network.1} parent=1 // pred_region
      _
    $region25: #{optical_network.1} parent=1 // pred_fallthru
      _
    // Predicated region
    $region26: #{optical_network.1} parent=1 // pred_check
      _
    $region27: #{optical_network.1} parent=1 // pred_check_branch
      %35 = sbr.rel (0) target = $region29
    $region28: #{optical_network.1} parent=1 // pred_region
      _
    $region29: #{optical_network.1} parent=1 // pred_fallthru
      _
    // Predicated region
    $region30: #{optical_network.1} parent=1 // pred_check
      _
    $region31: #{optical_network.1} parent=1 // pred_check_branch
      %37 = sbr.rel (0) target = $region33
    $region32: #{optical_network.1} parent=1 // pred_region
      _
    $region33: #{optical_network.1} parent=1 // pred_fallthru
      _
    // Predicated region
    $region34: #{optical_network.1} parent=1 // pred_check
      _
    $region35: #{optical_network.1} parent=1 // pred_check_branch
      %39 = sbr.rel (0) target = $region37
    $region36: #{optical_network.1} parent=1 // pred_region
      _
    $region37: #{optical_network.1} parent=1 // pred_fallthru
      _
    // Predicated region
    $region38: #{optical_network.1} parent=1 // pred_check
      _
    $region39: #{optical_network.1} parent=1 // pred_check_branch
      %41 = sbr.rel (0) target = $region41
    $region40: #{optical_network.1} parent=1 // pred_region
      _
    $region41: #{optical_network.1} parent=1 // pred_fallthru
      _
    // Predicated region
    $region42: #{optical_network.1} parent=1 // pred_check
      _
    $region43: #{optical_network.1} parent=1 // pred_check_branch
      %43 = sbr.rel (0) target = $region45
    $region44: #{optical_network.1} parent=1 // pred_region
      _
    $region45: #{optical_network.1} parent=1 // pred_fallthru
      _
    // Predicated region
    $region46: #{optical_network.1} parent=1 // pred_check
      _
    $region47: #{optical_network.1} parent=1 // pred_check_branch
      %45 = sbr.rel (0) target = $region49
    $region48: #{optical_network.1} parent=1 // pred_region
      _
    $region49: #{optical_network.1} parent=1 // pred_fallthru
      _
    %v46 = vld [vmem:[%s0] sm:$0xff]
    %v47 = vld [vmem:[%s0 + $0x8] sm:$0xff]
    %v48 = vld [vmem:[%s0 + $0x10] sm:$0xff]
    %v49 = vld [vmem:[%s0 + $0x18] sm:$0xff]
    %v50 = vld [vmem:[%s0 + $0x20] sm:$0xff]
    %v51 = vld [vmem:[%s0 + $0x28] sm:$0xff]
    %v52 = vld [vmem:[%s0 + $0x30] sm:$0xff]
    %v53 = vld [vmem:[%s0 + $0x38] sm:$0xff]
    %v54 = vld [vmem:[%s0 + $0x40] sm:$0xff]
    %v55 = vld [vmem:[%s0 + $0x48] sm:$0xff]
    %v56 = vld [vmem:[%s0 + $0x50] sm:$0xff]
    %v57 = vld [vmem:[%s0 + $0x58] sm:$0xff]
    %v58 = vld [vmem:[%s0 + $0x60] sm:$0xff]
    %v59 = vld [vmem:[%s0 + $0x68] sm:$0xff]
    %v60 = vld [vmem:[%s0 + $0x70] sm:$0xff]
    %v61 = vld [vmem:[%s0 + $0x78] sm:$0xff]
    %v62 = vld [vmem:[%s1] sm:$0xff]
    %v63 = vld [vmem:[%s1 + $0x8] sm:$0xff]
    %v64 = vld [vmem:[%s1 + $0x10] sm:$0xff]
    %v65 = vld [vmem:[%s1 + $0x18] sm:$0xff]
    %v66 = vld [vmem:[%s1 + $0x20] sm:$0xff]
    %v67 = vld [vmem:[%s1 + $0x28] sm:$0xff]
    %v68 = vld [vmem:[%s1 + $0x30] sm:$0xff]
    %v69 = vld [vmem:[%s1 + $0x38] sm:$0xff]
    %v70 = vld [vmem:[%s1 + $0x40] sm:$0xff]
    %v71 = vld [vmem:[%s1 + $0x48] sm:$0xff]
    %v72 = vld [vmem:[%s1 + $0x50] sm:$0xff]
    %v73 = vld [vmem:[%s1 + $0x58] sm:$0xff]
    %v74 = vld [vmem:[%s1 + $0x60] sm:$0xff]
    %v75 = vld [vmem:[%s1 + $0x68] sm:$0xff]
    %v76 = vld [vmem:[%s1 + $0x70] sm:$0xff]
    %v77 = vld [vmem:[%s1 + $0x78] sm:$0xff]
    %v78 = vld [vmem:[%s1 + $0x80] sm:$0xff]
    %v79 = vld [vmem:[%s1 + $0x88] sm:$0xff]
    %v80 = vld [vmem:[%s1 + $0x90] sm:$0xff]
    %v81 = vld [vmem:[%s1 + $0x98] sm:$0xff]
    %v82 = vld [vmem:[%s1 + $0xa0] sm:$0xff]
    %v83 = vld [vmem:[%s1 + $0xa8] sm:$0xff]
    %v84 = vld [vmem:[%s1 + $0xb0] sm:$0xff]
    %v85 = vld [vmem:[%s1 + $0xb8] sm:$0xff]
    %v86 = vld [vmem:[%s1 + $0xc0] sm:$0xff]
    %v87 = vld [vmem:[%s1 + $0xc8] sm:$0xff]
    %v88 = vld [vmem:[%s1 + $0xd0] sm:$0xff]
    %v89 = vld [vmem:[%s1 + $0xd8] sm:$0xff]
    %v90 = vld [vmem:[%s1 + $0xe0] sm:$0xff]
    %v91 = vld [vmem:[%s1 + $0xe8] sm:$0xff]
    %v92 = vld [vmem:[%s1 + $0xf0] sm:$0xff]
    %v93 = vld [vmem:[%s1 + $0xf8] sm:$0xff]
    %v94 = vld [vmem:[%s2] sm:$0xff]
    %v95 = vld [vmem:[%s2 + $0x8] sm:$0xff]
    %v96 = vld [vmem:[%s2 + $0x10] sm:$0xff]
    %v97 = vld [vmem:[%s2 + $0x18] sm:$0xff]
    %v98 = vld [vmem:[%s2 + $0x20] sm:$0xff]
    %v99 = vld [vmem:[%s2 + $0x28] sm:$0xff]
    %v100 = vld [vmem:[%s2 + $0x30] sm:$0xff]
    %v101 = vld [vmem:[%s2 + $0x38] sm:$0xff]
    %v102 = vld [vmem:[%s2 + $0x40] sm:$0xff]
    %v103 = vld [vmem:[%s2 + $0x48] sm:$0xff]
    %v104 = vld [vmem:[%s2 + $0x50] sm:$0xff]
    %v105 = vld [vmem:[%s2 + $0x58] sm:$0xff]
    %v106 = vld [vmem:[%s2 + $0x60] sm:$0xff]
    %v107 = vld [vmem:[%s2 + $0x68] sm:$0xff]
    %v108 = vld [vmem:[%s2 + $0x70] sm:$0xff]
    %v109 = vld [vmem:[%s2 + $0x78] sm:$0xff]
    %v110 = vld [vmem:[%s2 + $0x80] sm:$0xff]
    %v111 = vld [vmem:[%s2 + $0x88] sm:$0xff]
    %v112 = vld [vmem:[%s2 + $0x90] sm:$0xff]
    %v113 = vld [vmem:[%s2 + $0x98] sm:$0xff]
    %v114 = vld [vmem:[%s2 + $0xa0] sm:$0xff]
    %v115 = vld [vmem:[%s2 + $0xa8] sm:$0xff]
    %v116 = vld [vmem:[%s2 + $0xb0] sm:$0xff]
    %v117 = vld [vmem:[%s2 + $0xb8] sm:$0xff]
    %v118 = vld [vmem:[%s2 + $0xc0] sm:$0xff]
    %v119 = vld [vmem:[%s2 + $0xc8] sm:$0xff]
    %v120 = vld [vmem:[%s2 + $0xd0] sm:$0xff]
    %v121 = vld [vmem:[%s2 + $0xd8] sm:$0xff]
    %v122 = vld [vmem:[%s2 + $0xe0] sm:$0xff]
    %v123 = vld [vmem:[%s2 + $0xe8] sm:$0xff]
    %v124 = vld [vmem:[%s2 + $0xf0] sm:$0xff]
    %v125 = vld [vmem:[%s2 + $0xf8] sm:$0xff]
    %v126 = vld [vmem:[%s3] sm:$0xff]
    %v127 = vld [vmem:[%s3 + $0x8] sm:$0xff]
    %v128 = vld [vmem:[%s3 + $0x10] sm:$0xff]
    %v129 = vld [vmem:[%s3 + $0x18] sm:$0xff]
    %v130 = vld [vmem:[%s3 + $0x20] sm:$0xff]
    %v131 = vld [vmem:[%s3 + $0x28] sm:$0xff]
    %v132 = vld [vmem:[%s3 + $0x30] sm:$0xff]
    %v133 = vld [vmem:[%s3 + $0x38] sm:$0xff]
    %v134 = vld [vmem:[%s3 + $0x40] sm:$0xff]
    %v135 = vld [vmem:[%s3 + $0x48] sm:$0xff]
    %v136 = vld [vmem:[%s3 + $0x50] sm:$0xff]
    %v137 = vld [vmem:[%s3 + $0x58] sm:$0xff]
    %v138 = vld [vmem:[%s3 + $0x60] sm:$0xff]
    %v139 = vld [vmem:[%s3 + $0x68] sm:$0xff]
    %v140 = vld [vmem:[%s3 + $0x70] sm:$0xff]
    %v141 = vld [vmem:[%s3 + $0x78] sm:$0xff]
    %v142 = vld [vmem:[%s4] sm:$0xff]
    %v143 = vld [vmem:[%s4 + $0x8] sm:$0xff]
    %v144 = vld [vmem:[%s4 + $0x10] sm:$0xff]
    %v145 = vld [vmem:[%s4 + $0x18] sm:$0xff]
    %v146 = vld [vmem:[%s4 + $0x20] sm:$0xff]
    %v147 = vld [vmem:[%s4 + $0x28] sm:$0xff]
    %v148 = vld [vmem:[%s4 + $0x30] sm:$0xff]
    %v149 = vld [vmem:[%s4 + $0x38] sm:$0xff]
    %v150 = vld [vmem:[%s4 + $0x40] sm:$0xff]
    %v151 = vld [vmem:[%s4 + $0x48] sm:$0xff]
    %v152 = vld [vmem:[%s4 + $0x50] sm:$0xff]
    %v153 = vld [vmem:[%s4 + $0x58] sm:$0xff]
    %v154 = vld [vmem:[%s4 + $0x60] sm:$0xff]
    %v155 = vld [vmem:[%s4 + $0x68] sm:$0xff]
    %v156 = vld [vmem:[%s4 + $0x70] sm:$0xff]
    %v157 = vld [vmem:[%s4 + $0x78] sm:$0xff]
    %v158 = vld [vmem:[%s5] sm:$0xff]
    %v159 = vld [vmem:[%s5 + $0x8] sm:$0xff]
    %v160 = vld [vmem:[%s5 + $0x10] sm:$0xff]
    %v161 = vld [vmem:[%s5 + $0x18] sm:$0xff]
    %v162 = vld [vmem:[%s5 + $0x20] sm:$0xff]
    %v163 = vld [vmem:[%s5 + $0x28] sm:$0xff]
    %v164 = vld [vmem:[%s5 + $0x30] sm:$0xff]
    %v165 = vld [vmem:[%s5 + $0x38] sm:$0xff]
    %v166 = vld [vmem:[%s5 + $0x40] sm:$0xff]
    %v167 = vld [vmem:[%s5 + $0x48] sm:$0xff]
    %v168 = vld [vmem:[%s5 + $0x50] sm:$0xff]
    %v169 = vld [vmem:[%s5 + $0x58] sm:$0xff]
    %v170 = vld [vmem:[%s5 + $0x60] sm:$0xff]
    %v171 = vld [vmem:[%s5 + $0x68] sm:$0xff]
    %v172 = vld [vmem:[%s5 + $0x70] sm:$0xff]
    %v173 = vld [vmem:[%s5 + $0x78] sm:$0xff]
    %v174 = vld [vmem:[%s6] sm:$0xff]
    %v175 = vld [vmem:[%s6 + $0x8] sm:$0xff]
    %v176 = vld [vmem:[%s6 + $0x10] sm:$0xff]
    %v177 = vld [vmem:[%s6 + $0x18] sm:$0xff]
    %v178 = vld [vmem:[%s6 + $0x20] sm:$0xff]
    %v179 = vld [vmem:[%s6 + $0x28] sm:$0xff]
    %v180 = vld [vmem:[%s6 + $0x30] sm:$0xff]
    %v181 = vld [vmem:[%s6 + $0x38] sm:$0xff]
    %v182 = vld [vmem:[%s6 + $0x40] sm:$0xff]
    %v183 = vld [vmem:[%s6 + $0x48] sm:$0xff]
    %v184 = vld [vmem:[%s6 + $0x50] sm:$0xff]
    %v185 = vld [vmem:[%s6 + $0x58] sm:$0xff]
    %v186 = vld [vmem:[%s6 + $0x60] sm:$0xff]
    %v187 = vld [vmem:[%s6 + $0x68] sm:$0xff]
    %v188 = vld [vmem:[%s6 + $0x70] sm:$0xff]
    %v189 = vld [vmem:[%s6 + $0x78] sm:$0xff]
    %v190 = vld [vmem:[%s9] sm:$0xff]
    %v191 = vld [vmem:[%s9 + $0x8] sm:$0xff]
    %v192 = vld [vmem:[%s9 + $0x10] sm:$0xff]
    %v193 = vld [vmem:[%s9 + $0x18] sm:$0xff]
    %v194 = vld [vmem:[%s9 + $0x20] sm:$0xff]
    %v195 = vld [vmem:[%s9 + $0x28] sm:$0xff]
    %v196 = vld [vmem:[%s9 + $0x30] sm:$0xff]
    %v197 = vld [vmem:[%s9 + $0x38] sm:$0xff]
    %v198 = vld [vmem:[%s9 + $0x40] sm:$0xff]
    %v199 = vld [vmem:[%s9 + $0x48] sm:$0xff]
    %v200 = vld [vmem:[%s9 + $0x50] sm:$0xff]
    %v201 = vld [vmem:[%s9 + $0x58] sm:$0xff]
    %v202 = vld [vmem:[%s9 + $0x60] sm:$0xff]
    %v203 = vld [vmem:[%s9 + $0x68] sm:$0xff]
    %v204 = vld [vmem:[%s9 + $0x70] sm:$0xff]
    %v205 = vld [vmem:[%s9 + $0x78] sm:$0xff]
    %206 = vmatprep.subr.mxu0 0.0
    %207 = vmatpush1.msra.mxu0 %v61
    %208 = vmatprep.subr.mxu0 0.0
    %209 = vmatpush1.msra.mxu0 %v60
    %210 = vmatprep.subr.mxu0 0.0
    %211 = vmatpush1.msra.mxu0 %v59
    %212 = vmatprep.subr.mxu0 0.0
    %213 = vmatpush1.msra.mxu0 %v58
    %214 = vmatprep.subr.mxu0 0.0
    %215 = vmatpush1.msra.mxu0 %v57
    %216 = vmatprep.subr.mxu0 0.0
    %217 = vmatpush1.msra.mxu0 %v56
    %218 = vmatprep.subr.mxu0 0.0
    %219 = vmatpush1.msra.mxu0 %v55
    %220 = vmatprep.subr.mxu0 0.0
    %221 = vmatpush1.msra.mxu0 %v54
    %222 = vmatprep.subr.mxu0 0.0
    %223 = vmatpush1.msra.mxu0 %v53
    %224 = vmatprep.subr.mxu0 0.0
    %225 = vmatpush1.msra.mxu0 %v52
    %226 = vmatprep.subr.mxu0 0.0
    %227 = vmatpush1.msra.mxu0 %v51
    %228 = vmatprep.subr.mxu0 0.0
    %229 = vmatpush1.msra.mxu0 %v50
    %230 = vmatprep.subr.mxu0 0.0
    %231 = vmatpush1.msra.mxu0 %v49
    %232 = vmatprep.subr.mxu0 0.0
    %233 = vmatpush1.msra.mxu0 %v48
    %234 = vmatprep.subr.mxu0 0.0
    %235 = vmatpush1.msra.mxu0 %v47
    %236 = vmatprep.subr.mxu0 0.0
    %237 = vmatpush1.msra.mxu0 %v46
    %238 = vmatprep.subr.mxu0 0.0
    %239 = vmatpush2.msra.mxu0 0.0
    %240 = vmatprep.subr.mxu0 0.0
    %241 = vmatpush2.msra.mxu0 0.0
    %242 = vmatprep.subr.mxu0 0.0
    %243 = vmatpush2.msra.mxu0 0.0
    %244 = vmatprep.subr.mxu0 0.0
    %245 = vmatpush2.msra.mxu0 0.0
    %246 = vmatprep.subr.mxu0 0.0
    %247 = vmatpush2.msra.mxu0 0.0
    %248 = vmatprep.subr.mxu0 0.0
    %249 = vmatpush2.msra.mxu0 0.0
    %250 = vmatprep.subr.mxu0 0.0
    %251 = vmatpush2.msra.mxu0 0.0
    %252 = vmatprep.subr.mxu0 0.0
    %253 = vmatpush2.msra.mxu0 0.0
    %254 = vmatprep.subr.mxu0 0.0
    %255 = vmatpush2.msra.mxu0 0.0
    %256 = vmatprep.subr.mxu0 0.0
    %257 = vmatpush2.msra.mxu0 0.0
    %258 = vmatprep.subr.mxu0 0.0
    %259 = vmatpush2.msra.mxu0 0.0
    %260 = vmatprep.subr.mxu0 0.0
    %261 = vmatpush2.msra.mxu0 0.0
    %262 = vmatprep.subr.mxu0 0.0
    %263 = vmatpush2.msra.mxu0 0.0
    %264 = vmatprep.subr.mxu0 0.0
    %265 = vmatpush2.msra.mxu0 0.0
    %266 = vmatprep.subr.mxu0 0.0
    %267 = vmatpush2.msra.mxu0 0.0
    %268 = vmatprep.subr.mxu0 0.0
    %269 = vmatpush2.msra.mxu0 0.0
    %270 = vmatprep.mubr.f32.mxu0 0.0
    %271 = vmatmul.mubr.f32.gmra.mxu0 %v62
    %v272 = vpop.f32.mrf.mxu0
    %v273 = vadd.f32 0.0, %v272
    %v274 = vpop.f32.mrf.mxu0
    %275 = vmatprep.mubr.f32.mxu0 0.0
    %276 = vmatmul.mubr.f32.gmra.mxu0 %v63
    %v277 = vpop.f32.mrf.mxu0
    %v278 = vadd.f32 0.0, %v277
    %v279 = vpop.f32.mrf.mxu0
    %280 = vmatprep.mubr.f32.mxu0 0.0
    %281 = vmatmul.mubr.f32.gmra.mxu0 %v64
    %v282 = vpop.f32.mrf.mxu0
    %v283 = vadd.f32 0.0, %v282
    %v284 = vpop.f32.mrf.mxu0
    %285 = vmatprep.mubr.f32.mxu0 0.0
    %286 = vmatmul.mubr.f32.gmra.mxu0 %v65
    %v287 = vpop.f32.mrf.mxu0
    %v288 = vadd.f32 0.0, %v287
    %v289 = vpop.f32.mrf.mxu0
    %290 = vmatprep.mubr.f32.mxu0 0.0
    %291 = vmatmul.mubr.f32.gmra.mxu0 %v66
    %v292 = vpop.f32.mrf.mxu0
    %v293 = vadd.f32 0.0, %v292
    %v294 = vpop.f32.mrf.mxu0
    %295 = vmatprep.mubr.f32.mxu0 0.0
    %296 = vmatmul.mubr.f32.gmra.mxu0 %v67
    %v297 = vpop.f32.mrf.mxu0
    %v298 = vadd.f32 0.0, %v297
    %v299 = vpop.f32.mrf.mxu0
    %300 = vmatprep.mubr.f32.mxu0 0.0
    %301 = vmatmul.mubr.f32.gmra.mxu0 %v68
    %v302 = vpop.f32.mrf.mxu0
    %v303 = vadd.f32 0.0, %v302
    %v304 = vpop.f32.mrf.mxu0
    %305 = vmatprep.mubr.f32.mxu0 0.0
    %306 = vmatmul.mubr.f32.gmra.mxu0 %v69
    %v307 = vpop.f32.mrf.mxu0
    %v308 = vadd.f32 0.0, %v307
    %v309 = vpop.f32.mrf.mxu0
    %310 = vmatprep.mubr.f32.mxu0 0.0
    %311 = vmatmul.mubr.f32.gmra.mxu0 %v70
    %v312 = vpop.f32.mrf.mxu0
    %v313 = vadd.f32 0.0, %v312
    %v314 = vpop.f32.mrf.mxu0
    %315 = vmatprep.mubr.f32.mxu0 0.0
    %316 = vmatmul.mubr.f32.gmra.mxu0 %v71
    %v317 = vpop.f32.mrf.mxu0
    %v318 = vadd.f32 0.0, %v317
    %v319 = vpop.f32.mrf.mxu0
    %320 = vmatprep.mubr.f32.mxu0 0.0
    %321 = vmatmul.mubr.f32.gmra.mxu0 %v72
    %v322 = vpop.f32.mrf.mxu0
    %v323 = vadd.f32 0.0, %v322
    %v324 = vpop.f32.mrf.mxu0
    %325 = vmatprep.mubr.f32.mxu0 0.0
    %326 = vmatmul.mubr.f32.gmra.mxu0 %v73
    %v327 = vpop.f32.mrf.mxu0
    %v328 = vadd.f32 0.0, %v327
    %v329 = vpop.f32.mrf.mxu0
    %330 = vmatprep.mubr.f32.mxu0 0.0
    %331 = vmatmul.mubr.f32.gmra.mxu0 %v74
    %v332 = vpop.f32.mrf.mxu0
    %v333 = vadd.f32 0.0, %v332
    %v334 = vpop.f32.mrf.mxu0
    %335 = vmatprep.mubr.f32.mxu0 0.0
    %336 = vmatmul.mubr.f32.gmra.mxu0 %v75
    %v337 = vpop.f32.mrf.mxu0
    %v338 = vadd.f32 0.0, %v337
    %v339 = vpop.f32.mrf.mxu0
    %340 = vmatprep.mubr.f32.mxu0 0.0
    %341 = vmatmul.mubr.f32.gmra.mxu0 %v76
    %v342 = vpop.f32.mrf.mxu0
    %v343 = vadd.f32 0.0, %v342
    %v344 = vpop.f32.mrf.mxu0
    %345 = vmatprep.mubr.f32.mxu0 0.0
    %346 = vmatmul.mubr.f32.gmra.mxu0 %v77
    %v347 = vpop.f32.mrf.mxu0
    %v348 = vadd.f32 0.0, %v347
    %v349 = vpop.f32.mrf.mxu0
    %350 = vmatprep.mubr.f32.mxu0 0.0
    %351 = vmatmul.mubr.f32.gmra.mxu0 %v78
    %v352 = vpop.f32.mrf.mxu0
    %v353 = vadd.f32 0.0, %v352
    %v354 = vpop.f32.mrf.mxu0
    %355 = vmatprep.mubr.f32.mxu0 0.0
    %356 = vmatmul.mubr.f32.gmra.mxu0 %v79
    %v357 = vpop.f32.mrf.mxu0
    %v358 = vadd.f32 0.0, %v357
    %v359 = vpop.f32.mrf.mxu0
    %360 = vmatprep.mubr.f32.mxu0 0.0
    %361 = vmatmul.mubr.f32.gmra.mxu0 %v80
    %v362 = vpop.f32.mrf.mxu0
    %v363 = vadd.f32 0.0, %v362
    %v364 = vpop.f32.mrf.mxu0
    %365 = vmatprep.mubr.f32.mxu0 0.0
    %366 = vmatmul.mubr.f32.gmra.mxu0 %v81
    %v367 = vpop.f32.mrf.mxu0
    %v368 = vadd.f32 0.0, %v367
    %v369 = vpop.f32.mrf.mxu0
    %370 = vmatprep.mubr.f32.mxu0 0.0
    %371 = vmatmul.mubr.f32.gmra.mxu0 %v82
    %v372 = vpop.f32.mrf.mxu0
    %v373 = vadd.f32 0.0, %v372
    %v374 = vpop.f32.mrf.mxu0
    %375 = vmatprep.mubr.f32.mxu0 0.0
    %376 = vmatmul.mubr.f32.gmra.mxu0 %v83
    %v377 = vpop.f32.mrf.mxu0
    %v378 = vadd.f32 0.0, %v377
    %v379 = vpop.f32.mrf.mxu0
    %380 = vmatprep.mubr.f32.mxu0 0.0
    %381 = vmatmul.mubr.f32.gmra.mxu0 %v84
    %v382 = vpop.f32.mrf.mxu0
    %v383 = vadd.f32 0.0, %v382
    %v384 = vpop.f32.mrf.mxu0
    %385 = vmatprep.mubr.f32.mxu0 0.0
    %386 = vmatmul.mubr.f32.gmra.mxu0 %v85
    %v387 = vpop.f32.mrf.mxu0
    %v388 = vadd.f32 0.0, %v387
    %v389 = vpop.f32.mrf.mxu0
    %390 = vmatprep.mubr.f32.mxu0 0.0
    %391 = vmatmul.mubr.f32.gmra.mxu0 %v86
    %v392 = vpop.f32.mrf.mxu0
    %v393 = vadd.f32 0.0, %v392
    %v394 = vpop.f32.mrf.mxu0
    %395 = vmatprep.mubr.f32.mxu0 0.0
    %396 = vmatmul.mubr.f32.gmra.mxu0 %v87
    %v397 = vpop.f32.mrf.mxu0
    %v398 = vadd.f32 0.0, %v397
    %v399 = vpop.f32.mrf.mxu0
    %400 = vmatprep.mubr.f32.mxu0 0.0
    %401 = vmatmul.mubr.f32.gmra.mxu0 %v88
    %v402 = vpop.f32.mrf.mxu0
    %v403 = vadd.f32 0.0, %v402
    %v404 = vpop.f32.mrf.mxu0
    %405 = vmatprep.mubr.f32.mxu0 0.0
    %406 = vmatmul.mubr.f32.gmra.mxu0 %v89
    %v407 = vpop.f32.mrf.mxu0
    %v408 = vadd.f32 0.0, %v407
    %v409 = vpop.f32.mrf.mxu0
    %410 = vmatprep.mubr.f32.mxu0 0.0
    %411 = vmatmul.mubr.f32.gmra.mxu0 %v90
    %v412 = vpop.f32.mrf.mxu0
    %v413 = vadd.f32 0.0, %v412
    %v414 = vpop.f32.mrf.mxu0
    %415 = vmatprep.mubr.f32.mxu0 0.0
    %416 = vmatmul.mubr.f32.gmra.mxu0 %v91
    %v417 = vpop.f32.mrf.mxu0
    %v418 = vadd.f32 0.0, %v417
    %v419 = vpop.f32.mrf.mxu0
    %420 = vmatprep.mubr.f32.mxu0 0.0
    %421 = vmatmul.mubr.f32.gmra.mxu0 %v92
    %v422 = vpop.f32.mrf.mxu0
    %v423 = vadd.f32 0.0, %v422
    %v424 = vpop.f32.mrf.mxu0
    %425 = vmatprep.mubr.f32.mxu0 0.0
    %426 = vmatmul.mubr.f32.gmra.mxu0 %v93
    %v427 = vpop.f32.mrf.mxu0
    %v428 = vadd.f32 0.0, %v427
    %v429 = vpop.f32.mrf.mxu0
    %430 = vdwg.mxu0
    %431 = vrot.lane.b32.xlu0 %v353, 64
    %v432 = vpop.permute.xlu0 %431
    %433 = vrot.lane.b32.xlu0 %v358, 64
    %v434 = vpop.permute.xlu0 %433
    %435 = vrot.lane.b32.xlu0 %v363, 64
    %v436 = vpop.permute.xlu0 %435
    %437 = vrot.lane.b32.xlu0 %v368, 64
    %v438 = vpop.permute.xlu0 %437
    %439 = vrot.lane.b32.xlu0 %v373, 64
    %v440 = vpop.permute.xlu0 %439
    %441 = vrot.lane.b32.xlu0 %v378, 64
    %v442 = vpop.permute.xlu0 %441
    %443 = vrot.lane.b32.xlu0 %v383, 64
    %v444 = vpop.permute.xlu0 %443
    %445 = vrot.lane.b32.xlu0 %v388, 64
    %v446 = vpop.permute.xlu0 %445
    %447 = vrot.lane.b32.xlu0 %v393, 64
    %v448 = vpop.permute.xlu0 %447
    %449 = vrot.lane.b32.xlu0 %v398, 64
    %v450 = vpop.permute.xlu0 %449
    %451 = vrot.lane.b32.xlu0 %v403, 64
    %v452 = vpop.permute.xlu0 %451
    %453 = vrot.lane.b32.xlu0 %v408, 64
    %v454 = vpop.permute.xlu0 %453
    %455 = vrot.lane.b32.xlu0 %v413, 64
    %v456 = vpop.permute.xlu0 %455
    %457 = vrot.lane.b32.xlu0 %v418, 64
    %v458 = vpop.permute.xlu0 %457
    %459 = vrot.lane.b32.xlu0 %v423, 64
    %v460 = vpop.permute.xlu0 %459
    %461 = vrot.lane.b32.xlu0 %v428, 64
    %v462 = vpop.permute.xlu0 %461
    %v463 = vmul.f32 %v190, %v432
    %v464 = vmul.f32 %v191, %v434
    %v465 = vmul.f32 %v192, %v436
    %v466 = vmul.f32 %v193, %v438
    %v467 = vmul.f32 %v194, %v440
    %v468 = vmul.f32 %v195, %v442
    %v469 = vmul.f32 %v196, %v444
    %v470 = vmul.f32 %v197, %v446
    %v471 = vmul.f32 %v198, %v448
    %v472 = vmul.f32 %v199, %v450
    %v473 = vmul.f32 %v200, %v452
    %v474 = vmul.f32 %v201, %v454
    %v475 = vmul.f32 %v202, %v456
    %v476 = vmul.f32 %v203, %v458
    %v477 = vmul.f32 %v204, %v460
    %v478 = vmul.f32 %v205, %v462
    %v479 = vadd.f32 %v273, %v463
    %v480 = vadd.f32 %v278, %v464
    %v481 = vadd.f32 %v283, %v465
    %v482 = vadd.f32 %v288, %v466
    %v483 = vadd.f32 %v293, %v467
    %v484 = vadd.f32 %v298, %v468
    %v485 = vadd.f32 %v303, %v469
    %v486 = vadd.f32 %v308, %v470
    %v487 = vadd.f32 %v313, %v471
    %v488 = vadd.f32 %v318, %v472
    %v489 = vadd.f32 %v323, %v473
    %v490 = vadd.f32 %v328, %v474
    %v491 = vadd.f32 %v333, %v475
    %v492 = vadd.f32 %v338, %v476
    %v493 = vadd.f32 %v343, %v477
    %v494 = vadd.f32 %v348, %v478
    %495 = vmatprep.subr.mxu0 0.0
    %496 = vmatpush1.msra.mxu0 %v141
    %497 = vmatprep.subr.mxu0 0.0
    %498 = vmatpush1.msra.mxu0 %v140
    %499 = vmatprep.subr.mxu0 0.0
    %500 = vmatpush1.msra.mxu0 %v139
    %501 = vmatprep.subr.mxu0 0.0
    %502 = vmatpush1.msra.mxu0 %v138
    %503 = vmatprep.subr.mxu0 0.0
    %504 = vmatpush1.msra.mxu0 %v137
    %505 = vmatprep.subr.mxu0 0.0
    %506 = vmatpush1.msra.mxu0 %v136
    %507 = vmatprep.subr.mxu0 0.0
    %508 = vmatpush1.msra.mxu0 %v135
    %509 = vmatprep.subr.mxu0 0.0
    %510 = vmatpush1.msra.mxu0 %v134
    %511 = vmatprep.subr.mxu0 0.0
    %512 = vmatpush1.msra.mxu0 %v133
    %513 = vmatprep.subr.mxu0 0.0
    %514 = vmatpush1.msra.mxu0 %v132
    %515 = vmatprep.subr.mxu0 0.0
    %516 = vmatpush1.msra.mxu0 %v131
    %517 = vmatprep.subr.mxu0 0.0
    %518 = vmatpush1.msra.mxu0 %v130
    %519 = vmatprep.subr.mxu0 0.0
    %520 = vmatpush1.msra.mxu0 %v129
    %521 = vmatprep.subr.mxu0 0.0
    %522 = vmatpush1.msra.mxu0 %v128
    %523 = vmatprep.subr.mxu0 0.0
    %524 = vmatpush1.msra.mxu0 %v127
    %525 = vmatprep.subr.mxu0 0.0
    %526 = vmatpush1.msra.mxu0 %v126
    %527 = vmatprep.subr.mxu0 0.0
    %528 = vmatpush2.msra.mxu0 0.0
    %529 = vmatprep.subr.mxu0 0.0
    %530 = vmatpush2.msra.mxu0 0.0
    %531 = vmatprep.subr.mxu0 0.0
    %532 = vmatpush2.msra.mxu0 0.0
    %533 = vmatprep.subr.mxu0 0.0
    %534 = vmatpush2.msra.mxu0 0.0
    %535 = vmatprep.subr.mxu0 0.0
    %536 = vmatpush2.msra.mxu0 0.0
    %537 = vmatprep.subr.mxu0 0.0
    %538 = vmatpush2.msra.mxu0 0.0
    %539 = vmatprep.subr.mxu0 0.0
    %540 = vmatpush2.msra.mxu0 0.0
    %541 = vmatprep.subr.mxu0 0.0
    %542 = vmatpush2.msra.mxu0 0.0
    %543 = vmatprep.subr.mxu0 0.0
    %544 = vmatpush2.msra.mxu0 0.0
    %545 = vmatprep.subr.mxu0 0.0
    %546 = vmatpush2.msra.mxu0 0.0
    %547 = vmatprep.subr.mxu0 0.0
    %548 = vmatpush2.msra.mxu0 0.0
    %549 = vmatprep.subr.mxu0 0.0
    %550 = vmatpush2.msra.mxu0 0.0
    %551 = vmatprep.subr.mxu0 0.0
    %552 = vmatpush2.msra.mxu0 0.0
    %553 = vmatprep.subr.mxu0 0.0
    %554 = vmatpush2.msra.mxu0 0.0
    %555 = vmatprep.subr.mxu0 0.0
    %556 = vmatpush2.msra.mxu0 0.0
    %557 = vmatprep.subr.mxu0 0.0
    %558 = vmatpush2.msra.mxu0 0.0
    %559 = vmatprep.mubr.f32.mxu0 0.0
    %560 = vmatmul.mubr.f32.gmra.mxu0 %v479
    %v561 = vpop.f32.mrf.mxu0
    %v562 = vadd.f32 0.0, %v561
    %v563 = vpop.f32.mrf.mxu0
    %564 = vmatprep.mubr.f32.mxu0 0.0
    %565 = vmatmul.mubr.f32.gmra.mxu0 %v480
    %v566 = vpop.f32.mrf.mxu0
    %v567 = vadd.f32 0.0, %v566
    %v568 = vpop.f32.mrf.mxu0
    %569 = vmatprep.mubr.f32.mxu0 0.0
    %570 = vmatmul.mubr.f32.gmra.mxu0 %v481
    %v571 = vpop.f32.mrf.mxu0
    %v572 = vadd.f32 0.0, %v571
    %v573 = vpop.f32.mrf.mxu0
    %574 = vmatprep.mubr.f32.mxu0 0.0
    %575 = vmatmul.mubr.f32.gmra.mxu0 %v482
    %v576 = vpop.f32.mrf.mxu0
    %v577 = vadd.f32 0.0, %v576
    %v578 = vpop.f32.mrf.mxu0
    %579 = vmatprep.mubr.f32.mxu0 0.0
    %580 = vmatmul.mubr.f32.gmra.mxu0 %v483
    %v581 = vpop.f32.mrf.mxu0
    %v582 = vadd.f32 0.0, %v581
    %v583 = vpop.f32.mrf.mxu0
    %584 = vmatprep.mubr.f32.mxu0 0.0
    %585 = vmatmul.mubr.f32.gmra.mxu0 %v484
    %v586 = vpop.f32.mrf.mxu0
    %v587 = vadd.f32 0.0, %v586
    %v588 = vpop.f32.mrf.mxu0
    %589 = vmatprep.mubr.f32.mxu0 0.0
    %590 = vmatmul.mubr.f32.gmra.mxu0 %v485
    %v591 = vpop.f32.mrf.mxu0
    %v592 = vadd.f32 0.0, %v591
    %v593 = vpop.f32.mrf.mxu0
    %594 = vmatprep.mubr.f32.mxu0 0.0
    %595 = vmatmul.mubr.f32.gmra.mxu0 %v486
    %v596 = vpop.f32.mrf.mxu0
    %v597 = vadd.f32 0.0, %v596
    %v598 = vpop.f32.mrf.mxu0
    %599 = vmatprep.mubr.f32.mxu0 0.0
    %600 = vmatmul.mubr.f32.gmra.mxu0 %v487
    %v601 = vpop.f32.mrf.mxu0
    %v602 = vadd.f32 0.0, %v601
    %v603 = vpop.f32.mrf.mxu0
    %604 = vmatprep.mubr.f32.mxu0 0.0
    %605 = vmatmul.mubr.f32.gmra.mxu0 %v488
    %v606 = vpop.f32.mrf.mxu0
    %v607 = vadd.f32 0.0, %v606
    %v608 = vpop.f32.mrf.mxu0
    %609 = vmatprep.mubr.f32.mxu0 0.0
    %610 = vmatmul.mubr.f32.gmra.mxu0 %v489
    %v611 = vpop.f32.mrf.mxu0
    %v612 = vadd.f32 0.0, %v611
    %v613 = vpop.f32.mrf.mxu0
    %614 = vmatprep.mubr.f32.mxu0 0.0
    %615 = vmatmul.mubr.f32.gmra.mxu0 %v490
    %v616 = vpop.f32.mrf.mxu0
    %v617 = vadd.f32 0.0, %v616
    %v618 = vpop.f32.mrf.mxu0
    %619 = vmatprep.mubr.f32.mxu0 0.0
    %620 = vmatmul.mubr.f32.gmra.mxu0 %v491
    %v621 = vpop.f32.mrf.mxu0
    %v622 = vadd.f32 0.0, %v621
    %v623 = vpop.f32.mrf.mxu0
    %624 = vmatprep.mubr.f32.mxu0 0.0
    %625 = vmatmul.mubr.f32.gmra.mxu0 %v492
    %v626 = vpop.f32.mrf.mxu0
    %v627 = vadd.f32 0.0, %v626
    %v628 = vpop.f32.mrf.mxu0
    %629 = vmatprep.mubr.f32.mxu0 0.0
    %630 = vmatmul.mubr.f32.gmra.mxu0 %v493
    %v631 = vpop.f32.mrf.mxu0
    %v632 = vadd.f32 0.0, %v631
    %v633 = vpop.f32.mrf.mxu0
    %634 = vmatprep.mubr.f32.mxu0 0.0
    %635 = vmatmul.mubr.f32.gmra.mxu0 %v494
    %v636 = vpop.f32.mrf.mxu0
    %v637 = vadd.f32 0.0, %v636
    %v638 = vpop.f32.mrf.mxu0
    %639 = vdwg.mxu0
    %v640 = vmul.f32 %v158, %v562
    %v641 = vmul.f32 %v159, %v567
    %v642 = vmul.f32 %v160, %v572
    %v643 = vmul.f32 %v161, %v577
    %v644 = vmul.f32 %v162, %v582
    %v645 = vmul.f32 %v163, %v587
    %v646 = vmul.f32 %v164, %v592
    %v647 = vmul.f32 %v165, %v597
    %v648 = vmul.f32 %v166, %v602
    %v649 = vmul.f32 %v167, %v607
    %v650 = vmul.f32 %v168, %v612
    %v651 = vmul.f32 %v169, %v617
    %v652 = vmul.f32 %v170, %v622
    %v653 = vmul.f32 %v171, %v627
    %v654 = vmul.f32 %v172, %v632
    %v655 = vmul.f32 %v173, %v637
    %656 = vrot.lane.b32.xlu0 %v562, 64
    %v657 = vpop.permute.xlu0 %656
    %658 = vrot.lane.b32.xlu0 %v567, 64
    %v659 = vpop.permute.xlu0 %658
    %660 = vrot.lane.b32.xlu0 %v572, 64
    %v661 = vpop.permute.xlu0 %660
    %662 = vrot.lane.b32.xlu0 %v577, 64
    %v663 = vpop.permute.xlu0 %662
    %664 = vrot.lane.b32.xlu0 %v582, 64
    %v665 = vpop.permute.xlu0 %664
    %666 = vrot.lane.b32.xlu0 %v587, 64
    %v667 = vpop.permute.xlu0 %666
    %668 = vrot.lane.b32.xlu0 %v592, 64
    %v669 = vpop.permute.xlu0 %668
    %670 = vrot.lane.b32.xlu0 %v597, 64
    %v671 = vpop.permute.xlu0 %670
    %672 = vrot.lane.b32.xlu0 %v602, 64
    %v673 = vpop.permute.xlu0 %672
    %674 = vrot.lane.b32.xlu0 %v607, 64
    %v675 = vpop.permute.xlu0 %674
    %676 = vrot.lane.b32.xlu0 %v612, 64
    %v677 = vpop.permute.xlu0 %676
    %678 = vrot.lane.b32.xlu0 %v617, 64
    %v679 = vpop.permute.xlu0 %678
    %680 = vrot.lane.b32.xlu0 %v622, 64
    %v681 = vpop.permute.xlu0 %680
    %682 = vrot.lane.b32.xlu0 %v627, 64
    %v683 = vpop.permute.xlu0 %682
    %684 = vrot.lane.b32.xlu0 %v632, 64
    %v685 = vpop.permute.xlu0 %684
    %686 = vrot.lane.b32.xlu0 %v637, 64
    %v687 = vpop.permute.xlu0 %686
    %v688 = vmul.f32 %v174, %v657
    %v689 = vmul.f32 %v175, %v659
    %v690 = vmul.f32 %v176, %v661
    %v691 = vmul.f32 %v177, %v663
    %v692 = vmul.f32 %v178, %v665
    %v693 = vmul.f32 %v179, %v667
    %v694 = vmul.f32 %v180, %v669
    %v695 = vmul.f32 %v181, %v671
    %v696 = vmul.f32 %v182, %v673
    %v697 = vmul.f32 %v183, %v675
    %v698 = vmul.f32 %v184, %v677
    %v699 = vmul.f32 %v185, %v679
    %v700 = vmul.f32 %v186, %v681
    %v701 = vmul.f32 %v187, %v683
    %v702 = vmul.f32 %v188, %v685
    %v703 = vmul.f32 %v189, %v687
    %v704 = vadd.f32 %v640, %v688
    %v705 = vadd.f32 %v641, %v689
    %v706 = vadd.f32 %v642, %v690
    %v707 = vadd.f32 %v643, %v691
    %v708 = vadd.f32 %v644, %v692
    %v709 = vadd.f32 %v645, %v693
    %v710 = vadd.f32 %v646, %v694
    %v711 = vadd.f32 %v647, %v695
    %v712 = vadd.f32 %v648, %v696
    %v713 = vadd.f32 %v649, %v697
    %v714 = vadd.f32 %v650, %v698
    %v715 = vadd.f32 %v651, %v699
    %v716 = vadd.f32 %v652, %v700
    %v717 = vadd.f32 %v653, %v701
    %v718 = vadd.f32 %v654, %v702
    %v719 = vadd.f32 %v655, %v703
    %720 = vmatprep.subr.mxu0 0.0
    %721 = vmatpush1.msra.mxu0 %v719
    %722 = vmatprep.subr.mxu0 0.0
    %723 = vmatpush1.msra.mxu0 %v718
    %724 = vmatprep.subr.mxu0 0.0
    %725 = vmatpush1.msra.mxu0 %v717
    %726 = vmatprep.subr.mxu0 0.0
    %727 = vmatpush1.msra.mxu0 %v716
    %728 = vmatprep.subr.mxu0 0.0
    %729 = vmatpush1.msra.mxu0 %v715
    %730 = vmatprep.subr.mxu0 0.0
    %731 = vmatpush1.msra.mxu0 %v714
    %732 = vmatprep.subr.mxu0 0.0
    %733 = vmatpush1.msra.mxu0 %v713
    %734 = vmatprep.subr.mxu0 0.0
    %735 = vmatpush1.msra.mxu0 %v712
    %736 = vmatprep.subr.mxu0 0.0
    %737 = vmatpush1.msra.mxu0 %v711
    %738 = vmatprep.subr.mxu0 0.0
    %739 = vmatpush1.msra.mxu0 %v710
    %740 = vmatprep.subr.mxu0 0.0
    %741 = vmatpush1.msra.mxu0 %v709
    %742 = vmatprep.subr.mxu0 0.0
    %743 = vmatpush1.msra.mxu0 %v708
    %744 = vmatprep.subr.mxu0 0.0
    %745 = vmatpush1.msra.mxu0 %v707
    %746 = vmatprep.subr.mxu0 0.0
    %747 = vmatpush1.msra.mxu0 %v706
    %748 = vmatprep.subr.mxu0 0.0
    %749 = vmatpush1.msra.mxu0 %v705
    %750 = vmatprep.subr.mxu0 0.0
    %751 = vmatpush1.msra.mxu0 %v704
    %752 = vmatprep.subr.mxu0 0.0
    %753 = vmatpush2.msra.mxu0 0.0
    %754 = vmatprep.subr.mxu0 0.0
    %755 = vmatpush2.msra.mxu0 0.0
    %756 = vmatprep.subr.mxu0 0.0
    %757 = vmatpush2.msra.mxu0 0.0
    %758 = vmatprep.subr.mxu0 0.0
    %759 = vmatpush2.msra.mxu0 0.0
    %760 = vmatprep.subr.mxu0 0.0
    %761 = vmatpush2.msra.mxu0 0.0
    %762 = vmatprep.subr.mxu0 0.0
    %763 = vmatpush2.msra.mxu0 0.0
    %764 = vmatprep.subr.mxu0 0.0
    %765 = vmatpush2.msra.mxu0 0.0
    %766 = vmatprep.subr.mxu0 0.0
    %767 = vmatpush2.msra.mxu0 0.0
    %768 = vmatprep.subr.mxu0 0.0
    %769 = vmatpush2.msra.mxu0 0.0
    %770 = vmatprep.subr.mxu0 0.0
    %771 = vmatpush2.msra.mxu0 0.0
    %772 = vmatprep.subr.mxu0 0.0
    %773 = vmatpush2.msra.mxu0 0.0
    %774 = vmatprep.subr.mxu0 0.0
    %775 = vmatpush2.msra.mxu0 0.0
    %776 = vmatprep.subr.mxu0 0.0
    %777 = vmatpush2.msra.mxu0 0.0
    %778 = vmatprep.subr.mxu0 0.0
    %779 = vmatpush2.msra.mxu0 0.0
    %780 = vmatprep.subr.mxu0 0.0
    %781 = vmatpush2.msra.mxu0 0.0
    %782 = vmatprep.subr.mxu0 0.0
    %783 = vmatpush2.msra.mxu0 0.0
    %784 = vmatprep.mubr.f32.mxu0 0.0
    %785 = vmatmul.mubr.f32.gmra.mxu0 %v94
    %v786 = vpop.f32.mrf.mxu0
    %v787 = vadd.f32 0.0, %v786
    %v788 = vpop.f32.mrf.mxu0
    %789 = vmatprep.mubr.f32.mxu0 0.0
    %790 = vmatmul.mubr.f32.gmra.mxu0 %v95
    %v791 = vpop.f32.mrf.mxu0
    %v792 = vadd.f32 0.0, %v791
    %v793 = vpop.f32.mrf.mxu0
    %794 = vmatprep.mubr.f32.mxu0 0.0
    %795 = vmatmul.mubr.f32.gmra.mxu0 %v96
    %v796 = vpop.f32.mrf.mxu0
    %v797 = vadd.f32 0.0, %v796
    %v798 = vpop.f32.mrf.mxu0
    %799 = vmatprep.mubr.f32.mxu0 0.0
    %800 = vmatmul.mubr.f32.gmra.mxu0 %v97
    %v801 = vpop.f32.mrf.mxu0
    %v802 = vadd.f32 0.0, %v801
    %v803 = vpop.f32.mrf.mxu0
    %804 = vmatprep.mubr.f32.mxu0 0.0
    %805 = vmatmul.mubr.f32.gmra.mxu0 %v98
    %v806 = vpop.f32.mrf.mxu0
    %v807 = vadd.f32 0.0, %v806
    %v808 = vpop.f32.mrf.mxu0
    %809 = vmatprep.mubr.f32.mxu0 0.0
    %810 = vmatmul.mubr.f32.gmra.mxu0 %v99
    %v811 = vpop.f32.mrf.mxu0
    %v812 = vadd.f32 0.0, %v811
    %v813 = vpop.f32.mrf.mxu0
    %814 = vmatprep.mubr.f32.mxu0 0.0
    %815 = vmatmul.mubr.f32.gmra.mxu0 %v100
    %v816 = vpop.f32.mrf.mxu0
    %v817 = vadd.f32 0.0, %v816
    %v818 = vpop.f32.mrf.mxu0
    %819 = vmatprep.mubr.f32.mxu0 0.0
    %820 = vmatmul.mubr.f32.gmra.mxu0 %v101
    %v821 = vpop.f32.mrf.mxu0
    %v822 = vadd.f32 0.0, %v821
    %v823 = vpop.f32.mrf.mxu0
    %824 = vmatprep.mubr.f32.mxu0 0.0
    %825 = vmatmul.mubr.f32.gmra.mxu0 %v102
    %v826 = vpop.f32.mrf.mxu0
    %v827 = vadd.f32 0.0, %v826
    %v828 = vpop.f32.mrf.mxu0
    %829 = vmatprep.mubr.f32.mxu0 0.0
    %830 = vmatmul.mubr.f32.gmra.mxu0 %v103
    %v831 = vpop.f32.mrf.mxu0
    %v832 = vadd.f32 0.0, %v831
    %v833 = vpop.f32.mrf.mxu0
    %834 = vmatprep.mubr.f32.mxu0 0.0
    %835 = vmatmul.mubr.f32.gmra.mxu0 %v104
    %v836 = vpop.f32.mrf.mxu0
    %v837 = vadd.f32 0.0, %v836
    %v838 = vpop.f32.mrf.mxu0
    %839 = vmatprep.mubr.f32.mxu0 0.0
    %840 = vmatmul.mubr.f32.gmra.mxu0 %v105
    %v841 = vpop.f32.mrf.mxu0
    %v842 = vadd.f32 0.0, %v841
    %v843 = vpop.f32.mrf.mxu0
    %844 = vmatprep.mubr.f32.mxu0 0.0
    %845 = vmatmul.mubr.f32.gmra.mxu0 %v106
    %v846 = vpop.f32.mrf.mxu0
    %v847 = vadd.f32 0.0, %v846
    %v848 = vpop.f32.mrf.mxu0
    %849 = vmatprep.mubr.f32.mxu0 0.0
    %850 = vmatmul.mubr.f32.gmra.mxu0 %v107
    %v851 = vpop.f32.mrf.mxu0
    %v852 = vadd.f32 0.0, %v851
    %v853 = vpop.f32.mrf.mxu0
    %854 = vmatprep.mubr.f32.mxu0 0.0
    %855 = vmatmul.mubr.f32.gmra.mxu0 %v108
    %v856 = vpop.f32.mrf.mxu0
    %v857 = vadd.f32 0.0, %v856
    %v858 = vpop.f32.mrf.mxu0
    %859 = vmatprep.mubr.f32.mxu0 0.0
    %860 = vmatmul.mubr.f32.gmra.mxu0 %v109
    %v861 = vpop.f32.mrf.mxu0
    %v862 = vadd.f32 0.0, %v861
    %v863 = vpop.f32.mrf.mxu0
    %864 = vmatprep.mubr.f32.mxu0 0.0
    %865 = vmatmul.mubr.f32.gmra.mxu0 %v110
    %v866 = vpop.f32.mrf.mxu0
    %v867 = vadd.f32 0.0, %v866
    %v868 = vpop.f32.mrf.mxu0
    %869 = vmatprep.mubr.f32.mxu0 0.0
    %870 = vmatmul.mubr.f32.gmra.mxu0 %v111
    %v871 = vpop.f32.mrf.mxu0
    %v872 = vadd.f32 0.0, %v871
    %v873 = vpop.f32.mrf.mxu0
    %874 = vmatprep.mubr.f32.mxu0 0.0
    %875 = vmatmul.mubr.f32.gmra.mxu0 %v112
    %v876 = vpop.f32.mrf.mxu0
    %v877 = vadd.f32 0.0, %v876
    %v878 = vpop.f32.mrf.mxu0
    %879 = vmatprep.mubr.f32.mxu0 0.0
    %880 = vmatmul.mubr.f32.gmra.mxu0 %v113
    %v881 = vpop.f32.mrf.mxu0
    %v882 = vadd.f32 0.0, %v881
    %v883 = vpop.f32.mrf.mxu0
    %884 = vmatprep.mubr.f32.mxu0 0.0
    %885 = vmatmul.mubr.f32.gmra.mxu0 %v114
    %v886 = vpop.f32.mrf.mxu0
    %v887 = vadd.f32 0.0, %v886
    %v888 = vpop.f32.mrf.mxu0
    %889 = vmatprep.mubr.f32.mxu0 0.0
    %890 = vmatmul.mubr.f32.gmra.mxu0 %v115
    %v891 = vpop.f32.mrf.mxu0
    %v892 = vadd.f32 0.0, %v891
    %v893 = vpop.f32.mrf.mxu0
    %894 = vmatprep.mubr.f32.mxu0 0.0
    %895 = vmatmul.mubr.f32.gmra.mxu0 %v116
    %v896 = vpop.f32.mrf.mxu0
    %v897 = vadd.f32 0.0, %v896
    %v898 = vpop.f32.mrf.mxu0
    %899 = vmatprep.mubr.f32.mxu0 0.0
    %900 = vmatmul.mubr.f32.gmra.mxu0 %v117
    %v901 = vpop.f32.mrf.mxu0
    %v902 = vadd.f32 0.0, %v901
    %v903 = vpop.f32.mrf.mxu0
    %904 = vmatprep.mubr.f32.mxu0 0.0
    %905 = vmatmul.mubr.f32.gmra.mxu0 %v118
    %v906 = vpop.f32.mrf.mxu0
    %v907 = vadd.f32 0.0, %v906
    %v908 = vpop.f32.mrf.mxu0
    %909 = vmatprep.mubr.f32.mxu0 0.0
    %910 = vmatmul.mubr.f32.gmra.mxu0 %v119
    %v911 = vpop.f32.mrf.mxu0
    %v912 = vadd.f32 0.0, %v911
    %v913 = vpop.f32.mrf.mxu0
    %914 = vmatprep.mubr.f32.mxu0 0.0
    %915 = vmatmul.mubr.f32.gmra.mxu0 %v120
    %v916 = vpop.f32.mrf.mxu0
    %v917 = vadd.f32 0.0, %v916
    %v918 = vpop.f32.mrf.mxu0
    %919 = vmatprep.mubr.f32.mxu0 0.0
    %920 = vmatmul.mubr.f32.gmra.mxu0 %v121
    %v921 = vpop.f32.mrf.mxu0
    %v922 = vadd.f32 0.0, %v921
    %v923 = vpop.f32.mrf.mxu0
    %924 = vmatprep.mubr.f32.mxu0 0.0
    %925 = vmatmul.mubr.f32.gmra.mxu0 %v122
    %v926 = vpop.f32.mrf.mxu0
    %v927 = vadd.f32 0.0, %v926
    %v928 = vpop.f32.mrf.mxu0
    %929 = vmatprep.mubr.f32.mxu0 0.0
    %930 = vmatmul.mubr.f32.gmra.mxu0 %v123
    %v931 = vpop.f32.mrf.mxu0
    %v932 = vadd.f32 0.0, %v931
    %v933 = vpop.f32.mrf.mxu0
    %934 = vmatprep.mubr.f32.mxu0 0.0
    %935 = vmatmul.mubr.f32.gmra.mxu0 %v124
    %v936 = vpop.f32.mrf.mxu0
    %v937 = vadd.f32 0.0, %v936
    %v938 = vpop.f32.mrf.mxu0
    %939 = vmatprep.mubr.f32.mxu0 0.0
    %940 = vmatmul.mubr.f32.gmra.mxu0 %v125
    %v941 = vpop.f32.mrf.mxu0
    %v942 = vadd.f32 0.0, %v941
    %v943 = vpop.f32.mrf.mxu0
    %944 = vdwg.mxu0
    %945 = vrot.lane.b32.xlu0 %v867, 64
    %v946 = vpop.permute.xlu0 %945
    %947 = vrot.lane.b32.xlu0 %v872, 64
    %v948 = vpop.permute.xlu0 %947
    %949 = vrot.lane.b32.xlu0 %v877, 64
    %v950 = vpop.permute.xlu0 %949
    %951 = vrot.lane.b32.xlu0 %v882, 64
    %v952 = vpop.permute.xlu0 %951
    %953 = vrot.lane.b32.xlu0 %v887, 64
    %v954 = vpop.permute.xlu0 %953
    %955 = vrot.lane.b32.xlu0 %v892, 64
    %v956 = vpop.permute.xlu0 %955
    %957 = vrot.lane.b32.xlu0 %v897, 64
    %v958 = vpop.permute.xlu0 %957
    %959 = vrot.lane.b32.xlu0 %v902, 64
    %v960 = vpop.permute.xlu0 %959
    %961 = vrot.lane.b32.xlu0 %v907, 64
    %v962 = vpop.permute.xlu0 %961
    %963 = vrot.lane.b32.xlu0 %v912, 64
    %v964 = vpop.permute.xlu0 %963
    %965 = vrot.lane.b32.xlu0 %v917, 64
    %v966 = vpop.permute.xlu0 %965
    %967 = vrot.lane.b32.xlu0 %v922, 64
    %v968 = vpop.permute.xlu0 %967
    %969 = vrot.lane.b32.xlu0 %v927, 64
    %v970 = vpop.permute.xlu0 %969
    %971 = vrot.lane.b32.xlu0 %v932, 64
    %v972 = vpop.permute.xlu0 %971
    %973 = vrot.lane.b32.xlu0 %v937, 64
    %v974 = vpop.permute.xlu0 %973
    %975 = vrot.lane.b32.xlu0 %v942, 64
    %v976 = vpop.permute.xlu0 %975
    %v977 = vmul.f32 %v190, %v946
    %v978 = vmul.f32 %v191, %v948
    %v979 = vmul.f32 %v192, %v950
    %v980 = vmul.f32 %v193, %v952
    %v981 = vmul.f32 %v194, %v954
    %v982 = vmul.f32 %v195, %v956
    %v983 = vmul.f32 %v196, %v958
    %v984 = vmul.f32 %v197, %v960
    %v985 = vmul.f32 %v198, %v962
    %v986 = vmul.f32 %v199, %v964
    %v987 = vmul.f32 %v200, %v966
    %v988 = vmul.f32 %v201, %v968
    %v989 = vmul.f32 %v202, %v970
    %v990 = vmul.f32 %v203, %v972
    %v991 = vmul.f32 %v204, %v974
    %v992 = vmul.f32 %v205, %v976
    %v993 = vadd.f32 %v787, %v977
    %v994 = vadd.f32 %v792, %v978
    %v995 = vadd.f32 %v797, %v979
    %v996 = vadd.f32 %v802, %v980
    %v997 = vadd.f32 %v807, %v981
    %v998 = vadd.f32 %v812, %v982
    %v999 = vadd.f32 %v817, %v983
    %v1000 = vadd.f32 %v822, %v984
    %v1001 = vadd.f32 %v827, %v985
    %v1002 = vadd.f32 %v832, %v986
    %v1003 = vadd.f32 %v837, %v987
    %v1004 = vadd.f32 %v842, %v988
    %v1005 = vadd.f32 %v847, %v989
    %v1006 = vadd.f32 %v852, %v990
    %v1007 = vadd.f32 %v857, %v991
    %v1008 = vadd.f32 %v862, %v992
    %1009 = vmatprep.subr.mxu0 0.0
    %1010 = vmatpush1.msra.mxu0 %v157
    %1011 = vmatprep.subr.mxu0 0.0
    %1012 = vmatpush1.msra.mxu0 %v156
    %1013 = vmatprep.subr.mxu0 0.0
    %1014 = vmatpush1.msra.mxu0 %v155
    %1015 = vmatprep.subr.mxu0 0.0
    %1016 = vmatpush1.msra.mxu0 %v154
    %1017 = vmatprep.subr.mxu0 0.0
    %1018 = vmatpush1.msra.mxu0 %v153
    %1019 = vmatprep.subr.mxu0 0.0
    %1020 = vmatpush1.msra.mxu0 %v152
    %1021 = vmatprep.subr.mxu0 0.0
    %1022 = vmatpush1.msra.mxu0 %v151
    %1023 = vmatprep.subr.mxu0 0.0
    %1024 = vmatpush1.msra.mxu0 %v150
    %1025 = vmatprep.subr.mxu0 0.0
    %1026 = vmatpush1.msra.mxu0 %v149
    %1027 = vmatprep.subr.mxu0 0.0
    %1028 = vmatpush1.msra.mxu0 %v148
    %1029 = vmatprep.subr.mxu0 0.0
    %1030 = vmatpush1.msra.mxu0 %v147
    %1031 = vmatprep.subr.mxu0 0.0
    %1032 = vmatpush1.msra.mxu0 %v146
    %1033 = vmatprep.subr.mxu0 0.0
    %1034 = vmatpush1.msra.mxu0 %v145
    %1035 = vmatprep.subr.mxu0 0.0
    %1036 = vmatpush1.msra.mxu0 %v144
    %1037 = vmatprep.subr.mxu0 0.0
    %1038 = vmatpush1.msra.mxu0 %v143
    %1039 = vmatprep.subr.mxu0 0.0
    %1040 = vmatpush1.msra.mxu0 %v142
    %1041 = vmatprep.subr.mxu0 0.0
    %1042 = vmatpush2.msra.mxu0 0.0
    %1043 = vmatprep.subr.mxu0 0.0
    %1044 = vmatpush2.msra.mxu0 0.0
    %1045 = vmatprep.subr.mxu0 0.0
    %1046 = vmatpush2.msra.mxu0 0.0
    %1047 = vmatprep.subr.mxu0 0.0
    %1048 = vmatpush2.msra.mxu0 0.0
    %1049 = vmatprep.subr.mxu0 0.0
    %1050 = vmatpush2.msra.mxu0 0.0
    %1051 = vmatprep.subr.mxu0 0.0
    %1052 = vmatpush2.msra.mxu0 0.0
    %1053 = vmatprep.subr.mxu0 0.0
    %1054 = vmatpush2.msra.mxu0 0.0
    %1055 = vmatprep.subr.mxu0 0.0
    %1056 = vmatpush2.msra.mxu0 0.0
    %1057 = vmatprep.subr.mxu0 0.0
    %1058 = vmatpush2.msra.mxu0 0.0
    %1059 = vmatprep.subr.mxu0 0.0
    %1060 = vmatpush2.msra.mxu0 0.0
    %1061 = vmatprep.subr.mxu0 0.0
    %1062 = vmatpush2.msra.mxu0 0.0
    %1063 = vmatprep.subr.mxu0 0.0
    %1064 = vmatpush2.msra.mxu0 0.0
    %1065 = vmatprep.subr.mxu0 0.0
    %1066 = vmatpush2.msra.mxu0 0.0
    %1067 = vmatprep.subr.mxu0 0.0
    %1068 = vmatpush2.msra.mxu0 0.0
    %1069 = vmatprep.subr.mxu0 0.0
    %1070 = vmatpush2.msra.mxu0 0.0
    %1071 = vmatprep.subr.mxu0 0.0
    %1072 = vmatpush2.msra.mxu0 0.0
    %1073 = vmatprep.mubr.f32.mxu0 0.0
    %1074 = vmatmul.mubr.f32.gmra.mxu0 %v993
    %v1075 = vpop.f32.mrf.mxu0
    %v1076 = vadd.f32 0.0, %v1075
    %v1077 = vpop.f32.mrf.mxu0
    %1078 = vmatprep.mubr.f32.mxu0 0.0
    %1079 = vmatmul.mubr.f32.gmra.mxu0 %v994
    %v1080 = vpop.f32.mrf.mxu0
    %v1081 = vadd.f32 0.0, %v1080
    %v1082 = vpop.f32.mrf.mxu0
    %1083 = vmatprep.mubr.f32.mxu0 0.0
    %1084 = vmatmul.mubr.f32.gmra.mxu0 %v995
    %v1085 = vpop.f32.mrf.mxu0
    %v1086 = vadd.f32 0.0, %v1085
    %v1087 = vpop.f32.mrf.mxu0
    %1088 = vmatprep.mubr.f32.mxu0 0.0
    %1089 = vmatmul.mubr.f32.gmra.mxu0 %v996
    %v1090 = vpop.f32.mrf.mxu0
    %v1091 = vadd.f32 0.0, %v1090
    %v1092 = vpop.f32.mrf.mxu0
    %1093 = vmatprep.mubr.f32.mxu0 0.0
    %1094 = vmatmul.mubr.f32.gmra.mxu0 %v997
    %v1095 = vpop.f32.mrf.mxu0
    %v1096 = vadd.f32 0.0, %v1095
    %v1097 = vpop.f32.mrf.mxu0
    %1098 = vmatprep.mubr.f32.mxu0 0.0
    %1099 = vmatmul.mubr.f32.gmra.mxu0 %v998
    %v1100 = vpop.f32.mrf.mxu0
    %v1101 = vadd.f32 0.0, %v1100
    %v1102 = vpop.f32.mrf.mxu0
    %1103 = vmatprep.mubr.f32.mxu0 0.0
    %1104 = vmatmul.mubr.f32.gmra.mxu0 %v999
    %v1105 = vpop.f32.mrf.mxu0
    %v1106 = vadd.f32 0.0, %v1105
    %v1107 = vpop.f32.mrf.mxu0
    %1108 = vmatprep.mubr.f32.mxu0 0.0
    %1109 = vmatmul.mubr.f32.gmra.mxu0 %v1000
    %v1110 = vpop.f32.mrf.mxu0
    %v1111 = vadd.f32 0.0, %v1110
    %v1112 = vpop.f32.mrf.mxu0
    %1113 = vmatprep.mubr.f32.mxu0 0.0
    %1114 = vmatmul.mubr.f32.gmra.mxu0 %v1001
    %v1115 = vpop.f32.mrf.mxu0
    %v1116 = vadd.f32 0.0, %v1115
    %v1117 = vpop.f32.mrf.mxu0
    %1118 = vmatprep.mubr.f32.mxu0 0.0
    %1119 = vmatmul.mubr.f32.gmra.mxu0 %v1002
    %v1120 = vpop.f32.mrf.mxu0
    %v1121 = vadd.f32 0.0, %v1120
    %v1122 = vpop.f32.mrf.mxu0
    %1123 = vmatprep.mubr.f32.mxu0 0.0
    %1124 = vmatmul.mubr.f32.gmra.mxu0 %v1003
    %v1125 = vpop.f32.mrf.mxu0
    %v1126 = vadd.f32 0.0, %v1125
    %v1127 = vpop.f32.mrf.mxu0
    %1128 = vmatprep.mubr.f32.mxu0 0.0
    %1129 = vmatmul.mubr.f32.gmra.mxu0 %v1004
    %v1130 = vpop.f32.mrf.mxu0
    %v1131 = vadd.f32 0.0, %v1130
    %v1132 = vpop.f32.mrf.mxu0
    %1133 = vmatprep.mubr.f32.mxu0 0.0
    %1134 = vmatmul.mubr.f32.gmra.mxu0 %v1005
    %v1135 = vpop.f32.mrf.mxu0
    %v1136 = vadd.f32 0.0, %v1135
    %v1137 = vpop.f32.mrf.mxu0
    %1138 = vmatprep.mubr.f32.mxu0 0.0
    %1139 = vmatmul.mubr.f32.gmra.mxu0 %v1006
    %v1140 = vpop.f32.mrf.mxu0
    %v1141 = vadd.f32 0.0, %v1140
    %v1142 = vpop.f32.mrf.mxu0
    %1143 = vmatprep.mubr.f32.mxu0 0.0
    %1144 = vmatmul.mubr.f32.gmra.mxu0 %v1007
    %v1145 = vpop.f32.mrf.mxu0
    %v1146 = vadd.f32 0.0, %v1145
    %v1147 = vpop.f32.mrf.mxu0
    %1148 = vmatprep.mubr.f32.mxu0 0.0
    %1149 = vmatmul.mubr.f32.gmra.mxu0 %v1008
    %v1150 = vpop.f32.mrf.mxu0
    %v1151 = vadd.f32 0.0, %v1150
    %v1152 = vpop.f32.mrf.mxu0
    %1153 = vdwg.mxu0
    %v1154 = vld [vmem:[%s7] sm:$0xff]
    %v1155 = vld [vmem:[%s7 + $0x8] sm:$0xff]
    %v1156 = vld [vmem:[%s7 + $0x10] sm:$0xff]
    %v1157 = vld [vmem:[%s7 + $0x18] sm:$0xff]
    %v1158 = vld [vmem:[%s7 + $0x20] sm:$0xff]
    %v1159 = vld [vmem:[%s7 + $0x28] sm:$0xff]
    %v1160 = vld [vmem:[%s7 + $0x30] sm:$0xff]
    %v1161 = vld [vmem:[%s7 + $0x38] sm:$0xff]
    %v1162 = vld [vmem:[%s7 + $0x40] sm:$0xff]
    %v1163 = vld [vmem:[%s7 + $0x48] sm:$0xff]
    %v1164 = vld [vmem:[%s7 + $0x50] sm:$0xff]
    %v1165 = vld [vmem:[%s7 + $0x58] sm:$0xff]
    %v1166 = vld [vmem:[%s7 + $0x60] sm:$0xff]
    %v1167 = vld [vmem:[%s7 + $0x68] sm:$0xff]
    %v1168 = vld [vmem:[%s7 + $0x70] sm:$0xff]
    %v1169 = vld [vmem:[%s7 + $0x78] sm:$0xff]
    %v1170 = vmul.f32 %v1154, %v1076
    %v1171 = vmul.f32 %v1155, %v1081
    %v1172 = vmul.f32 %v1156, %v1086
    %v1173 = vmul.f32 %v1157, %v1091
    %v1174 = vmul.f32 %v1158, %v1096
    %v1175 = vmul.f32 %v1159, %v1101
    %v1176 = vmul.f32 %v1160, %v1106
    %v1177 = vmul.f32 %v1161, %v1111
    %v1178 = vmul.f32 %v1162, %v1116
    %v1179 = vmul.f32 %v1163, %v1121
    %v1180 = vmul.f32 %v1164, %v1126
    %v1181 = vmul.f32 %v1165, %v1131
    %v1182 = vmul.f32 %v1166, %v1136
    %v1183 = vmul.f32 %v1167, %v1141
    %v1184 = vmul.f32 %v1168, %v1146
    %v1185 = vmul.f32 %v1169, %v1151
    %v1186 = vld [vmem:[%s8] sm:$0xff]
    %v1187 = vld [vmem:[%s8 + $0x8] sm:$0xff]
    %v1188 = vld [vmem:[%s8 + $0x10] sm:$0xff]
    %v1189 = vld [vmem:[%s8 + $0x18] sm:$0xff]
    %v1190 = vld [vmem:[%s8 + $0x20] sm:$0xff]
    %v1191 = vld [vmem:[%s8 + $0x28] sm:$0xff]
    %v1192 = vld [vmem:[%s8 + $0x30] sm:$0xff]
    %v1193 = vld [vmem:[%s8 + $0x38] sm:$0xff]
    %v1194 = vld [vmem:[%s8 + $0x40] sm:$0xff]
    %v1195 = vld [vmem:[%s8 + $0x48] sm:$0xff]
    %v1196 = vld [vmem:[%s8 + $0x50] sm:$0xff]
    %v1197 = vld [vmem:[%s8 + $0x58] sm:$0xff]
    %v1198 = vld [vmem:[%s8 + $0x60] sm:$0xff]
    %v1199 = vld [vmem:[%s8 + $0x68] sm:$0xff]
    %v1200 = vld [vmem:[%s8 + $0x70] sm:$0xff]
    %v1201 = vld [vmem:[%s8 + $0x78] sm:$0xff]
    %1202 = vrot.lane.b32.xlu0 %v1076, 64
    %v1203 = vpop.permute.xlu0 %1202
    %1204 = vrot.lane.b32.xlu0 %v1081, 64
    %v1205 = vpop.permute.xlu0 %1204
    %1206 = vrot.lane.b32.xlu0 %v1086, 64
    %v1207 = vpop.permute.xlu0 %1206
    %1208 = vrot.lane.b32.xlu0 %v1091, 64
    %v1209 = vpop.permute.xlu0 %1208
    %1210 = vrot.lane.b32.xlu0 %v1096, 64
    %v1211 = vpop.permute.xlu0 %1210
    %1212 = vrot.lane.b32.xlu0 %v1101, 64
    %v1213 = vpop.permute.xlu0 %1212
    %1214 = vrot.lane.b32.xlu0 %v1106, 64
    %v1215 = vpop.permute.xlu0 %1214
    %1216 = vrot.lane.b32.xlu0 %v1111, 64
    %v1217 = vpop.permute.xlu0 %1216
    %1218 = vrot.lane.b32.xlu0 %v1116, 64
    %v1219 = vpop.permute.xlu0 %1218
    %1220 = vrot.lane.b32.xlu0 %v1121, 64
    %v1221 = vpop.permute.xlu0 %1220
    %1222 = vrot.lane.b32.xlu0 %v1126, 64
    %v1223 = vpop.permute.xlu0 %1222
    %1224 = vrot.lane.b32.xlu0 %v1131, 64
    %v1225 = vpop.permute.xlu0 %1224
    %1226 = vrot.lane.b32.xlu0 %v1136, 64
    %v1227 = vpop.permute.xlu0 %1226
    %1228 = vrot.lane.b32.xlu0 %v1141, 64
    %v1229 = vpop.permute.xlu0 %1228
    %1230 = vrot.lane.b32.xlu0 %v1146, 64
    %v1231 = vpop.permute.xlu0 %1230
    %1232 = vrot.lane.b32.xlu0 %v1151, 64
    %v1233 = vpop.permute.xlu0 %1232
    %v1234 = vmul.f32 %v1186, %v1203
    %v1235 = vmul.f32 %v1187, %v1205
    %v1236 = vmul.f32 %v1188, %v1207
    %v1237 = vmul.f32 %v1189, %v1209
    %v1238 = vmul.f32 %v1190, %v1211
    %v1239 = vmul.f32 %v1191, %v1213
    %v1240 = vmul.f32 %v1192, %v1215
    %v1241 = vmul.f32 %v1193, %v1217
    %v1242 = vmul.f32 %v1194, %v1219
    %v1243 = vmul.f32 %v1195, %v1221
    %v1244 = vmul.f32 %v1196, %v1223
    %v1245 = vmul.f32 %v1197, %v1225
    %v1246 = vmul.f32 %v1198, %v1227
    %v1247 = vmul.f32 %v1199, %v1229
    %v1248 = vmul.f32 %v1200, %v1231
    %v1249 = vmul.f32 %v1201, %v1233
    %v1250 = vadd.f32 %v1170, %v1234
    %v1251 = vadd.f32 %v1171, %v1235
    %v1252 = vadd.f32 %v1172, %v1236
    %v1253 = vadd.f32 %v1173, %v1237
    %v1254 = vadd.f32 %v1174, %v1238
    %v1255 = vadd.f32 %v1175, %v1239
    %v1256 = vadd.f32 %v1176, %v1240
    %v1257 = vadd.f32 %v1177, %v1241
    %v1258 = vadd.f32 %v1178, %v1242
    %v1259 = vadd.f32 %v1179, %v1243
    %v1260 = vadd.f32 %v1180, %v1244
    %v1261 = vadd.f32 %v1181, %v1245
    %v1262 = vadd.f32 %v1182, %v1246
    %v1263 = vadd.f32 %v1183, %v1247
    %v1264 = vadd.f32 %v1184, %v1248
    %v1265 = vadd.f32 %v1185, %v1249
    %1266 = vmatprep.subr.mxu0 0.0
    %1267 = vmatpush1.msra.mxu0 %v1265
    %1268 = vmatprep.subr.mxu0 0.0
    %1269 = vmatpush1.msra.mxu0 %v1264
    %1270 = vmatprep.subr.mxu0 0.0
    %1271 = vmatpush1.msra.mxu0 %v1263
    %1272 = vmatprep.subr.mxu0 0.0
    %1273 = vmatpush1.msra.mxu0 %v1262
    %1274 = vmatprep.subr.mxu0 0.0
    %1275 = vmatpush1.msra.mxu0 %v1261
    %1276 = vmatprep.subr.mxu0 0.0
    %1277 = vmatpush1.msra.mxu0 %v1260
    %1278 = vmatprep.subr.mxu0 0.0
    %1279 = vmatpush1.msra.mxu0 %v1259
    %1280 = vmatprep.subr.mxu0 0.0
    %1281 = vmatpush1.msra.mxu0 %v1258
    %1282 = vmatprep.subr.mxu0 0.0
    %1283 = vmatpush1.msra.mxu0 %v1257
    %1284 = vmatprep.subr.mxu0 0.0
    %1285 = vmatpush1.msra.mxu0 %v1256
    %1286 = vmatprep.subr.mxu0 0.0
    %1287 = vmatpush1.msra.mxu0 %v1255
    %1288 = vmatprep.subr.mxu0 0.0
    %1289 = vmatpush1.msra.mxu0 %v1254
    %1290 = vmatprep.subr.mxu0 0.0
    %1291 = vmatpush1.msra.mxu0 %v1253
    %1292 = vmatprep.subr.mxu0 0.0
    %1293 = vmatpush1.msra.mxu0 %v1252
    %1294 = vmatprep.subr.mxu0 0.0
    %1295 = vmatpush1.msra.mxu0 %v1251
    %1296 = vmatprep.subr.mxu0 0.0
    %1297 = vmatpush1.msra.mxu0 %v1250
    %1298 = vmatprep.subr.mxu0 0.0
    %1299 = vmatpush2.msra.mxu0 0.0
    %1300 = vmatprep.subr.mxu0 0.0
    %1301 = vmatpush2.msra.mxu0 0.0
    %1302 = vmatprep.subr.mxu0 0.0
    %1303 = vmatpush2.msra.mxu0 0.0
    %1304 = vmatprep.subr.mxu0 0.0
    %1305 = vmatpush2.msra.mxu0 0.0
    %1306 = vmatprep.subr.mxu0 0.0
    %1307 = vmatpush2.msra.mxu0 0.0
    %1308 = vmatprep.subr.mxu0 0.0
    %1309 = vmatpush2.msra.mxu0 0.0
    %1310 = vmatprep.subr.mxu0 0.0
    %1311 = vmatpush2.msra.mxu0 0.0
    %1312 = vmatprep.subr.mxu0 0.0
    %1313 = vmatpush2.msra.mxu0 0.0
    %1314 = vmatprep.subr.mxu0 0.0
    %1315 = vmatpush2.msra.mxu0 0.0
    %1316 = vmatprep.subr.mxu0 0.0
    %1317 = vmatpush2.msra.mxu0 0.0
    %1318 = vmatprep.subr.mxu0 0.0
    %1319 = vmatpush2.msra.mxu0 0.0
    %1320 = vmatprep.subr.mxu0 0.0
    %1321 = vmatpush2.msra.mxu0 0.0
    %1322 = vmatprep.subr.mxu0 0.0
    %1323 = vmatpush2.msra.mxu0 0.0
    %1324 = vmatprep.subr.mxu0 0.0
    %1325 = vmatpush2.msra.mxu0 0.0
    %1326 = vmatprep.subr.mxu0 0.0
    %1327 = vmatpush2.msra.mxu0 0.0
    %1328 = vmatprep.subr.mxu0 0.0
    %1329 = vmatpush2.msra.mxu0 0.0
    %1330 = vmatprep.mubr.f32.mxu0 0.0
    %1331 = vmatmul.mubr.f32.gmra.mxu0 %v62
    %v1332 = vpop.f32.mrf.mxu0
    %v1333 = vadd.f32 0.0, %v1332
    %v1334 = vpop.f32.mrf.mxu0
    %1335 = vmatprep.mubr.f32.mxu0 0.0
    %1336 = vmatmul.mubr.f32.gmra.mxu0 %v63
    %v1337 = vpop.f32.mrf.mxu0
    %v1338 = vadd.f32 0.0, %v1337
    %v1339 = vpop.f32.mrf.mxu0
    %1340 = vmatprep.mubr.f32.mxu0 0.0
    %1341 = vmatmul.mubr.f32.gmra.mxu0 %v64
    %v1342 = vpop.f32.mrf.mxu0
    %v1343 = vadd.f32 0.0, %v1342
    %v1344 = vpop.f32.mrf.mxu0
    %1345 = vmatprep.mubr.f32.mxu0 0.0
    %1346 = vmatmul.mubr.f32.gmra.mxu0 %v65
    %v1347 = vpop.f32.mrf.mxu0
    %v1348 = vadd.f32 0.0, %v1347
    %v1349 = vpop.f32.mrf.mxu0
    %1350 = vmatprep.mubr.f32.mxu0 0.0
    %1351 = vmatmul.mubr.f32.gmra.mxu0 %v66
    %v1352 = vpop.f32.mrf.mxu0
    %v1353 = vadd.f32 0.0, %v1352
    %v1354 = vpop.f32.mrf.mxu0
    %1355 = vmatprep.mubr.f32.mxu0 0.0
    %1356 = vmatmul.mubr.f32.gmra.mxu0 %v67
    %v1357 = vpop.f32.mrf.mxu0
    %v1358 = vadd.f32 0.0, %v1357
    %v1359 = vpop.f32.mrf.mxu0
    %1360 = vmatprep.mubr.f32.mxu0 0.0
    %1361 = vmatmul.mubr.f32.gmra.mxu0 %v68
    %v1362 = vpop.f32.mrf.mxu0
    %v1363 = vadd.f32 0.0, %v1362
    %v1364 = vpop.f32.mrf.mxu0
    %1365 = vmatprep.mubr.f32.mxu0 0.0
    %1366 = vmatmul.mubr.f32.gmra.mxu0 %v69
    %v1367 = vpop.f32.mrf.mxu0
    %v1368 = vadd.f32 0.0, %v1367
    %v1369 = vpop.f32.mrf.mxu0
    %1370 = vmatprep.mubr.f32.mxu0 0.0
    %1371 = vmatmul.mubr.f32.gmra.mxu0 %v70
    %v1372 = vpop.f32.mrf.mxu0
    %v1373 = vadd.f32 0.0, %v1372
    %v1374 = vpop.f32.mrf.mxu0
    %1375 = vmatprep.mubr.f32.mxu0 0.0
    %1376 = vmatmul.mubr.f32.gmra.mxu0 %v71
    %v1377 = vpop.f32.mrf.mxu0
    %v1378 = vadd.f32 0.0, %v1377
    %v1379 = vpop.f32.mrf.mxu0
    %1380 = vmatprep.mubr.f32.mxu0 0.0
    %1381 = vmatmul.mubr.f32.gmra.mxu0 %v72
    %v1382 = vpop.f32.mrf.mxu0
    %v1383 = vadd.f32 0.0, %v1382
    %v1384 = vpop.f32.mrf.mxu0
    %1385 = vmatprep.mubr.f32.mxu0 0.0
    %1386 = vmatmul.mubr.f32.gmra.mxu0 %v73
    %v1387 = vpop.f32.mrf.mxu0
    %v1388 = vadd.f32 0.0, %v1387
    %v1389 = vpop.f32.mrf.mxu0
    %1390 = vmatprep.mubr.f32.mxu0 0.0
    %1391 = vmatmul.mubr.f32.gmra.mxu0 %v74
    %v1392 = vpop.f32.mrf.mxu0
    %v1393 = vadd.f32 0.0, %v1392
    %v1394 = vpop.f32.mrf.mxu0
    %1395 = vmatprep.mubr.f32.mxu0 0.0
    %1396 = vmatmul.mubr.f32.gmra.mxu0 %v75
    %v1397 = vpop.f32.mrf.mxu0
    %v1398 = vadd.f32 0.0, %v1397
    %v1399 = vpop.f32.mrf.mxu0
    %1400 = vmatprep.mubr.f32.mxu0 0.0
    %1401 = vmatmul.mubr.f32.gmra.mxu0 %v76
    %v1402 = vpop.f32.mrf.mxu0
    %v1403 = vadd.f32 0.0, %v1402
    %v1404 = vpop.f32.mrf.mxu0
    %1405 = vmatprep.mubr.f32.mxu0 0.0
    %1406 = vmatmul.mubr.f32.gmra.mxu0 %v77
    %v1407 = vpop.f32.mrf.mxu0
    %v1408 = vadd.f32 0.0, %v1407
    %v1409 = vpop.f32.mrf.mxu0
    %1410 = vmatprep.mubr.f32.mxu0 0.0
    %1411 = vmatmul.mubr.f32.gmra.mxu0 %v78
    %v1412 = vpop.f32.mrf.mxu0
    %v1413 = vadd.f32 0.0, %v1412
    %v1414 = vpop.f32.mrf.mxu0
    %1415 = vmatprep.mubr.f32.mxu0 0.0
    %1416 = vmatmul.mubr.f32.gmra.mxu0 %v79
    %v1417 = vpop.f32.mrf.mxu0
    %v1418 = vadd.f32 0.0, %v1417
    %v1419 = vpop.f32.mrf.mxu0
    %1420 = vmatprep.mubr.f32.mxu0 0.0
    %1421 = vmatmul.mubr.f32.gmra.mxu0 %v80
    %v1422 = vpop.f32.mrf.mxu0
    %v1423 = vadd.f32 0.0, %v1422
    %v1424 = vpop.f32.mrf.mxu0
    %1425 = vmatprep.mubr.f32.mxu0 0.0
    %1426 = vmatmul.mubr.f32.gmra.mxu0 %v81
    %v1427 = vpop.f32.mrf.mxu0
    %v1428 = vadd.f32 0.0, %v1427
    %v1429 = vpop.f32.mrf.mxu0
    %1430 = vmatprep.mubr.f32.mxu0 0.0
    %1431 = vmatmul.mubr.f32.gmra.mxu0 %v82
    %v1432 = vpop.f32.mrf.mxu0
    %v1433 = vadd.f32 0.0, %v1432
    %v1434 = vpop.f32.mrf.mxu0
    %1435 = vmatprep.mubr.f32.mxu0 0.0
    %1436 = vmatmul.mubr.f32.gmra.mxu0 %v83
    %v1437 = vpop.f32.mrf.mxu0
    %v1438 = vadd.f32 0.0, %v1437
    %v1439 = vpop.f32.mrf.mxu0
    %1440 = vmatprep.mubr.f32.mxu0 0.0
    %1441 = vmatmul.mubr.f32.gmra.mxu0 %v84
    %v1442 = vpop.f32.mrf.mxu0
    %v1443 = vadd.f32 0.0, %v1442
    %v1444 = vpop.f32.mrf.mxu0
    %1445 = vmatprep.mubr.f32.mxu0 0.0
    %1446 = vmatmul.mubr.f32.gmra.mxu0 %v85
    %v1447 = vpop.f32.mrf.mxu0
    %v1448 = vadd.f32 0.0, %v1447
    %v1449 = vpop.f32.mrf.mxu0
    %1450 = vmatprep.mubr.f32.mxu0 0.0
    %1451 = vmatmul.mubr.f32.gmra.mxu0 %v86
    %v1452 = vpop.f32.mrf.mxu0
    %v1453 = vadd.f32 0.0, %v1452
    %v1454 = vpop.f32.mrf.mxu0
    %1455 = vmatprep.mubr.f32.mxu0 0.0
    %1456 = vmatmul.mubr.f32.gmra.mxu0 %v87
    %v1457 = vpop.f32.mrf.mxu0
    %v1458 = vadd.f32 0.0, %v1457
    %v1459 = vpop.f32.mrf.mxu0
    %1460 = vmatprep.mubr.f32.mxu0 0.0
    %1461 = vmatmul.mubr.f32.gmra.mxu0 %v88
    %v1462 = vpop.f32.mrf.mxu0
    %v1463 = vadd.f32 0.0, %v1462
    %v1464 = vpop.f32.mrf.mxu0
    %1465 = vmatprep.mubr.f32.mxu0 0.0
    %1466 = vmatmul.mubr.f32.gmra.mxu0 %v89
    %v1467 = vpop.f32.mrf.mxu0
    %v1468 = vadd.f32 0.0, %v1467
    %v1469 = vpop.f32.mrf.mxu0
    %1470 = vmatprep.mubr.f32.mxu0 0.0
    %1471 = vmatmul.mubr.f32.gmra.mxu0 %v90
    %v1472 = vpop.f32.mrf.mxu0
    %v1473 = vadd.f32 0.0, %v1472
    %v1474 = vpop.f32.mrf.mxu0
    %1475 = vmatprep.mubr.f32.mxu0 0.0
    %1476 = vmatmul.mubr.f32.gmra.mxu0 %v91
    %v1477 = vpop.f32.mrf.mxu0
    %v1478 = vadd.f32 0.0, %v1477
    %v1479 = vpop.f32.mrf.mxu0
    %1480 = vmatprep.mubr.f32.mxu0 0.0
    %1481 = vmatmul.mubr.f32.gmra.mxu0 %v92
    %v1482 = vpop.f32.mrf.mxu0
    %v1483 = vadd.f32 0.0, %v1482
    %v1484 = vpop.f32.mrf.mxu0
    %1485 = vmatprep.mubr.f32.mxu0 0.0
    %1486 = vmatmul.mubr.f32.gmra.mxu0 %v93
    %v1487 = vpop.f32.mrf.mxu0
    %v1488 = vadd.f32 0.0, %v1487
    %v1489 = vpop.f32.mrf.mxu0
    %1490 = vdwg.mxu0
    %1491 = vrot.lane.b32.xlu0 %v1413, 64
    %v1492 = vpop.permute.xlu0 %1491
    %1493 = vrot.lane.b32.xlu0 %v1418, 64
    %v1494 = vpop.permute.xlu0 %1493
    %1495 = vrot.lane.b32.xlu0 %v1423, 64
    %v1496 = vpop.permute.xlu0 %1495
    %1497 = vrot.lane.b32.xlu0 %v1428, 64
    %v1498 = vpop.permute.xlu0 %1497
    %1499 = vrot.lane.b32.xlu0 %v1433, 64
    %v1500 = vpop.permute.xlu0 %1499
    %1501 = vrot.lane.b32.xlu0 %v1438, 64
    %v1502 = vpop.permute.xlu0 %1501
    %1503 = vrot.lane.b32.xlu0 %v1443, 64
    %v1504 = vpop.permute.xlu0 %1503
    %1505 = vrot.lane.b32.xlu0 %v1448, 64
    %v1506 = vpop.permute.xlu0 %1505
    %1507 = vrot.lane.b32.xlu0 %v1453, 64
    %v1508 = vpop.permute.xlu0 %1507
    %1509 = vrot.lane.b32.xlu0 %v1458, 64
    %v1510 = vpop.permute.xlu0 %1509
    %1511 = vrot.lane.b32.xlu0 %v1463, 64
    %v1512 = vpop.permute.xlu0 %1511
    %1513 = vrot.lane.b32.xlu0 %v1468, 64
    %v1514 = vpop.permute.xlu0 %1513
    %1515 = vrot.lane.b32.xlu0 %v1473, 64
    %v1516 = vpop.permute.xlu0 %1515
    %1517 = vrot.lane.b32.xlu0 %v1478, 64
    %v1518 = vpop.permute.xlu0 %1517
    %1519 = vrot.lane.b32.xlu0 %v1483, 64
    %v1520 = vpop.permute.xlu0 %1519
    %1521 = vrot.lane.b32.xlu0 %v1488, 64
    %v1522 = vpop.permute.xlu0 %1521
    %v1523 = vmul.f32 %v190, %v1492
    %v1524 = vmul.f32 %v191, %v1494
    %v1525 = vmul.f32 %v192, %v1496
    %v1526 = vmul.f32 %v193, %v1498
    %v1527 = vmul.f32 %v194, %v1500
    %v1528 = vmul.f32 %v195, %v1502
    %v1529 = vmul.f32 %v196, %v1504
    %v1530 = vmul.f32 %v197, %v1506
    %v1531 = vmul.f32 %v198, %v1508
    %v1532 = vmul.f32 %v199, %v1510
    %v1533 = vmul.f32 %v200, %v1512
    %v1534 = vmul.f32 %v201, %v1514
    %v1535 = vmul.f32 %v202, %v1516
    %v1536 = vmul.f32 %v203, %v1518
    %v1537 = vmul.f32 %v204, %v1520
    %v1538 = vmul.f32 %v205, %v1522
    %v1539 = vadd.f32 %v1333, %v1523
    %v1540 = vadd.f32 %v1338, %v1524
    %v1541 = vadd.f32 %v1343, %v1525
    %v1542 = vadd.f32 %v1348, %v1526
    %v1543 = vadd.f32 %v1353, %v1527
    %v1544 = vadd.f32 %v1358, %v1528
    %v1545 = vadd.f32 %v1363, %v1529
    %v1546 = vadd.f32 %v1368, %v1530
    %v1547 = vadd.f32 %v1373, %v1531
    %v1548 = vadd.f32 %v1378, %v1532
    %v1549 = vadd.f32 %v1383, %v1533
    %v1550 = vadd.f32 %v1388, %v1534
    %v1551 = vadd.f32 %v1393, %v1535
    %v1552 = vadd.f32 %v1398, %v1536
    %v1553 = vadd.f32 %v1403, %v1537
    %v1554 = vadd.f32 %v1408, %v1538
    %1555 = vmatprep.subr.mxu0 0.0
    %1556 = vmatpush1.msra.mxu0 %v141
    %1557 = vmatprep.subr.mxu0 0.0
    %1558 = vmatpush1.msra.mxu0 %v140
    %1559 = vmatprep.subr.mxu0 0.0
    %1560 = vmatpush1.msra.mxu0 %v139
    %1561 = vmatprep.subr.mxu0 0.0
    %1562 = vmatpush1.msra.mxu0 %v138
    %1563 = vmatprep.subr.mxu0 0.0
    %1564 = vmatpush1.msra.mxu0 %v137
    %1565 = vmatprep.subr.mxu0 0.0
    %1566 = vmatpush1.msra.mxu0 %v136
    %1567 = vmatprep.subr.mxu0 0.0
    %1568 = vmatpush1.msra.mxu0 %v135
    %1569 = vmatprep.subr.mxu0 0.0
    %1570 = vmatpush1.msra.mxu0 %v134
    %1571 = vmatprep.subr.mxu0 0.0
    %1572 = vmatpush1.msra.mxu0 %v133
    %1573 = vmatprep.subr.mxu0 0.0
    %1574 = vmatpush1.msra.mxu0 %v132
    %1575 = vmatprep.subr.mxu0 0.0
    %1576 = vmatpush1.msra.mxu0 %v131
    %1577 = vmatprep.subr.mxu0 0.0
    %1578 = vmatpush1.msra.mxu0 %v130
    %1579 = vmatprep.subr.mxu0 0.0
    %1580 = vmatpush1.msra.mxu0 %v129
    %1581 = vmatprep.subr.mxu0 0.0
    %1582 = vmatpush1.msra.mxu0 %v128
    %1583 = vmatprep.subr.mxu0 0.0
    %1584 = vmatpush1.msra.mxu0 %v127
    %1585 = vmatprep.subr.mxu0 0.0
    %1586 = vmatpush1.msra.mxu0 %v126
    %1587 = vmatprep.subr.mxu0 0.0
    %1588 = vmatpush2.msra.mxu0 0.0
    %1589 = vmatprep.subr.mxu0 0.0
    %1590 = vmatpush2.msra.mxu0 0.0
    %1591 = vmatprep.subr.mxu0 0.0
    %1592 = vmatpush2.msra.mxu0 0.0
    %1593 = vmatprep.subr.mxu0 0.0
    %1594 = vmatpush2.msra.mxu0 0.0
    %1595 = vmatprep.subr.mxu0 0.0
    %1596 = vmatpush2.msra.mxu0 0.0
    %1597 = vmatprep.subr.mxu0 0.0
    %1598 = vmatpush2.msra.mxu0 0.0
    %1599 = vmatprep.subr.mxu0 0.0
    %1600 = vmatpush2.msra.mxu0 0.0
    %1601 = vmatprep.subr.mxu0 0.0
    %1602 = vmatpush2.msra.mxu0 0.0
    %1603 = vmatprep.subr.mxu0 0.0
    %1604 = vmatpush2.msra.mxu0 0.0
    %1605 = vmatprep.subr.mxu0 0.0
    %1606 = vmatpush2.msra.mxu0 0.0
    %1607 = vmatprep.subr.mxu0 0.0
    %1608 = vmatpush2.msra.mxu0 0.0
    %1609 = vmatprep.subr.mxu0 0.0
    %1610 = vmatpush2.msra.mxu0 0.0
    %1611 = vmatprep.subr.mxu0 0.0
    %1612 = vmatpush2.msra.mxu0 0.0
    %1613 = vmatprep.subr.mxu0 0.0
    %1614 = vmatpush2.msra.mxu0 0.0
    %1615 = vmatprep.subr.mxu0 0.0
    %1616 = vmatpush2.msra.mxu0 0.0
    %1617 = vmatprep.subr.mxu0 0.0
    %1618 = vmatpush2.msra.mxu0 0.0
    %1619 = vmatprep.mubr.f32.mxu0 0.0
    %1620 = vmatmul.mubr.f32.gmra.mxu0 %v1539
    %v1621 = vpop.f32.mrf.mxu0
    %v1622 = vadd.f32 0.0, %v1621
    %v1623 = vpop.f32.mrf.mxu0
    %1624 = vmatprep.mubr.f32.mxu0 0.0
    %1625 = vmatmul.mubr.f32.gmra.mxu0 %v1540
    %v1626 = vpop.f32.mrf.mxu0
    %v1627 = vadd.f32 0.0, %v1626
    %v1628 = vpop.f32.mrf.mxu0
    %1629 = vmatprep.mubr.f32.mxu0 0.0
    %1630 = vmatmul.mubr.f32.gmra.mxu0 %v1541
    %v1631 = vpop.f32.mrf.mxu0
    %v1632 = vadd.f32 0.0, %v1631
    %v1633 = vpop.f32.mrf.mxu0
    %1634 = vmatprep.mubr.f32.mxu0 0.0
    %1635 = vmatmul.mubr.f32.gmra.mxu0 %v1542
    %v1636 = vpop.f32.mrf.mxu0
    %v1637 = vadd.f32 0.0, %v1636
    %v1638 = vpop.f32.mrf.mxu0
    %1639 = vmatprep.mubr.f32.mxu0 0.0
    %1640 = vmatmul.mubr.f32.gmra.mxu0 %v1543
    %v1641 = vpop.f32.mrf.mxu0
    %v1642 = vadd.f32 0.0, %v1641
    %v1643 = vpop.f32.mrf.mxu0
    %1644 = vmatprep.mubr.f32.mxu0 0.0
    %1645 = vmatmul.mubr.f32.gmra.mxu0 %v1544
    %v1646 = vpop.f32.mrf.mxu0
    %v1647 = vadd.f32 0.0, %v1646
    %v1648 = vpop.f32.mrf.mxu0
    %1649 = vmatprep.mubr.f32.mxu0 0.0
    %1650 = vmatmul.mubr.f32.gmra.mxu0 %v1545
    %v1651 = vpop.f32.mrf.mxu0
    %v1652 = vadd.f32 0.0, %v1651
    %v1653 = vpop.f32.mrf.mxu0
    %1654 = vmatprep.mubr.f32.mxu0 0.0
    %1655 = vmatmul.mubr.f32.gmra.mxu0 %v1546
    %v1656 = vpop.f32.mrf.mxu0
    %v1657 = vadd.f32 0.0, %v1656
    %v1658 = vpop.f32.mrf.mxu0
    %1659 = vmatprep.mubr.f32.mxu0 0.0
    %1660 = vmatmul.mubr.f32.gmra.mxu0 %v1547
    %v1661 = vpop.f32.mrf.mxu0
    %v1662 = vadd.f32 0.0, %v1661
    %v1663 = vpop.f32.mrf.mxu0
    %1664 = vmatprep.mubr.f32.mxu0 0.0
    %1665 = vmatmul.mubr.f32.gmra.mxu0 %v1548
    %v1666 = vpop.f32.mrf.mxu0
    %v1667 = vadd.f32 0.0, %v1666
    %v1668 = vpop.f32.mrf.mxu0
    %1669 = vmatprep.mubr.f32.mxu0 0.0
    %1670 = vmatmul.mubr.f32.gmra.mxu0 %v1549
    %v1671 = vpop.f32.mrf.mxu0
    %v1672 = vadd.f32 0.0, %v1671
    %v1673 = vpop.f32.mrf.mxu0
    %1674 = vmatprep.mubr.f32.mxu0 0.0
    %1675 = vmatmul.mubr.f32.gmra.mxu0 %v1550
    %v1676 = vpop.f32.mrf.mxu0
    %v1677 = vadd.f32 0.0, %v1676
    %v1678 = vpop.f32.mrf.mxu0
    %1679 = vmatprep.mubr.f32.mxu0 0.0
    %1680 = vmatmul.mubr.f32.gmra.mxu0 %v1551
    %v1681 = vpop.f32.mrf.mxu0
    %v1682 = vadd.f32 0.0, %v1681
    %v1683 = vpop.f32.mrf.mxu0
    %1684 = vmatprep.mubr.f32.mxu0 0.0
    %1685 = vmatmul.mubr.f32.gmra.mxu0 %v1552
    %v1686 = vpop.f32.mrf.mxu0
    %v1687 = vadd.f32 0.0, %v1686
    %v1688 = vpop.f32.mrf.mxu0
    %1689 = vmatprep.mubr.f32.mxu0 0.0
    %1690 = vmatmul.mubr.f32.gmra.mxu0 %v1553
    %v1691 = vpop.f32.mrf.mxu0
    %v1692 = vadd.f32 0.0, %v1691
    %v1693 = vpop.f32.mrf.mxu0
    %1694 = vmatprep.mubr.f32.mxu0 0.0
    %1695 = vmatmul.mubr.f32.gmra.mxu0 %v1554
    %v1696 = vpop.f32.mrf.mxu0
    %v1697 = vadd.f32 0.0, %v1696
    %v1698 = vpop.f32.mrf.mxu0
    %1699 = vdwg.mxu0
    %v1700 = vmul.f32 %v158, %v1622
    %v1701 = vmul.f32 %v159, %v1627
    %v1702 = vmul.f32 %v160, %v1632
    %v1703 = vmul.f32 %v161, %v1637
    %v1704 = vmul.f32 %v162, %v1642
    %v1705 = vmul.f32 %v163, %v1647
    %v1706 = vmul.f32 %v164, %v1652
    %v1707 = vmul.f32 %v165, %v1657
    %v1708 = vmul.f32 %v166, %v1662
    %v1709 = vmul.f32 %v167, %v1667
    %v1710 = vmul.f32 %v168, %v1672
    %v1711 = vmul.f32 %v169, %v1677
    %v1712 = vmul.f32 %v170, %v1682
    %v1713 = vmul.f32 %v171, %v1687
    %v1714 = vmul.f32 %v172, %v1692
    %v1715 = vmul.f32 %v173, %v1697
    %1716 = vrot.lane.b32.xlu0 %v1622, 64
    %v1717 = vpop.permute.xlu0 %1716
    %1718 = vrot.lane.b32.xlu0 %v1627, 64
    %v1719 = vpop.permute.xlu0 %1718
    %1720 = vrot.lane.b32.xlu0 %v1632, 64
    %v1721 = vpop.permute.xlu0 %1720
    %1722 = vrot.lane.b32.xlu0 %v1637, 64
    %v1723 = vpop.permute.xlu0 %1722
    %1724 = vrot.lane.b32.xlu0 %v1642, 64
    %v1725 = vpop.permute.xlu0 %1724
    %1726 = vrot.lane.b32.xlu0 %v1647, 64
    %v1727 = vpop.permute.xlu0 %1726
    %1728 = vrot.lane.b32.xlu0 %v1652, 64
    %v1729 = vpop.permute.xlu0 %1728
    %1730 = vrot.lane.b32.xlu0 %v1657, 64
    %v1731 = vpop.permute.xlu0 %1730
    %1732 = vrot.lane.b32.xlu0 %v1662, 64
    %v1733 = vpop.permute.xlu0 %1732
    %1734 = vrot.lane.b32.xlu0 %v1667, 64
    %v1735 = vpop.permute.xlu0 %1734
    %1736 = vrot.lane.b32.xlu0 %v1672, 64
    %v1737 = vpop.permute.xlu0 %1736
    %1738 = vrot.lane.b32.xlu0 %v1677, 64
    %v1739 = vpop.permute.xlu0 %1738
    %1740 = vrot.lane.b32.xlu0 %v1682, 64
    %v1741 = vpop.permute.xlu0 %1740
    %1742 = vrot.lane.b32.xlu0 %v1687, 64
    %v1743 = vpop.permute.xlu0 %1742
    %1744 = vrot.lane.b32.xlu0 %v1692, 64
    %v1745 = vpop.permute.xlu0 %1744
    %1746 = vrot.lane.b32.xlu0 %v1697, 64
    %v1747 = vpop.permute.xlu0 %1746
    %v1748 = vmul.f32 %v174, %v1717
    %v1749 = vmul.f32 %v175, %v1719
    %v1750 = vmul.f32 %v176, %v1721
    %v1751 = vmul.f32 %v177, %v1723
    %v1752 = vmul.f32 %v178, %v1725
    %v1753 = vmul.f32 %v179, %v1727
    %v1754 = vmul.f32 %v180, %v1729
    %v1755 = vmul.f32 %v181, %v1731
    %v1756 = vmul.f32 %v182, %v1733
    %v1757 = vmul.f32 %v183, %v1735
    %v1758 = vmul.f32 %v184, %v1737
    %v1759 = vmul.f32 %v185, %v1739
    %v1760 = vmul.f32 %v186, %v1741
    %v1761 = vmul.f32 %v187, %v1743
    %v1762 = vmul.f32 %v188, %v1745
    %v1763 = vmul.f32 %v189, %v1747
    %v1764 = vadd.f32 %v1700, %v1748
    %v1765 = vadd.f32 %v1701, %v1749
    %v1766 = vadd.f32 %v1702, %v1750
    %v1767 = vadd.f32 %v1703, %v1751
    %v1768 = vadd.f32 %v1704, %v1752
    %v1769 = vadd.f32 %v1705, %v1753
    %v1770 = vadd.f32 %v1706, %v1754
    %v1771 = vadd.f32 %v1707, %v1755
    %v1772 = vadd.f32 %v1708, %v1756
    %v1773 = vadd.f32 %v1709, %v1757
    %v1774 = vadd.f32 %v1710, %v1758
    %v1775 = vadd.f32 %v1711, %v1759
    %v1776 = vadd.f32 %v1712, %v1760
    %v1777 = vadd.f32 %v1713, %v1761
    %v1778 = vadd.f32 %v1714, %v1762
    %v1779 = vadd.f32 %v1715, %v1763
    %1780 = vmatprep.subr.mxu0 0.0
    %1781 = vmatpush1.msra.mxu0 %v1779
    %1782 = vmatprep.subr.mxu0 0.0
    %1783 = vmatpush1.msra.mxu0 %v1778
    %1784 = vmatprep.subr.mxu0 0.0
    %1785 = vmatpush1.msra.mxu0 %v1777
    %1786 = vmatprep.subr.mxu0 0.0
    %1787 = vmatpush1.msra.mxu0 %v1776
    %1788 = vmatprep.subr.mxu0 0.0
    %1789 = vmatpush1.msra.mxu0 %v1775
    %1790 = vmatprep.subr.mxu0 0.0
    %1791 = vmatpush1.msra.mxu0 %v1774
    %1792 = vmatprep.subr.mxu0 0.0
    %1793 = vmatpush1.msra.mxu0 %v1773
    %1794 = vmatprep.subr.mxu0 0.0
    %1795 = vmatpush1.msra.mxu0 %v1772
    %1796 = vmatprep.subr.mxu0 0.0
    %1797 = vmatpush1.msra.mxu0 %v1771
    %1798 = vmatprep.subr.mxu0 0.0
    %1799 = vmatpush1.msra.mxu0 %v1770
    %1800 = vmatprep.subr.mxu0 0.0
    %1801 = vmatpush1.msra.mxu0 %v1769
    %1802 = vmatprep.subr.mxu0 0.0
    %1803 = vmatpush1.msra.mxu0 %v1768
    %1804 = vmatprep.subr.mxu0 0.0
    %1805 = vmatpush1.msra.mxu0 %v1767
    %1806 = vmatprep.subr.mxu0 0.0
    %1807 = vmatpush1.msra.mxu0 %v1766
    %1808 = vmatprep.subr.mxu0 0.0
    %1809 = vmatpush1.msra.mxu0 %v1765
    %1810 = vmatprep.subr.mxu0 0.0
    %1811 = vmatpush1.msra.mxu0 %v1764
    %1812 = vmatprep.subr.mxu0 0.0
    %1813 = vmatpush2.msra.mxu0 0.0
    %1814 = vmatprep.subr.mxu0 0.0
    %1815 = vmatpush2.msra.mxu0 0.0
    %1816 = vmatprep.subr.mxu0 0.0
    %1817 = vmatpush2.msra.mxu0 0.0
    %1818 = vmatprep.subr.mxu0 0.0
    %1819 = vmatpush2.msra.mxu0 0.0
    %1820 = vmatprep.subr.mxu0 0.0
    %1821 = vmatpush2.msra.mxu0 0.0
    %1822 = vmatprep.subr.mxu0 0.0
    %1823 = vmatpush2.msra.mxu0 0.0
    %1824 = vmatprep.subr.mxu0 0.0
    %1825 = vmatpush2.msra.mxu0 0.0
    %1826 = vmatprep.subr.mxu0 0.0
    %1827 = vmatpush2.msra.mxu0 0.0
    %1828 = vmatprep.subr.mxu0 0.0
    %1829 = vmatpush2.msra.mxu0 0.0
    %1830 = vmatprep.subr.mxu0 0.0
    %1831 = vmatpush2.msra.mxu0 0.0
    %1832 = vmatprep.subr.mxu0 0.0
    %1833 = vmatpush2.msra.mxu0 0.0
    %1834 = vmatprep.subr.mxu0 0.0
    %1835 = vmatpush2.msra.mxu0 0.0
    %1836 = vmatprep.subr.mxu0 0.0
    %1837 = vmatpush2.msra.mxu0 0.0
    %1838 = vmatprep.subr.mxu0 0.0
    %1839 = vmatpush2.msra.mxu0 0.0
    %1840 = vmatprep.subr.mxu0 0.0
    %1841 = vmatpush2.msra.mxu0 0.0
    %1842 = vmatprep.subr.mxu0 0.0
    %1843 = vmatpush2.msra.mxu0 0.0
    %1844 = vmatprep.mubr.f32.mxu0 0.0
    %1845 = vmatmul.mubr.f32.gmra.mxu0 %v94
    %v1846 = vpop.f32.mrf.mxu0
    %v1847 = vadd.f32 0.0, %v1846
    %v1848 = vpop.f32.mrf.mxu0
    %1849 = vmatprep.mubr.f32.mxu0 0.0
    %1850 = vmatmul.mubr.f32.gmra.mxu0 %v95
    %v1851 = vpop.f32.mrf.mxu0
    %v1852 = vadd.f32 0.0, %v1851
    %v1853 = vpop.f32.mrf.mxu0
    %1854 = vmatprep.mubr.f32.mxu0 0.0
    %1855 = vmatmul.mubr.f32.gmra.mxu0 %v96
    %v1856 = vpop.f32.mrf.mxu0
    %v1857 = vadd.f32 0.0, %v1856
    %v1858 = vpop.f32.mrf.mxu0
    %1859 = vmatprep.mubr.f32.mxu0 0.0
    %1860 = vmatmul.mubr.f32.gmra.mxu0 %v97
    %v1861 = vpop.f32.mrf.mxu0
    %v1862 = vadd.f32 0.0, %v1861
    %v1863 = vpop.f32.mrf.mxu0
    %1864 = vmatprep.mubr.f32.mxu0 0.0
    %1865 = vmatmul.mubr.f32.gmra.mxu0 %v98
    %v1866 = vpop.f32.mrf.mxu0
    %v1867 = vadd.f32 0.0, %v1866
    %v1868 = vpop.f32.mrf.mxu0
    %1869 = vmatprep.mubr.f32.mxu0 0.0
    %1870 = vmatmul.mubr.f32.gmra.mxu0 %v99
    %v1871 = vpop.f32.mrf.mxu0
    %v1872 = vadd.f32 0.0, %v1871
    %v1873 = vpop.f32.mrf.mxu0
    %1874 = vmatprep.mubr.f32.mxu0 0.0
    %1875 = vmatmul.mubr.f32.gmra.mxu0 %v100
    %v1876 = vpop.f32.mrf.mxu0
    %v1877 = vadd.f32 0.0, %v1876
    %v1878 = vpop.f32.mrf.mxu0
    %1879 = vmatprep.mubr.f32.mxu0 0.0
    %1880 = vmatmul.mubr.f32.gmra.mxu0 %v101
    %v1881 = vpop.f32.mrf.mxu0
    %v1882 = vadd.f32 0.0, %v1881
    %v1883 = vpop.f32.mrf.mxu0
    %1884 = vmatprep.mubr.f32.mxu0 0.0
    %1885 = vmatmul.mubr.f32.gmra.mxu0 %v102
    %v1886 = vpop.f32.mrf.mxu0
    %v1887 = vadd.f32 0.0, %v1886
    %v1888 = vpop.f32.mrf.mxu0
    %1889 = vmatprep.mubr.f32.mxu0 0.0
    %1890 = vmatmul.mubr.f32.gmra.mxu0 %v103
    %v1891 = vpop.f32.mrf.mxu0
    %v1892 = vadd.f32 0.0, %v1891
    %v1893 = vpop.f32.mrf.mxu0
    %1894 = vmatprep.mubr.f32.mxu0 0.0
    %1895 = vmatmul.mubr.f32.gmra.mxu0 %v104
    %v1896 = vpop.f32.mrf.mxu0
    %v1897 = vadd.f32 0.0, %v1896
    %v1898 = vpop.f32.mrf.mxu0
    %1899 = vmatprep.mubr.f32.mxu0 0.0
    %1900 = vmatmul.mubr.f32.gmra.mxu0 %v105
    %v1901 = vpop.f32.mrf.mxu0
    %v1902 = vadd.f32 0.0, %v1901
    %v1903 = vpop.f32.mrf.mxu0
    %1904 = vmatprep.mubr.f32.mxu0 0.0
    %1905 = vmatmul.mubr.f32.gmra.mxu0 %v106
    %v1906 = vpop.f32.mrf.mxu0
    %v1907 = vadd.f32 0.0, %v1906
    %v1908 = vpop.f32.mrf.mxu0
    %1909 = vmatprep.mubr.f32.mxu0 0.0
    %1910 = vmatmul.mubr.f32.gmra.mxu0 %v107
    %v1911 = vpop.f32.mrf.mxu0
    %v1912 = vadd.f32 0.0, %v1911
    %v1913 = vpop.f32.mrf.mxu0
    %1914 = vmatprep.mubr.f32.mxu0 0.0
    %1915 = vmatmul.mubr.f32.gmra.mxu0 %v108
    %v1916 = vpop.f32.mrf.mxu0
    %v1917 = vadd.f32 0.0, %v1916
    %v1918 = vpop.f32.mrf.mxu0
    %1919 = vmatprep.mubr.f32.mxu0 0.0
    %1920 = vmatmul.mubr.f32.gmra.mxu0 %v109
    %v1921 = vpop.f32.mrf.mxu0
    %v1922 = vadd.f32 0.0, %v1921
    %v1923 = vpop.f32.mrf.mxu0
    %1924 = vmatprep.mubr.f32.mxu0 0.0
    %1925 = vmatmul.mubr.f32.gmra.mxu0 %v110
    %v1926 = vpop.f32.mrf.mxu0
    %v1927 = vadd.f32 0.0, %v1926
    %v1928 = vpop.f32.mrf.mxu0
    %1929 = vmatprep.mubr.f32.mxu0 0.0
    %1930 = vmatmul.mubr.f32.gmra.mxu0 %v111
    %v1931 = vpop.f32.mrf.mxu0
    %v1932 = vadd.f32 0.0, %v1931
    %v1933 = vpop.f32.mrf.mxu0
    %1934 = vmatprep.mubr.f32.mxu0 0.0
    %1935 = vmatmul.mubr.f32.gmra.mxu0 %v112
    %v1936 = vpop.f32.mrf.mxu0
    %v1937 = vadd.f32 0.0, %v1936
    %v1938 = vpop.f32.mrf.mxu0
    %1939 = vmatprep.mubr.f32.mxu0 0.0
    %1940 = vmatmul.mubr.f32.gmra.mxu0 %v113
    %v1941 = vpop.f32.mrf.mxu0
    %v1942 = vadd.f32 0.0, %v1941
    %v1943 = vpop.f32.mrf.mxu0
    %1944 = vmatprep.mubr.f32.mxu0 0.0
    %1945 = vmatmul.mubr.f32.gmra.mxu0 %v114
    %v1946 = vpop.f32.mrf.mxu0
    %v1947 = vadd.f32 0.0, %v1946
    %v1948 = vpop.f32.mrf.mxu0
    %1949 = vmatprep.mubr.f32.mxu0 0.0
    %1950 = vmatmul.mubr.f32.gmra.mxu0 %v115
    %v1951 = vpop.f32.mrf.mxu0
    %v1952 = vadd.f32 0.0, %v1951
    %v1953 = vpop.f32.mrf.mxu0
    %1954 = vmatprep.mubr.f32.mxu0 0.0
    %1955 = vmatmul.mubr.f32.gmra.mxu0 %v116
    %v1956 = vpop.f32.mrf.mxu0
    %v1957 = vadd.f32 0.0, %v1956
    %v1958 = vpop.f32.mrf.mxu0
    %1959 = vmatprep.mubr.f32.mxu0 0.0
    %1960 = vmatmul.mubr.f32.gmra.mxu0 %v117
    %v1961 = vpop.f32.mrf.mxu0
    %v1962 = vadd.f32 0.0, %v1961
    %v1963 = vpop.f32.mrf.mxu0
    %1964 = vmatprep.mubr.f32.mxu0 0.0
    %1965 = vmatmul.mubr.f32.gmra.mxu0 %v118
    %v1966 = vpop.f32.mrf.mxu0
    %v1967 = vadd.f32 0.0, %v1966
    %v1968 = vpop.f32.mrf.mxu0
    %1969 = vmatprep.mubr.f32.mxu0 0.0
    %1970 = vmatmul.mubr.f32.gmra.mxu0 %v119
    %v1971 = vpop.f32.mrf.mxu0
    %v1972 = vadd.f32 0.0, %v1971
    %v1973 = vpop.f32.mrf.mxu0
    %1974 = vmatprep.mubr.f32.mxu0 0.0
    %1975 = vmatmul.mubr.f32.gmra.mxu0 %v120
    %v1976 = vpop.f32.mrf.mxu0
    %v1977 = vadd.f32 0.0, %v1976
    %v1978 = vpop.f32.mrf.mxu0
    %1979 = vmatprep.mubr.f32.mxu0 0.0
    %1980 = vmatmul.mubr.f32.gmra.mxu0 %v121
    %v1981 = vpop.f32.mrf.mxu0
    %v1982 = vadd.f32 0.0, %v1981
    %v1983 = vpop.f32.mrf.mxu0
    %1984 = vmatprep.mubr.f32.mxu0 0.0
    %1985 = vmatmul.mubr.f32.gmra.mxu0 %v122
    %v1986 = vpop.f32.mrf.mxu0
    %v1987 = vadd.f32 0.0, %v1986
    %v1988 = vpop.f32.mrf.mxu0
    %1989 = vmatprep.mubr.f32.mxu0 0.0
    %1990 = vmatmul.mubr.f32.gmra.mxu0 %v123
    %v1991 = vpop.f32.mrf.mxu0
    %v1992 = vadd.f32 0.0, %v1991
    %v1993 = vpop.f32.mrf.mxu0
    %1994 = vmatprep.mubr.f32.mxu0 0.0
    %1995 = vmatmul.mubr.f32.gmra.mxu0 %v124
    %v1996 = vpop.f32.mrf.mxu0
    %v1997 = vadd.f32 0.0, %v1996
    %v1998 = vpop.f32.mrf.mxu0
    %1999 = vmatprep.mubr.f32.mxu0 0.0
    %2000 = vmatmul.mubr.f32.gmra.mxu0 %v125
    %v2001 = vpop.f32.mrf.mxu0
    %v2002 = vadd.f32 0.0, %v2001
    %v2003 = vpop.f32.mrf.mxu0
    %2004 = vdwg.mxu0
    %2005 = vrot.lane.b32.xlu0 %v1927, 64
    %v2006 = vpop.permute.xlu0 %2005
    %2007 = vrot.lane.b32.xlu0 %v1932, 64
    %v2008 = vpop.permute.xlu0 %2007
    %2009 = vrot.lane.b32.xlu0 %v1937, 64
    %v2010 = vpop.permute.xlu0 %2009
    %2011 = vrot.lane.b32.xlu0 %v1942, 64
    %v2012 = vpop.permute.xlu0 %2011
    %2013 = vrot.lane.b32.xlu0 %v1947, 64
    %v2014 = vpop.permute.xlu0 %2013
    %2015 = vrot.lane.b32.xlu0 %v1952, 64
    %v2016 = vpop.permute.xlu0 %2015
    %2017 = vrot.lane.b32.xlu0 %v1957, 64
    %v2018 = vpop.permute.xlu0 %2017
    %2019 = vrot.lane.b32.xlu0 %v1962, 64
    %v2020 = vpop.permute.xlu0 %2019
    %2021 = vrot.lane.b32.xlu0 %v1967, 64
    %v2022 = vpop.permute.xlu0 %2021
    %2023 = vrot.lane.b32.xlu0 %v1972, 64
    %v2024 = vpop.permute.xlu0 %2023
    %2025 = vrot.lane.b32.xlu0 %v1977, 64
    %v2026 = vpop.permute.xlu0 %2025
    %2027 = vrot.lane.b32.xlu0 %v1982, 64
    %v2028 = vpop.permute.xlu0 %2027
    %2029 = vrot.lane.b32.xlu0 %v1987, 64
    %v2030 = vpop.permute.xlu0 %2029
    %2031 = vrot.lane.b32.xlu0 %v1992, 64
    %v2032 = vpop.permute.xlu0 %2031
    %2033 = vrot.lane.b32.xlu0 %v1997, 64
    %v2034 = vpop.permute.xlu0 %2033
    %2035 = vrot.lane.b32.xlu0 %v2002, 64
    %v2036 = vpop.permute.xlu0 %2035
    %v2037 = vmul.f32 %v190, %v2006
    %v2038 = vmul.f32 %v191, %v2008
    %v2039 = vmul.f32 %v192, %v2010
    %v2040 = vmul.f32 %v193, %v2012
    %v2041 = vmul.f32 %v194, %v2014
    %v2042 = vmul.f32 %v195, %v2016
    %v2043 = vmul.f32 %v196, %v2018
    %v2044 = vmul.f32 %v197, %v2020
    %v2045 = vmul.f32 %v198, %v2022
    %v2046 = vmul.f32 %v199, %v2024
    %v2047 = vmul.f32 %v200, %v2026
    %v2048 = vmul.f32 %v201, %v2028
    %v2049 = vmul.f32 %v202, %v2030
    %v2050 = vmul.f32 %v203, %v2032
    %v2051 = vmul.f32 %v204, %v2034
    %v2052 = vmul.f32 %v205, %v2036
    %v2053 = vadd.f32 %v1847, %v2037
    %v2054 = vadd.f32 %v1852, %v2038
    %v2055 = vadd.f32 %v1857, %v2039
    %v2056 = vadd.f32 %v1862, %v2040
    %v2057 = vadd.f32 %v1867, %v2041
    %v2058 = vadd.f32 %v1872, %v2042
    %v2059 = vadd.f32 %v1877, %v2043
    %v2060 = vadd.f32 %v1882, %v2044
    %v2061 = vadd.f32 %v1887, %v2045
    %v2062 = vadd.f32 %v1892, %v2046
    %v2063 = vadd.f32 %v1897, %v2047
    %v2064 = vadd.f32 %v1902, %v2048
    %v2065 = vadd.f32 %v1907, %v2049
    %v2066 = vadd.f32 %v1912, %v2050
    %v2067 = vadd.f32 %v1917, %v2051
    %v2068 = vadd.f32 %v1922, %v2052
    %2069 = vmatprep.subr.mxu0 0.0
    %2070 = vmatpush1.msra.mxu0 %v157
    %2071 = vmatprep.subr.mxu0 0.0
    %2072 = vmatpush1.msra.mxu0 %v156
    %2073 = vmatprep.subr.mxu0 0.0
    %2074 = vmatpush1.msra.mxu0 %v155
    %2075 = vmatprep.subr.mxu0 0.0
    %2076 = vmatpush1.msra.mxu0 %v154
    %2077 = vmatprep.subr.mxu0 0.0
    %2078 = vmatpush1.msra.mxu0 %v153
    %2079 = vmatprep.subr.mxu0 0.0
    %2080 = vmatpush1.msra.mxu0 %v152
    %2081 = vmatprep.subr.mxu0 0.0
    %2082 = vmatpush1.msra.mxu0 %v151
    %2083 = vmatprep.subr.mxu0 0.0
    %2084 = vmatpush1.msra.mxu0 %v150
    %2085 = vmatprep.subr.mxu0 0.0
    %2086 = vmatpush1.msra.mxu0 %v149
    %2087 = vmatprep.subr.mxu0 0.0
    %2088 = vmatpush1.msra.mxu0 %v148
    %2089 = vmatprep.subr.mxu0 0.0
    %2090 = vmatpush1.msra.mxu0 %v147
    %2091 = vmatprep.subr.mxu0 0.0
    %2092 = vmatpush1.msra.mxu0 %v146
    %2093 = vmatprep.subr.mxu0 0.0
    %2094 = vmatpush1.msra.mxu0 %v145
    %2095 = vmatprep.subr.mxu0 0.0
    %2096 = vmatpush1.msra.mxu0 %v144
    %2097 = vmatprep.subr.mxu0 0.0
    %2098 = vmatpush1.msra.mxu0 %v143
    %2099 = vmatprep.subr.mxu0 0.0
    %2100 = vmatpush1.msra.mxu0 %v142
    %2101 = vmatprep.subr.mxu0 0.0
    %2102 = vmatpush2.msra.mxu0 0.0
    %2103 = vmatprep.subr.mxu0 0.0
    %2104 = vmatpush2.msra.mxu0 0.0
    %2105 = vmatprep.subr.mxu0 0.0
    %2106 = vmatpush2.msra.mxu0 0.0
    %2107 = vmatprep.subr.mxu0 0.0
    %2108 = vmatpush2.msra.mxu0 0.0
    %2109 = vmatprep.subr.mxu0 0.0
    %2110 = vmatpush2.msra.mxu0 0.0
    %2111 = vmatprep.subr.mxu0 0.0
    %2112 = vmatpush2.msra.mxu0 0.0
    %2113 = vmatprep.subr.mxu0 0.0
    %2114 = vmatpush2.msra.mxu0 0.0
    %2115 = vmatprep.subr.mxu0 0.0
    %2116 = vmatpush2.msra.mxu0 0.0
    %2117 = vmatprep.subr.mxu0 0.0
    %2118 = vmatpush2.msra.mxu0 0.0
    %2119 = vmatprep.subr.mxu0 0.0
    %2120 = vmatpush2.msra.mxu0 0.0
    %2121 = vmatprep.subr.mxu0 0.0
    %2122 = vmatpush2.msra.mxu0 0.0
    %2123 = vmatprep.subr.mxu0 0.0
    %2124 = vmatpush2.msra.mxu0 0.0
    %2125 = vmatprep.subr.mxu0 0.0
    %2126 = vmatpush2.msra.mxu0 0.0
    %2127 = vmatprep.subr.mxu0 0.0
    %2128 = vmatpush2.msra.mxu0 0.0
    %2129 = vmatprep.subr.mxu0 0.0
    %2130 = vmatpush2.msra.mxu0 0.0
    %2131 = vmatprep.subr.mxu0 0.0
    %2132 = vmatpush2.msra.mxu0 0.0
    %2133 = vmatprep.mubr.f32.mxu0 0.0
    %2134 = vmatmul.mubr.f32.gmra.mxu0 %v2053
    %v2135 = vpop.f32.mrf.mxu0
    %v2136 = vadd.f32 0.0, %v2135
    %v2137 = vpop.f32.mrf.mxu0
    %2138 = vmatprep.mubr.f32.mxu0 0.0
    %2139 = vmatmul.mubr.f32.gmra.mxu0 %v2054
    %v2140 = vpop.f32.mrf.mxu0
    %v2141 = vadd.f32 0.0, %v2140
    %v2142 = vpop.f32.mrf.mxu0
    %2143 = vmatprep.mubr.f32.mxu0 0.0
    %2144 = vmatmul.mubr.f32.gmra.mxu0 %v2055
    %v2145 = vpop.f32.mrf.mxu0
    %v2146 = vadd.f32 0.0, %v2145
    %v2147 = vpop.f32.mrf.mxu0
    %2148 = vmatprep.mubr.f32.mxu0 0.0
    %2149 = vmatmul.mubr.f32.gmra.mxu0 %v2056
    %v2150 = vpop.f32.mrf.mxu0
    %v2151 = vadd.f32 0.0, %v2150
    %v2152 = vpop.f32.mrf.mxu0
    %2153 = vmatprep.mubr.f32.mxu0 0.0
    %2154 = vmatmul.mubr.f32.gmra.mxu0 %v2057
    %v2155 = vpop.f32.mrf.mxu0
    %v2156 = vadd.f32 0.0, %v2155
    %v2157 = vpop.f32.mrf.mxu0
    %2158 = vmatprep.mubr.f32.mxu0 0.0
    %2159 = vmatmul.mubr.f32.gmra.mxu0 %v2058
    %v2160 = vpop.f32.mrf.mxu0
    %v2161 = vadd.f32 0.0, %v2160
    %v2162 = vpop.f32.mrf.mxu0
    %2163 = vmatprep.mubr.f32.mxu0 0.0
    %2164 = vmatmul.mubr.f32.gmra.mxu0 %v2059
    %v2165 = vpop.f32.mrf.mxu0
    %v2166 = vadd.f32 0.0, %v2165
    %v2167 = vpop.f32.mrf.mxu0
    %2168 = vmatprep.mubr.f32.mxu0 0.0
    %2169 = vmatmul.mubr.f32.gmra.mxu0 %v2060
    %v2170 = vpop.f32.mrf.mxu0
    %v2171 = vadd.f32 0.0, %v2170
    %v2172 = vpop.f32.mrf.mxu0
    %2173 = vmatprep.mubr.f32.mxu0 0.0
    %2174 = vmatmul.mubr.f32.gmra.mxu0 %v2061
    %v2175 = vpop.f32.mrf.mxu0
    %v2176 = vadd.f32 0.0, %v2175
    %v2177 = vpop.f32.mrf.mxu0
    %2178 = vmatprep.mubr.f32.mxu0 0.0
    %2179 = vmatmul.mubr.f32.gmra.mxu0 %v2062
    %v2180 = vpop.f32.mrf.mxu0
    %v2181 = vadd.f32 0.0, %v2180
    %v2182 = vpop.f32.mrf.mxu0
    %2183 = vmatprep.mubr.f32.mxu0 0.0
    %2184 = vmatmul.mubr.f32.gmra.mxu0 %v2063
    %v2185 = vpop.f32.mrf.mxu0
    %v2186 = vadd.f32 0.0, %v2185
    %v2187 = vpop.f32.mrf.mxu0
    %2188 = vmatprep.mubr.f32.mxu0 0.0
    %2189 = vmatmul.mubr.f32.gmra.mxu0 %v2064
    %v2190 = vpop.f32.mrf.mxu0
    %v2191 = vadd.f32 0.0, %v2190
    %v2192 = vpop.f32.mrf.mxu0
    %2193 = vmatprep.mubr.f32.mxu0 0.0
    %2194 = vmatmul.mubr.f32.gmra.mxu0 %v2065
    %v2195 = vpop.f32.mrf.mxu0
    %v2196 = vadd.f32 0.0, %v2195
    %v2197 = vpop.f32.mrf.mxu0
    %2198 = vmatprep.mubr.f32.mxu0 0.0
    %2199 = vmatmul.mubr.f32.gmra.mxu0 %v2066
    %v2200 = vpop.f32.mrf.mxu0
    %v2201 = vadd.f32 0.0, %v2200
    %v2202 = vpop.f32.mrf.mxu0
    %2203 = vmatprep.mubr.f32.mxu0 0.0
    %2204 = vmatmul.mubr.f32.gmra.mxu0 %v2067
    %v2205 = vpop.f32.mrf.mxu0
    %v2206 = vadd.f32 0.0, %v2205
    %v2207 = vpop.f32.mrf.mxu0
    %2208 = vmatprep.mubr.f32.mxu0 0.0
    %2209 = vmatmul.mubr.f32.gmra.mxu0 %v2068
    %v2210 = vpop.f32.mrf.mxu0
    %v2211 = vadd.f32 0.0, %v2210
    %v2212 = vpop.f32.mrf.mxu0
    %2213 = vdwg.mxu0
    %s2214 = scalar_lea.vmem %s7, 128
    %v2215 = vld [vmem:[%s2214] sm:$0xff]
    %v2216 = vld [vmem:[%s2214 + $0x8] sm:$0xff]
    %v2217 = vld [vmem:[%s2214 + $0x10] sm:$0xff]
    %v2218 = vld [vmem:[%s2214 + $0x18] sm:$0xff]
    %v2219 = vld [vmem:[%s2214 + $0x20] sm:$0xff]
    %v2220 = vld [vmem:[%s2214 + $0x28] sm:$0xff]
    %v2221 = vld [vmem:[%s2214 + $0x30] sm:$0xff]
    %v2222 = vld [vmem:[%s2214 + $0x38] sm:$0xff]
    %v2223 = vld [vmem:[%s2214 + $0x40] sm:$0xff]
    %v2224 = vld [vmem:[%s2214 + $0x48] sm:$0xff]
    %v2225 = vld [vmem:[%s2214 + $0x50] sm:$0xff]
    %v2226 = vld [vmem:[%s2214 + $0x58] sm:$0xff]
    %v2227 = vld [vmem:[%s2214 + $0x60] sm:$0xff]
    %v2228 = vld [vmem:[%s2214 + $0x68] sm:$0xff]
    %v2229 = vld [vmem:[%s2214 + $0x70] sm:$0xff]
    %v2230 = vld [vmem:[%s2214 + $0x78] sm:$0xff]
    %v2231 = vmul.f32 %v2215, %v2136
    %v2232 = vmul.f32 %v2216, %v2141
    %v2233 = vmul.f32 %v2217, %v2146
    %v2234 = vmul.f32 %v2218, %v2151
    %v2235 = vmul.f32 %v2219, %v2156
    %v2236 = vmul.f32 %v2220, %v2161
    %v2237 = vmul.f32 %v2221, %v2166
    %v2238 = vmul.f32 %v2222, %v2171
    %v2239 = vmul.f32 %v2223, %v2176
    %v2240 = vmul.f32 %v2224, %v2181
    %v2241 = vmul.f32 %v2225, %v2186
    %v2242 = vmul.f32 %v2226, %v2191
    %v2243 = vmul.f32 %v2227, %v2196
    %v2244 = vmul.f32 %v2228, %v2201
    %v2245 = vmul.f32 %v2229, %v2206
    %v2246 = vmul.f32 %v2230, %v2211
    %s2247 = scalar_lea.vmem %s8, 128
    %v2248 = vld [vmem:[%s2247] sm:$0xff]
    %v2249 = vld [vmem:[%s2247 + $0x8] sm:$0xff]
    %v2250 = vld [vmem:[%s2247 + $0x10] sm:$0xff]
    %v2251 = vld [vmem:[%s2247 + $0x18] sm:$0xff]
    %v2252 = vld [vmem:[%s2247 + $0x20] sm:$0xff]
    %v2253 = vld [vmem:[%s2247 + $0x28] sm:$0xff]
    %v2254 = vld [vmem:[%s2247 + $0x30] sm:$0xff]
    %v2255 = vld [vmem:[%s2247 + $0x38] sm:$0xff]
    %v2256 = vld [vmem:[%s2247 + $0x40] sm:$0xff]
    %v2257 = vld [vmem:[%s2247 + $0x48] sm:$0xff]
    %v2258 = vld [vmem:[%s2247 + $0x50] sm:$0xff]
    %v2259 = vld [vmem:[%s2247 + $0x58] sm:$0xff]
    %v2260 = vld [vmem:[%s2247 + $0x60] sm:$0xff]
    %v2261 = vld [vmem:[%s2247 + $0x68] sm:$0xff]
    %v2262 = vld [vmem:[%s2247 + $0x70] sm:$0xff]
    %v2263 = vld [vmem:[%s2247 + $0x78] sm:$0xff]
    %2264 = vrot.lane.b32.xlu0 %v2136, 64
    %v2265 = vpop.permute.xlu0 %2264
    %2266 = vrot.lane.b32.xlu0 %v2141, 64
    %v2267 = vpop.permute.xlu0 %2266
    %2268 = vrot.lane.b32.xlu0 %v2146, 64
    %v2269 = vpop.permute.xlu0 %2268
    %2270 = vrot.lane.b32.xlu0 %v2151, 64
    %v2271 = vpop.permute.xlu0 %2270
    %2272 = vrot.lane.b32.xlu0 %v2156, 64
    %v2273 = vpop.permute.xlu0 %2272
    %2274 = vrot.lane.b32.xlu0 %v2161, 64
    %v2275 = vpop.permute.xlu0 %2274
    %2276 = vrot.lane.b32.xlu0 %v2166, 64
    %v2277 = vpop.permute.xlu0 %2276
    %2278 = vrot.lane.b32.xlu0 %v2171, 64
    %v2279 = vpop.permute.xlu0 %2278
    %2280 = vrot.lane.b32.xlu0 %v2176, 64
    %v2281 = vpop.permute.xlu0 %2280
    %2282 = vrot.lane.b32.xlu0 %v2181, 64
    %v2283 = vpop.permute.xlu0 %2282
    %2284 = vrot.lane.b32.xlu0 %v2186, 64
    %v2285 = vpop.permute.xlu0 %2284
    %2286 = vrot.lane.b32.xlu0 %v2191, 64
    %v2287 = vpop.permute.xlu0 %2286
    %2288 = vrot.lane.b32.xlu0 %v2196, 64
    %v2289 = vpop.permute.xlu0 %2288
    %2290 = vrot.lane.b32.xlu0 %v2201, 64
    %v2291 = vpop.permute.xlu0 %2290
    %2292 = vrot.lane.b32.xlu0 %v2206, 64
    %v2293 = vpop.permute.xlu0 %2292
    %2294 = vrot.lane.b32.xlu0 %v2211, 64
    %v2295 = vpop.permute.xlu0 %2294
    %v2296 = vmul.f32 %v2248, %v2265
    %v2297 = vmul.f32 %v2249, %v2267
    %v2298 = vmul.f32 %v2250, %v2269
    %v2299 = vmul.f32 %v2251, %v2271
    %v2300 = vmul.f32 %v2252, %v2273
    %v2301 = vmul.f32 %v2253, %v2275
    %v2302 = vmul.f32 %v2254, %v2277
    %v2303 = vmul.f32 %v2255, %v2279
    %v2304 = vmul.f32 %v2256, %v2281
    %v2305 = vmul.f32 %v2257, %v2283
    %v2306 = vmul.f32 %v2258, %v2285
    %v2307 = vmul.f32 %v2259, %v2287
    %v2308 = vmul.f32 %v2260, %v2289
    %v2309 = vmul.f32 %v2261, %v2291
    %v2310 = vmul.f32 %v2262, %v2293
    %v2311 = vmul.f32 %v2263, %v2295
    %v2312 = vadd.f32 %v2231, %v2296
    %v2313 = vadd.f32 %v2232, %v2297
    %v2314 = vadd.f32 %v2233, %v2298
    %v2315 = vadd.f32 %v2234, %v2299
    %v2316 = vadd.f32 %v2235, %v2300
    %v2317 = vadd.f32 %v2236, %v2301
    %v2318 = vadd.f32 %v2237, %v2302
    %v2319 = vadd.f32 %v2238, %v2303
    %v2320 = vadd.f32 %v2239, %v2304
    %v2321 = vadd.f32 %v2240, %v2305
    %v2322 = vadd.f32 %v2241, %v2306
    %v2323 = vadd.f32 %v2242, %v2307
    %v2324 = vadd.f32 %v2243, %v2308
    %v2325 = vadd.f32 %v2244, %v2309
    %v2326 = vadd.f32 %v2245, %v2310
    %v2327 = vadd.f32 %v2246, %v2311
    %2328 = vmatprep.subr.mxu0 0.0
    %2329 = vmatpush1.msra.mxu0 %v2327
    %2330 = vmatprep.subr.mxu0 0.0
    %2331 = vmatpush1.msra.mxu0 %v2326
    %2332 = vmatprep.subr.mxu0 0.0
    %2333 = vmatpush1.msra.mxu0 %v2325
    %2334 = vmatprep.subr.mxu0 0.0
    %2335 = vmatpush1.msra.mxu0 %v2324
    %2336 = vmatprep.subr.mxu0 0.0
    %2337 = vmatpush1.msra.mxu0 %v2323
    %2338 = vmatprep.subr.mxu0 0.0
    %2339 = vmatpush1.msra.mxu0 %v2322
    %2340 = vmatprep.subr.mxu0 0.0
    %2341 = vmatpush1.msra.mxu0 %v2321
    %2342 = vmatprep.subr.mxu0 0.0
    %2343 = vmatpush1.msra.mxu0 %v2320
    %2344 = vmatprep.subr.mxu0 0.0
    %2345 = vmatpush1.msra.mxu0 %v2319
    %2346 = vmatprep.subr.mxu0 0.0
    %2347 = vmatpush1.msra.mxu0 %v2318
    %2348 = vmatprep.subr.mxu0 0.0
    %2349 = vmatpush1.msra.mxu0 %v2317
    %2350 = vmatprep.subr.mxu0 0.0
    %2351 = vmatpush1.msra.mxu0 %v2316
    %2352 = vmatprep.subr.mxu0 0.0
    %2353 = vmatpush1.msra.mxu0 %v2315
    %2354 = vmatprep.subr.mxu0 0.0
    %2355 = vmatpush1.msra.mxu0 %v2314
    %2356 = vmatprep.subr.mxu0 0.0
    %2357 = vmatpush1.msra.mxu0 %v2313
    %2358 = vmatprep.subr.mxu0 0.0
    %2359 = vmatpush1.msra.mxu0 %v2312
    %2360 = vmatprep.subr.mxu0 0.0
    %2361 = vmatpush2.msra.mxu0 0.0
    %2362 = vmatprep.subr.mxu0 0.0
    %2363 = vmatpush2.msra.mxu0 0.0
    %2364 = vmatprep.subr.mxu0 0.0
    %2365 = vmatpush2.msra.mxu0 0.0
    %2366 = vmatprep.subr.mxu0 0.0
    %2367 = vmatpush2.msra.mxu0 0.0
    %2368 = vmatprep.subr.mxu0 0.0
    %2369 = vmatpush2.msra.mxu0 0.0
    %2370 = vmatprep.subr.mxu0 0.0
    %2371 = vmatpush2.msra.mxu0 0.0
    %2372 = vmatprep.subr.mxu0 0.0
    %2373 = vmatpush2.msra.mxu0 0.0
    %2374 = vmatprep.subr.mxu0 0.0
    %2375 = vmatpush2.msra.mxu0 0.0
    %2376 = vmatprep.subr.mxu0 0.0
    %2377 = vmatpush2.msra.mxu0 0.0
    %2378 = vmatprep.subr.mxu0 0.0
    %2379 = vmatpush2.msra.mxu0 0.0
    %2380 = vmatprep.subr.mxu0 0.0
    %2381 = vmatpush2.msra.mxu0 0.0
    %2382 = vmatprep.subr.mxu0 0.0
    %2383 = vmatpush2.msra.mxu0 0.0
    %2384 = vmatprep.subr.mxu0 0.0
    %2385 = vmatpush2.msra.mxu0 0.0
    %2386 = vmatprep.subr.mxu0 0.0
    %2387 = vmatpush2.msra.mxu0 0.0
    %2388 = vmatprep.subr.mxu0 0.0
    %2389 = vmatpush2.msra.mxu0 0.0
    %2390 = vmatprep.subr.mxu0 0.0
    %2391 = vmatpush2.msra.mxu0 0.0
    %2392 = vmatprep.mubr.f32.mxu0 0.0
    %2393 = vmatmul.mubr.f32.gmra.mxu0 %v62
    %v2394 = vpop.f32.mrf.mxu0
    %v2395 = vadd.f32 0.0, %v2394
    %v2396 = vpop.f32.mrf.mxu0
    %2397 = vmatprep.mubr.f32.mxu0 0.0
    %2398 = vmatmul.mubr.f32.gmra.mxu0 %v63
    %v2399 = vpop.f32.mrf.mxu0
    %v2400 = vadd.f32 0.0, %v2399
    %v2401 = vpop.f32.mrf.mxu0
    %2402 = vmatprep.mubr.f32.mxu0 0.0
    %2403 = vmatmul.mubr.f32.gmra.mxu0 %v64
    %v2404 = vpop.f32.mrf.mxu0
    %v2405 = vadd.f32 0.0, %v2404
    %v2406 = vpop.f32.mrf.mxu0
    %2407 = vmatprep.mubr.f32.mxu0 0.0
    %2408 = vmatmul.mubr.f32.gmra.mxu0 %v65
    %v2409 = vpop.f32.mrf.mxu0
    %v2410 = vadd.f32 0.0, %v2409
    %v2411 = vpop.f32.mrf.mxu0
    %2412 = vmatprep.mubr.f32.mxu0 0.0
    %2413 = vmatmul.mubr.f32.gmra.mxu0 %v66
    %v2414 = vpop.f32.mrf.mxu0
    %v2415 = vadd.f32 0.0, %v2414
    %v2416 = vpop.f32.mrf.mxu0
    %2417 = vmatprep.mubr.f32.mxu0 0.0
    %2418 = vmatmul.mubr.f32.gmra.mxu0 %v67
    %v2419 = vpop.f32.mrf.mxu0
    %v2420 = vadd.f32 0.0, %v2419
    %v2421 = vpop.f32.mrf.mxu0
    %2422 = vmatprep.mubr.f32.mxu0 0.0
    %2423 = vmatmul.mubr.f32.gmra.mxu0 %v68
    %v2424 = vpop.f32.mrf.mxu0
    %v2425 = vadd.f32 0.0, %v2424
    %v2426 = vpop.f32.mrf.mxu0
    %2427 = vmatprep.mubr.f32.mxu0 0.0
    %2428 = vmatmul.mubr.f32.gmra.mxu0 %v69
    %v2429 = vpop.f32.mrf.mxu0
    %v2430 = vadd.f32 0.0, %v2429
    %v2431 = vpop.f32.mrf.mxu0
    %2432 = vmatprep.mubr.f32.mxu0 0.0
    %2433 = vmatmul.mubr.f32.gmra.mxu0 %v70
    %v2434 = vpop.f32.mrf.mxu0
    %v2435 = vadd.f32 0.0, %v2434
    %v2436 = vpop.f32.mrf.mxu0
    %2437 = vmatprep.mubr.f32.mxu0 0.0
    %2438 = vmatmul.mubr.f32.gmra.mxu0 %v71
    %v2439 = vpop.f32.mrf.mxu0
    %v2440 = vadd.f32 0.0, %v2439
    %v2441 = vpop.f32.mrf.mxu0
    %2442 = vmatprep.mubr.f32.mxu0 0.0
    %2443 = vmatmul.mubr.f32.gmra.mxu0 %v72
    %v2444 = vpop.f32.mrf.mxu0
    %v2445 = vadd.f32 0.0, %v2444
    %v2446 = vpop.f32.mrf.mxu0
    %2447 = vmatprep.mubr.f32.mxu0 0.0
    %2448 = vmatmul.mubr.f32.gmra.mxu0 %v73
    %v2449 = vpop.f32.mrf.mxu0
    %v2450 = vadd.f32 0.0, %v2449
    %v2451 = vpop.f32.mrf.mxu0
    %2452 = vmatprep.mubr.f32.mxu0 0.0
    %2453 = vmatmul.mubr.f32.gmra.mxu0 %v74
    %v2454 = vpop.f32.mrf.mxu0
    %v2455 = vadd.f32 0.0, %v2454
    %v2456 = vpop.f32.mrf.mxu0
    %2457 = vmatprep.mubr.f32.mxu0 0.0
    %2458 = vmatmul.mubr.f32.gmra.mxu0 %v75
    %v2459 = vpop.f32.mrf.mxu0
    %v2460 = vadd.f32 0.0, %v2459
    %v2461 = vpop.f32.mrf.mxu0
    %2462 = vmatprep.mubr.f32.mxu0 0.0
    %2463 = vmatmul.mubr.f32.gmra.mxu0 %v76
    %v2464 = vpop.f32.mrf.mxu0
    %v2465 = vadd.f32 0.0, %v2464
    %v2466 = vpop.f32.mrf.mxu0
    %2467 = vmatprep.mubr.f32.mxu0 0.0
    %2468 = vmatmul.mubr.f32.gmra.mxu0 %v77
    %v2469 = vpop.f32.mrf.mxu0
    %v2470 = vadd.f32 0.0, %v2469
    %v2471 = vpop.f32.mrf.mxu0
    %2472 = vmatprep.mubr.f32.mxu0 0.0
    %2473 = vmatmul.mubr.f32.gmra.mxu0 %v78
    %v2474 = vpop.f32.mrf.mxu0
    %v2475 = vadd.f32 0.0, %v2474
    %v2476 = vpop.f32.mrf.mxu0
    %2477 = vmatprep.mubr.f32.mxu0 0.0
    %2478 = vmatmul.mubr.f32.gmra.mxu0 %v79
    %v2479 = vpop.f32.mrf.mxu0
    %v2480 = vadd.f32 0.0, %v2479
    %v2481 = vpop.f32.mrf.mxu0
    %2482 = vmatprep.mubr.f32.mxu0 0.0
    %2483 = vmatmul.mubr.f32.gmra.mxu0 %v80
    %v2484 = vpop.f32.mrf.mxu0
    %v2485 = vadd.f32 0.0, %v2484
    %v2486 = vpop.f32.mrf.mxu0
    %2487 = vmatprep.mubr.f32.mxu0 0.0
    %2488 = vmatmul.mubr.f32.gmra.mxu0 %v81
    %v2489 = vpop.f32.mrf.mxu0
    %v2490 = vadd.f32 0.0, %v2489
    %v2491 = vpop.f32.mrf.mxu0
    %2492 = vmatprep.mubr.f32.mxu0 0.0
    %2493 = vmatmul.mubr.f32.gmra.mxu0 %v82
    %v2494 = vpop.f32.mrf.mxu0
    %v2495 = vadd.f32 0.0, %v2494
    %v2496 = vpop.f32.mrf.mxu0
    %2497 = vmatprep.mubr.f32.mxu0 0.0
    %2498 = vmatmul.mubr.f32.gmra.mxu0 %v83
    %v2499 = vpop.f32.mrf.mxu0
    %v2500 = vadd.f32 0.0, %v2499
    %v2501 = vpop.f32.mrf.mxu0
    %2502 = vmatprep.mubr.f32.mxu0 0.0
    %2503 = vmatmul.mubr.f32.gmra.mxu0 %v84
    %v2504 = vpop.f32.mrf.mxu0
    %v2505 = vadd.f32 0.0, %v2504
    %v2506 = vpop.f32.mrf.mxu0
    %2507 = vmatprep.mubr.f32.mxu0 0.0
    %2508 = vmatmul.mubr.f32.gmra.mxu0 %v85
    %v2509 = vpop.f32.mrf.mxu0
    %v2510 = vadd.f32 0.0, %v2509
    %v2511 = vpop.f32.mrf.mxu0
    %2512 = vmatprep.mubr.f32.mxu0 0.0
    %2513 = vmatmul.mubr.f32.gmra.mxu0 %v86
    %v2514 = vpop.f32.mrf.mxu0
    %v2515 = vadd.f32 0.0, %v2514
    %v2516 = vpop.f32.mrf.mxu0
    %2517 = vmatprep.mubr.f32.mxu0 0.0
    %2518 = vmatmul.mubr.f32.gmra.mxu0 %v87
    %v2519 = vpop.f32.mrf.mxu0
    %v2520 = vadd.f32 0.0, %v2519
    %v2521 = vpop.f32.mrf.mxu0
    %2522 = vmatprep.mubr.f32.mxu0 0.0
    %2523 = vmatmul.mubr.f32.gmra.mxu0 %v88
    %v2524 = vpop.f32.mrf.mxu0
    %v2525 = vadd.f32 0.0, %v2524
    %v2526 = vpop.f32.mrf.mxu0
    %2527 = vmatprep.mubr.f32.mxu0 0.0
    %2528 = vmatmul.mubr.f32.gmra.mxu0 %v89
    %v2529 = vpop.f32.mrf.mxu0
    %v2530 = vadd.f32 0.0, %v2529
    %v2531 = vpop.f32.mrf.mxu0
    %2532 = vmatprep.mubr.f32.mxu0 0.0
    %2533 = vmatmul.mubr.f32.gmra.mxu0 %v90
    %v2534 = vpop.f32.mrf.mxu0
    %v2535 = vadd.f32 0.0, %v2534
    %v2536 = vpop.f32.mrf.mxu0
    %2537 = vmatprep.mubr.f32.mxu0 0.0
    %2538 = vmatmul.mubr.f32.gmra.mxu0 %v91
    %v2539 = vpop.f32.mrf.mxu0
    %v2540 = vadd.f32 0.0, %v2539
    %v2541 = vpop.f32.mrf.mxu0
    %2542 = vmatprep.mubr.f32.mxu0 0.0
    %2543 = vmatmul.mubr.f32.gmra.mxu0 %v92
    %v2544 = vpop.f32.mrf.mxu0
    %v2545 = vadd.f32 0.0, %v2544
    %v2546 = vpop.f32.mrf.mxu0
    %2547 = vmatprep.mubr.f32.mxu0 0.0
    %2548 = vmatmul.mubr.f32.gmra.mxu0 %v93
    %v2549 = vpop.f32.mrf.mxu0
    %v2550 = vadd.f32 0.0, %v2549
    %v2551 = vpop.f32.mrf.mxu0
    %2552 = vdwg.mxu0
    %2553 = vrot.lane.b32.xlu0 %v2475, 64
    %v2554 = vpop.permute.xlu0 %2553
    %2555 = vrot.lane.b32.xlu0 %v2480, 64
    %v2556 = vpop.permute.xlu0 %2555
    %2557 = vrot.lane.b32.xlu0 %v2485, 64
    %v2558 = vpop.permute.xlu0 %2557
    %2559 = vrot.lane.b32.xlu0 %v2490, 64
    %v2560 = vpop.permute.xlu0 %2559
    %2561 = vrot.lane.b32.xlu0 %v2495, 64
    %v2562 = vpop.permute.xlu0 %2561
    %2563 = vrot.lane.b32.xlu0 %v2500, 64
    %v2564 = vpop.permute.xlu0 %2563
    %2565 = vrot.lane.b32.xlu0 %v2505, 64
    %v2566 = vpop.permute.xlu0 %2565
    %2567 = vrot.lane.b32.xlu0 %v2510, 64
    %v2568 = vpop.permute.xlu0 %2567
    %2569 = vrot.lane.b32.xlu0 %v2515, 64
    %v2570 = vpop.permute.xlu0 %2569
    %2571 = vrot.lane.b32.xlu0 %v2520, 64
    %v2572 = vpop.permute.xlu0 %2571
    %2573 = vrot.lane.b32.xlu0 %v2525, 64
    %v2574 = vpop.permute.xlu0 %2573
    %2575 = vrot.lane.b32.xlu0 %v2530, 64
    %v2576 = vpop.permute.xlu0 %2575
    %2577 = vrot.lane.b32.xlu0 %v2535, 64
    %v2578 = vpop.permute.xlu0 %2577
    %2579 = vrot.lane.b32.xlu0 %v2540, 64
    %v2580 = vpop.permute.xlu0 %2579
    %2581 = vrot.lane.b32.xlu0 %v2545, 64
    %v2582 = vpop.permute.xlu0 %2581
    %2583 = vrot.lane.b32.xlu0 %v2550, 64
    %v2584 = vpop.permute.xlu0 %2583
    %v2585 = vmul.f32 %v190, %v2554
    %v2586 = vmul.f32 %v191, %v2556
    %v2587 = vmul.f32 %v192, %v2558
    %v2588 = vmul.f32 %v193, %v2560
    %v2589 = vmul.f32 %v194, %v2562
    %v2590 = vmul.f32 %v195, %v2564
    %v2591 = vmul.f32 %v196, %v2566
    %v2592 = vmul.f32 %v197, %v2568
    %v2593 = vmul.f32 %v198, %v2570
    %v2594 = vmul.f32 %v199, %v2572
    %v2595 = vmul.f32 %v200, %v2574
    %v2596 = vmul.f32 %v201, %v2576
    %v2597 = vmul.f32 %v202, %v2578
    %v2598 = vmul.f32 %v203, %v2580
    %v2599 = vmul.f32 %v204, %v2582
    %v2600 = vmul.f32 %v205, %v2584
    %v2601 = vadd.f32 %v2395, %v2585
    %v2602 = vadd.f32 %v2400, %v2586
    %v2603 = vadd.f32 %v2405, %v2587
    %v2604 = vadd.f32 %v2410, %v2588
    %v2605 = vadd.f32 %v2415, %v2589
    %v2606 = vadd.f32 %v2420, %v2590
    %v2607 = vadd.f32 %v2425, %v2591
    %v2608 = vadd.f32 %v2430, %v2592
    %v2609 = vadd.f32 %v2435, %v2593
    %v2610 = vadd.f32 %v2440, %v2594
    %v2611 = vadd.f32 %v2445, %v2595
    %v2612 = vadd.f32 %v2450, %v2596
    %v2613 = vadd.f32 %v2455, %v2597
    %v2614 = vadd.f32 %v2460, %v2598
    %v2615 = vadd.f32 %v2465, %v2599
    %v2616 = vadd.f32 %v2470, %v2600
    %2617 = vmatprep.subr.mxu0 0.0
    %2618 = vmatpush1.msra.mxu0 %v141
    %2619 = vmatprep.subr.mxu0 0.0
    %2620 = vmatpush1.msra.mxu0 %v140
    %2621 = vmatprep.subr.mxu0 0.0
    %2622 = vmatpush1.msra.mxu0 %v139
    %2623 = vmatprep.subr.mxu0 0.0
    %2624 = vmatpush1.msra.mxu0 %v138
    %2625 = vmatprep.subr.mxu0 0.0
    %2626 = vmatpush1.msra.mxu0 %v137
    %2627 = vmatprep.subr.mxu0 0.0
    %2628 = vmatpush1.msra.mxu0 %v136
    %2629 = vmatprep.subr.mxu0 0.0
    %2630 = vmatpush1.msra.mxu0 %v135
    %2631 = vmatprep.subr.mxu0 0.0
    %2632 = vmatpush1.msra.mxu0 %v134
    %2633 = vmatprep.subr.mxu0 0.0
    %2634 = vmatpush1.msra.mxu0 %v133
    %2635 = vmatprep.subr.mxu0 0.0
    %2636 = vmatpush1.msra.mxu0 %v132
    %2637 = vmatprep.subr.mxu0 0.0
    %2638 = vmatpush1.msra.mxu0 %v131
    %2639 = vmatprep.subr.mxu0 0.0
    %2640 = vmatpush1.msra.mxu0 %v130
    %2641 = vmatprep.subr.mxu0 0.0
    %2642 = vmatpush1.msra.mxu0 %v129
    %2643 = vmatprep.subr.mxu0 0.0
    %2644 = vmatpush1.msra.mxu0 %v128
    %2645 = vmatprep.subr.mxu0 0.0
    %2646 = vmatpush1.msra.mxu0 %v127
    %2647 = vmatprep.subr.mxu0 0.0
    %2648 = vmatpush1.msra.mxu0 %v126
    %2649 = vmatprep.subr.mxu0 0.0
    %2650 = vmatpush2.msra.mxu0 0.0
    %2651 = vmatprep.subr.mxu0 0.0
    %2652 = vmatpush2.msra.mxu0 0.0
    %2653 = vmatprep.subr.mxu0 0.0
    %2654 = vmatpush2.msra.mxu0 0.0
    %2655 = vmatprep.subr.mxu0 0.0
    %2656 = vmatpush2.msra.mxu0 0.0
    %2657 = vmatprep.subr.mxu0 0.0
    %2658 = vmatpush2.msra.mxu0 0.0
    %2659 = vmatprep.subr.mxu0 0.0
    %2660 = vmatpush2.msra.mxu0 0.0
    %2661 = vmatprep.subr.mxu0 0.0
    %2662 = vmatpush2.msra.mxu0 0.0
    %2663 = vmatprep.subr.mxu0 0.0
    %2664 = vmatpush2.msra.mxu0 0.0
    %2665 = vmatprep.subr.mxu0 0.0
    %2666 = vmatpush2.msra.mxu0 0.0
    %2667 = vmatprep.subr.mxu0 0.0
    %2668 = vmatpush2.msra.mxu0 0.0
    %2669 = vmatprep.subr.mxu0 0.0
    %2670 = vmatpush2.msra.mxu0 0.0
    %2671 = vmatprep.subr.mxu0 0.0
    %2672 = vmatpush2.msra.mxu0 0.0
    %2673 = vmatprep.subr.mxu0 0.0
    %2674 = vmatpush2.msra.mxu0 0.0
    %2675 = vmatprep.subr.mxu0 0.0
    %2676 = vmatpush2.msra.mxu0 0.0
    %2677 = vmatprep.subr.mxu0 0.0
    %2678 = vmatpush2.msra.mxu0 0.0
    %2679 = vmatprep.subr.mxu0 0.0
    %2680 = vmatpush2.msra.mxu0 0.0
    %2681 = vmatprep.mubr.f32.mxu0 0.0
    %2682 = vmatmul.mubr.f32.gmra.mxu0 %v2601
    %v2683 = vpop.f32.mrf.mxu0
    %v2684 = vadd.f32 0.0, %v2683
    %v2685 = vpop.f32.mrf.mxu0
    %2686 = vmatprep.mubr.f32.mxu0 0.0
    %2687 = vmatmul.mubr.f32.gmra.mxu0 %v2602
    %v2688 = vpop.f32.mrf.mxu0
    %v2689 = vadd.f32 0.0, %v2688
    %v2690 = vpop.f32.mrf.mxu0
    %2691 = vmatprep.mubr.f32.mxu0 0.0
    %2692 = vmatmul.mubr.f32.gmra.mxu0 %v2603
    %v2693 = vpop.f32.mrf.mxu0
    %v2694 = vadd.f32 0.0, %v2693
    %v2695 = vpop.f32.mrf.mxu0
    %2696 = vmatprep.mubr.f32.mxu0 0.0
    %2697 = vmatmul.mubr.f32.gmra.mxu0 %v2604
    %v2698 = vpop.f32.mrf.mxu0
    %v2699 = vadd.f32 0.0, %v2698
    %v2700 = vpop.f32.mrf.mxu0
    %2701 = vmatprep.mubr.f32.mxu0 0.0
    %2702 = vmatmul.mubr.f32.gmra.mxu0 %v2605
    %v2703 = vpop.f32.mrf.mxu0
    %v2704 = vadd.f32 0.0, %v2703
    %v2705 = vpop.f32.mrf.mxu0
    %2706 = vmatprep.mubr.f32.mxu0 0.0
    %2707 = vmatmul.mubr.f32.gmra.mxu0 %v2606
    %v2708 = vpop.f32.mrf.mxu0
    %v2709 = vadd.f32 0.0, %v2708
    %v2710 = vpop.f32.mrf.mxu0
    %2711 = vmatprep.mubr.f32.mxu0 0.0
    %2712 = vmatmul.mubr.f32.gmra.mxu0 %v2607
    %v2713 = vpop.f32.mrf.mxu0
    %v2714 = vadd.f32 0.0, %v2713
    %v2715 = vpop.f32.mrf.mxu0
    %2716 = vmatprep.mubr.f32.mxu0 0.0
    %2717 = vmatmul.mubr.f32.gmra.mxu0 %v2608
    %v2718 = vpop.f32.mrf.mxu0
    %v2719 = vadd.f32 0.0, %v2718
    %v2720 = vpop.f32.mrf.mxu0
    %2721 = vmatprep.mubr.f32.mxu0 0.0
    %2722 = vmatmul.mubr.f32.gmra.mxu0 %v2609
    %v2723 = vpop.f32.mrf.mxu0
    %v2724 = vadd.f32 0.0, %v2723
    %v2725 = vpop.f32.mrf.mxu0
    %2726 = vmatprep.mubr.f32.mxu0 0.0
    %2727 = vmatmul.mubr.f32.gmra.mxu0 %v2610
    %v2728 = vpop.f32.mrf.mxu0
    %v2729 = vadd.f32 0.0, %v2728
    %v2730 = vpop.f32.mrf.mxu0
    %2731 = vmatprep.mubr.f32.mxu0 0.0
    %2732 = vmatmul.mubr.f32.gmra.mxu0 %v2611
    %v2733 = vpop.f32.mrf.mxu0
    %v2734 = vadd.f32 0.0, %v2733
    %v2735 = vpop.f32.mrf.mxu0
    %2736 = vmatprep.mubr.f32.mxu0 0.0
    %2737 = vmatmul.mubr.f32.gmra.mxu0 %v2612
    %v2738 = vpop.f32.mrf.mxu0
    %v2739 = vadd.f32 0.0, %v2738
    %v2740 = vpop.f32.mrf.mxu0
    %2741 = vmatprep.mubr.f32.mxu0 0.0
    %2742 = vmatmul.mubr.f32.gmra.mxu0 %v2613
    %v2743 = vpop.f32.mrf.mxu0
    %v2744 = vadd.f32 0.0, %v2743
    %v2745 = vpop.f32.mrf.mxu0
    %2746 = vmatprep.mubr.f32.mxu0 0.0
    %2747 = vmatmul.mubr.f32.gmra.mxu0 %v2614
    %v2748 = vpop.f32.mrf.mxu0
    %v2749 = vadd.f32 0.0, %v2748
    %v2750 = vpop.f32.mrf.mxu0
    %2751 = vmatprep.mubr.f32.mxu0 0.0
    %2752 = vmatmul.mubr.f32.gmra.mxu0 %v2615
    %v2753 = vpop.f32.mrf.mxu0
    %v2754 = vadd.f32 0.0, %v2753
    %v2755 = vpop.f32.mrf.mxu0
    %2756 = vmatprep.mubr.f32.mxu0 0.0
    %2757 = vmatmul.mubr.f32.gmra.mxu0 %v2616
    %v2758 = vpop.f32.mrf.mxu0
    %v2759 = vadd.f32 0.0, %v2758
    %v2760 = vpop.f32.mrf.mxu0
    %2761 = vdwg.mxu0
    %v2762 = vmul.f32 %v158, %v2684
    %v2763 = vmul.f32 %v159, %v2689
    %v2764 = vmul.f32 %v160, %v2694
    %v2765 = vmul.f32 %v161, %v2699
    %v2766 = vmul.f32 %v162, %v2704
    %v2767 = vmul.f32 %v163, %v2709
    %v2768 = vmul.f32 %v164, %v2714
    %v2769 = vmul.f32 %v165, %v2719
    %v2770 = vmul.f32 %v166, %v2724
    %v2771 = vmul.f32 %v167, %v2729
    %v2772 = vmul.f32 %v168, %v2734
    %v2773 = vmul.f32 %v169, %v2739
    %v2774 = vmul.f32 %v170, %v2744
    %v2775 = vmul.f32 %v171, %v2749
    %v2776 = vmul.f32 %v172, %v2754
    %v2777 = vmul.f32 %v173, %v2759
    %2778 = vrot.lane.b32.xlu0 %v2684, 64
    %v2779 = vpop.permute.xlu0 %2778
    %2780 = vrot.lane.b32.xlu0 %v2689, 64
    %v2781 = vpop.permute.xlu0 %2780
    %2782 = vrot.lane.b32.xlu0 %v2694, 64
    %v2783 = vpop.permute.xlu0 %2782
    %2784 = vrot.lane.b32.xlu0 %v2699, 64
    %v2785 = vpop.permute.xlu0 %2784
    %2786 = vrot.lane.b32.xlu0 %v2704, 64
    %v2787 = vpop.permute.xlu0 %2786
    %2788 = vrot.lane.b32.xlu0 %v2709, 64
    %v2789 = vpop.permute.xlu0 %2788
    %2790 = vrot.lane.b32.xlu0 %v2714, 64
    %v2791 = vpop.permute.xlu0 %2790
    %2792 = vrot.lane.b32.xlu0 %v2719, 64
    %v2793 = vpop.permute.xlu0 %2792
    %2794 = vrot.lane.b32.xlu0 %v2724, 64
    %v2795 = vpop.permute.xlu0 %2794
    %2796 = vrot.lane.b32.xlu0 %v2729, 64
    %v2797 = vpop.permute.xlu0 %2796
    %2798 = vrot.lane.b32.xlu0 %v2734, 64
    %v2799 = vpop.permute.xlu0 %2798
    %2800 = vrot.lane.b32.xlu0 %v2739, 64
    %v2801 = vpop.permute.xlu0 %2800
    %2802 = vrot.lane.b32.xlu0 %v2744, 64
    %v2803 = vpop.permute.xlu0 %2802
    %2804 = vrot.lane.b32.xlu0 %v2749, 64
    %v2805 = vpop.permute.xlu0 %2804
    %2806 = vrot.lane.b32.xlu0 %v2754, 64
    %v2807 = vpop.permute.xlu0 %2806
    %2808 = vrot.lane.b32.xlu0 %v2759, 64
    %v2809 = vpop.permute.xlu0 %2808
    %v2810 = vmul.f32 %v174, %v2779
    %v2811 = vmul.f32 %v175, %v2781
    %v2812 = vmul.f32 %v176, %v2783
    %v2813 = vmul.f32 %v177, %v2785
    %v2814 = vmul.f32 %v178, %v2787
    %v2815 = vmul.f32 %v179, %v2789
    %v2816 = vmul.f32 %v180, %v2791
    %v2817 = vmul.f32 %v181, %v2793
    %v2818 = vmul.f32 %v182, %v2795
    %v2819 = vmul.f32 %v183, %v2797
    %v2820 = vmul.f32 %v184, %v2799
    %v2821 = vmul.f32 %v185, %v2801
    %v2822 = vmul.f32 %v186, %v2803
    %v2823 = vmul.f32 %v187, %v2805
    %v2824 = vmul.f32 %v188, %v2807
    %v2825 = vmul.f32 %v189, %v2809
    %v2826 = vadd.f32 %v2762, %v2810
    %v2827 = vadd.f32 %v2763, %v2811
    %v2828 = vadd.f32 %v2764, %v2812
    %v2829 = vadd.f32 %v2765, %v2813
    %v2830 = vadd.f32 %v2766, %v2814
    %v2831 = vadd.f32 %v2767, %v2815
    %v2832 = vadd.f32 %v2768, %v2816
    %v2833 = vadd.f32 %v2769, %v2817
    %v2834 = vadd.f32 %v2770, %v2818
    %v2835 = vadd.f32 %v2771, %v2819
    %v2836 = vadd.f32 %v2772, %v2820
    %v2837 = vadd.f32 %v2773, %v2821
    %v2838 = vadd.f32 %v2774, %v2822
    %v2839 = vadd.f32 %v2775, %v2823
    %v2840 = vadd.f32 %v2776, %v2824
    %v2841 = vadd.f32 %v2777, %v2825
    %2842 = vmatprep.subr.mxu0 0.0
    %2843 = vmatpush1.msra.mxu0 %v2841
    %2844 = vmatprep.subr.mxu0 0.0
    %2845 = vmatpush1.msra.mxu0 %v2840
    %2846 = vmatprep.subr.mxu0 0.0
    %2847 = vmatpush1.msra.mxu0 %v2839
    %2848 = vmatprep.subr.mxu0 0.0
    %2849 = vmatpush1.msra.mxu0 %v2838
    %2850 = vmatprep.subr.mxu0 0.0
    %2851 = vmatpush1.msra.mxu0 %v2837
    %2852 = vmatprep.subr.mxu0 0.0
    %2853 = vmatpush1.msra.mxu0 %v2836
    %2854 = vmatprep.subr.mxu0 0.0
    %2855 = vmatpush1.msra.mxu0 %v2835
    %2856 = vmatprep.subr.mxu0 0.0
    %2857 = vmatpush1.msra.mxu0 %v2834
    %2858 = vmatprep.subr.mxu0 0.0
    %2859 = vmatpush1.msra.mxu0 %v2833
    %2860 = vmatprep.subr.mxu0 0.0
    %2861 = vmatpush1.msra.mxu0 %v2832
    %2862 = vmatprep.subr.mxu0 0.0
    %2863 = vmatpush1.msra.mxu0 %v2831
    %2864 = vmatprep.subr.mxu0 0.0
    %2865 = vmatpush1.msra.mxu0 %v2830
    %2866 = vmatprep.subr.mxu0 0.0
    %2867 = vmatpush1.msra.mxu0 %v2829
    %2868 = vmatprep.subr.mxu0 0.0
    %2869 = vmatpush1.msra.mxu0 %v2828
    %2870 = vmatprep.subr.mxu0 0.0
    %2871 = vmatpush1.msra.mxu0 %v2827
    %2872 = vmatprep.subr.mxu0 0.0
    %2873 = vmatpush1.msra.mxu0 %v2826
    %2874 = vmatprep.subr.mxu0 0.0
    %2875 = vmatpush2.msra.mxu0 0.0
    %2876 = vmatprep.subr.mxu0 0.0
    %2877 = vmatpush2.msra.mxu0 0.0
    %2878 = vmatprep.subr.mxu0 0.0
    %2879 = vmatpush2.msra.mxu0 0.0
    %2880 = vmatprep.subr.mxu0 0.0
    %2881 = vmatpush2.msra.mxu0 0.0
    %2882 = vmatprep.subr.mxu0 0.0
    %2883 = vmatpush2.msra.mxu0 0.0
    %2884 = vmatprep.subr.mxu0 0.0
    %2885 = vmatpush2.msra.mxu0 0.0
    %2886 = vmatprep.subr.mxu0 0.0
    %2887 = vmatpush2.msra.mxu0 0.0
    %2888 = vmatprep.subr.mxu0 0.0
    %2889 = vmatpush2.msra.mxu0 0.0
    %2890 = vmatprep.subr.mxu0 0.0
    %2891 = vmatpush2.msra.mxu0 0.0
    %2892 = vmatprep.subr.mxu0 0.0
    %2893 = vmatpush2.msra.mxu0 0.0
    %2894 = vmatprep.subr.mxu0 0.0
    %2895 = vmatpush2.msra.mxu0 0.0
    %2896 = vmatprep.subr.mxu0 0.0
    %2897 = vmatpush2.msra.mxu0 0.0
    %2898 = vmatprep.subr.mxu0 0.0
    %2899 = vmatpush2.msra.mxu0 0.0
    %2900 = vmatprep.subr.mxu0 0.0
    %2901 = vmatpush2.msra.mxu0 0.0
    %2902 = vmatprep.subr.mxu0 0.0
    %2903 = vmatpush2.msra.mxu0 0.0
    %2904 = vmatprep.subr.mxu0 0.0
    %2905 = vmatpush2.msra.mxu0 0.0
    %2906 = vmatprep.mubr.f32.mxu0 0.0
    %2907 = vmatmul.mubr.f32.gmra.mxu0 %v94
    %v2908 = vpop.f32.mrf.mxu0
    %v2909 = vadd.f32 0.0, %v2908
    %v2910 = vpop.f32.mrf.mxu0
    %2911 = vmatprep.mubr.f32.mxu0 0.0
    %2912 = vmatmul.mubr.f32.gmra.mxu0 %v95
    %v2913 = vpop.f32.mrf.mxu0
    %v2914 = vadd.f32 0.0, %v2913
    %v2915 = vpop.f32.mrf.mxu0
    %2916 = vmatprep.mubr.f32.mxu0 0.0
    %2917 = vmatmul.mubr.f32.gmra.mxu0 %v96
    %v2918 = vpop.f32.mrf.mxu0
    %v2919 = vadd.f32 0.0, %v2918
    %v2920 = vpop.f32.mrf.mxu0
    %2921 = vmatprep.mubr.f32.mxu0 0.0
    %2922 = vmatmul.mubr.f32.gmra.mxu0 %v97
    %v2923 = vpop.f32.mrf.mxu0
    %v2924 = vadd.f32 0.0, %v2923
    %v2925 = vpop.f32.mrf.mxu0
    %2926 = vmatprep.mubr.f32.mxu0 0.0
    %2927 = vmatmul.mubr.f32.gmra.mxu0 %v98
    %v2928 = vpop.f32.mrf.mxu0
    %v2929 = vadd.f32 0.0, %v2928
    %v2930 = vpop.f32.mrf.mxu0
    %2931 = vmatprep.mubr.f32.mxu0 0.0
    %2932 = vmatmul.mubr.f32.gmra.mxu0 %v99
    %v2933 = vpop.f32.mrf.mxu0
    %v2934 = vadd.f32 0.0, %v2933
    %v2935 = vpop.f32.mrf.mxu0
    %2936 = vmatprep.mubr.f32.mxu0 0.0
    %2937 = vmatmul.mubr.f32.gmra.mxu0 %v100
    %v2938 = vpop.f32.mrf.mxu0
    %v2939 = vadd.f32 0.0, %v2938
    %v2940 = vpop.f32.mrf.mxu0
    %2941 = vmatprep.mubr.f32.mxu0 0.0
    %2942 = vmatmul.mubr.f32.gmra.mxu0 %v101
    %v2943 = vpop.f32.mrf.mxu0
    %v2944 = vadd.f32 0.0, %v2943
    %v2945 = vpop.f32.mrf.mxu0
    %2946 = vmatprep.mubr.f32.mxu0 0.0
    %2947 = vmatmul.mubr.f32.gmra.mxu0 %v102
    %v2948 = vpop.f32.mrf.mxu0
    %v2949 = vadd.f32 0.0, %v2948
    %v2950 = vpop.f32.mrf.mxu0
    %2951 = vmatprep.mubr.f32.mxu0 0.0
    %2952 = vmatmul.mubr.f32.gmra.mxu0 %v103
    %v2953 = vpop.f32.mrf.mxu0
    %v2954 = vadd.f32 0.0, %v2953
    %v2955 = vpop.f32.mrf.mxu0
    %2956 = vmatprep.mubr.f32.mxu0 0.0
    %2957 = vmatmul.mubr.f32.gmra.mxu0 %v104
    %v2958 = vpop.f32.mrf.mxu0
    %v2959 = vadd.f32 0.0, %v2958
    %v2960 = vpop.f32.mrf.mxu0
    %2961 = vmatprep.mubr.f32.mxu0 0.0
    %2962 = vmatmul.mubr.f32.gmra.mxu0 %v105
    %v2963 = vpop.f32.mrf.mxu0
    %v2964 = vadd.f32 0.0, %v2963
    %v2965 = vpop.f32.mrf.mxu0
    %2966 = vmatprep.mubr.f32.mxu0 0.0
    %2967 = vmatmul.mubr.f32.gmra.mxu0 %v106
    %v2968 = vpop.f32.mrf.mxu0
    %v2969 = vadd.f32 0.0, %v2968
    %v2970 = vpop.f32.mrf.mxu0
    %2971 = vmatprep.mubr.f32.mxu0 0.0
    %2972 = vmatmul.mubr.f32.gmra.mxu0 %v107
    %v2973 = vpop.f32.mrf.mxu0
    %v2974 = vadd.f32 0.0, %v2973
    %v2975 = vpop.f32.mrf.mxu0
    %2976 = vmatprep.mubr.f32.mxu0 0.0
    %2977 = vmatmul.mubr.f32.gmra.mxu0 %v108
    %v2978 = vpop.f32.mrf.mxu0
    %v2979 = vadd.f32 0.0, %v2978
    %v2980 = vpop.f32.mrf.mxu0
    %2981 = vmatprep.mubr.f32.mxu0 0.0
    %2982 = vmatmul.mubr.f32.gmra.mxu0 %v109
    %v2983 = vpop.f32.mrf.mxu0
    %v2984 = vadd.f32 0.0, %v2983
    %v2985 = vpop.f32.mrf.mxu0
    %2986 = vmatprep.mubr.f32.mxu0 0.0
    %2987 = vmatmul.mubr.f32.gmra.mxu0 %v110
    %v2988 = vpop.f32.mrf.mxu0
    %v2989 = vadd.f32 0.0, %v2988
    %v2990 = vpop.f32.mrf.mxu0
    %2991 = vmatprep.mubr.f32.mxu0 0.0
    %2992 = vmatmul.mubr.f32.gmra.mxu0 %v111
    %v2993 = vpop.f32.mrf.mxu0
    %v2994 = vadd.f32 0.0, %v2993
    %v2995 = vpop.f32.mrf.mxu0
    %2996 = vmatprep.mubr.f32.mxu0 0.0
    %2997 = vmatmul.mubr.f32.gmra.mxu0 %v112
    %v2998 = vpop.f32.mrf.mxu0
    %v2999 = vadd.f32 0.0, %v2998
    %v3000 = vpop.f32.mrf.mxu0
    %3001 = vmatprep.mubr.f32.mxu0 0.0
    %3002 = vmatmul.mubr.f32.gmra.mxu0 %v113
    %v3003 = vpop.f32.mrf.mxu0
    %v3004 = vadd.f32 0.0, %v3003
    %v3005 = vpop.f32.mrf.mxu0
    %3006 = vmatprep.mubr.f32.mxu0 0.0
    %3007 = vmatmul.mubr.f32.gmra.mxu0 %v114
    %v3008 = vpop.f32.mrf.mxu0
    %v3009 = vadd.f32 0.0, %v3008
    %v3010 = vpop.f32.mrf.mxu0
    %3011 = vmatprep.mubr.f32.mxu0 0.0
    %3012 = vmatmul.mubr.f32.gmra.mxu0 %v115
    %v3013 = vpop.f32.mrf.mxu0
    %v3014 = vadd.f32 0.0, %v3013
    %v3015 = vpop.f32.mrf.mxu0
    %3016 = vmatprep.mubr.f32.mxu0 0.0
    %3017 = vmatmul.mubr.f32.gmra.mxu0 %v116
    %v3018 = vpop.f32.mrf.mxu0
    %v3019 = vadd.f32 0.0, %v3018
    %v3020 = vpop.f32.mrf.mxu0
    %3021 = vmatprep.mubr.f32.mxu0 0.0
    %3022 = vmatmul.mubr.f32.gmra.mxu0 %v117
    %v3023 = vpop.f32.mrf.mxu0
    %v3024 = vadd.f32 0.0, %v3023
    %v3025 = vpop.f32.mrf.mxu0
    %3026 = vmatprep.mubr.f32.mxu0 0.0
    %3027 = vmatmul.mubr.f32.gmra.mxu0 %v118
    %v3028 = vpop.f32.mrf.mxu0
    %v3029 = vadd.f32 0.0, %v3028
    %v3030 = vpop.f32.mrf.mxu0
    %3031 = vmatprep.mubr.f32.mxu0 0.0
    %3032 = vmatmul.mubr.f32.gmra.mxu0 %v119
    %v3033 = vpop.f32.mrf.mxu0
    %v3034 = vadd.f32 0.0, %v3033
    %v3035 = vpop.f32.mrf.mxu0
    %3036 = vmatprep.mubr.f32.mxu0 0.0
    %3037 = vmatmul.mubr.f32.gmra.mxu0 %v120
    %v3038 = vpop.f32.mrf.mxu0
    %v3039 = vadd.f32 0.0, %v3038
    %v3040 = vpop.f32.mrf.mxu0
    %3041 = vmatprep.mubr.f32.mxu0 0.0
    %3042 = vmatmul.mubr.f32.gmra.mxu0 %v121
    %v3043 = vpop.f32.mrf.mxu0
    %v3044 = vadd.f32 0.0, %v3043
    %v3045 = vpop.f32.mrf.mxu0
    %3046 = vmatprep.mubr.f32.mxu0 0.0
    %3047 = vmatmul.mubr.f32.gmra.mxu0 %v122
    %v3048 = vpop.f32.mrf.mxu0
    %v3049 = vadd.f32 0.0, %v3048
    %v3050 = vpop.f32.mrf.mxu0
    %3051 = vmatprep.mubr.f32.mxu0 0.0
    %3052 = vmatmul.mubr.f32.gmra.mxu0 %v123
    %v3053 = vpop.f32.mrf.mxu0
    %v3054 = vadd.f32 0.0, %v3053
    %v3055 = vpop.f32.mrf.mxu0
    %3056 = vmatprep.mubr.f32.mxu0 0.0
    %3057 = vmatmul.mubr.f32.gmra.mxu0 %v124
    %v3058 = vpop.f32.mrf.mxu0
    %v3059 = vadd.f32 0.0, %v3058
    %v3060 = vpop.f32.mrf.mxu0
    %3061 = vmatprep.mubr.f32.mxu0 0.0
    %3062 = vmatmul.mubr.f32.gmra.mxu0 %v125
    %v3063 = vpop.f32.mrf.mxu0
    %v3064 = vadd.f32 0.0, %v3063
    %v3065 = vpop.f32.mrf.mxu0
    %3066 = vdwg.mxu0
    %3067 = vrot.lane.b32.xlu0 %v2989, 64
    %v3068 = vpop.permute.xlu0 %3067
    %3069 = vrot.lane.b32.xlu0 %v2994, 64
    %v3070 = vpop.permute.xlu0 %3069
    %3071 = vrot.lane.b32.xlu0 %v2999, 64
    %v3072 = vpop.permute.xlu0 %3071
    %3073 = vrot.lane.b32.xlu0 %v3004, 64
    %v3074 = vpop.permute.xlu0 %3073
    %3075 = vrot.lane.b32.xlu0 %v3009, 64
    %v3076 = vpop.permute.xlu0 %3075
    %3077 = vrot.lane.b32.xlu0 %v3014, 64
    %v3078 = vpop.permute.xlu0 %3077
    %3079 = vrot.lane.b32.xlu0 %v3019, 64
    %v3080 = vpop.permute.xlu0 %3079
    %3081 = vrot.lane.b32.xlu0 %v3024, 64
    %v3082 = vpop.permute.xlu0 %3081
    %3083 = vrot.lane.b32.xlu0 %v3029, 64
    %v3084 = vpop.permute.xlu0 %3083
    %3085 = vrot.lane.b32.xlu0 %v3034, 64
    %v3086 = vpop.permute.xlu0 %3085
    %3087 = vrot.lane.b32.xlu0 %v3039, 64
    %v3088 = vpop.permute.xlu0 %3087
    %3089 = vrot.lane.b32.xlu0 %v3044, 64
    %v3090 = vpop.permute.xlu0 %3089
    %3091 = vrot.lane.b32.xlu0 %v3049, 64
    %v3092 = vpop.permute.xlu0 %3091
    %3093 = vrot.lane.b32.xlu0 %v3054, 64
    %v3094 = vpop.permute.xlu0 %3093
    %3095 = vrot.lane.b32.xlu0 %v3059, 64
    %v3096 = vpop.permute.xlu0 %3095
    %3097 = vrot.lane.b32.xlu0 %v3064, 64
    %v3098 = vpop.permute.xlu0 %3097
    %v3099 = vmul.f32 %v190, %v3068
    %v3100 = vmul.f32 %v191, %v3070
    %v3101 = vmul.f32 %v192, %v3072
    %v3102 = vmul.f32 %v193, %v3074
    %v3103 = vmul.f32 %v194, %v3076
    %v3104 = vmul.f32 %v195, %v3078
    %v3105 = vmul.f32 %v196, %v3080
    %v3106 = vmul.f32 %v197, %v3082
    %v3107 = vmul.f32 %v198, %v3084
    %v3108 = vmul.f32 %v199, %v3086
    %v3109 = vmul.f32 %v200, %v3088
    %v3110 = vmul.f32 %v201, %v3090
    %v3111 = vmul.f32 %v202, %v3092
    %v3112 = vmul.f32 %v203, %v3094
    %v3113 = vmul.f32 %v204, %v3096
    %v3114 = vmul.f32 %v205, %v3098
    %v3115 = vadd.f32 %v2909, %v3099
    %v3116 = vadd.f32 %v2914, %v3100
    %v3117 = vadd.f32 %v2919, %v3101
    %v3118 = vadd.f32 %v2924, %v3102
    %v3119 = vadd.f32 %v2929, %v3103
    %v3120 = vadd.f32 %v2934, %v3104
    %v3121 = vadd.f32 %v2939, %v3105
    %v3122 = vadd.f32 %v2944, %v3106
    %v3123 = vadd.f32 %v2949, %v3107
    %v3124 = vadd.f32 %v2954, %v3108
    %v3125 = vadd.f32 %v2959, %v3109
    %v3126 = vadd.f32 %v2964, %v3110
    %v3127 = vadd.f32 %v2969, %v3111
    %v3128 = vadd.f32 %v2974, %v3112
    %v3129 = vadd.f32 %v2979, %v3113
    %v3130 = vadd.f32 %v2984, %v3114
    %3131 = vmatprep.subr.mxu0 0.0
    %3132 = vmatpush1.msra.mxu0 %v157
    %3133 = vmatprep.subr.mxu0 0.0
    %3134 = vmatpush1.msra.mxu0 %v156
    %3135 = vmatprep.subr.mxu0 0.0
    %3136 = vmatpush1.msra.mxu0 %v155
    %3137 = vmatprep.subr.mxu0 0.0
    %3138 = vmatpush1.msra.mxu0 %v154
    %3139 = vmatprep.subr.mxu0 0.0
    %3140 = vmatpush1.msra.mxu0 %v153
    %3141 = vmatprep.subr.mxu0 0.0
    %3142 = vmatpush1.msra.mxu0 %v152
    %3143 = vmatprep.subr.mxu0 0.0
    %3144 = vmatpush1.msra.mxu0 %v151
    %3145 = vmatprep.subr.mxu0 0.0
    %3146 = vmatpush1.msra.mxu0 %v150
    %3147 = vmatprep.subr.mxu0 0.0
    %3148 = vmatpush1.msra.mxu0 %v149
    %3149 = vmatprep.subr.mxu0 0.0
    %3150 = vmatpush1.msra.mxu0 %v148
    %3151 = vmatprep.subr.mxu0 0.0
    %3152 = vmatpush1.msra.mxu0 %v147
    %3153 = vmatprep.subr.mxu0 0.0
    %3154 = vmatpush1.msra.mxu0 %v146
    %3155 = vmatprep.subr.mxu0 0.0
    %3156 = vmatpush1.msra.mxu0 %v145
    %3157 = vmatprep.subr.mxu0 0.0
    %3158 = vmatpush1.msra.mxu0 %v144
    %3159 = vmatprep.subr.mxu0 0.0
    %3160 = vmatpush1.msra.mxu0 %v143
    %3161 = vmatprep.subr.mxu0 0.0
    %3162 = vmatpush1.msra.mxu0 %v142
    %3163 = vmatprep.subr.mxu0 0.0
    %3164 = vmatpush2.msra.mxu0 0.0
    %3165 = vmatprep.subr.mxu0 0.0
    %3166 = vmatpush2.msra.mxu0 0.0
    %3167 = vmatprep.subr.mxu0 0.0
    %3168 = vmatpush2.msra.mxu0 0.0
    %3169 = vmatprep.subr.mxu0 0.0
    %3170 = vmatpush2.msra.mxu0 0.0
    %3171 = vmatprep.subr.mxu0 0.0
    %3172 = vmatpush2.msra.mxu0 0.0
    %3173 = vmatprep.subr.mxu0 0.0
    %3174 = vmatpush2.msra.mxu0 0.0
    %3175 = vmatprep.subr.mxu0 0.0
    %3176 = vmatpush2.msra.mxu0 0.0
    %3177 = vmatprep.subr.mxu0 0.0
    %3178 = vmatpush2.msra.mxu0 0.0
    %3179 = vmatprep.subr.mxu0 0.0
    %3180 = vmatpush2.msra.mxu0 0.0
    %3181 = vmatprep.subr.mxu0 0.0
    %3182 = vmatpush2.msra.mxu0 0.0
    %3183 = vmatprep.subr.mxu0 0.0
    %3184 = vmatpush2.msra.mxu0 0.0
    %3185 = vmatprep.subr.mxu0 0.0
    %3186 = vmatpush2.msra.mxu0 0.0
    %3187 = vmatprep.subr.mxu0 0.0
    %3188 = vmatpush2.msra.mxu0 0.0
    %3189 = vmatprep.subr.mxu0 0.0
    %3190 = vmatpush2.msra.mxu0 0.0
    %3191 = vmatprep.subr.mxu0 0.0
    %3192 = vmatpush2.msra.mxu0 0.0
    %3193 = vmatprep.subr.mxu0 0.0
    %3194 = vmatpush2.msra.mxu0 0.0
    %3195 = vmatprep.mubr.f32.mxu0 0.0
    %3196 = vmatmul.mubr.f32.gmra.mxu0 %v3115
    %v3197 = vpop.f32.mrf.mxu0
    %v3198 = vadd.f32 0.0, %v3197
    %v3199 = vpop.f32.mrf.mxu0
    %3200 = vmatprep.mubr.f32.mxu0 0.0
    %3201 = vmatmul.mubr.f32.gmra.mxu0 %v3116
    %v3202 = vpop.f32.mrf.mxu0
    %v3203 = vadd.f32 0.0, %v3202
    %v3204 = vpop.f32.mrf.mxu0
    %3205 = vmatprep.mubr.f32.mxu0 0.0
    %3206 = vmatmul.mubr.f32.gmra.mxu0 %v3117
    %v3207 = vpop.f32.mrf.mxu0
    %v3208 = vadd.f32 0.0, %v3207
    %v3209 = vpop.f32.mrf.mxu0
    %3210 = vmatprep.mubr.f32.mxu0 0.0
    %3211 = vmatmul.mubr.f32.gmra.mxu0 %v3118
    %v3212 = vpop.f32.mrf.mxu0
    %v3213 = vadd.f32 0.0, %v3212
    %v3214 = vpop.f32.mrf.mxu0
    %3215 = vmatprep.mubr.f32.mxu0 0.0
    %3216 = vmatmul.mubr.f32.gmra.mxu0 %v3119
    %v3217 = vpop.f32.mrf.mxu0
    %v3218 = vadd.f32 0.0, %v3217
    %v3219 = vpop.f32.mrf.mxu0
    %3220 = vmatprep.mubr.f32.mxu0 0.0
    %3221 = vmatmul.mubr.f32.gmra.mxu0 %v3120
    %v3222 = vpop.f32.mrf.mxu0
    %v3223 = vadd.f32 0.0, %v3222
    %v3224 = vpop.f32.mrf.mxu0
    %3225 = vmatprep.mubr.f32.mxu0 0.0
    %3226 = vmatmul.mubr.f32.gmra.mxu0 %v3121
    %v3227 = vpop.f32.mrf.mxu0
    %v3228 = vadd.f32 0.0, %v3227
    %v3229 = vpop.f32.mrf.mxu0
    %3230 = vmatprep.mubr.f32.mxu0 0.0
    %3231 = vmatmul.mubr.f32.gmra.mxu0 %v3122
    %v3232 = vpop.f32.mrf.mxu0
    %v3233 = vadd.f32 0.0, %v3232
    %v3234 = vpop.f32.mrf.mxu0
    %3235 = vmatprep.mubr.f32.mxu0 0.0
    %3236 = vmatmul.mubr.f32.gmra.mxu0 %v3123
    %v3237 = vpop.f32.mrf.mxu0
    %v3238 = vadd.f32 0.0, %v3237
    %v3239 = vpop.f32.mrf.mxu0
    %3240 = vmatprep.mubr.f32.mxu0 0.0
    %3241 = vmatmul.mubr.f32.gmra.mxu0 %v3124
    %v3242 = vpop.f32.mrf.mxu0
    %v3243 = vadd.f32 0.0, %v3242
    %v3244 = vpop.f32.mrf.mxu0
    %3245 = vmatprep.mubr.f32.mxu0 0.0
    %3246 = vmatmul.mubr.f32.gmra.mxu0 %v3125
    %v3247 = vpop.f32.mrf.mxu0
    %v3248 = vadd.f32 0.0, %v3247
    %v3249 = vpop.f32.mrf.mxu0
    %3250 = vmatprep.mubr.f32.mxu0 0.0
    %3251 = vmatmul.mubr.f32.gmra.mxu0 %v3126
    %v3252 = vpop.f32.mrf.mxu0
    %v3253 = vadd.f32 0.0, %v3252
    %v3254 = vpop.f32.mrf.mxu0
    %3255 = vmatprep.mubr.f32.mxu0 0.0
    %3256 = vmatmul.mubr.f32.gmra.mxu0 %v3127
    %v3257 = vpop.f32.mrf.mxu0
    %v3258 = vadd.f32 0.0, %v3257
    %v3259 = vpop.f32.mrf.mxu0
    %3260 = vmatprep.mubr.f32.mxu0 0.0
    %3261 = vmatmul.mubr.f32.gmra.mxu0 %v3128
    %v3262 = vpop.f32.mrf.mxu0
    %v3263 = vadd.f32 0.0, %v3262
    %v3264 = vpop.f32.mrf.mxu0
    %3265 = vmatprep.mubr.f32.mxu0 0.0
    %3266 = vmatmul.mubr.f32.gmra.mxu0 %v3129
    %v3267 = vpop.f32.mrf.mxu0
    %v3268 = vadd.f32 0.0, %v3267
    %v3269 = vpop.f32.mrf.mxu0
    %3270 = vmatprep.mubr.f32.mxu0 0.0
    %3271 = vmatmul.mubr.f32.gmra.mxu0 %v3130
    %v3272 = vpop.f32.mrf.mxu0
    %v3273 = vadd.f32 0.0, %v3272
    %v3274 = vpop.f32.mrf.mxu0
    %3275 = vdwg.mxu0
    %s3276 = scalar_lea.vmem %s7, 256
    %v3277 = vld [vmem:[%s3276] sm:$0xff]
    %v3278 = vld [vmem:[%s3276 + $0x8] sm:$0xff]
    %v3279 = vld [vmem:[%s3276 + $0x10] sm:$0xff]
    %v3280 = vld [vmem:[%s3276 + $0x18] sm:$0xff]
    %v3281 = vld [vmem:[%s3276 + $0x20] sm:$0xff]
    %v3282 = vld [vmem:[%s3276 + $0x28] sm:$0xff]
    %v3283 = vld [vmem:[%s3276 + $0x30] sm:$0xff]
    %v3284 = vld [vmem:[%s3276 + $0x38] sm:$0xff]
    %v3285 = vld [vmem:[%s3276 + $0x40] sm:$0xff]
    %v3286 = vld [vmem:[%s3276 + $0x48] sm:$0xff]
    %v3287 = vld [vmem:[%s3276 + $0x50] sm:$0xff]
    %v3288 = vld [vmem:[%s3276 + $0x58] sm:$0xff]
    %v3289 = vld [vmem:[%s3276 + $0x60] sm:$0xff]
    %v3290 = vld [vmem:[%s3276 + $0x68] sm:$0xff]
    %v3291 = vld [vmem:[%s3276 + $0x70] sm:$0xff]
    %v3292 = vld [vmem:[%s3276 + $0x78] sm:$0xff]
    %v3293 = vmul.f32 %v3277, %v3198
    %v3294 = vmul.f32 %v3278, %v3203
    %v3295 = vmul.f32 %v3279, %v3208
    %v3296 = vmul.f32 %v3280, %v3213
    %v3297 = vmul.f32 %v3281, %v3218
    %v3298 = vmul.f32 %v3282, %v3223
    %v3299 = vmul.f32 %v3283, %v3228
    %v3300 = vmul.f32 %v3284, %v3233
    %v3301 = vmul.f32 %v3285, %v3238
    %v3302 = vmul.f32 %v3286, %v3243
    %v3303 = vmul.f32 %v3287, %v3248
    %v3304 = vmul.f32 %v3288, %v3253
    %v3305 = vmul.f32 %v3289, %v3258
    %v3306 = vmul.f32 %v3290, %v3263
    %v3307 = vmul.f32 %v3291, %v3268
    %v3308 = vmul.f32 %v3292, %v3273
    %s3309 = scalar_lea.vmem %s8, 256
    %v3310 = vld [vmem:[%s3309] sm:$0xff]
    %v3311 = vld [vmem:[%s3309 + $0x8] sm:$0xff]
    %v3312 = vld [vmem:[%s3309 + $0x10] sm:$0xff]
    %v3313 = vld [vmem:[%s3309 + $0x18] sm:$0xff]
    %v3314 = vld [vmem:[%s3309 + $0x20] sm:$0xff]
    %v3315 = vld [vmem:[%s3309 + $0x28] sm:$0xff]
    %v3316 = vld [vmem:[%s3309 + $0x30] sm:$0xff]
    %v3317 = vld [vmem:[%s3309 + $0x38] sm:$0xff]
    %v3318 = vld [vmem:[%s3309 + $0x40] sm:$0xff]
    %v3319 = vld [vmem:[%s3309 + $0x48] sm:$0xff]
    %v3320 = vld [vmem:[%s3309 + $0x50] sm:$0xff]
    %v3321 = vld [vmem:[%s3309 + $0x58] sm:$0xff]
    %v3322 = vld [vmem:[%s3309 + $0x60] sm:$0xff]
    %v3323 = vld [vmem:[%s3309 + $0x68] sm:$0xff]
    %v3324 = vld [vmem:[%s3309 + $0x70] sm:$0xff]
    %v3325 = vld [vmem:[%s3309 + $0x78] sm:$0xff]
    %3326 = vrot.lane.b32.xlu0 %v3198, 64
    %v3327 = vpop.permute.xlu0 %3326
    %3328 = vrot.lane.b32.xlu0 %v3203, 64
    %v3329 = vpop.permute.xlu0 %3328
    %3330 = vrot.lane.b32.xlu0 %v3208, 64
    %v3331 = vpop.permute.xlu0 %3330
    %3332 = vrot.lane.b32.xlu0 %v3213, 64
    %v3333 = vpop.permute.xlu0 %3332
    %3334 = vrot.lane.b32.xlu0 %v3218, 64
    %v3335 = vpop.permute.xlu0 %3334
    %3336 = vrot.lane.b32.xlu0 %v3223, 64
    %v3337 = vpop.permute.xlu0 %3336
    %3338 = vrot.lane.b32.xlu0 %v3228, 64
    %v3339 = vpop.permute.xlu0 %3338
    %3340 = vrot.lane.b32.xlu0 %v3233, 64
    %v3341 = vpop.permute.xlu0 %3340
    %3342 = vrot.lane.b32.xlu0 %v3238, 64
    %v3343 = vpop.permute.xlu0 %3342
    %3344 = vrot.lane.b32.xlu0 %v3243, 64
    %v3345 = vpop.permute.xlu0 %3344
    %3346 = vrot.lane.b32.xlu0 %v3248, 64
    %v3347 = vpop.permute.xlu0 %3346
    %3348 = vrot.lane.b32.xlu0 %v3253, 64
    %v3349 = vpop.permute.xlu0 %3348
    %3350 = vrot.lane.b32.xlu0 %v3258, 64
    %v3351 = vpop.permute.xlu0 %3350
    %3352 = vrot.lane.b32.xlu0 %v3263, 64
    %v3353 = vpop.permute.xlu0 %3352
    %3354 = vrot.lane.b32.xlu0 %v3268, 64
    %v3355 = vpop.permute.xlu0 %3354
    %3356 = vrot.lane.b32.xlu0 %v3273, 64
    %v3357 = vpop.permute.xlu0 %3356
    %v3358 = vmul.f32 %v3310, %v3327
    %v3359 = vmul.f32 %v3311, %v3329
    %v3360 = vmul.f32 %v3312, %v3331
    %v3361 = vmul.f32 %v3313, %v3333
    %v3362 = vmul.f32 %v3314, %v3335
    %v3363 = vmul.f32 %v3315, %v3337
    %v3364 = vmul.f32 %v3316, %v3339
    %v3365 = vmul.f32 %v3317, %v3341
    %v3366 = vmul.f32 %v3318, %v3343
    %v3367 = vmul.f32 %v3319, %v3345
    %v3368 = vmul.f32 %v3320, %v3347
    %v3369 = vmul.f32 %v3321, %v3349
    %v3370 = vmul.f32 %v3322, %v3351
    %v3371 = vmul.f32 %v3323, %v3353
    %v3372 = vmul.f32 %v3324, %v3355
    %v3373 = vmul.f32 %v3325, %v3357
    %v3374 = vadd.f32 %v3293, %v3358
    %v3375 = vadd.f32 %v3294, %v3359
    %v3376 = vadd.f32 %v3295, %v3360
    %v3377 = vadd.f32 %v3296, %v3361
    %v3378 = vadd.f32 %v3297, %v3362
    %v3379 = vadd.f32 %v3298, %v3363
    %v3380 = vadd.f32 %v3299, %v3364
    %v3381 = vadd.f32 %v3300, %v3365
    %v3382 = vadd.f32 %v3301, %v3366
    %v3383 = vadd.f32 %v3302, %v3367
    %v3384 = vadd.f32 %v3303, %v3368
    %v3385 = vadd.f32 %v3304, %v3369
    %v3386 = vadd.f32 %v3305, %v3370
    %v3387 = vadd.f32 %v3306, %v3371
    %v3388 = vadd.f32 %v3307, %v3372
    %v3389 = vadd.f32 %v3308, %v3373
    %3390 = vmatprep.subr.mxu0 0.0
    %3391 = vmatpush1.msra.mxu0 %v3389
    %3392 = vmatprep.subr.mxu0 0.0
    %3393 = vmatpush1.msra.mxu0 %v3388
    %3394 = vmatprep.subr.mxu0 0.0
    %3395 = vmatpush1.msra.mxu0 %v3387
    %3396 = vmatprep.subr.mxu0 0.0
    %3397 = vmatpush1.msra.mxu0 %v3386
    %3398 = vmatprep.subr.mxu0 0.0
    %3399 = vmatpush1.msra.mxu0 %v3385
    %3400 = vmatprep.subr.mxu0 0.0
    %3401 = vmatpush1.msra.mxu0 %v3384
    %3402 = vmatprep.subr.mxu0 0.0
    %3403 = vmatpush1.msra.mxu0 %v3383
    %3404 = vmatprep.subr.mxu0 0.0
    %3405 = vmatpush1.msra.mxu0 %v3382
    %3406 = vmatprep.subr.mxu0 0.0
    %3407 = vmatpush1.msra.mxu0 %v3381
    %3408 = vmatprep.subr.mxu0 0.0
    %3409 = vmatpush1.msra.mxu0 %v3380
    %3410 = vmatprep.subr.mxu0 0.0
    %3411 = vmatpush1.msra.mxu0 %v3379
    %3412 = vmatprep.subr.mxu0 0.0
    %3413 = vmatpush1.msra.mxu0 %v3378
    %3414 = vmatprep.subr.mxu0 0.0
    %3415 = vmatpush1.msra.mxu0 %v3377
    %3416 = vmatprep.subr.mxu0 0.0
    %3417 = vmatpush1.msra.mxu0 %v3376
    %3418 = vmatprep.subr.mxu0 0.0
    %3419 = vmatpush1.msra.mxu0 %v3375
    %3420 = vmatprep.subr.mxu0 0.0
    %3421 = vmatpush1.msra.mxu0 %v3374
    %3422 = vmatprep.subr.mxu0 0.0
    %3423 = vmatpush2.msra.mxu0 0.0
    %3424 = vmatprep.subr.mxu0 0.0
    %3425 = vmatpush2.msra.mxu0 0.0
    %3426 = vmatprep.subr.mxu0 0.0
    %3427 = vmatpush2.msra.mxu0 0.0
    %3428 = vmatprep.subr.mxu0 0.0
    %3429 = vmatpush2.msra.mxu0 0.0
    %3430 = vmatprep.subr.mxu0 0.0
    %3431 = vmatpush2.msra.mxu0 0.0
    %3432 = vmatprep.subr.mxu0 0.0
    %3433 = vmatpush2.msra.mxu0 0.0
    %3434 = vmatprep.subr.mxu0 0.0
    %3435 = vmatpush2.msra.mxu0 0.0
    %3436 = vmatprep.subr.mxu0 0.0
    %3437 = vmatpush2.msra.mxu0 0.0
    %3438 = vmatprep.subr.mxu0 0.0
    %3439 = vmatpush2.msra.mxu0 0.0
    %3440 = vmatprep.subr.mxu0 0.0
    %3441 = vmatpush2.msra.mxu0 0.0
    %3442 = vmatprep.subr.mxu0 0.0
    %3443 = vmatpush2.msra.mxu0 0.0
    %3444 = vmatprep.subr.mxu0 0.0
    %3445 = vmatpush2.msra.mxu0 0.0
    %3446 = vmatprep.subr.mxu0 0.0
    %3447 = vmatpush2.msra.mxu0 0.0
    %3448 = vmatprep.subr.mxu0 0.0
    %3449 = vmatpush2.msra.mxu0 0.0
    %3450 = vmatprep.subr.mxu0 0.0
    %3451 = vmatpush2.msra.mxu0 0.0
    %3452 = vmatprep.subr.mxu0 0.0
    %3453 = vmatpush2.msra.mxu0 0.0
    %3454 = vmatprep.mubr.f32.mxu0 0.0
    %3455 = vmatmul.mubr.f32.gmra.mxu0 %v62
    %v3456 = vpop.f32.mrf.mxu0
    %v3457 = vadd.f32 0.0, %v3456
    %v3458 = vpop.f32.mrf.mxu0
    %3459 = vmatprep.mubr.f32.mxu0 0.0
    %3460 = vmatmul.mubr.f32.gmra.mxu0 %v63
    %v3461 = vpop.f32.mrf.mxu0
    %v3462 = vadd.f32 0.0, %v3461
    %v3463 = vpop.f32.mrf.mxu0
    %3464 = vmatprep.mubr.f32.mxu0 0.0
    %3465 = vmatmul.mubr.f32.gmra.mxu0 %v64
    %v3466 = vpop.f32.mrf.mxu0
    %v3467 = vadd.f32 0.0, %v3466
    %v3468 = vpop.f32.mrf.mxu0
    %3469 = vmatprep.mubr.f32.mxu0 0.0
    %3470 = vmatmul.mubr.f32.gmra.mxu0 %v65
    %v3471 = vpop.f32.mrf.mxu0
    %v3472 = vadd.f32 0.0, %v3471
    %v3473 = vpop.f32.mrf.mxu0
    %3474 = vmatprep.mubr.f32.mxu0 0.0
    %3475 = vmatmul.mubr.f32.gmra.mxu0 %v66
    %v3476 = vpop.f32.mrf.mxu0
    %v3477 = vadd.f32 0.0, %v3476
    %v3478 = vpop.f32.mrf.mxu0
    %3479 = vmatprep.mubr.f32.mxu0 0.0
    %3480 = vmatmul.mubr.f32.gmra.mxu0 %v67
    %v3481 = vpop.f32.mrf.mxu0
    %v3482 = vadd.f32 0.0, %v3481
    %v3483 = vpop.f32.mrf.mxu0
    %3484 = vmatprep.mubr.f32.mxu0 0.0
    %3485 = vmatmul.mubr.f32.gmra.mxu0 %v68
    %v3486 = vpop.f32.mrf.mxu0
    %v3487 = vadd.f32 0.0, %v3486
    %v3488 = vpop.f32.mrf.mxu0
    %3489 = vmatprep.mubr.f32.mxu0 0.0
    %3490 = vmatmul.mubr.f32.gmra.mxu0 %v69
    %v3491 = vpop.f32.mrf.mxu0
    %v3492 = vadd.f32 0.0, %v3491
    %v3493 = vpop.f32.mrf.mxu0
    %3494 = vmatprep.mubr.f32.mxu0 0.0
    %3495 = vmatmul.mubr.f32.gmra.mxu0 %v70
    %v3496 = vpop.f32.mrf.mxu0
    %v3497 = vadd.f32 0.0, %v3496
    %v3498 = vpop.f32.mrf.mxu0
    %3499 = vmatprep.mubr.f32.mxu0 0.0
    %3500 = vmatmul.mubr.f32.gmra.mxu0 %v71
    %v3501 = vpop.f32.mrf.mxu0
    %v3502 = vadd.f32 0.0, %v3501
    %v3503 = vpop.f32.mrf.mxu0
    %3504 = vmatprep.mubr.f32.mxu0 0.0
    %3505 = vmatmul.mubr.f32.gmra.mxu0 %v72
    %v3506 = vpop.f32.mrf.mxu0
    %v3507 = vadd.f32 0.0, %v3506
    %v3508 = vpop.f32.mrf.mxu0
    %3509 = vmatprep.mubr.f32.mxu0 0.0
    %3510 = vmatmul.mubr.f32.gmra.mxu0 %v73
    %v3511 = vpop.f32.mrf.mxu0
    %v3512 = vadd.f32 0.0, %v3511
    %v3513 = vpop.f32.mrf.mxu0
    %3514 = vmatprep.mubr.f32.mxu0 0.0
    %3515 = vmatmul.mubr.f32.gmra.mxu0 %v74
    %v3516 = vpop.f32.mrf.mxu0
    %v3517 = vadd.f32 0.0, %v3516
    %v3518 = vpop.f32.mrf.mxu0
    %3519 = vmatprep.mubr.f32.mxu0 0.0
    %3520 = vmatmul.mubr.f32.gmra.mxu0 %v75
    %v3521 = vpop.f32.mrf.mxu0
    %v3522 = vadd.f32 0.0, %v3521
    %v3523 = vpop.f32.mrf.mxu0
    %3524 = vmatprep.mubr.f32.mxu0 0.0
    %3525 = vmatmul.mubr.f32.gmra.mxu0 %v76
    %v3526 = vpop.f32.mrf.mxu0
    %v3527 = vadd.f32 0.0, %v3526
    %v3528 = vpop.f32.mrf.mxu0
    %3529 = vmatprep.mubr.f32.mxu0 0.0
    %3530 = vmatmul.mubr.f32.gmra.mxu0 %v77
    %v3531 = vpop.f32.mrf.mxu0
    %v3532 = vadd.f32 0.0, %v3531
    %v3533 = vpop.f32.mrf.mxu0
    %3534 = vmatprep.mubr.f32.mxu0 0.0
    %3535 = vmatmul.mubr.f32.gmra.mxu0 %v78
    %v3536 = vpop.f32.mrf.mxu0
    %v3537 = vadd.f32 0.0, %v3536
    %v3538 = vpop.f32.mrf.mxu0
    %3539 = vmatprep.mubr.f32.mxu0 0.0
    %3540 = vmatmul.mubr.f32.gmra.mxu0 %v79
    %v3541 = vpop.f32.mrf.mxu0
    %v3542 = vadd.f32 0.0, %v3541
    %v3543 = vpop.f32.mrf.mxu0
    %3544 = vmatprep.mubr.f32.mxu0 0.0
    %3545 = vmatmul.mubr.f32.gmra.mxu0 %v80
    %v3546 = vpop.f32.mrf.mxu0
    %v3547 = vadd.f32 0.0, %v3546
    %v3548 = vpop.f32.mrf.mxu0
    %3549 = vmatprep.mubr.f32.mxu0 0.0
    %3550 = vmatmul.mubr.f32.gmra.mxu0 %v81
    %v3551 = vpop.f32.mrf.mxu0
    %v3552 = vadd.f32 0.0, %v3551
    %v3553 = vpop.f32.mrf.mxu0
    %3554 = vmatprep.mubr.f32.mxu0 0.0
    %3555 = vmatmul.mubr.f32.gmra.mxu0 %v82
    %v3556 = vpop.f32.mrf.mxu0
    %v3557 = vadd.f32 0.0, %v3556
    %v3558 = vpop.f32.mrf.mxu0
    %3559 = vmatprep.mubr.f32.mxu0 0.0
    %3560 = vmatmul.mubr.f32.gmra.mxu0 %v83
    %v3561 = vpop.f32.mrf.mxu0
    %v3562 = vadd.f32 0.0, %v3561
    %v3563 = vpop.f32.mrf.mxu0
    %3564 = vmatprep.mubr.f32.mxu0 0.0
    %3565 = vmatmul.mubr.f32.gmra.mxu0 %v84
    %v3566 = vpop.f32.mrf.mxu0
    %v3567 = vadd.f32 0.0, %v3566
    %v3568 = vpop.f32.mrf.mxu0
    %3569 = vmatprep.mubr.f32.mxu0 0.0
    %3570 = vmatmul.mubr.f32.gmra.mxu0 %v85
    %v3571 = vpop.f32.mrf.mxu0
    %v3572 = vadd.f32 0.0, %v3571
    %v3573 = vpop.f32.mrf.mxu0
    %3574 = vmatprep.mubr.f32.mxu0 0.0
    %3575 = vmatmul.mubr.f32.gmra.mxu0 %v86
    %v3576 = vpop.f32.mrf.mxu0
    %v3577 = vadd.f32 0.0, %v3576
    %v3578 = vpop.f32.mrf.mxu0
    %3579 = vmatprep.mubr.f32.mxu0 0.0
    %3580 = vmatmul.mubr.f32.gmra.mxu0 %v87
    %v3581 = vpop.f32.mrf.mxu0
    %v3582 = vadd.f32 0.0, %v3581
    %v3583 = vpop.f32.mrf.mxu0
    %3584 = vmatprep.mubr.f32.mxu0 0.0
    %3585 = vmatmul.mubr.f32.gmra.mxu0 %v88
    %v3586 = vpop.f32.mrf.mxu0
    %v3587 = vadd.f32 0.0, %v3586
    %v3588 = vpop.f32.mrf.mxu0
    %3589 = vmatprep.mubr.f32.mxu0 0.0
    %3590 = vmatmul.mubr.f32.gmra.mxu0 %v89
    %v3591 = vpop.f32.mrf.mxu0
    %v3592 = vadd.f32 0.0, %v3591
    %v3593 = vpop.f32.mrf.mxu0
    %3594 = vmatprep.mubr.f32.mxu0 0.0
    %3595 = vmatmul.mubr.f32.gmra.mxu0 %v90
    %v3596 = vpop.f32.mrf.mxu0
    %v3597 = vadd.f32 0.0, %v3596
    %v3598 = vpop.f32.mrf.mxu0
    %3599 = vmatprep.mubr.f32.mxu0 0.0
    %3600 = vmatmul.mubr.f32.gmra.mxu0 %v91
    %v3601 = vpop.f32.mrf.mxu0
    %v3602 = vadd.f32 0.0, %v3601
    %v3603 = vpop.f32.mrf.mxu0
    %3604 = vmatprep.mubr.f32.mxu0 0.0
    %3605 = vmatmul.mubr.f32.gmra.mxu0 %v92
    %v3606 = vpop.f32.mrf.mxu0
    %v3607 = vadd.f32 0.0, %v3606
    %v3608 = vpop.f32.mrf.mxu0
    %3609 = vmatprep.mubr.f32.mxu0 0.0
    %3610 = vmatmul.mubr.f32.gmra.mxu0 %v93
    %v3611 = vpop.f32.mrf.mxu0
    %v3612 = vadd.f32 0.0, %v3611
    %v3613 = vpop.f32.mrf.mxu0
    %3614 = vdwg.mxu0
    %3615 = vrot.lane.b32.xlu0 %v3537, 64
    %v3616 = vpop.permute.xlu0 %3615
    %3617 = vrot.lane.b32.xlu0 %v3542, 64
    %v3618 = vpop.permute.xlu0 %3617
    %3619 = vrot.lane.b32.xlu0 %v3547, 64
    %v3620 = vpop.permute.xlu0 %3619
    %3621 = vrot.lane.b32.xlu0 %v3552, 64
    %v3622 = vpop.permute.xlu0 %3621
    %3623 = vrot.lane.b32.xlu0 %v3557, 64
    %v3624 = vpop.permute.xlu0 %3623
    %3625 = vrot.lane.b32.xlu0 %v3562, 64
    %v3626 = vpop.permute.xlu0 %3625
    %3627 = vrot.lane.b32.xlu0 %v3567, 64
    %v3628 = vpop.permute.xlu0 %3627
    %3629 = vrot.lane.b32.xlu0 %v3572, 64
    %v3630 = vpop.permute.xlu0 %3629
    %3631 = vrot.lane.b32.xlu0 %v3577, 64
    %v3632 = vpop.permute.xlu0 %3631
    %3633 = vrot.lane.b32.xlu0 %v3582, 64
    %v3634 = vpop.permute.xlu0 %3633
    %3635 = vrot.lane.b32.xlu0 %v3587, 64
    %v3636 = vpop.permute.xlu0 %3635
    %3637 = vrot.lane.b32.xlu0 %v3592, 64
    %v3638 = vpop.permute.xlu0 %3637
    %3639 = vrot.lane.b32.xlu0 %v3597, 64
    %v3640 = vpop.permute.xlu0 %3639
    %3641 = vrot.lane.b32.xlu0 %v3602, 64
    %v3642 = vpop.permute.xlu0 %3641
    %3643 = vrot.lane.b32.xlu0 %v3607, 64
    %v3644 = vpop.permute.xlu0 %3643
    %3645 = vrot.lane.b32.xlu0 %v3612, 64
    %v3646 = vpop.permute.xlu0 %3645
    %v3647 = vmul.f32 %v190, %v3616
    %v3648 = vmul.f32 %v191, %v3618
    %v3649 = vmul.f32 %v192, %v3620
    %v3650 = vmul.f32 %v193, %v3622
    %v3651 = vmul.f32 %v194, %v3624
    %v3652 = vmul.f32 %v195, %v3626
    %v3653 = vmul.f32 %v196, %v3628
    %v3654 = vmul.f32 %v197, %v3630
    %v3655 = vmul.f32 %v198, %v3632
    %v3656 = vmul.f32 %v199, %v3634
    %v3657 = vmul.f32 %v200, %v3636
    %v3658 = vmul.f32 %v201, %v3638
    %v3659 = vmul.f32 %v202, %v3640
    %v3660 = vmul.f32 %v203, %v3642
    %v3661 = vmul.f32 %v204, %v3644
    %v3662 = vmul.f32 %v205, %v3646
    %v3663 = vadd.f32 %v3457, %v3647
    %v3664 = vadd.f32 %v3462, %v3648
    %v3665 = vadd.f32 %v3467, %v3649
    %v3666 = vadd.f32 %v3472, %v3650
    %v3667 = vadd.f32 %v3477, %v3651
    %v3668 = vadd.f32 %v3482, %v3652
    %v3669 = vadd.f32 %v3487, %v3653
    %v3670 = vadd.f32 %v3492, %v3654
    %v3671 = vadd.f32 %v3497, %v3655
    %v3672 = vadd.f32 %v3502, %v3656
    %v3673 = vadd.f32 %v3507, %v3657
    %v3674 = vadd.f32 %v3512, %v3658
    %v3675 = vadd.f32 %v3517, %v3659
    %v3676 = vadd.f32 %v3522, %v3660
    %v3677 = vadd.f32 %v3527, %v3661
    %v3678 = vadd.f32 %v3532, %v3662
    %3679 = vmatprep.subr.mxu0 0.0
    %3680 = vmatpush1.msra.mxu0 %v141
    %3681 = vmatprep.subr.mxu0 0.0
    %3682 = vmatpush1.msra.mxu0 %v140
    %3683 = vmatprep.subr.mxu0 0.0
    %3684 = vmatpush1.msra.mxu0 %v139
    %3685 = vmatprep.subr.mxu0 0.0
    %3686 = vmatpush1.msra.mxu0 %v138
    %3687 = vmatprep.subr.mxu0 0.0
    %3688 = vmatpush1.msra.mxu0 %v137
    %3689 = vmatprep.subr.mxu0 0.0
    %3690 = vmatpush1.msra.mxu0 %v136
    %3691 = vmatprep.subr.mxu0 0.0
    %3692 = vmatpush1.msra.mxu0 %v135
    %3693 = vmatprep.subr.mxu0 0.0
    %3694 = vmatpush1.msra.mxu0 %v134
    %3695 = vmatprep.subr.mxu0 0.0
    %3696 = vmatpush1.msra.mxu0 %v133
    %3697 = vmatprep.subr.mxu0 0.0
    %3698 = vmatpush1.msra.mxu0 %v132
    %3699 = vmatprep.subr.mxu0 0.0
    %3700 = vmatpush1.msra.mxu0 %v131
    %3701 = vmatprep.subr.mxu0 0.0
    %3702 = vmatpush1.msra.mxu0 %v130
    %3703 = vmatprep.subr.mxu0 0.0
    %3704 = vmatpush1.msra.mxu0 %v129
    %3705 = vmatprep.subr.mxu0 0.0
    %3706 = vmatpush1.msra.mxu0 %v128
    %3707 = vmatprep.subr.mxu0 0.0
    %3708 = vmatpush1.msra.mxu0 %v127
    %3709 = vmatprep.subr.mxu0 0.0
    %3710 = vmatpush1.msra.mxu0 %v126
    %3711 = vmatprep.subr.mxu0 0.0
    %3712 = vmatpush2.msra.mxu0 0.0
    %3713 = vmatprep.subr.mxu0 0.0
    %3714 = vmatpush2.msra.mxu0 0.0
    %3715 = vmatprep.subr.mxu0 0.0
    %3716 = vmatpush2.msra.mxu0 0.0
    %3717 = vmatprep.subr.mxu0 0.0
    %3718 = vmatpush2.msra.mxu0 0.0
    %3719 = vmatprep.subr.mxu0 0.0
    %3720 = vmatpush2.msra.mxu0 0.0
    %3721 = vmatprep.subr.mxu0 0.0
    %3722 = vmatpush2.msra.mxu0 0.0
    %3723 = vmatprep.subr.mxu0 0.0
    %3724 = vmatpush2.msra.mxu0 0.0
    %3725 = vmatprep.subr.mxu0 0.0
    %3726 = vmatpush2.msra.mxu0 0.0
    %3727 = vmatprep.subr.mxu0 0.0
    %3728 = vmatpush2.msra.mxu0 0.0
    %3729 = vmatprep.subr.mxu0 0.0
    %3730 = vmatpush2.msra.mxu0 0.0
    %3731 = vmatprep.subr.mxu0 0.0
    %3732 = vmatpush2.msra.mxu0 0.0
    %3733 = vmatprep.subr.mxu0 0.0
    %3734 = vmatpush2.msra.mxu0 0.0
    %3735 = vmatprep.subr.mxu0 0.0
    %3736 = vmatpush2.msra.mxu0 0.0
    %3737 = vmatprep.subr.mxu0 0.0
    %3738 = vmatpush2.msra.mxu0 0.0
    %3739 = vmatprep.subr.mxu0 0.0
    %3740 = vmatpush2.msra.mxu0 0.0
    %3741 = vmatprep.subr.mxu0 0.0
    %3742 = vmatpush2.msra.mxu0 0.0
    %3743 = vmatprep.mubr.f32.mxu0 0.0
    %3744 = vmatmul.mubr.f32.gmra.mxu0 %v3663
    %v3745 = vpop.f32.mrf.mxu0
    %v3746 = vadd.f32 0.0, %v3745
    %v3747 = vpop.f32.mrf.mxu0
    %3748 = vmatprep.mubr.f32.mxu0 0.0
    %3749 = vmatmul.mubr.f32.gmra.mxu0 %v3664
    %v3750 = vpop.f32.mrf.mxu0
    %v3751 = vadd.f32 0.0, %v3750
    %v3752 = vpop.f32.mrf.mxu0
    %3753 = vmatprep.mubr.f32.mxu0 0.0
    %3754 = vmatmul.mubr.f32.gmra.mxu0 %v3665
    %v3755 = vpop.f32.mrf.mxu0
    %v3756 = vadd.f32 0.0, %v3755
    %v3757 = vpop.f32.mrf.mxu0
    %3758 = vmatprep.mubr.f32.mxu0 0.0
    %3759 = vmatmul.mubr.f32.gmra.mxu0 %v3666
    %v3760 = vpop.f32.mrf.mxu0
    %v3761 = vadd.f32 0.0, %v3760
    %v3762 = vpop.f32.mrf.mxu0
    %3763 = vmatprep.mubr.f32.mxu0 0.0
    %3764 = vmatmul.mubr.f32.gmra.mxu0 %v3667
    %v3765 = vpop.f32.mrf.mxu0
    %v3766 = vadd.f32 0.0, %v3765
    %v3767 = vpop.f32.mrf.mxu0
    %3768 = vmatprep.mubr.f32.mxu0 0.0
    %3769 = vmatmul.mubr.f32.gmra.mxu0 %v3668
    %v3770 = vpop.f32.mrf.mxu0
    %v3771 = vadd.f32 0.0, %v3770
    %v3772 = vpop.f32.mrf.mxu0
    %3773 = vmatprep.mubr.f32.mxu0 0.0
    %3774 = vmatmul.mubr.f32.gmra.mxu0 %v3669
    %v3775 = vpop.f32.mrf.mxu0
    %v3776 = vadd.f32 0.0, %v3775
    %v3777 = vpop.f32.mrf.mxu0
    %3778 = vmatprep.mubr.f32.mxu0 0.0
    %3779 = vmatmul.mubr.f32.gmra.mxu0 %v3670
    %v3780 = vpop.f32.mrf.mxu0
    %v3781 = vadd.f32 0.0, %v3780
    %v3782 = vpop.f32.mrf.mxu0
    %3783 = vmatprep.mubr.f32.mxu0 0.0
    %3784 = vmatmul.mubr.f32.gmra.mxu0 %v3671
    %v3785 = vpop.f32.mrf.mxu0
    %v3786 = vadd.f32 0.0, %v3785
    %v3787 = vpop.f32.mrf.mxu0
    %3788 = vmatprep.mubr.f32.mxu0 0.0
    %3789 = vmatmul.mubr.f32.gmra.mxu0 %v3672
    %v3790 = vpop.f32.mrf.mxu0
    %v3791 = vadd.f32 0.0, %v3790
    %v3792 = vpop.f32.mrf.mxu0
    %3793 = vmatprep.mubr.f32.mxu0 0.0
    %3794 = vmatmul.mubr.f32.gmra.mxu0 %v3673
    %v3795 = vpop.f32.mrf.mxu0
    %v3796 = vadd.f32 0.0, %v3795
    %v3797 = vpop.f32.mrf.mxu0
    %3798 = vmatprep.mubr.f32.mxu0 0.0
    %3799 = vmatmul.mubr.f32.gmra.mxu0 %v3674
    %v3800 = vpop.f32.mrf.mxu0
    %v3801 = vadd.f32 0.0, %v3800
    %v3802 = vpop.f32.mrf.mxu0
    %3803 = vmatprep.mubr.f32.mxu0 0.0
    %3804 = vmatmul.mubr.f32.gmra.mxu0 %v3675
    %v3805 = vpop.f32.mrf.mxu0
    %v3806 = vadd.f32 0.0, %v3805
    %v3807 = vpop.f32.mrf.mxu0
    %3808 = vmatprep.mubr.f32.mxu0 0.0
    %3809 = vmatmul.mubr.f32.gmra.mxu0 %v3676
    %v3810 = vpop.f32.mrf.mxu0
    %v3811 = vadd.f32 0.0, %v3810
    %v3812 = vpop.f32.mrf.mxu0
    %3813 = vmatprep.mubr.f32.mxu0 0.0
    %3814 = vmatmul.mubr.f32.gmra.mxu0 %v3677
    %v3815 = vpop.f32.mrf.mxu0
    %v3816 = vadd.f32 0.0, %v3815
    %v3817 = vpop.f32.mrf.mxu0
    %3818 = vmatprep.mubr.f32.mxu0 0.0
    %3819 = vmatmul.mubr.f32.gmra.mxu0 %v3678
    %v3820 = vpop.f32.mrf.mxu0
    %v3821 = vadd.f32 0.0, %v3820
    %v3822 = vpop.f32.mrf.mxu0
    %3823 = vdwg.mxu0
    %v3824 = vmul.f32 %v158, %v3746
    %v3825 = vmul.f32 %v159, %v3751
    %v3826 = vmul.f32 %v160, %v3756
    %v3827 = vmul.f32 %v161, %v3761
    %v3828 = vmul.f32 %v162, %v3766
    %v3829 = vmul.f32 %v163, %v3771
    %v3830 = vmul.f32 %v164, %v3776
    %v3831 = vmul.f32 %v165, %v3781
    %v3832 = vmul.f32 %v166, %v3786
    %v3833 = vmul.f32 %v167, %v3791
    %v3834 = vmul.f32 %v168, %v3796
    %v3835 = vmul.f32 %v169, %v3801
    %v3836 = vmul.f32 %v170, %v3806
    %v3837 = vmul.f32 %v171, %v3811
    %v3838 = vmul.f32 %v172, %v3816
    %v3839 = vmul.f32 %v173, %v3821
    %3840 = vrot.lane.b32.xlu0 %v3746, 64
    %v3841 = vpop.permute.xlu0 %3840
    %3842 = vrot.lane.b32.xlu0 %v3751, 64
    %v3843 = vpop.permute.xlu0 %3842
    %3844 = vrot.lane.b32.xlu0 %v3756, 64
    %v3845 = vpop.permute.xlu0 %3844
    %3846 = vrot.lane.b32.xlu0 %v3761, 64
    %v3847 = vpop.permute.xlu0 %3846
    %3848 = vrot.lane.b32.xlu0 %v3766, 64
    %v3849 = vpop.permute.xlu0 %3848
    %3850 = vrot.lane.b32.xlu0 %v3771, 64
    %v3851 = vpop.permute.xlu0 %3850
    %3852 = vrot.lane.b32.xlu0 %v3776, 64
    %v3853 = vpop.permute.xlu0 %3852
    %3854 = vrot.lane.b32.xlu0 %v3781, 64
    %v3855 = vpop.permute.xlu0 %3854
    %3856 = vrot.lane.b32.xlu0 %v3786, 64
    %v3857 = vpop.permute.xlu0 %3856
    %3858 = vrot.lane.b32.xlu0 %v3791, 64
    %v3859 = vpop.permute.xlu0 %3858
    %3860 = vrot.lane.b32.xlu0 %v3796, 64
    %v3861 = vpop.permute.xlu0 %3860
    %3862 = vrot.lane.b32.xlu0 %v3801, 64
    %v3863 = vpop.permute.xlu0 %3862
    %3864 = vrot.lane.b32.xlu0 %v3806, 64
    %v3865 = vpop.permute.xlu0 %3864
    %3866 = vrot.lane.b32.xlu0 %v3811, 64
    %v3867 = vpop.permute.xlu0 %3866
    %3868 = vrot.lane.b32.xlu0 %v3816, 64
    %v3869 = vpop.permute.xlu0 %3868
    %3870 = vrot.lane.b32.xlu0 %v3821, 64
    %v3871 = vpop.permute.xlu0 %3870
    %v3872 = vmul.f32 %v174, %v3841
    %v3873 = vmul.f32 %v175, %v3843
    %v3874 = vmul.f32 %v176, %v3845
    %v3875 = vmul.f32 %v177, %v3847
    %v3876 = vmul.f32 %v178, %v3849
    %v3877 = vmul.f32 %v179, %v3851
    %v3878 = vmul.f32 %v180, %v3853
    %v3879 = vmul.f32 %v181, %v3855
    %v3880 = vmul.f32 %v182, %v3857
    %v3881 = vmul.f32 %v183, %v3859
    %v3882 = vmul.f32 %v184, %v3861
    %v3883 = vmul.f32 %v185, %v3863
    %v3884 = vmul.f32 %v186, %v3865
    %v3885 = vmul.f32 %v187, %v3867
    %v3886 = vmul.f32 %v188, %v3869
    %v3887 = vmul.f32 %v189, %v3871
    %v3888 = vadd.f32 %v3824, %v3872
    %v3889 = vadd.f32 %v3825, %v3873
    %v3890 = vadd.f32 %v3826, %v3874
    %v3891 = vadd.f32 %v3827, %v3875
    %v3892 = vadd.f32 %v3828, %v3876
    %v3893 = vadd.f32 %v3829, %v3877
    %v3894 = vadd.f32 %v3830, %v3878
    %v3895 = vadd.f32 %v3831, %v3879
    %v3896 = vadd.f32 %v3832, %v3880
    %v3897 = vadd.f32 %v3833, %v3881
    %v3898 = vadd.f32 %v3834, %v3882
    %v3899 = vadd.f32 %v3835, %v3883
    %v3900 = vadd.f32 %v3836, %v3884
    %v3901 = vadd.f32 %v3837, %v3885
    %v3902 = vadd.f32 %v3838, %v3886
    %v3903 = vadd.f32 %v3839, %v3887
    %3904 = vmatprep.subr.mxu0 0.0
    %3905 = vmatpush1.msra.mxu0 %v3903
    %3906 = vmatprep.subr.mxu0 0.0
    %3907 = vmatpush1.msra.mxu0 %v3902
    %3908 = vmatprep.subr.mxu0 0.0
    %3909 = vmatpush1.msra.mxu0 %v3901
    %3910 = vmatprep.subr.mxu0 0.0
    %3911 = vmatpush1.msra.mxu0 %v3900
    %3912 = vmatprep.subr.mxu0 0.0
    %3913 = vmatpush1.msra.mxu0 %v3899
    %3914 = vmatprep.subr.mxu0 0.0
    %3915 = vmatpush1.msra.mxu0 %v3898
    %3916 = vmatprep.subr.mxu0 0.0
    %3917 = vmatpush1.msra.mxu0 %v3897
    %3918 = vmatprep.subr.mxu0 0.0
    %3919 = vmatpush1.msra.mxu0 %v3896
    %3920 = vmatprep.subr.mxu0 0.0
    %3921 = vmatpush1.msra.mxu0 %v3895
    %3922 = vmatprep.subr.mxu0 0.0
    %3923 = vmatpush1.msra.mxu0 %v3894
    %3924 = vmatprep.subr.mxu0 0.0
    %3925 = vmatpush1.msra.mxu0 %v3893
    %3926 = vmatprep.subr.mxu0 0.0
    %3927 = vmatpush1.msra.mxu0 %v3892
    %3928 = vmatprep.subr.mxu0 0.0
    %3929 = vmatpush1.msra.mxu0 %v3891
    %3930 = vmatprep.subr.mxu0 0.0
    %3931 = vmatpush1.msra.mxu0 %v3890
    %3932 = vmatprep.subr.mxu0 0.0
    %3933 = vmatpush1.msra.mxu0 %v3889
    %3934 = vmatprep.subr.mxu0 0.0
    %3935 = vmatpush1.msra.mxu0 %v3888
    %3936 = vmatprep.subr.mxu0 0.0
    %3937 = vmatpush2.msra.mxu0 0.0
    %3938 = vmatprep.subr.mxu0 0.0
    %3939 = vmatpush2.msra.mxu0 0.0
    %3940 = vmatprep.subr.mxu0 0.0
    %3941 = vmatpush2.msra.mxu0 0.0
    %3942 = vmatprep.subr.mxu0 0.0
    %3943 = vmatpush2.msra.mxu0 0.0
    %3944 = vmatprep.subr.mxu0 0.0
    %3945 = vmatpush2.msra.mxu0 0.0
    %3946 = vmatprep.subr.mxu0 0.0
    %3947 = vmatpush2.msra.mxu0 0.0
    %3948 = vmatprep.subr.mxu0 0.0
    %3949 = vmatpush2.msra.mxu0 0.0
    %3950 = vmatprep.subr.mxu0 0.0
    %3951 = vmatpush2.msra.mxu0 0.0
    %3952 = vmatprep.subr.mxu0 0.0
    %3953 = vmatpush2.msra.mxu0 0.0
    %3954 = vmatprep.subr.mxu0 0.0
    %3955 = vmatpush2.msra.mxu0 0.0
    %3956 = vmatprep.subr.mxu0 0.0
    %3957 = vmatpush2.msra.mxu0 0.0
    %3958 = vmatprep.subr.mxu0 0.0
    %3959 = vmatpush2.msra.mxu0 0.0
    %3960 = vmatprep.subr.mxu0 0.0
    %3961 = vmatpush2.msra.mxu0 0.0
    %3962 = vmatprep.subr.mxu0 0.0
    %3963 = vmatpush2.msra.mxu0 0.0
    %3964 = vmatprep.subr.mxu0 0.0
    %3965 = vmatpush2.msra.mxu0 0.0
    %3966 = vmatprep.subr.mxu0 0.0
    %3967 = vmatpush2.msra.mxu0 0.0
    %3968 = vmatprep.mubr.f32.mxu0 0.0
    %3969 = vmatmul.mubr.f32.gmra.mxu0 %v94
    %v3970 = vpop.f32.mrf.mxu0
    %v3971 = vadd.f32 0.0, %v3970
    %v3972 = vpop.f32.mrf.mxu0
    %3973 = vmatprep.mubr.f32.mxu0 0.0
    %3974 = vmatmul.mubr.f32.gmra.mxu0 %v95
    %v3975 = vpop.f32.mrf.mxu0
    %v3976 = vadd.f32 0.0, %v3975
    %v3977 = vpop.f32.mrf.mxu0
    %3978 = vmatprep.mubr.f32.mxu0 0.0
    %3979 = vmatmul.mubr.f32.gmra.mxu0 %v96
    %v3980 = vpop.f32.mrf.mxu0
    %v3981 = vadd.f32 0.0, %v3980
    %v3982 = vpop.f32.mrf.mxu0
    %3983 = vmatprep.mubr.f32.mxu0 0.0
    %3984 = vmatmul.mubr.f32.gmra.mxu0 %v97
    %v3985 = vpop.f32.mrf.mxu0
    %v3986 = vadd.f32 0.0, %v3985
    %v3987 = vpop.f32.mrf.mxu0
    %3988 = vmatprep.mubr.f32.mxu0 0.0
    %3989 = vmatmul.mubr.f32.gmra.mxu0 %v98
    %v3990 = vpop.f32.mrf.mxu0
    %v3991 = vadd.f32 0.0, %v3990
    %v3992 = vpop.f32.mrf.mxu0
    %3993 = vmatprep.mubr.f32.mxu0 0.0
    %3994 = vmatmul.mubr.f32.gmra.mxu0 %v99
    %v3995 = vpop.f32.mrf.mxu0
    %v3996 = vadd.f32 0.0, %v3995
    %v3997 = vpop.f32.mrf.mxu0
    %3998 = vmatprep.mubr.f32.mxu0 0.0
    %3999 = vmatmul.mubr.f32.gmra.mxu0 %v100
    %v4000 = vpop.f32.mrf.mxu0
    %v4001 = vadd.f32 0.0, %v4000
    %v4002 = vpop.f32.mrf.mxu0
    %4003 = vmatprep.mubr.f32.mxu0 0.0
    %4004 = vmatmul.mubr.f32.gmra.mxu0 %v101
    %v4005 = vpop.f32.mrf.mxu0
    %v4006 = vadd.f32 0.0, %v4005
    %v4007 = vpop.f32.mrf.mxu0
    %4008 = vmatprep.mubr.f32.mxu0 0.0
    %4009 = vmatmul.mubr.f32.gmra.mxu0 %v102
    %v4010 = vpop.f32.mrf.mxu0
    %v4011 = vadd.f32 0.0, %v4010
    %v4012 = vpop.f32.mrf.mxu0
    %4013 = vmatprep.mubr.f32.mxu0 0.0
    %4014 = vmatmul.mubr.f32.gmra.mxu0 %v103
    %v4015 = vpop.f32.mrf.mxu0
    %v4016 = vadd.f32 0.0, %v4015
    %v4017 = vpop.f32.mrf.mxu0
    %4018 = vmatprep.mubr.f32.mxu0 0.0
    %4019 = vmatmul.mubr.f32.gmra.mxu0 %v104
    %v4020 = vpop.f32.mrf.mxu0
    %v4021 = vadd.f32 0.0, %v4020
    %v4022 = vpop.f32.mrf.mxu0
    %4023 = vmatprep.mubr.f32.mxu0 0.0
    %4024 = vmatmul.mubr.f32.gmra.mxu0 %v105
    %v4025 = vpop.f32.mrf.mxu0
    %v4026 = vadd.f32 0.0, %v4025
    %v4027 = vpop.f32.mrf.mxu0
    %4028 = vmatprep.mubr.f32.mxu0 0.0
    %4029 = vmatmul.mubr.f32.gmra.mxu0 %v106
    %v4030 = vpop.f32.mrf.mxu0
    %v4031 = vadd.f32 0.0, %v4030
    %v4032 = vpop.f32.mrf.mxu0
    %4033 = vmatprep.mubr.f32.mxu0 0.0
    %4034 = vmatmul.mubr.f32.gmra.mxu0 %v107
    %v4035 = vpop.f32.mrf.mxu0
    %v4036 = vadd.f32 0.0, %v4035
    %v4037 = vpop.f32.mrf.mxu0
    %4038 = vmatprep.mubr.f32.mxu0 0.0
    %4039 = vmatmul.mubr.f32.gmra.mxu0 %v108
    %v4040 = vpop.f32.mrf.mxu0
    %v4041 = vadd.f32 0.0, %v4040
    %v4042 = vpop.f32.mrf.mxu0
    %4043 = vmatprep.mubr.f32.mxu0 0.0
    %4044 = vmatmul.mubr.f32.gmra.mxu0 %v109
    %v4045 = vpop.f32.mrf.mxu0
    %v4046 = vadd.f32 0.0, %v4045
    %v4047 = vpop.f32.mrf.mxu0
    %4048 = vmatprep.mubr.f32.mxu0 0.0
    %4049 = vmatmul.mubr.f32.gmra.mxu0 %v110
    %v4050 = vpop.f32.mrf.mxu0
    %v4051 = vadd.f32 0.0, %v4050
    %v4052 = vpop.f32.mrf.mxu0
    %4053 = vmatprep.mubr.f32.mxu0 0.0
    %4054 = vmatmul.mubr.f32.gmra.mxu0 %v111
    %v4055 = vpop.f32.mrf.mxu0
    %v4056 = vadd.f32 0.0, %v4055
    %v4057 = vpop.f32.mrf.mxu0
    %4058 = vmatprep.mubr.f32.mxu0 0.0
    %4059 = vmatmul.mubr.f32.gmra.mxu0 %v112
    %v4060 = vpop.f32.mrf.mxu0
    %v4061 = vadd.f32 0.0, %v4060
    %v4062 = vpop.f32.mrf.mxu0
    %4063 = vmatprep.mubr.f32.mxu0 0.0
    %4064 = vmatmul.mubr.f32.gmra.mxu0 %v113
    %v4065 = vpop.f32.mrf.mxu0
    %v4066 = vadd.f32 0.0, %v4065
    %v4067 = vpop.f32.mrf.mxu0
    %4068 = vmatprep.mubr.f32.mxu0 0.0
    %4069 = vmatmul.mubr.f32.gmra.mxu0 %v114
    %v4070 = vpop.f32.mrf.mxu0
    %v4071 = vadd.f32 0.0, %v4070
    %v4072 = vpop.f32.mrf.mxu0
    %4073 = vmatprep.mubr.f32.mxu0 0.0
    %4074 = vmatmul.mubr.f32.gmra.mxu0 %v115
    %v4075 = vpop.f32.mrf.mxu0
    %v4076 = vadd.f32 0.0, %v4075
    %v4077 = vpop.f32.mrf.mxu0
    %4078 = vmatprep.mubr.f32.mxu0 0.0
    %4079 = vmatmul.mubr.f32.gmra.mxu0 %v116
    %v4080 = vpop.f32.mrf.mxu0
    %v4081 = vadd.f32 0.0, %v4080
    %v4082 = vpop.f32.mrf.mxu0
    %4083 = vmatprep.mubr.f32.mxu0 0.0
    %4084 = vmatmul.mubr.f32.gmra.mxu0 %v117
    %v4085 = vpop.f32.mrf.mxu0
    %v4086 = vadd.f32 0.0, %v4085
    %v4087 = vpop.f32.mrf.mxu0
    %4088 = vmatprep.mubr.f32.mxu0 0.0
    %4089 = vmatmul.mubr.f32.gmra.mxu0 %v118
    %v4090 = vpop.f32.mrf.mxu0
    %v4091 = vadd.f32 0.0, %v4090
    %v4092 = vpop.f32.mrf.mxu0
    %4093 = vmatprep.mubr.f32.mxu0 0.0
    %4094 = vmatmul.mubr.f32.gmra.mxu0 %v119
    %v4095 = vpop.f32.mrf.mxu0
    %v4096 = vadd.f32 0.0, %v4095
    %v4097 = vpop.f32.mrf.mxu0
    %4098 = vmatprep.mubr.f32.mxu0 0.0
    %4099 = vmatmul.mubr.f32.gmra.mxu0 %v120
    %v4100 = vpop.f32.mrf.mxu0
    %v4101 = vadd.f32 0.0, %v4100
    %v4102 = vpop.f32.mrf.mxu0
    %4103 = vmatprep.mubr.f32.mxu0 0.0
    %4104 = vmatmul.mubr.f32.gmra.mxu0 %v121
    %v4105 = vpop.f32.mrf.mxu0
    %v4106 = vadd.f32 0.0, %v4105
    %v4107 = vpop.f32.mrf.mxu0
    %4108 = vmatprep.mubr.f32.mxu0 0.0
    %4109 = vmatmul.mubr.f32.gmra.mxu0 %v122
    %v4110 = vpop.f32.mrf.mxu0
    %v4111 = vadd.f32 0.0, %v4110
    %v4112 = vpop.f32.mrf.mxu0
    %4113 = vmatprep.mubr.f32.mxu0 0.0
    %4114 = vmatmul.mubr.f32.gmra.mxu0 %v123
    %v4115 = vpop.f32.mrf.mxu0
    %v4116 = vadd.f32 0.0, %v4115
    %v4117 = vpop.f32.mrf.mxu0
    %4118 = vmatprep.mubr.f32.mxu0 0.0
    %4119 = vmatmul.mubr.f32.gmra.mxu0 %v124
    %v4120 = vpop.f32.mrf.mxu0
    %v4121 = vadd.f32 0.0, %v4120
    %v4122 = vpop.f32.mrf.mxu0
    %4123 = vmatprep.mubr.f32.mxu0 0.0
    %4124 = vmatmul.mubr.f32.gmra.mxu0 %v125
    %v4125 = vpop.f32.mrf.mxu0
    %v4126 = vadd.f32 0.0, %v4125
    %v4127 = vpop.f32.mrf.mxu0
    %4128 = vdwg.mxu0
    %4129 = vrot.lane.b32.xlu0 %v4051, 64
    %v4130 = vpop.permute.xlu0 %4129
    %4131 = vrot.lane.b32.xlu0 %v4056, 64
    %v4132 = vpop.permute.xlu0 %4131
    %4133 = vrot.lane.b32.xlu0 %v4061, 64
    %v4134 = vpop.permute.xlu0 %4133
    %4135 = vrot.lane.b32.xlu0 %v4066, 64
    %v4136 = vpop.permute.xlu0 %4135
    %4137 = vrot.lane.b32.xlu0 %v4071, 64
    %v4138 = vpop.permute.xlu0 %4137
    %4139 = vrot.lane.b32.xlu0 %v4076, 64
    %v4140 = vpop.permute.xlu0 %4139
    %4141 = vrot.lane.b32.xlu0 %v4081, 64
    %v4142 = vpop.permute.xlu0 %4141
    %4143 = vrot.lane.b32.xlu0 %v4086, 64
    %v4144 = vpop.permute.xlu0 %4143
    %4145 = vrot.lane.b32.xlu0 %v4091, 64
    %v4146 = vpop.permute.xlu0 %4145
    %4147 = vrot.lane.b32.xlu0 %v4096, 64
    %v4148 = vpop.permute.xlu0 %4147
    %4149 = vrot.lane.b32.xlu0 %v4101, 64
    %v4150 = vpop.permute.xlu0 %4149
    %4151 = vrot.lane.b32.xlu0 %v4106, 64
    %v4152 = vpop.permute.xlu0 %4151
    %4153 = vrot.lane.b32.xlu0 %v4111, 64
    %v4154 = vpop.permute.xlu0 %4153
    %4155 = vrot.lane.b32.xlu0 %v4116, 64
    %v4156 = vpop.permute.xlu0 %4155
    %4157 = vrot.lane.b32.xlu0 %v4121, 64
    %v4158 = vpop.permute.xlu0 %4157
    %4159 = vrot.lane.b32.xlu0 %v4126, 64
    %v4160 = vpop.permute.xlu0 %4159
    %v4161 = vmul.f32 %v190, %v4130
    %v4162 = vmul.f32 %v191, %v4132
    %v4163 = vmul.f32 %v192, %v4134
    %v4164 = vmul.f32 %v193, %v4136
    %v4165 = vmul.f32 %v194, %v4138
    %v4166 = vmul.f32 %v195, %v4140
    %v4167 = vmul.f32 %v196, %v4142
    %v4168 = vmul.f32 %v197, %v4144
    %v4169 = vmul.f32 %v198, %v4146
    %v4170 = vmul.f32 %v199, %v4148
    %v4171 = vmul.f32 %v200, %v4150
    %v4172 = vmul.f32 %v201, %v4152
    %v4173 = vmul.f32 %v202, %v4154
    %v4174 = vmul.f32 %v203, %v4156
    %v4175 = vmul.f32 %v204, %v4158
    %v4176 = vmul.f32 %v205, %v4160
    %v4177 = vadd.f32 %v3971, %v4161
    %v4178 = vadd.f32 %v3976, %v4162
    %v4179 = vadd.f32 %v3981, %v4163
    %v4180 = vadd.f32 %v3986, %v4164
    %v4181 = vadd.f32 %v3991, %v4165
    %v4182 = vadd.f32 %v3996, %v4166
    %v4183 = vadd.f32 %v4001, %v4167
    %v4184 = vadd.f32 %v4006, %v4168
    %v4185 = vadd.f32 %v4011, %v4169
    %v4186 = vadd.f32 %v4016, %v4170
    %v4187 = vadd.f32 %v4021, %v4171
    %v4188 = vadd.f32 %v4026, %v4172
    %v4189 = vadd.f32 %v4031, %v4173
    %v4190 = vadd.f32 %v4036, %v4174
    %v4191 = vadd.f32 %v4041, %v4175
    %v4192 = vadd.f32 %v4046, %v4176
    %4193 = vmatprep.subr.mxu0 0.0
    %4194 = vmatpush1.msra.mxu0 %v157
    %4195 = vmatprep.subr.mxu0 0.0
    %4196 = vmatpush1.msra.mxu0 %v156
    %4197 = vmatprep.subr.mxu0 0.0
    %4198 = vmatpush1.msra.mxu0 %v155
    %4199 = vmatprep.subr.mxu0 0.0
    %4200 = vmatpush1.msra.mxu0 %v154
    %4201 = vmatprep.subr.mxu0 0.0
    %4202 = vmatpush1.msra.mxu0 %v153
    %4203 = vmatprep.subr.mxu0 0.0
    %4204 = vmatpush1.msra.mxu0 %v152
    %4205 = vmatprep.subr.mxu0 0.0
    %4206 = vmatpush1.msra.mxu0 %v151
    %4207 = vmatprep.subr.mxu0 0.0
    %4208 = vmatpush1.msra.mxu0 %v150
    %4209 = vmatprep.subr.mxu0 0.0
    %4210 = vmatpush1.msra.mxu0 %v149
    %4211 = vmatprep.subr.mxu0 0.0
    %4212 = vmatpush1.msra.mxu0 %v148
    %4213 = vmatprep.subr.mxu0 0.0
    %4214 = vmatpush1.msra.mxu0 %v147
    %4215 = vmatprep.subr.mxu0 0.0
    %4216 = vmatpush1.msra.mxu0 %v146
    %4217 = vmatprep.subr.mxu0 0.0
    %4218 = vmatpush1.msra.mxu0 %v145
    %4219 = vmatprep.subr.mxu0 0.0
    %4220 = vmatpush1.msra.mxu0 %v144
    %4221 = vmatprep.subr.mxu0 0.0
    %4222 = vmatpush1.msra.mxu0 %v143
    %4223 = vmatprep.subr.mxu0 0.0
    %4224 = vmatpush1.msra.mxu0 %v142
    %4225 = vmatprep.subr.mxu0 0.0
    %4226 = vmatpush2.msra.mxu0 0.0
    %4227 = vmatprep.subr.mxu0 0.0
    %4228 = vmatpush2.msra.mxu0 0.0
    %4229 = vmatprep.subr.mxu0 0.0
    %4230 = vmatpush2.msra.mxu0 0.0
    %4231 = vmatprep.subr.mxu0 0.0
    %4232 = vmatpush2.msra.mxu0 0.0
    %4233 = vmatprep.subr.mxu0 0.0
    %4234 = vmatpush2.msra.mxu0 0.0
    %4235 = vmatprep.subr.mxu0 0.0
    %4236 = vmatpush2.msra.mxu0 0.0
    %4237 = vmatprep.subr.mxu0 0.0
    %4238 = vmatpush2.msra.mxu0 0.0
    %4239 = vmatprep.subr.mxu0 0.0
    %4240 = vmatpush2.msra.mxu0 0.0
    %4241 = vmatprep.subr.mxu0 0.0
    %4242 = vmatpush2.msra.mxu0 0.0
    %4243 = vmatprep.subr.mxu0 0.0
    %4244 = vmatpush2.msra.mxu0 0.0
    %4245 = vmatprep.subr.mxu0 0.0
    %4246 = vmatpush2.msra.mxu0 0.0
    %4247 = vmatprep.subr.mxu0 0.0
    %4248 = vmatpush2.msra.mxu0 0.0
    %4249 = vmatprep.subr.mxu0 0.0
    %4250 = vmatpush2.msra.mxu0 0.0
    %4251 = vmatprep.subr.mxu0 0.0
    %4252 = vmatpush2.msra.mxu0 0.0
    %4253 = vmatprep.subr.mxu0 0.0
    %4254 = vmatpush2.msra.mxu0 0.0
    %4255 = vmatprep.subr.mxu0 0.0
    %4256 = vmatpush2.msra.mxu0 0.0
    %4257 = vmatprep.mubr.f32.mxu0 0.0
    %4258 = vmatmul.mubr.f32.gmra.mxu0 %v4177
    %v4259 = vpop.f32.mrf.mxu0
    %v4260 = vadd.f32 0.0, %v4259
    %v4261 = vpop.f32.mrf.mxu0
    %4262 = vmatprep.mubr.f32.mxu0 0.0
    %4263 = vmatmul.mubr.f32.gmra.mxu0 %v4178
    %v4264 = vpop.f32.mrf.mxu0
    %v4265 = vadd.f32 0.0, %v4264
    %v4266 = vpop.f32.mrf.mxu0
    %4267 = vmatprep.mubr.f32.mxu0 0.0
    %4268 = vmatmul.mubr.f32.gmra.mxu0 %v4179
    %v4269 = vpop.f32.mrf.mxu0
    %v4270 = vadd.f32 0.0, %v4269
    %v4271 = vpop.f32.mrf.mxu0
    %4272 = vmatprep.mubr.f32.mxu0 0.0
    %4273 = vmatmul.mubr.f32.gmra.mxu0 %v4180
    %v4274 = vpop.f32.mrf.mxu0
    %v4275 = vadd.f32 0.0, %v4274
    %v4276 = vpop.f32.mrf.mxu0
    %4277 = vmatprep.mubr.f32.mxu0 0.0
    %4278 = vmatmul.mubr.f32.gmra.mxu0 %v4181
    %v4279 = vpop.f32.mrf.mxu0
    %v4280 = vadd.f32 0.0, %v4279
    %v4281 = vpop.f32.mrf.mxu0
    %4282 = vmatprep.mubr.f32.mxu0 0.0
    %4283 = vmatmul.mubr.f32.gmra.mxu0 %v4182
    %v4284 = vpop.f32.mrf.mxu0
    %v4285 = vadd.f32 0.0, %v4284
    %v4286 = vpop.f32.mrf.mxu0
    %4287 = vmatprep.mubr.f32.mxu0 0.0
    %4288 = vmatmul.mubr.f32.gmra.mxu0 %v4183
    %v4289 = vpop.f32.mrf.mxu0
    %v4290 = vadd.f32 0.0, %v4289
    %v4291 = vpop.f32.mrf.mxu0
    %4292 = vmatprep.mubr.f32.mxu0 0.0
    %4293 = vmatmul.mubr.f32.gmra.mxu0 %v4184
    %v4294 = vpop.f32.mrf.mxu0
    %v4295 = vadd.f32 0.0, %v4294
    %v4296 = vpop.f32.mrf.mxu0
    %4297 = vmatprep.mubr.f32.mxu0 0.0
    %4298 = vmatmul.mubr.f32.gmra.mxu0 %v4185
    %v4299 = vpop.f32.mrf.mxu0
    %v4300 = vadd.f32 0.0, %v4299
    %v4301 = vpop.f32.mrf.mxu0
    %4302 = vmatprep.mubr.f32.mxu0 0.0
    %4303 = vmatmul.mubr.f32.gmra.mxu0 %v4186
    %v4304 = vpop.f32.mrf.mxu0
    %v4305 = vadd.f32 0.0, %v4304
    %v4306 = vpop.f32.mrf.mxu0
    %4307 = vmatprep.mubr.f32.mxu0 0.0
    %4308 = vmatmul.mubr.f32.gmra.mxu0 %v4187
    %v4309 = vpop.f32.mrf.mxu0
    %v4310 = vadd.f32 0.0, %v4309
    %v4311 = vpop.f32.mrf.mxu0
    %4312 = vmatprep.mubr.f32.mxu0 0.0
    %4313 = vmatmul.mubr.f32.gmra.mxu0 %v4188
    %v4314 = vpop.f32.mrf.mxu0
    %v4315 = vadd.f32 0.0, %v4314
    %v4316 = vpop.f32.mrf.mxu0
    %4317 = vmatprep.mubr.f32.mxu0 0.0
    %4318 = vmatmul.mubr.f32.gmra.mxu0 %v4189
    %v4319 = vpop.f32.mrf.mxu0
    %v4320 = vadd.f32 0.0, %v4319
    %v4321 = vpop.f32.mrf.mxu0
    %4322 = vmatprep.mubr.f32.mxu0 0.0
    %4323 = vmatmul.mubr.f32.gmra.mxu0 %v4190
    %v4324 = vpop.f32.mrf.mxu0
    %v4325 = vadd.f32 0.0, %v4324
    %v4326 = vpop.f32.mrf.mxu0
    %4327 = vmatprep.mubr.f32.mxu0 0.0
    %4328 = vmatmul.mubr.f32.gmra.mxu0 %v4191
    %v4329 = vpop.f32.mrf.mxu0
    %v4330 = vadd.f32 0.0, %v4329
    %v4331 = vpop.f32.mrf.mxu0
    %4332 = vmatprep.mubr.f32.mxu0 0.0
    %4333 = vmatmul.mubr.f32.gmra.mxu0 %v4192
    %v4334 = vpop.f32.mrf.mxu0
    %v4335 = vadd.f32 0.0, %v4334
    %v4336 = vpop.f32.mrf.mxu0
    %4337 = vdwg.mxu0
    %s4338 = scalar_lea.vmem %s7, 384
    %v4339 = vld [vmem:[%s4338] sm:$0xff]
    %v4340 = vld [vmem:[%s4338 + $0x8] sm:$0xff]
    %v4341 = vld [vmem:[%s4338 + $0x10] sm:$0xff]
    %v4342 = vld [vmem:[%s4338 + $0x18] sm:$0xff]
    %v4343 = vld [vmem:[%s4338 + $0x20] sm:$0xff]
    %v4344 = vld [vmem:[%s4338 + $0x28] sm:$0xff]
    %v4345 = vld [vmem:[%s4338 + $0x30] sm:$0xff]
    %v4346 = vld [vmem:[%s4338 + $0x38] sm:$0xff]
    %v4347 = vld [vmem:[%s4338 + $0x40] sm:$0xff]
    %v4348 = vld [vmem:[%s4338 + $0x48] sm:$0xff]
    %v4349 = vld [vmem:[%s4338 + $0x50] sm:$0xff]
    %v4350 = vld [vmem:[%s4338 + $0x58] sm:$0xff]
    %v4351 = vld [vmem:[%s4338 + $0x60] sm:$0xff]
    %v4352 = vld [vmem:[%s4338 + $0x68] sm:$0xff]
    %v4353 = vld [vmem:[%s4338 + $0x70] sm:$0xff]
    %v4354 = vld [vmem:[%s4338 + $0x78] sm:$0xff]
    %v4355 = vmul.f32 %v4339, %v4260
    %v4356 = vmul.f32 %v4340, %v4265
    %v4357 = vmul.f32 %v4341, %v4270
    %v4358 = vmul.f32 %v4342, %v4275
    %v4359 = vmul.f32 %v4343, %v4280
    %v4360 = vmul.f32 %v4344, %v4285
    %v4361 = vmul.f32 %v4345, %v4290
    %v4362 = vmul.f32 %v4346, %v4295
    %v4363 = vmul.f32 %v4347, %v4300
    %v4364 = vmul.f32 %v4348, %v4305
    %v4365 = vmul.f32 %v4349, %v4310
    %v4366 = vmul.f32 %v4350, %v4315
    %v4367 = vmul.f32 %v4351, %v4320
    %v4368 = vmul.f32 %v4352, %v4325
    %v4369 = vmul.f32 %v4353, %v4330
    %v4370 = vmul.f32 %v4354, %v4335
    %s4371 = scalar_lea.vmem %s8, 384
    %v4372 = vld [vmem:[%s4371] sm:$0xff]
    %v4373 = vld [vmem:[%s4371 + $0x8] sm:$0xff]
    %v4374 = vld [vmem:[%s4371 + $0x10] sm:$0xff]
    %v4375 = vld [vmem:[%s4371 + $0x18] sm:$0xff]
    %v4376 = vld [vmem:[%s4371 + $0x20] sm:$0xff]
    %v4377 = vld [vmem:[%s4371 + $0x28] sm:$0xff]
    %v4378 = vld [vmem:[%s4371 + $0x30] sm:$0xff]
    %v4379 = vld [vmem:[%s4371 + $0x38] sm:$0xff]
    %v4380 = vld [vmem:[%s4371 + $0x40] sm:$0xff]
    %v4381 = vld [vmem:[%s4371 + $0x48] sm:$0xff]
    %v4382 = vld [vmem:[%s4371 + $0x50] sm:$0xff]
    %v4383 = vld [vmem:[%s4371 + $0x58] sm:$0xff]
    %v4384 = vld [vmem:[%s4371 + $0x60] sm:$0xff]
    %v4385 = vld [vmem:[%s4371 + $0x68] sm:$0xff]
    %v4386 = vld [vmem:[%s4371 + $0x70] sm:$0xff]
    %v4387 = vld [vmem:[%s4371 + $0x78] sm:$0xff]
    %4388 = vrot.lane.b32.xlu0 %v4260, 64
    %v4389 = vpop.permute.xlu0 %4388
    %4390 = vrot.lane.b32.xlu0 %v4265, 64
    %v4391 = vpop.permute.xlu0 %4390
    %4392 = vrot.lane.b32.xlu0 %v4270, 64
    %v4393 = vpop.permute.xlu0 %4392
    %4394 = vrot.lane.b32.xlu0 %v4275, 64
    %v4395 = vpop.permute.xlu0 %4394
    %4396 = vrot.lane.b32.xlu0 %v4280, 64
    %v4397 = vpop.permute.xlu0 %4396
    %4398 = vrot.lane.b32.xlu0 %v4285, 64
    %v4399 = vpop.permute.xlu0 %4398
    %4400 = vrot.lane.b32.xlu0 %v4290, 64
    %v4401 = vpop.permute.xlu0 %4400
    %4402 = vrot.lane.b32.xlu0 %v4295, 64
    %v4403 = vpop.permute.xlu0 %4402
    %4404 = vrot.lane.b32.xlu0 %v4300, 64
    %v4405 = vpop.permute.xlu0 %4404
    %4406 = vrot.lane.b32.xlu0 %v4305, 64
    %v4407 = vpop.permute.xlu0 %4406
    %4408 = vrot.lane.b32.xlu0 %v4310, 64
    %v4409 = vpop.permute.xlu0 %4408
    %4410 = vrot.lane.b32.xlu0 %v4315, 64
    %v4411 = vpop.permute.xlu0 %4410
    %4412 = vrot.lane.b32.xlu0 %v4320, 64
    %v4413 = vpop.permute.xlu0 %4412
    %4414 = vrot.lane.b32.xlu0 %v4325, 64
    %v4415 = vpop.permute.xlu0 %4414
    %4416 = vrot.lane.b32.xlu0 %v4330, 64
    %v4417 = vpop.permute.xlu0 %4416
    %4418 = vrot.lane.b32.xlu0 %v4335, 64
    %v4419 = vpop.permute.xlu0 %4418
    %v4420 = vmul.f32 %v4372, %v4389
    %v4421 = vmul.f32 %v4373, %v4391
    %v4422 = vmul.f32 %v4374, %v4393
    %v4423 = vmul.f32 %v4375, %v4395
    %v4424 = vmul.f32 %v4376, %v4397
    %v4425 = vmul.f32 %v4377, %v4399
    %v4426 = vmul.f32 %v4378, %v4401
    %v4427 = vmul.f32 %v4379, %v4403
    %v4428 = vmul.f32 %v4380, %v4405
    %v4429 = vmul.f32 %v4381, %v4407
    %v4430 = vmul.f32 %v4382, %v4409
    %v4431 = vmul.f32 %v4383, %v4411
    %v4432 = vmul.f32 %v4384, %v4413
    %v4433 = vmul.f32 %v4385, %v4415
    %v4434 = vmul.f32 %v4386, %v4417
    %v4435 = vmul.f32 %v4387, %v4419
    %v4436 = vadd.f32 %v4355, %v4420
    %v4437 = vadd.f32 %v4356, %v4421
    %v4438 = vadd.f32 %v4357, %v4422
    %v4439 = vadd.f32 %v4358, %v4423
    %v4440 = vadd.f32 %v4359, %v4424
    %v4441 = vadd.f32 %v4360, %v4425
    %v4442 = vadd.f32 %v4361, %v4426
    %v4443 = vadd.f32 %v4362, %v4427
    %v4444 = vadd.f32 %v4363, %v4428
    %v4445 = vadd.f32 %v4364, %v4429
    %v4446 = vadd.f32 %v4365, %v4430
    %v4447 = vadd.f32 %v4366, %v4431
    %v4448 = vadd.f32 %v4367, %v4432
    %v4449 = vadd.f32 %v4368, %v4433
    %v4450 = vadd.f32 %v4369, %v4434
    %v4451 = vadd.f32 %v4370, %v4435
    %4452 = vmatprep.subr.mxu0 0.0
    %4453 = vmatpush1.msra.mxu0 %v4451
    %4454 = vmatprep.subr.mxu0 0.0
    %4455 = vmatpush1.msra.mxu0 %v4450
    %4456 = vmatprep.subr.mxu0 0.0
    %4457 = vmatpush1.msra.mxu0 %v4449
    %4458 = vmatprep.subr.mxu0 0.0
    %4459 = vmatpush1.msra.mxu0 %v4448
    %4460 = vmatprep.subr.mxu0 0.0
    %4461 = vmatpush1.msra.mxu0 %v4447
    %4462 = vmatprep.subr.mxu0 0.0
    %4463 = vmatpush1.msra.mxu0 %v4446
    %4464 = vmatprep.subr.mxu0 0.0
    %4465 = vmatpush1.msra.mxu0 %v4445
    %4466 = vmatprep.subr.mxu0 0.0
    %4467 = vmatpush1.msra.mxu0 %v4444
    %4468 = vmatprep.subr.mxu0 0.0
    %4469 = vmatpush1.msra.mxu0 %v4443
    %4470 = vmatprep.subr.mxu0 0.0
    %4471 = vmatpush1.msra.mxu0 %v4442
    %4472 = vmatprep.subr.mxu0 0.0
    %4473 = vmatpush1.msra.mxu0 %v4441
    %4474 = vmatprep.subr.mxu0 0.0
    %4475 = vmatpush1.msra.mxu0 %v4440
    %4476 = vmatprep.subr.mxu0 0.0
    %4477 = vmatpush1.msra.mxu0 %v4439
    %4478 = vmatprep.subr.mxu0 0.0
    %4479 = vmatpush1.msra.mxu0 %v4438
    %4480 = vmatprep.subr.mxu0 0.0
    %4481 = vmatpush1.msra.mxu0 %v4437
    %4482 = vmatprep.subr.mxu0 0.0
    %4483 = vmatpush1.msra.mxu0 %v4436
    %4484 = vmatprep.subr.mxu0 0.0
    %4485 = vmatpush2.msra.mxu0 0.0
    %4486 = vmatprep.subr.mxu0 0.0
    %4487 = vmatpush2.msra.mxu0 0.0
    %4488 = vmatprep.subr.mxu0 0.0
    %4489 = vmatpush2.msra.mxu0 0.0
    %4490 = vmatprep.subr.mxu0 0.0
    %4491 = vmatpush2.msra.mxu0 0.0
    %4492 = vmatprep.subr.mxu0 0.0
    %4493 = vmatpush2.msra.mxu0 0.0
    %4494 = vmatprep.subr.mxu0 0.0
    %4495 = vmatpush2.msra.mxu0 0.0
    %4496 = vmatprep.subr.mxu0 0.0
    %4497 = vmatpush2.msra.mxu0 0.0
    %4498 = vmatprep.subr.mxu0 0.0
    %4499 = vmatpush2.msra.mxu0 0.0
    %4500 = vmatprep.subr.mxu0 0.0
    %4501 = vmatpush2.msra.mxu0 0.0
    %4502 = vmatprep.subr.mxu0 0.0
    %4503 = vmatpush2.msra.mxu0 0.0
    %4504 = vmatprep.subr.mxu0 0.0
    %4505 = vmatpush2.msra.mxu0 0.0
    %4506 = vmatprep.subr.mxu0 0.0
    %4507 = vmatpush2.msra.mxu0 0.0
    %4508 = vmatprep.subr.mxu0 0.0
    %4509 = vmatpush2.msra.mxu0 0.0
    %4510 = vmatprep.subr.mxu0 0.0
    %4511 = vmatpush2.msra.mxu0 0.0
    %4512 = vmatprep.subr.mxu0 0.0
    %4513 = vmatpush2.msra.mxu0 0.0
    %4514 = vmatprep.subr.mxu0 0.0
    %4515 = vmatpush2.msra.mxu0 0.0
    %4516 = vmatprep.mubr.f32.mxu0 0.0
    %4517 = vmatmul.mubr.f32.gmra.mxu0 %v62
    %v4518 = vpop.f32.mrf.mxu0
    %v4519 = vadd.f32 0.0, %v4518
    %v4520 = vpop.f32.mrf.mxu0
    %4521 = vmatprep.mubr.f32.mxu0 0.0
    %4522 = vmatmul.mubr.f32.gmra.mxu0 %v63
    %v4523 = vpop.f32.mrf.mxu0
    %v4524 = vadd.f32 0.0, %v4523
    %v4525 = vpop.f32.mrf.mxu0
    %4526 = vmatprep.mubr.f32.mxu0 0.0
    %4527 = vmatmul.mubr.f32.gmra.mxu0 %v64
    %v4528 = vpop.f32.mrf.mxu0
    %v4529 = vadd.f32 0.0, %v4528
    %v4530 = vpop.f32.mrf.mxu0
    %4531 = vmatprep.mubr.f32.mxu0 0.0
    %4532 = vmatmul.mubr.f32.gmra.mxu0 %v65
    %v4533 = vpop.f32.mrf.mxu0
    %v4534 = vadd.f32 0.0, %v4533
    %v4535 = vpop.f32.mrf.mxu0
    %4536 = vmatprep.mubr.f32.mxu0 0.0
    %4537 = vmatmul.mubr.f32.gmra.mxu0 %v66
    %v4538 = vpop.f32.mrf.mxu0
    %v4539 = vadd.f32 0.0, %v4538
    %v4540 = vpop.f32.mrf.mxu0
    %4541 = vmatprep.mubr.f32.mxu0 0.0
    %4542 = vmatmul.mubr.f32.gmra.mxu0 %v67
    %v4543 = vpop.f32.mrf.mxu0
    %v4544 = vadd.f32 0.0, %v4543
    %v4545 = vpop.f32.mrf.mxu0
    %4546 = vmatprep.mubr.f32.mxu0 0.0
    %4547 = vmatmul.mubr.f32.gmra.mxu0 %v68
    %v4548 = vpop.f32.mrf.mxu0
    %v4549 = vadd.f32 0.0, %v4548
    %v4550 = vpop.f32.mrf.mxu0
    %4551 = vmatprep.mubr.f32.mxu0 0.0
    %4552 = vmatmul.mubr.f32.gmra.mxu0 %v69
    %v4553 = vpop.f32.mrf.mxu0
    %v4554 = vadd.f32 0.0, %v4553
    %v4555 = vpop.f32.mrf.mxu0
    %4556 = vmatprep.mubr.f32.mxu0 0.0
    %4557 = vmatmul.mubr.f32.gmra.mxu0 %v70
    %v4558 = vpop.f32.mrf.mxu0
    %v4559 = vadd.f32 0.0, %v4558
    %v4560 = vpop.f32.mrf.mxu0
    %4561 = vmatprep.mubr.f32.mxu0 0.0
    %4562 = vmatmul.mubr.f32.gmra.mxu0 %v71
    %v4563 = vpop.f32.mrf.mxu0
    %v4564 = vadd.f32 0.0, %v4563
    %v4565 = vpop.f32.mrf.mxu0
    %4566 = vmatprep.mubr.f32.mxu0 0.0
    %4567 = vmatmul.mubr.f32.gmra.mxu0 %v72
    %v4568 = vpop.f32.mrf.mxu0
    %v4569 = vadd.f32 0.0, %v4568
    %v4570 = vpop.f32.mrf.mxu0
    %4571 = vmatprep.mubr.f32.mxu0 0.0
    %4572 = vmatmul.mubr.f32.gmra.mxu0 %v73
    %v4573 = vpop.f32.mrf.mxu0
    %v4574 = vadd.f32 0.0, %v4573
    %v4575 = vpop.f32.mrf.mxu0
    %4576 = vmatprep.mubr.f32.mxu0 0.0
    %4577 = vmatmul.mubr.f32.gmra.mxu0 %v74
    %v4578 = vpop.f32.mrf.mxu0
    %v4579 = vadd.f32 0.0, %v4578
    %v4580 = vpop.f32.mrf.mxu0
    %4581 = vmatprep.mubr.f32.mxu0 0.0
    %4582 = vmatmul.mubr.f32.gmra.mxu0 %v75
    %v4583 = vpop.f32.mrf.mxu0
    %v4584 = vadd.f32 0.0, %v4583
    %v4585 = vpop.f32.mrf.mxu0
    %4586 = vmatprep.mubr.f32.mxu0 0.0
    %4587 = vmatmul.mubr.f32.gmra.mxu0 %v76
    %v4588 = vpop.f32.mrf.mxu0
    %v4589 = vadd.f32 0.0, %v4588
    %v4590 = vpop.f32.mrf.mxu0
    %4591 = vmatprep.mubr.f32.mxu0 0.0
    %4592 = vmatmul.mubr.f32.gmra.mxu0 %v77
    %v4593 = vpop.f32.mrf.mxu0
    %v4594 = vadd.f32 0.0, %v4593
    %v4595 = vpop.f32.mrf.mxu0
    %4596 = vmatprep.mubr.f32.mxu0 0.0
    %4597 = vmatmul.mubr.f32.gmra.mxu0 %v78
    %v4598 = vpop.f32.mrf.mxu0
    %v4599 = vadd.f32 0.0, %v4598
    %v4600 = vpop.f32.mrf.mxu0
    %4601 = vmatprep.mubr.f32.mxu0 0.0
    %4602 = vmatmul.mubr.f32.gmra.mxu0 %v79
    %v4603 = vpop.f32.mrf.mxu0
    %v4604 = vadd.f32 0.0, %v4603
    %v4605 = vpop.f32.mrf.mxu0
    %4606 = vmatprep.mubr.f32.mxu0 0.0
    %4607 = vmatmul.mubr.f32.gmra.mxu0 %v80
    %v4608 = vpop.f32.mrf.mxu0
    %v4609 = vadd.f32 0.0, %v4608
    %v4610 = vpop.f32.mrf.mxu0
    %4611 = vmatprep.mubr.f32.mxu0 0.0
    %4612 = vmatmul.mubr.f32.gmra.mxu0 %v81
    %v4613 = vpop.f32.mrf.mxu0
    %v4614 = vadd.f32 0.0, %v4613
    %v4615 = vpop.f32.mrf.mxu0
    %4616 = vmatprep.mubr.f32.mxu0 0.0
    %4617 = vmatmul.mubr.f32.gmra.mxu0 %v82
    %v4618 = vpop.f32.mrf.mxu0
    %v4619 = vadd.f32 0.0, %v4618
    %v4620 = vpop.f32.mrf.mxu0
    %4621 = vmatprep.mubr.f32.mxu0 0.0
    %4622 = vmatmul.mubr.f32.gmra.mxu0 %v83
    %v4623 = vpop.f32.mrf.mxu0
    %v4624 = vadd.f32 0.0, %v4623
    %v4625 = vpop.f32.mrf.mxu0
    %4626 = vmatprep.mubr.f32.mxu0 0.0
    %4627 = vmatmul.mubr.f32.gmra.mxu0 %v84
    %v4628 = vpop.f32.mrf.mxu0
    %v4629 = vadd.f32 0.0, %v4628
    %v4630 = vpop.f32.mrf.mxu0
    %4631 = vmatprep.mubr.f32.mxu0 0.0
    %4632 = vmatmul.mubr.f32.gmra.mxu0 %v85
    %v4633 = vpop.f32.mrf.mxu0
    %v4634 = vadd.f32 0.0, %v4633
    %v4635 = vpop.f32.mrf.mxu0
    %4636 = vmatprep.mubr.f32.mxu0 0.0
    %4637 = vmatmul.mubr.f32.gmra.mxu0 %v86
    %v4638 = vpop.f32.mrf.mxu0
    %v4639 = vadd.f32 0.0, %v4638
    %v4640 = vpop.f32.mrf.mxu0
    %4641 = vmatprep.mubr.f32.mxu0 0.0
    %4642 = vmatmul.mubr.f32.gmra.mxu0 %v87
    %v4643 = vpop.f32.mrf.mxu0
    %v4644 = vadd.f32 0.0, %v4643
    %v4645 = vpop.f32.mrf.mxu0
    %4646 = vmatprep.mubr.f32.mxu0 0.0
    %4647 = vmatmul.mubr.f32.gmra.mxu0 %v88
    %v4648 = vpop.f32.mrf.mxu0
    %v4649 = vadd.f32 0.0, %v4648
    %v4650 = vpop.f32.mrf.mxu0
    %4651 = vmatprep.mubr.f32.mxu0 0.0
    %4652 = vmatmul.mubr.f32.gmra.mxu0 %v89
    %v4653 = vpop.f32.mrf.mxu0
    %v4654 = vadd.f32 0.0, %v4653
    %v4655 = vpop.f32.mrf.mxu0
    %4656 = vmatprep.mubr.f32.mxu0 0.0
    %4657 = vmatmul.mubr.f32.gmra.mxu0 %v90
    %v4658 = vpop.f32.mrf.mxu0
    %v4659 = vadd.f32 0.0, %v4658
    %v4660 = vpop.f32.mrf.mxu0
    %4661 = vmatprep.mubr.f32.mxu0 0.0
    %4662 = vmatmul.mubr.f32.gmra.mxu0 %v91
    %v4663 = vpop.f32.mrf.mxu0
    %v4664 = vadd.f32 0.0, %v4663
    %v4665 = vpop.f32.mrf.mxu0
    %4666 = vmatprep.mubr.f32.mxu0 0.0
    %4667 = vmatmul.mubr.f32.gmra.mxu0 %v92
    %v4668 = vpop.f32.mrf.mxu0
    %v4669 = vadd.f32 0.0, %v4668
    %v4670 = vpop.f32.mrf.mxu0
    %4671 = vmatprep.mubr.f32.mxu0 0.0
    %4672 = vmatmul.mubr.f32.gmra.mxu0 %v93
    %v4673 = vpop.f32.mrf.mxu0
    %v4674 = vadd.f32 0.0, %v4673
    %v4675 = vpop.f32.mrf.mxu0
    %4676 = vdwg.mxu0
    %4677 = vrot.lane.b32.xlu0 %v4599, 64
    %v4678 = vpop.permute.xlu0 %4677
    %4679 = vrot.lane.b32.xlu0 %v4604, 64
    %v4680 = vpop.permute.xlu0 %4679
    %4681 = vrot.lane.b32.xlu0 %v4609, 64
    %v4682 = vpop.permute.xlu0 %4681
    %4683 = vrot.lane.b32.xlu0 %v4614, 64
    %v4684 = vpop.permute.xlu0 %4683
    %4685 = vrot.lane.b32.xlu0 %v4619, 64
    %v4686 = vpop.permute.xlu0 %4685
    %4687 = vrot.lane.b32.xlu0 %v4624, 64
    %v4688 = vpop.permute.xlu0 %4687
    %4689 = vrot.lane.b32.xlu0 %v4629, 64
    %v4690 = vpop.permute.xlu0 %4689
    %4691 = vrot.lane.b32.xlu0 %v4634, 64
    %v4692 = vpop.permute.xlu0 %4691
    %4693 = vrot.lane.b32.xlu0 %v4639, 64
    %v4694 = vpop.permute.xlu0 %4693
    %4695 = vrot.lane.b32.xlu0 %v4644, 64
    %v4696 = vpop.permute.xlu0 %4695
    %4697 = vrot.lane.b32.xlu0 %v4649, 64
    %v4698 = vpop.permute.xlu0 %4697
    %4699 = vrot.lane.b32.xlu0 %v4654, 64
    %v4700 = vpop.permute.xlu0 %4699
    %4701 = vrot.lane.b32.xlu0 %v4659, 64
    %v4702 = vpop.permute.xlu0 %4701
    %4703 = vrot.lane.b32.xlu0 %v4664, 64
    %v4704 = vpop.permute.xlu0 %4703
    %4705 = vrot.lane.b32.xlu0 %v4669, 64
    %v4706 = vpop.permute.xlu0 %4705
    %4707 = vrot.lane.b32.xlu0 %v4674, 64
    %v4708 = vpop.permute.xlu0 %4707
    %v4709 = vmul.f32 %v190, %v4678
    %v4710 = vmul.f32 %v191, %v4680
    %v4711 = vmul.f32 %v192, %v4682
    %v4712 = vmul.f32 %v193, %v4684
    %v4713 = vmul.f32 %v194, %v4686
    %v4714 = vmul.f32 %v195, %v4688
    %v4715 = vmul.f32 %v196, %v4690
    %v4716 = vmul.f32 %v197, %v4692
    %v4717 = vmul.f32 %v198, %v4694
    %v4718 = vmul.f32 %v199, %v4696
    %v4719 = vmul.f32 %v200, %v4698
    %v4720 = vmul.f32 %v201, %v4700
    %v4721 = vmul.f32 %v202, %v4702
    %v4722 = vmul.f32 %v203, %v4704
    %v4723 = vmul.f32 %v204, %v4706
    %v4724 = vmul.f32 %v205, %v4708
    %v4725 = vadd.f32 %v4519, %v4709
    %v4726 = vadd.f32 %v4524, %v4710
    %v4727 = vadd.f32 %v4529, %v4711
    %v4728 = vadd.f32 %v4534, %v4712
    %v4729 = vadd.f32 %v4539, %v4713
    %v4730 = vadd.f32 %v4544, %v4714
    %v4731 = vadd.f32 %v4549, %v4715
    %v4732 = vadd.f32 %v4554, %v4716
    %v4733 = vadd.f32 %v4559, %v4717
    %v4734 = vadd.f32 %v4564, %v4718
    %v4735 = vadd.f32 %v4569, %v4719
    %v4736 = vadd.f32 %v4574, %v4720
    %v4737 = vadd.f32 %v4579, %v4721
    %v4738 = vadd.f32 %v4584, %v4722
    %v4739 = vadd.f32 %v4589, %v4723
    %v4740 = vadd.f32 %v4594, %v4724
    %4741 = vmatprep.subr.mxu0 0.0
    %4742 = vmatpush1.msra.mxu0 %v141
    %4743 = vmatprep.subr.mxu0 0.0
    %4744 = vmatpush1.msra.mxu0 %v140
    %4745 = vmatprep.subr.mxu0 0.0
    %4746 = vmatpush1.msra.mxu0 %v139
    %4747 = vmatprep.subr.mxu0 0.0
    %4748 = vmatpush1.msra.mxu0 %v138
    %4749 = vmatprep.subr.mxu0 0.0
    %4750 = vmatpush1.msra.mxu0 %v137
    %4751 = vmatprep.subr.mxu0 0.0
    %4752 = vmatpush1.msra.mxu0 %v136
    %4753 = vmatprep.subr.mxu0 0.0
    %4754 = vmatpush1.msra.mxu0 %v135
    %4755 = vmatprep.subr.mxu0 0.0
    %4756 = vmatpush1.msra.mxu0 %v134
    %4757 = vmatprep.subr.mxu0 0.0
    %4758 = vmatpush1.msra.mxu0 %v133
    %4759 = vmatprep.subr.mxu0 0.0
    %4760 = vmatpush1.msra.mxu0 %v132
    %4761 = vmatprep.subr.mxu0 0.0
    %4762 = vmatpush1.msra.mxu0 %v131
    %4763 = vmatprep.subr.mxu0 0.0
    %4764 = vmatpush1.msra.mxu0 %v130
    %4765 = vmatprep.subr.mxu0 0.0
    %4766 = vmatpush1.msra.mxu0 %v129
    %4767 = vmatprep.subr.mxu0 0.0
    %4768 = vmatpush1.msra.mxu0 %v128
    %4769 = vmatprep.subr.mxu0 0.0
    %4770 = vmatpush1.msra.mxu0 %v127
    %4771 = vmatprep.subr.mxu0 0.0
    %4772 = vmatpush1.msra.mxu0 %v126
    %4773 = vmatprep.subr.mxu0 0.0
    %4774 = vmatpush2.msra.mxu0 0.0
    %4775 = vmatprep.subr.mxu0 0.0
    %4776 = vmatpush2.msra.mxu0 0.0
    %4777 = vmatprep.subr.mxu0 0.0
    %4778 = vmatpush2.msra.mxu0 0.0
    %4779 = vmatprep.subr.mxu0 0.0
    %4780 = vmatpush2.msra.mxu0 0.0
    %4781 = vmatprep.subr.mxu0 0.0
    %4782 = vmatpush2.msra.mxu0 0.0
    %4783 = vmatprep.subr.mxu0 0.0
    %4784 = vmatpush2.msra.mxu0 0.0
    %4785 = vmatprep.subr.mxu0 0.0
    %4786 = vmatpush2.msra.mxu0 0.0
    %4787 = vmatprep.subr.mxu0 0.0
    %4788 = vmatpush2.msra.mxu0 0.0
    %4789 = vmatprep.subr.mxu0 0.0
    %4790 = vmatpush2.msra.mxu0 0.0
    %4791 = vmatprep.subr.mxu0 0.0
    %4792 = vmatpush2.msra.mxu0 0.0
    %4793 = vmatprep.subr.mxu0 0.0
    %4794 = vmatpush2.msra.mxu0 0.0
    %4795 = vmatprep.subr.mxu0 0.0
    %4796 = vmatpush2.msra.mxu0 0.0
    %4797 = vmatprep.subr.mxu0 0.0
    %4798 = vmatpush2.msra.mxu0 0.0
    %4799 = vmatprep.subr.mxu0 0.0
    %4800 = vmatpush2.msra.mxu0 0.0
    %4801 = vmatprep.subr.mxu0 0.0
    %4802 = vmatpush2.msra.mxu0 0.0
    %4803 = vmatprep.subr.mxu0 0.0
    %4804 = vmatpush2.msra.mxu0 0.0
    %4805 = vmatprep.mubr.f32.mxu0 0.0
    %4806 = vmatmul.mubr.f32.gmra.mxu0 %v4725
    %v4807 = vpop.f32.mrf.mxu0
    %v4808 = vadd.f32 0.0, %v4807
    %v4809 = vpop.f32.mrf.mxu0
    %4810 = vmatprep.mubr.f32.mxu0 0.0
    %4811 = vmatmul.mubr.f32.gmra.mxu0 %v4726
    %v4812 = vpop.f32.mrf.mxu0
    %v4813 = vadd.f32 0.0, %v4812
    %v4814 = vpop.f32.mrf.mxu0
    %4815 = vmatprep.mubr.f32.mxu0 0.0
    %4816 = vmatmul.mubr.f32.gmra.mxu0 %v4727
    %v4817 = vpop.f32.mrf.mxu0
    %v4818 = vadd.f32 0.0, %v4817
    %v4819 = vpop.f32.mrf.mxu0
    %4820 = vmatprep.mubr.f32.mxu0 0.0
    %4821 = vmatmul.mubr.f32.gmra.mxu0 %v4728
    %v4822 = vpop.f32.mrf.mxu0
    %v4823 = vadd.f32 0.0, %v4822
    %v4824 = vpop.f32.mrf.mxu0
    %4825 = vmatprep.mubr.f32.mxu0 0.0
    %4826 = vmatmul.mubr.f32.gmra.mxu0 %v4729
    %v4827 = vpop.f32.mrf.mxu0
    %v4828 = vadd.f32 0.0, %v4827
    %v4829 = vpop.f32.mrf.mxu0
    %4830 = vmatprep.mubr.f32.mxu0 0.0
    %4831 = vmatmul.mubr.f32.gmra.mxu0 %v4730
    %v4832 = vpop.f32.mrf.mxu0
    %v4833 = vadd.f32 0.0, %v4832
    %v4834 = vpop.f32.mrf.mxu0
    %4835 = vmatprep.mubr.f32.mxu0 0.0
    %4836 = vmatmul.mubr.f32.gmra.mxu0 %v4731
    %v4837 = vpop.f32.mrf.mxu0
    %v4838 = vadd.f32 0.0, %v4837
    %v4839 = vpop.f32.mrf.mxu0
    %4840 = vmatprep.mubr.f32.mxu0 0.0
    %4841 = vmatmul.mubr.f32.gmra.mxu0 %v4732
    %v4842 = vpop.f32.mrf.mxu0
    %v4843 = vadd.f32 0.0, %v4842
    %v4844 = vpop.f32.mrf.mxu0
    %4845 = vmatprep.mubr.f32.mxu0 0.0
    %4846 = vmatmul.mubr.f32.gmra.mxu0 %v4733
    %v4847 = vpop.f32.mrf.mxu0
    %v4848 = vadd.f32 0.0, %v4847
    %v4849 = vpop.f32.mrf.mxu0
    %4850 = vmatprep.mubr.f32.mxu0 0.0
    %4851 = vmatmul.mubr.f32.gmra.mxu0 %v4734
    %v4852 = vpop.f32.mrf.mxu0
    %v4853 = vadd.f32 0.0, %v4852
    %v4854 = vpop.f32.mrf.mxu0
    %4855 = vmatprep.mubr.f32.mxu0 0.0
    %4856 = vmatmul.mubr.f32.gmra.mxu0 %v4735
    %v4857 = vpop.f32.mrf.mxu0
    %v4858 = vadd.f32 0.0, %v4857
    %v4859 = vpop.f32.mrf.mxu0
    %4860 = vmatprep.mubr.f32.mxu0 0.0
    %4861 = vmatmul.mubr.f32.gmra.mxu0 %v4736
    %v4862 = vpop.f32.mrf.mxu0
    %v4863 = vadd.f32 0.0, %v4862
    %v4864 = vpop.f32.mrf.mxu0
    %4865 = vmatprep.mubr.f32.mxu0 0.0
    %4866 = vmatmul.mubr.f32.gmra.mxu0 %v4737
    %v4867 = vpop.f32.mrf.mxu0
    %v4868 = vadd.f32 0.0, %v4867
    %v4869 = vpop.f32.mrf.mxu0
    %4870 = vmatprep.mubr.f32.mxu0 0.0
    %4871 = vmatmul.mubr.f32.gmra.mxu0 %v4738
    %v4872 = vpop.f32.mrf.mxu0
    %v4873 = vadd.f32 0.0, %v4872
    %v4874 = vpop.f32.mrf.mxu0
    %4875 = vmatprep.mubr.f32.mxu0 0.0
    %4876 = vmatmul.mubr.f32.gmra.mxu0 %v4739
    %v4877 = vpop.f32.mrf.mxu0
    %v4878 = vadd.f32 0.0, %v4877
    %v4879 = vpop.f32.mrf.mxu0
    %4880 = vmatprep.mubr.f32.mxu0 0.0
    %4881 = vmatmul.mubr.f32.gmra.mxu0 %v4740
    %v4882 = vpop.f32.mrf.mxu0
    %v4883 = vadd.f32 0.0, %v4882
    %v4884 = vpop.f32.mrf.mxu0
    %4885 = vdwg.mxu0
    %v4886 = vmul.f32 %v158, %v4808
    %v4887 = vmul.f32 %v159, %v4813
    %v4888 = vmul.f32 %v160, %v4818
    %v4889 = vmul.f32 %v161, %v4823
    %v4890 = vmul.f32 %v162, %v4828
    %v4891 = vmul.f32 %v163, %v4833
    %v4892 = vmul.f32 %v164, %v4838
    %v4893 = vmul.f32 %v165, %v4843
    %v4894 = vmul.f32 %v166, %v4848
    %v4895 = vmul.f32 %v167, %v4853
    %v4896 = vmul.f32 %v168, %v4858
    %v4897 = vmul.f32 %v169, %v4863
    %v4898 = vmul.f32 %v170, %v4868
    %v4899 = vmul.f32 %v171, %v4873
    %v4900 = vmul.f32 %v172, %v4878
    %v4901 = vmul.f32 %v173, %v4883
    %4902 = vrot.lane.b32.xlu0 %v4808, 64
    %v4903 = vpop.permute.xlu0 %4902
    %4904 = vrot.lane.b32.xlu0 %v4813, 64
    %v4905 = vpop.permute.xlu0 %4904
    %4906 = vrot.lane.b32.xlu0 %v4818, 64
    %v4907 = vpop.permute.xlu0 %4906
    %4908 = vrot.lane.b32.xlu0 %v4823, 64
    %v4909 = vpop.permute.xlu0 %4908
    %4910 = vrot.lane.b32.xlu0 %v4828, 64
    %v4911 = vpop.permute.xlu0 %4910
    %4912 = vrot.lane.b32.xlu0 %v4833, 64
    %v4913 = vpop.permute.xlu0 %4912
    %4914 = vrot.lane.b32.xlu0 %v4838, 64
    %v4915 = vpop.permute.xlu0 %4914
    %4916 = vrot.lane.b32.xlu0 %v4843, 64
    %v4917 = vpop.permute.xlu0 %4916
    %4918 = vrot.lane.b32.xlu0 %v4848, 64
    %v4919 = vpop.permute.xlu0 %4918
    %4920 = vrot.lane.b32.xlu0 %v4853, 64
    %v4921 = vpop.permute.xlu0 %4920
    %4922 = vrot.lane.b32.xlu0 %v4858, 64
    %v4923 = vpop.permute.xlu0 %4922
    %4924 = vrot.lane.b32.xlu0 %v4863, 64
    %v4925 = vpop.permute.xlu0 %4924
    %4926 = vrot.lane.b32.xlu0 %v4868, 64
    %v4927 = vpop.permute.xlu0 %4926
    %4928 = vrot.lane.b32.xlu0 %v4873, 64
    %v4929 = vpop.permute.xlu0 %4928
    %4930 = vrot.lane.b32.xlu0 %v4878, 64
    %v4931 = vpop.permute.xlu0 %4930
    %4932 = vrot.lane.b32.xlu0 %v4883, 64
    %v4933 = vpop.permute.xlu0 %4932
    %v4934 = vmul.f32 %v174, %v4903
    %v4935 = vmul.f32 %v175, %v4905
    %v4936 = vmul.f32 %v176, %v4907
    %v4937 = vmul.f32 %v177, %v4909
    %v4938 = vmul.f32 %v178, %v4911
    %v4939 = vmul.f32 %v179, %v4913
    %v4940 = vmul.f32 %v180, %v4915
    %v4941 = vmul.f32 %v181, %v4917
    %v4942 = vmul.f32 %v182, %v4919
    %v4943 = vmul.f32 %v183, %v4921
    %v4944 = vmul.f32 %v184, %v4923
    %v4945 = vmul.f32 %v185, %v4925
    %v4946 = vmul.f32 %v186, %v4927
    %v4947 = vmul.f32 %v187, %v4929
    %v4948 = vmul.f32 %v188, %v4931
    %v4949 = vmul.f32 %v189, %v4933
    %v4950 = vadd.f32 %v4886, %v4934
    %v4951 = vadd.f32 %v4887, %v4935
    %v4952 = vadd.f32 %v4888, %v4936
    %v4953 = vadd.f32 %v4889, %v4937
    %v4954 = vadd.f32 %v4890, %v4938
    %v4955 = vadd.f32 %v4891, %v4939
    %v4956 = vadd.f32 %v4892, %v4940
    %v4957 = vadd.f32 %v4893, %v4941
    %v4958 = vadd.f32 %v4894, %v4942
    %v4959 = vadd.f32 %v4895, %v4943
    %v4960 = vadd.f32 %v4896, %v4944
    %v4961 = vadd.f32 %v4897, %v4945
    %v4962 = vadd.f32 %v4898, %v4946
    %v4963 = vadd.f32 %v4899, %v4947
    %v4964 = vadd.f32 %v4900, %v4948
    %v4965 = vadd.f32 %v4901, %v4949
    %4966 = vmatprep.subr.mxu0 0.0
    %4967 = vmatpush1.msra.mxu0 %v4965
    %4968 = vmatprep.subr.mxu0 0.0
    %4969 = vmatpush1.msra.mxu0 %v4964
    %4970 = vmatprep.subr.mxu0 0.0
    %4971 = vmatpush1.msra.mxu0 %v4963
    %4972 = vmatprep.subr.mxu0 0.0
    %4973 = vmatpush1.msra.mxu0 %v4962
    %4974 = vmatprep.subr.mxu0 0.0
    %4975 = vmatpush1.msra.mxu0 %v4961
    %4976 = vmatprep.subr.mxu0 0.0
    %4977 = vmatpush1.msra.mxu0 %v4960
    %4978 = vmatprep.subr.mxu0 0.0
    %4979 = vmatpush1.msra.mxu0 %v4959
    %4980 = vmatprep.subr.mxu0 0.0
    %4981 = vmatpush1.msra.mxu0 %v4958
    %4982 = vmatprep.subr.mxu0 0.0
    %4983 = vmatpush1.msra.mxu0 %v4957
    %4984 = vmatprep.subr.mxu0 0.0
    %4985 = vmatpush1.msra.mxu0 %v4956
    %4986 = vmatprep.subr.mxu0 0.0
    %4987 = vmatpush1.msra.mxu0 %v4955
    %4988 = vmatprep.subr.mxu0 0.0
    %4989 = vmatpush1.msra.mxu0 %v4954
    %4990 = vmatprep.subr.mxu0 0.0
    %4991 = vmatpush1.msra.mxu0 %v4953
    %4992 = vmatprep.subr.mxu0 0.0
    %4993 = vmatpush1.msra.mxu0 %v4952
    %4994 = vmatprep.subr.mxu0 0.0
    %4995 = vmatpush1.msra.mxu0 %v4951
    %4996 = vmatprep.subr.mxu0 0.0
    %4997 = vmatpush1.msra.mxu0 %v4950
    %4998 = vmatprep.subr.mxu0 0.0
    %4999 = vmatpush2.msra.mxu0 0.0
    %5000 = vmatprep.subr.mxu0 0.0
    %5001 = vmatpush2.msra.mxu0 0.0
    %5002 = vmatprep.subr.mxu0 0.0
    %5003 = vmatpush2.msra.mxu0 0.0
    %5004 = vmatprep.subr.mxu0 0.0
    %5005 = vmatpush2.msra.mxu0 0.0
    %5006 = vmatprep.subr.mxu0 0.0
    %5007 = vmatpush2.msra.mxu0 0.0
    %5008 = vmatprep.subr.mxu0 0.0
    %5009 = vmatpush2.msra.mxu0 0.0
    %5010 = vmatprep.subr.mxu0 0.0
    %5011 = vmatpush2.msra.mxu0 0.0
    %5012 = vmatprep.subr.mxu0 0.0
    %5013 = vmatpush2.msra.mxu0 0.0
    %5014 = vmatprep.subr.mxu0 0.0
    %5015 = vmatpush2.msra.mxu0 0.0
    %5016 = vmatprep.subr.mxu0 0.0
    %5017 = vmatpush2.msra.mxu0 0.0
    %5018 = vmatprep.subr.mxu0 0.0
    %5019 = vmatpush2.msra.mxu0 0.0
    %5020 = vmatprep.subr.mxu0 0.0
    %5021 = vmatpush2.msra.mxu0 0.0
    %5022 = vmatprep.subr.mxu0 0.0
    %5023 = vmatpush2.msra.mxu0 0.0
    %5024 = vmatprep.subr.mxu0 0.0
    %5025 = vmatpush2.msra.mxu0 0.0
    %5026 = vmatprep.subr.mxu0 0.0
    %5027 = vmatpush2.msra.mxu0 0.0
    %5028 = vmatprep.subr.mxu0 0.0
    %5029 = vmatpush2.msra.mxu0 0.0
    %5030 = vmatprep.mubr.f32.mxu0 0.0
    %5031 = vmatmul.mubr.f32.gmra.mxu0 %v94
    %v5032 = vpop.f32.mrf.mxu0
    %v5033 = vadd.f32 0.0, %v5032
    %v5034 = vpop.f32.mrf.mxu0
    %5035 = vmatprep.mubr.f32.mxu0 0.0
    %5036 = vmatmul.mubr.f32.gmra.mxu0 %v95
    %v5037 = vpop.f32.mrf.mxu0
    %v5038 = vadd.f32 0.0, %v5037
    %v5039 = vpop.f32.mrf.mxu0
    %5040 = vmatprep.mubr.f32.mxu0 0.0
    %5041 = vmatmul.mubr.f32.gmra.mxu0 %v96
    %v5042 = vpop.f32.mrf.mxu0
    %v5043 = vadd.f32 0.0, %v5042
    %v5044 = vpop.f32.mrf.mxu0
    %5045 = vmatprep.mubr.f32.mxu0 0.0
    %5046 = vmatmul.mubr.f32.gmra.mxu0 %v97
    %v5047 = vpop.f32.mrf.mxu0
    %v5048 = vadd.f32 0.0, %v5047
    %v5049 = vpop.f32.mrf.mxu0
    %5050 = vmatprep.mubr.f32.mxu0 0.0
    %5051 = vmatmul.mubr.f32.gmra.mxu0 %v98
    %v5052 = vpop.f32.mrf.mxu0
    %v5053 = vadd.f32 0.0, %v5052
    %v5054 = vpop.f32.mrf.mxu0
    %5055 = vmatprep.mubr.f32.mxu0 0.0
    %5056 = vmatmul.mubr.f32.gmra.mxu0 %v99
    %v5057 = vpop.f32.mrf.mxu0
    %v5058 = vadd.f32 0.0, %v5057
    %v5059 = vpop.f32.mrf.mxu0
    %5060 = vmatprep.mubr.f32.mxu0 0.0
    %5061 = vmatmul.mubr.f32.gmra.mxu0 %v100
    %v5062 = vpop.f32.mrf.mxu0
    %v5063 = vadd.f32 0.0, %v5062
    %v5064 = vpop.f32.mrf.mxu0
    %5065 = vmatprep.mubr.f32.mxu0 0.0
    %5066 = vmatmul.mubr.f32.gmra.mxu0 %v101
    %v5067 = vpop.f32.mrf.mxu0
    %v5068 = vadd.f32 0.0, %v5067
    %v5069 = vpop.f32.mrf.mxu0
    %5070 = vmatprep.mubr.f32.mxu0 0.0
    %5071 = vmatmul.mubr.f32.gmra.mxu0 %v102
    %v5072 = vpop.f32.mrf.mxu0
    %v5073 = vadd.f32 0.0, %v5072
    %v5074 = vpop.f32.mrf.mxu0
    %5075 = vmatprep.mubr.f32.mxu0 0.0
    %5076 = vmatmul.mubr.f32.gmra.mxu0 %v103
    %v5077 = vpop.f32.mrf.mxu0
    %v5078 = vadd.f32 0.0, %v5077
    %v5079 = vpop.f32.mrf.mxu0
    %5080 = vmatprep.mubr.f32.mxu0 0.0
    %5081 = vmatmul.mubr.f32.gmra.mxu0 %v104
    %v5082 = vpop.f32.mrf.mxu0
    %v5083 = vadd.f32 0.0, %v5082
    %v5084 = vpop.f32.mrf.mxu0
    %5085 = vmatprep.mubr.f32.mxu0 0.0
    %5086 = vmatmul.mubr.f32.gmra.mxu0 %v105
    %v5087 = vpop.f32.mrf.mxu0
    %v5088 = vadd.f32 0.0, %v5087
    %v5089 = vpop.f32.mrf.mxu0
    %5090 = vmatprep.mubr.f32.mxu0 0.0
    %5091 = vmatmul.mubr.f32.gmra.mxu0 %v106
    %v5092 = vpop.f32.mrf.mxu0
    %v5093 = vadd.f32 0.0, %v5092
    %v5094 = vpop.f32.mrf.mxu0
    %5095 = vmatprep.mubr.f32.mxu0 0.0
    %5096 = vmatmul.mubr.f32.gmra.mxu0 %v107
    %v5097 = vpop.f32.mrf.mxu0
    %v5098 = vadd.f32 0.0, %v5097
    %v5099 = vpop.f32.mrf.mxu0
    %5100 = vmatprep.mubr.f32.mxu0 0.0
    %5101 = vmatmul.mubr.f32.gmra.mxu0 %v108
    %v5102 = vpop.f32.mrf.mxu0
    %v5103 = vadd.f32 0.0, %v5102
    %v5104 = vpop.f32.mrf.mxu0
    %5105 = vmatprep.mubr.f32.mxu0 0.0
    %5106 = vmatmul.mubr.f32.gmra.mxu0 %v109
    %v5107 = vpop.f32.mrf.mxu0
    %v5108 = vadd.f32 0.0, %v5107
    %v5109 = vpop.f32.mrf.mxu0
    %5110 = vmatprep.mubr.f32.mxu0 0.0
    %5111 = vmatmul.mubr.f32.gmra.mxu0 %v110
    %v5112 = vpop.f32.mrf.mxu0
    %v5113 = vadd.f32 0.0, %v5112
    %v5114 = vpop.f32.mrf.mxu0
    %5115 = vmatprep.mubr.f32.mxu0 0.0
    %5116 = vmatmul.mubr.f32.gmra.mxu0 %v111
    %v5117 = vpop.f32.mrf.mxu0
    %v5118 = vadd.f32 0.0, %v5117
    %v5119 = vpop.f32.mrf.mxu0
    %5120 = vmatprep.mubr.f32.mxu0 0.0
    %5121 = vmatmul.mubr.f32.gmra.mxu0 %v112
    %v5122 = vpop.f32.mrf.mxu0
    %v5123 = vadd.f32 0.0, %v5122
    %v5124 = vpop.f32.mrf.mxu0
    %5125 = vmatprep.mubr.f32.mxu0 0.0
    %5126 = vmatmul.mubr.f32.gmra.mxu0 %v113
    %v5127 = vpop.f32.mrf.mxu0
    %v5128 = vadd.f32 0.0, %v5127
    %v5129 = vpop.f32.mrf.mxu0
    %5130 = vmatprep.mubr.f32.mxu0 0.0
    %5131 = vmatmul.mubr.f32.gmra.mxu0 %v114
    %v5132 = vpop.f32.mrf.mxu0
    %v5133 = vadd.f32 0.0, %v5132
    %v5134 = vpop.f32.mrf.mxu0
    %5135 = vmatprep.mubr.f32.mxu0 0.0
    %5136 = vmatmul.mubr.f32.gmra.mxu0 %v115
    %v5137 = vpop.f32.mrf.mxu0
    %v5138 = vadd.f32 0.0, %v5137
    %v5139 = vpop.f32.mrf.mxu0
    %5140 = vmatprep.mubr.f32.mxu0 0.0
    %5141 = vmatmul.mubr.f32.gmra.mxu0 %v116
    %v5142 = vpop.f32.mrf.mxu0
    %v5143 = vadd.f32 0.0, %v5142
    %v5144 = vpop.f32.mrf.mxu0
    %5145 = vmatprep.mubr.f32.mxu0 0.0
    %5146 = vmatmul.mubr.f32.gmra.mxu0 %v117
    %v5147 = vpop.f32.mrf.mxu0
    %v5148 = vadd.f32 0.0, %v5147
    %v5149 = vpop.f32.mrf.mxu0
    %5150 = vmatprep.mubr.f32.mxu0 0.0
    %5151 = vmatmul.mubr.f32.gmra.mxu0 %v118
    %v5152 = vpop.f32.mrf.mxu0
    %v5153 = vadd.f32 0.0, %v5152
    %v5154 = vpop.f32.mrf.mxu0
    %5155 = vmatprep.mubr.f32.mxu0 0.0
    %5156 = vmatmul.mubr.f32.gmra.mxu0 %v119
    %v5157 = vpop.f32.mrf.mxu0
    %v5158 = vadd.f32 0.0, %v5157
    %v5159 = vpop.f32.mrf.mxu0
    %5160 = vmatprep.mubr.f32.mxu0 0.0
    %5161 = vmatmul.mubr.f32.gmra.mxu0 %v120
    %v5162 = vpop.f32.mrf.mxu0
    %v5163 = vadd.f32 0.0, %v5162
    %v5164 = vpop.f32.mrf.mxu0
    %5165 = vmatprep.mubr.f32.mxu0 0.0
    %5166 = vmatmul.mubr.f32.gmra.mxu0 %v121
    %v5167 = vpop.f32.mrf.mxu0
    %v5168 = vadd.f32 0.0, %v5167
    %v5169 = vpop.f32.mrf.mxu0
    %5170 = vmatprep.mubr.f32.mxu0 0.0
    %5171 = vmatmul.mubr.f32.gmra.mxu0 %v122
    %v5172 = vpop.f32.mrf.mxu0
    %v5173 = vadd.f32 0.0, %v5172
    %v5174 = vpop.f32.mrf.mxu0
    %5175 = vmatprep.mubr.f32.mxu0 0.0
    %5176 = vmatmul.mubr.f32.gmra.mxu0 %v123
    %v5177 = vpop.f32.mrf.mxu0
    %v5178 = vadd.f32 0.0, %v5177
    %v5179 = vpop.f32.mrf.mxu0
    %5180 = vmatprep.mubr.f32.mxu0 0.0
    %5181 = vmatmul.mubr.f32.gmra.mxu0 %v124
    %v5182 = vpop.f32.mrf.mxu0
    %v5183 = vadd.f32 0.0, %v5182
    %v5184 = vpop.f32.mrf.mxu0
    %5185 = vmatprep.mubr.f32.mxu0 0.0
    %5186 = vmatmul.mubr.f32.gmra.mxu0 %v125
    %v5187 = vpop.f32.mrf.mxu0
    %v5188 = vadd.f32 0.0, %v5187
    %v5189 = vpop.f32.mrf.mxu0
    %5190 = vdwg.mxu0
    %5191 = vrot.lane.b32.xlu0 %v5113, 64
    %v5192 = vpop.permute.xlu0 %5191
    %5193 = vrot.lane.b32.xlu0 %v5118, 64
    %v5194 = vpop.permute.xlu0 %5193
    %5195 = vrot.lane.b32.xlu0 %v5123, 64
    %v5196 = vpop.permute.xlu0 %5195
    %5197 = vrot.lane.b32.xlu0 %v5128, 64
    %v5198 = vpop.permute.xlu0 %5197
    %5199 = vrot.lane.b32.xlu0 %v5133, 64
    %v5200 = vpop.permute.xlu0 %5199
    %5201 = vrot.lane.b32.xlu0 %v5138, 64
    %v5202 = vpop.permute.xlu0 %5201
    %5203 = vrot.lane.b32.xlu0 %v5143, 64
    %v5204 = vpop.permute.xlu0 %5203
    %5205 = vrot.lane.b32.xlu0 %v5148, 64
    %v5206 = vpop.permute.xlu0 %5205
    %5207 = vrot.lane.b32.xlu0 %v5153, 64
    %v5208 = vpop.permute.xlu0 %5207
    %5209 = vrot.lane.b32.xlu0 %v5158, 64
    %v5210 = vpop.permute.xlu0 %5209
    %5211 = vrot.lane.b32.xlu0 %v5163, 64
    %v5212 = vpop.permute.xlu0 %5211
    %5213 = vrot.lane.b32.xlu0 %v5168, 64
    %v5214 = vpop.permute.xlu0 %5213
    %5215 = vrot.lane.b32.xlu0 %v5173, 64
    %v5216 = vpop.permute.xlu0 %5215
    %5217 = vrot.lane.b32.xlu0 %v5178, 64
    %v5218 = vpop.permute.xlu0 %5217
    %5219 = vrot.lane.b32.xlu0 %v5183, 64
    %v5220 = vpop.permute.xlu0 %5219
    %5221 = vrot.lane.b32.xlu0 %v5188, 64
    %v5222 = vpop.permute.xlu0 %5221
    %v5223 = vmul.f32 %v190, %v5192
    %v5224 = vmul.f32 %v191, %v5194
    %v5225 = vmul.f32 %v192, %v5196
    %v5226 = vmul.f32 %v193, %v5198
    %v5227 = vmul.f32 %v194, %v5200
    %v5228 = vmul.f32 %v195, %v5202
    %v5229 = vmul.f32 %v196, %v5204
    %v5230 = vmul.f32 %v197, %v5206
    %v5231 = vmul.f32 %v198, %v5208
    %v5232 = vmul.f32 %v199, %v5210
    %v5233 = vmul.f32 %v200, %v5212
    %v5234 = vmul.f32 %v201, %v5214
    %v5235 = vmul.f32 %v202, %v5216
    %v5236 = vmul.f32 %v203, %v5218
    %v5237 = vmul.f32 %v204, %v5220
    %v5238 = vmul.f32 %v205, %v5222
    %v5239 = vadd.f32 %v5033, %v5223
    %v5240 = vadd.f32 %v5038, %v5224
    %v5241 = vadd.f32 %v5043, %v5225
    %v5242 = vadd.f32 %v5048, %v5226
    %v5243 = vadd.f32 %v5053, %v5227
    %v5244 = vadd.f32 %v5058, %v5228
    %v5245 = vadd.f32 %v5063, %v5229
    %v5246 = vadd.f32 %v5068, %v5230
    %v5247 = vadd.f32 %v5073, %v5231
    %v5248 = vadd.f32 %v5078, %v5232
    %v5249 = vadd.f32 %v5083, %v5233
    %v5250 = vadd.f32 %v5088, %v5234
    %v5251 = vadd.f32 %v5093, %v5235
    %v5252 = vadd.f32 %v5098, %v5236
    %v5253 = vadd.f32 %v5103, %v5237
    %v5254 = vadd.f32 %v5108, %v5238
    %5255 = vmatprep.subr.mxu0 0.0
    %5256 = vmatpush1.msra.mxu0 %v157
    %5257 = vmatprep.subr.mxu0 0.0
    %5258 = vmatpush1.msra.mxu0 %v156
    %5259 = vmatprep.subr.mxu0 0.0
    %5260 = vmatpush1.msra.mxu0 %v155
    %5261 = vmatprep.subr.mxu0 0.0
    %5262 = vmatpush1.msra.mxu0 %v154
    %5263 = vmatprep.subr.mxu0 0.0
    %5264 = vmatpush1.msra.mxu0 %v153
    %5265 = vmatprep.subr.mxu0 0.0
    %5266 = vmatpush1.msra.mxu0 %v152
    %5267 = vmatprep.subr.mxu0 0.0
    %5268 = vmatpush1.msra.mxu0 %v151
    %5269 = vmatprep.subr.mxu0 0.0
    %5270 = vmatpush1.msra.mxu0 %v150
    %5271 = vmatprep.subr.mxu0 0.0
    %5272 = vmatpush1.msra.mxu0 %v149
    %5273 = vmatprep.subr.mxu0 0.0
    %5274 = vmatpush1.msra.mxu0 %v148
    %5275 = vmatprep.subr.mxu0 0.0
    %5276 = vmatpush1.msra.mxu0 %v147
    %5277 = vmatprep.subr.mxu0 0.0
    %5278 = vmatpush1.msra.mxu0 %v146
    %5279 = vmatprep.subr.mxu0 0.0
    %5280 = vmatpush1.msra.mxu0 %v145
    %5281 = vmatprep.subr.mxu0 0.0
    %5282 = vmatpush1.msra.mxu0 %v144
    %5283 = vmatprep.subr.mxu0 0.0
    %5284 = vmatpush1.msra.mxu0 %v143
    %5285 = vmatprep.subr.mxu0 0.0
    %5286 = vmatpush1.msra.mxu0 %v142
    %5287 = vmatprep.subr.mxu0 0.0
    %5288 = vmatpush2.msra.mxu0 0.0
    %5289 = vmatprep.subr.mxu0 0.0
    %5290 = vmatpush2.msra.mxu0 0.0
    %5291 = vmatprep.subr.mxu0 0.0
    %5292 = vmatpush2.msra.mxu0 0.0
    %5293 = vmatprep.subr.mxu0 0.0
    %5294 = vmatpush2.msra.mxu0 0.0
    %5295 = vmatprep.subr.mxu0 0.0
    %5296 = vmatpush2.msra.mxu0 0.0
    %5297 = vmatprep.subr.mxu0 0.0
    %5298 = vmatpush2.msra.mxu0 0.0
    %5299 = vmatprep.subr.mxu0 0.0
    %5300 = vmatpush2.msra.mxu0 0.0
    %5301 = vmatprep.subr.mxu0 0.0
    %5302 = vmatpush2.msra.mxu0 0.0
    %5303 = vmatprep.subr.mxu0 0.0
    %5304 = vmatpush2.msra.mxu0 0.0
    %5305 = vmatprep.subr.mxu0 0.0
    %5306 = vmatpush2.msra.mxu0 0.0
    %5307 = vmatprep.subr.mxu0 0.0
    %5308 = vmatpush2.msra.mxu0 0.0
    %5309 = vmatprep.subr.mxu0 0.0
    %5310 = vmatpush2.msra.mxu0 0.0
    %5311 = vmatprep.subr.mxu0 0.0
    %5312 = vmatpush2.msra.mxu0 0.0
    %5313 = vmatprep.subr.mxu0 0.0
    %5314 = vmatpush2.msra.mxu0 0.0
    %5315 = vmatprep.subr.mxu0 0.0
    %5316 = vmatpush2.msra.mxu0 0.0
    %5317 = vmatprep.subr.mxu0 0.0
    %5318 = vmatpush2.msra.mxu0 0.0
    %5319 = vmatprep.mubr.f32.mxu0 0.0
    %5320 = vmatmul.mubr.f32.gmra.mxu0 %v5239
    %v5321 = vpop.f32.mrf.mxu0
    %v5322 = vadd.f32 0.0, %v5321
    %v5323 = vpop.f32.mrf.mxu0
    %5324 = vmatprep.mubr.f32.mxu0 0.0
    %5325 = vmatmul.mubr.f32.gmra.mxu0 %v5240
    %v5326 = vpop.f32.mrf.mxu0
    %v5327 = vadd.f32 0.0, %v5326
    %v5328 = vpop.f32.mrf.mxu0
    %5329 = vmatprep.mubr.f32.mxu0 0.0
    %5330 = vmatmul.mubr.f32.gmra.mxu0 %v5241
    %v5331 = vpop.f32.mrf.mxu0
    %v5332 = vadd.f32 0.0, %v5331
    %v5333 = vpop.f32.mrf.mxu0
    %5334 = vmatprep.mubr.f32.mxu0 0.0
    %5335 = vmatmul.mubr.f32.gmra.mxu0 %v5242
    %v5336 = vpop.f32.mrf.mxu0
    %v5337 = vadd.f32 0.0, %v5336
    %v5338 = vpop.f32.mrf.mxu0
    %5339 = vmatprep.mubr.f32.mxu0 0.0
    %5340 = vmatmul.mubr.f32.gmra.mxu0 %v5243
    %v5341 = vpop.f32.mrf.mxu0
    %v5342 = vadd.f32 0.0, %v5341
    %v5343 = vpop.f32.mrf.mxu0
    %5344 = vmatprep.mubr.f32.mxu0 0.0
    %5345 = vmatmul.mubr.f32.gmra.mxu0 %v5244
    %v5346 = vpop.f32.mrf.mxu0
    %v5347 = vadd.f32 0.0, %v5346
    %v5348 = vpop.f32.mrf.mxu0
    %5349 = vmatprep.mubr.f32.mxu0 0.0
    %5350 = vmatmul.mubr.f32.gmra.mxu0 %v5245
    %v5351 = vpop.f32.mrf.mxu0
    %v5352 = vadd.f32 0.0, %v5351
    %v5353 = vpop.f32.mrf.mxu0
    %5354 = vmatprep.mubr.f32.mxu0 0.0
    %5355 = vmatmul.mubr.f32.gmra.mxu0 %v5246
    %v5356 = vpop.f32.mrf.mxu0
    %v5357 = vadd.f32 0.0, %v5356
    %v5358 = vpop.f32.mrf.mxu0
    %5359 = vmatprep.mubr.f32.mxu0 0.0
    %5360 = vmatmul.mubr.f32.gmra.mxu0 %v5247
    %v5361 = vpop.f32.mrf.mxu0
    %v5362 = vadd.f32 0.0, %v5361
    %v5363 = vpop.f32.mrf.mxu0
    %5364 = vmatprep.mubr.f32.mxu0 0.0
    %5365 = vmatmul.mubr.f32.gmra.mxu0 %v5248
    %v5366 = vpop.f32.mrf.mxu0
    %v5367 = vadd.f32 0.0, %v5366
    %v5368 = vpop.f32.mrf.mxu0
    %5369 = vmatprep.mubr.f32.mxu0 0.0
    %5370 = vmatmul.mubr.f32.gmra.mxu0 %v5249
    %v5371 = vpop.f32.mrf.mxu0
    %v5372 = vadd.f32 0.0, %v5371
    %v5373 = vpop.f32.mrf.mxu0
    %5374 = vmatprep.mubr.f32.mxu0 0.0
    %5375 = vmatmul.mubr.f32.gmra.mxu0 %v5250
    %v5376 = vpop.f32.mrf.mxu0
    %v5377 = vadd.f32 0.0, %v5376
    %v5378 = vpop.f32.mrf.mxu0
    %5379 = vmatprep.mubr.f32.mxu0 0.0
    %5380 = vmatmul.mubr.f32.gmra.mxu0 %v5251
    %v5381 = vpop.f32.mrf.mxu0
    %v5382 = vadd.f32 0.0, %v5381
    %v5383 = vpop.f32.mrf.mxu0
    %5384 = vmatprep.mubr.f32.mxu0 0.0
    %5385 = vmatmul.mubr.f32.gmra.mxu0 %v5252
    %v5386 = vpop.f32.mrf.mxu0
    %v5387 = vadd.f32 0.0, %v5386
    %v5388 = vpop.f32.mrf.mxu0
    %5389 = vmatprep.mubr.f32.mxu0 0.0
    %5390 = vmatmul.mubr.f32.gmra.mxu0 %v5253
    %v5391 = vpop.f32.mrf.mxu0
    %v5392 = vadd.f32 0.0, %v5391
    %v5393 = vpop.f32.mrf.mxu0
    %5394 = vmatprep.mubr.f32.mxu0 0.0
    %5395 = vmatmul.mubr.f32.gmra.mxu0 %v5254
    %v5396 = vpop.f32.mrf.mxu0
    %v5397 = vadd.f32 0.0, %v5396
    %v5398 = vpop.f32.mrf.mxu0
    %5399 = vdwg.mxu0
    %s5400 = scalar_lea.vmem %s7, 512
    %v5401 = vld [vmem:[%s5400] sm:$0xff]
    %v5402 = vld [vmem:[%s5400 + $0x8] sm:$0xff]
    %v5403 = vld [vmem:[%s5400 + $0x10] sm:$0xff]
    %v5404 = vld [vmem:[%s5400 + $0x18] sm:$0xff]
    %v5405 = vld [vmem:[%s5400 + $0x20] sm:$0xff]
    %v5406 = vld [vmem:[%s5400 + $0x28] sm:$0xff]
    %v5407 = vld [vmem:[%s5400 + $0x30] sm:$0xff]
    %v5408 = vld [vmem:[%s5400 + $0x38] sm:$0xff]
    %v5409 = vld [vmem:[%s5400 + $0x40] sm:$0xff]
    %v5410 = vld [vmem:[%s5400 + $0x48] sm:$0xff]
    %v5411 = vld [vmem:[%s5400 + $0x50] sm:$0xff]
    %v5412 = vld [vmem:[%s5400 + $0x58] sm:$0xff]
    %v5413 = vld [vmem:[%s5400 + $0x60] sm:$0xff]
    %v5414 = vld [vmem:[%s5400 + $0x68] sm:$0xff]
    %v5415 = vld [vmem:[%s5400 + $0x70] sm:$0xff]
    %v5416 = vld [vmem:[%s5400 + $0x78] sm:$0xff]
    %v5417 = vmul.f32 %v5401, %v5322
    %v5418 = vmul.f32 %v5402, %v5327
    %v5419 = vmul.f32 %v5403, %v5332
    %v5420 = vmul.f32 %v5404, %v5337
    %v5421 = vmul.f32 %v5405, %v5342
    %v5422 = vmul.f32 %v5406, %v5347
    %v5423 = vmul.f32 %v5407, %v5352
    %v5424 = vmul.f32 %v5408, %v5357
    %v5425 = vmul.f32 %v5409, %v5362
    %v5426 = vmul.f32 %v5410, %v5367
    %v5427 = vmul.f32 %v5411, %v5372
    %v5428 = vmul.f32 %v5412, %v5377
    %v5429 = vmul.f32 %v5413, %v5382
    %v5430 = vmul.f32 %v5414, %v5387
    %v5431 = vmul.f32 %v5415, %v5392
    %v5432 = vmul.f32 %v5416, %v5397
    %s5433 = scalar_lea.vmem %s8, 512
    %v5434 = vld [vmem:[%s5433] sm:$0xff]
    %v5435 = vld [vmem:[%s5433 + $0x8] sm:$0xff]
    %v5436 = vld [vmem:[%s5433 + $0x10] sm:$0xff]
    %v5437 = vld [vmem:[%s5433 + $0x18] sm:$0xff]
    %v5438 = vld [vmem:[%s5433 + $0x20] sm:$0xff]
    %v5439 = vld [vmem:[%s5433 + $0x28] sm:$0xff]
    %v5440 = vld [vmem:[%s5433 + $0x30] sm:$0xff]
    %v5441 = vld [vmem:[%s5433 + $0x38] sm:$0xff]
    %v5442 = vld [vmem:[%s5433 + $0x40] sm:$0xff]
    %v5443 = vld [vmem:[%s5433 + $0x48] sm:$0xff]
    %v5444 = vld [vmem:[%s5433 + $0x50] sm:$0xff]
    %v5445 = vld [vmem:[%s5433 + $0x58] sm:$0xff]
    %v5446 = vld [vmem:[%s5433 + $0x60] sm:$0xff]
    %v5447 = vld [vmem:[%s5433 + $0x68] sm:$0xff]
    %v5448 = vld [vmem:[%s5433 + $0x70] sm:$0xff]
    %v5449 = vld [vmem:[%s5433 + $0x78] sm:$0xff]
    %5450 = vrot.lane.b32.xlu0 %v5322, 64
    %v5451 = vpop.permute.xlu0 %5450
    %5452 = vrot.lane.b32.xlu0 %v5327, 64
    %v5453 = vpop.permute.xlu0 %5452
    %5454 = vrot.lane.b32.xlu0 %v5332, 64
    %v5455 = vpop.permute.xlu0 %5454
    %5456 = vrot.lane.b32.xlu0 %v5337, 64
    %v5457 = vpop.permute.xlu0 %5456
    %5458 = vrot.lane.b32.xlu0 %v5342, 64
    %v5459 = vpop.permute.xlu0 %5458
    %5460 = vrot.lane.b32.xlu0 %v5347, 64
    %v5461 = vpop.permute.xlu0 %5460
    %5462 = vrot.lane.b32.xlu0 %v5352, 64
    %v5463 = vpop.permute.xlu0 %5462
    %5464 = vrot.lane.b32.xlu0 %v5357, 64
    %v5465 = vpop.permute.xlu0 %5464
    %5466 = vrot.lane.b32.xlu0 %v5362, 64
    %v5467 = vpop.permute.xlu0 %5466
    %5468 = vrot.lane.b32.xlu0 %v5367, 64
    %v5469 = vpop.permute.xlu0 %5468
    %5470 = vrot.lane.b32.xlu0 %v5372, 64
    %v5471 = vpop.permute.xlu0 %5470
    %5472 = vrot.lane.b32.xlu0 %v5377, 64
    %v5473 = vpop.permute.xlu0 %5472
    %5474 = vrot.lane.b32.xlu0 %v5382, 64
    %v5475 = vpop.permute.xlu0 %5474
    %5476 = vrot.lane.b32.xlu0 %v5387, 64
    %v5477 = vpop.permute.xlu0 %5476
    %5478 = vrot.lane.b32.xlu0 %v5392, 64
    %v5479 = vpop.permute.xlu0 %5478
    %5480 = vrot.lane.b32.xlu0 %v5397, 64
    %v5481 = vpop.permute.xlu0 %5480
    %v5482 = vmul.f32 %v5434, %v5451
    %v5483 = vmul.f32 %v5435, %v5453
    %v5484 = vmul.f32 %v5436, %v5455
    %v5485 = vmul.f32 %v5437, %v5457
    %v5486 = vmul.f32 %v5438, %v5459
    %v5487 = vmul.f32 %v5439, %v5461
    %v5488 = vmul.f32 %v5440, %v5463
    %v5489 = vmul.f32 %v5441, %v5465
    %v5490 = vmul.f32 %v5442, %v5467
    %v5491 = vmul.f32 %v5443, %v5469
    %v5492 = vmul.f32 %v5444, %v5471
    %v5493 = vmul.f32 %v5445, %v5473
    %v5494 = vmul.f32 %v5446, %v5475
    %v5495 = vmul.f32 %v5447, %v5477
    %v5496 = vmul.f32 %v5448, %v5479
    %v5497 = vmul.f32 %v5449, %v5481
    %v5498 = vadd.f32 %v5417, %v5482
    %v5499 = vadd.f32 %v5418, %v5483
    %v5500 = vadd.f32 %v5419, %v5484
    %v5501 = vadd.f32 %v5420, %v5485
    %v5502 = vadd.f32 %v5421, %v5486
    %v5503 = vadd.f32 %v5422, %v5487
    %v5504 = vadd.f32 %v5423, %v5488
    %v5505 = vadd.f32 %v5424, %v5489
    %v5506 = vadd.f32 %v5425, %v5490
    %v5507 = vadd.f32 %v5426, %v5491
    %v5508 = vadd.f32 %v5427, %v5492
    %v5509 = vadd.f32 %v5428, %v5493
    %v5510 = vadd.f32 %v5429, %v5494
    %v5511 = vadd.f32 %v5430, %v5495
    %v5512 = vadd.f32 %v5431, %v5496
    %v5513 = vadd.f32 %v5432, %v5497
    %v5514 = vmul.f32 %v5498, %v5498
    %v5515 = vmul.f32 %v5499, %v5499
    %v5516 = vmul.f32 %v5500, %v5500
    %v5517 = vmul.f32 %v5501, %v5501
    %v5518 = vmul.f32 %v5502, %v5502
    %v5519 = vmul.f32 %v5503, %v5503
    %v5520 = vmul.f32 %v5504, %v5504
    %v5521 = vmul.f32 %v5505, %v5505
    %v5522 = vmul.f32 %v5506, %v5506
    %v5523 = vmul.f32 %v5507, %v5507
    %v5524 = vmul.f32 %v5508, %v5508
    %v5525 = vmul.f32 %v5509, %v5509
    %v5526 = vmul.f32 %v5510, %v5510
    %v5527 = vmul.f32 %v5511, %v5511
    %v5528 = vmul.f32 %v5512, %v5512
    %v5529 = vmul.f32 %v5513, %v5513
    %v5530 = vld [vmem:[%s10] sm:$0xff]
    %v5531 = vld [vmem:[%s10 + $0x8] sm:$0xff]
    %v5532 = vld [vmem:[%s10 + $0x10] sm:$0xff]
    %v5533 = vld [vmem:[%s10 + $0x18] sm:$0xff]
    %v5534 = vld [vmem:[%s10 + $0x20] sm:$0xff]
    %v5535 = vld [vmem:[%s10 + $0x28] sm:$0xff]
    %v5536 = vld [vmem:[%s10 + $0x30] sm:$0xff]
    %v5537 = vld [vmem:[%s10 + $0x38] sm:$0xff]
    %v5538 = vld [vmem:[%s10 + $0x40] sm:$0xff]
    %v5539 = vld [vmem:[%s10 + $0x48] sm:$0xff]
    %v5540 = vld [vmem:[%s10 + $0x50] sm:$0xff]
    %v5541 = vld [vmem:[%s10 + $0x58] sm:$0xff]
    %v5542 = vld [vmem:[%s10 + $0x60] sm:$0xff]
    %v5543 = vld [vmem:[%s10 + $0x68] sm:$0xff]
    %v5544 = vld [vmem:[%s10 + $0x70] sm:$0xff]
    %v5545 = vld [vmem:[%s10 + $0x78] sm:$0xff]
    %5546 = vmatprep.subr.mxu0 0.0
    %5547 = vmatpush1.msra.mxu0 %v5545
    %5548 = vmatprep.subr.mxu0 0.0
    %5549 = vmatpush1.msra.mxu0 %v5544
    %5550 = vmatprep.subr.mxu0 0.0
    %5551 = vmatpush1.msra.mxu0 %v5543
    %5552 = vmatprep.subr.mxu0 0.0
    %5553 = vmatpush1.msra.mxu0 %v5542
    %5554 = vmatprep.subr.mxu0 0.0
    %5555 = vmatpush1.msra.mxu0 %v5541
    %5556 = vmatprep.subr.mxu0 0.0
    %5557 = vmatpush1.msra.mxu0 %v5540
    %5558 = vmatprep.subr.mxu0 0.0
    %5559 = vmatpush1.msra.mxu0 %v5539
    %5560 = vmatprep.subr.mxu0 0.0
    %5561 = vmatpush1.msra.mxu0 %v5538
    %5562 = vmatprep.subr.mxu0 0.0
    %5563 = vmatpush1.msra.mxu0 %v5537
    %5564 = vmatprep.subr.mxu0 0.0
    %5565 = vmatpush1.msra.mxu0 %v5536
    %5566 = vmatprep.subr.mxu0 0.0
    %5567 = vmatpush1.msra.mxu0 %v5535
    %5568 = vmatprep.subr.mxu0 0.0
    %5569 = vmatpush1.msra.mxu0 %v5534
    %5570 = vmatprep.subr.mxu0 0.0
    %5571 = vmatpush1.msra.mxu0 %v5533
    %5572 = vmatprep.subr.mxu0 0.0
    %5573 = vmatpush1.msra.mxu0 %v5532
    %5574 = vmatprep.subr.mxu0 0.0
    %5575 = vmatpush1.msra.mxu0 %v5531
    %5576 = vmatprep.subr.mxu0 0.0
    %5577 = vmatpush1.msra.mxu0 %v5530
    %5578 = vmatprep.subr.mxu0 0.0
    %5579 = vmatpush2.msra.mxu0 0.0
    %5580 = vmatprep.subr.mxu0 0.0
    %5581 = vmatpush2.msra.mxu0 0.0
    %5582 = vmatprep.subr.mxu0 0.0
    %5583 = vmatpush2.msra.mxu0 0.0
    %5584 = vmatprep.subr.mxu0 0.0
    %5585 = vmatpush2.msra.mxu0 0.0
    %5586 = vmatprep.subr.mxu0 0.0
    %5587 = vmatpush2.msra.mxu0 0.0
    %5588 = vmatprep.subr.mxu0 0.0
    %5589 = vmatpush2.msra.mxu0 0.0
    %5590 = vmatprep.subr.mxu0 0.0
    %5591 = vmatpush2.msra.mxu0 0.0
    %5592 = vmatprep.subr.mxu0 0.0
    %5593 = vmatpush2.msra.mxu0 0.0
    %5594 = vmatprep.subr.mxu0 0.0
    %5595 = vmatpush2.msra.mxu0 0.0
    %5596 = vmatprep.subr.mxu0 0.0
    %5597 = vmatpush2.msra.mxu0 0.0
    %5598 = vmatprep.subr.mxu0 0.0
    %5599 = vmatpush2.msra.mxu0 0.0
    %5600 = vmatprep.subr.mxu0 0.0
    %5601 = vmatpush2.msra.mxu0 0.0
    %5602 = vmatprep.subr.mxu0 0.0
    %5603 = vmatpush2.msra.mxu0 0.0
    %5604 = vmatprep.subr.mxu0 0.0
    %5605 = vmatpush2.msra.mxu0 0.0
    %5606 = vmatprep.subr.mxu0 0.0
    %5607 = vmatpush2.msra.mxu0 0.0
    %5608 = vmatprep.subr.mxu0 0.0
    %5609 = vmatpush2.msra.mxu0 0.0
    %5610 = vmatprep.mubr.f32.mxu0 0.0
    %5611 = vmatmul.mubr.f32.gmra.mxu0 %v5514
    %v5612 = vpop.f32.mrf.mxu0
    %v5613 = vadd.f32 0.0, %v5612
    %v5614 = vpop.f32.mrf.mxu0
    %5615 = vmatprep.mubr.f32.mxu0 0.0
    %5616 = vmatmul.mubr.f32.gmra.mxu0 %v5515
    %v5617 = vpop.f32.mrf.mxu0
    %v5618 = vadd.f32 0.0, %v5617
    %v5619 = vpop.f32.mrf.mxu0
    %5620 = vmatprep.mubr.f32.mxu0 0.0
    %5621 = vmatmul.mubr.f32.gmra.mxu0 %v5516
    %v5622 = vpop.f32.mrf.mxu0
    %v5623 = vadd.f32 0.0, %v5622
    %v5624 = vpop.f32.mrf.mxu0
    %5625 = vmatprep.mubr.f32.mxu0 0.0
    %5626 = vmatmul.mubr.f32.gmra.mxu0 %v5517
    %v5627 = vpop.f32.mrf.mxu0
    %v5628 = vadd.f32 0.0, %v5627
    %v5629 = vpop.f32.mrf.mxu0
    %5630 = vmatprep.mubr.f32.mxu0 0.0
    %5631 = vmatmul.mubr.f32.gmra.mxu0 %v5518
    %v5632 = vpop.f32.mrf.mxu0
    %v5633 = vadd.f32 0.0, %v5632
    %v5634 = vpop.f32.mrf.mxu0
    %5635 = vmatprep.mubr.f32.mxu0 0.0
    %5636 = vmatmul.mubr.f32.gmra.mxu0 %v5519
    %v5637 = vpop.f32.mrf.mxu0
    %v5638 = vadd.f32 0.0, %v5637
    %v5639 = vpop.f32.mrf.mxu0
    %5640 = vmatprep.mubr.f32.mxu0 0.0
    %5641 = vmatmul.mubr.f32.gmra.mxu0 %v5520
    %v5642 = vpop.f32.mrf.mxu0
    %v5643 = vadd.f32 0.0, %v5642
    %v5644 = vpop.f32.mrf.mxu0
    %5645 = vmatprep.mubr.f32.mxu0 0.0
    %5646 = vmatmul.mubr.f32.gmra.mxu0 %v5521
    %v5647 = vpop.f32.mrf.mxu0
    %v5648 = vadd.f32 0.0, %v5647
    %v5649 = vpop.f32.mrf.mxu0
    %5650 = vmatprep.mubr.f32.mxu0 0.0
    %5651 = vmatmul.mubr.f32.gmra.mxu0 %v5522
    %v5652 = vpop.f32.mrf.mxu0
    %v5653 = vadd.f32 0.0, %v5652
    %v5654 = vpop.f32.mrf.mxu0
    %5655 = vmatprep.mubr.f32.mxu0 0.0
    %5656 = vmatmul.mubr.f32.gmra.mxu0 %v5523
    %v5657 = vpop.f32.mrf.mxu0
    %v5658 = vadd.f32 0.0, %v5657
    %v5659 = vpop.f32.mrf.mxu0
    %5660 = vmatprep.mubr.f32.mxu0 0.0
    %5661 = vmatmul.mubr.f32.gmra.mxu0 %v5524
    %v5662 = vpop.f32.mrf.mxu0
    %v5663 = vadd.f32 0.0, %v5662
    %v5664 = vpop.f32.mrf.mxu0
    %5665 = vmatprep.mubr.f32.mxu0 0.0
    %5666 = vmatmul.mubr.f32.gmra.mxu0 %v5525
    %v5667 = vpop.f32.mrf.mxu0
    %v5668 = vadd.f32 0.0, %v5667
    %v5669 = vpop.f32.mrf.mxu0
    %5670 = vmatprep.mubr.f32.mxu0 0.0
    %5671 = vmatmul.mubr.f32.gmra.mxu0 %v5526
    %v5672 = vpop.f32.mrf.mxu0
    %v5673 = vadd.f32 0.0, %v5672
    %v5674 = vpop.f32.mrf.mxu0
    %5675 = vmatprep.mubr.f32.mxu0 0.0
    %5676 = vmatmul.mubr.f32.gmra.mxu0 %v5527
    %v5677 = vpop.f32.mrf.mxu0
    %v5678 = vadd.f32 0.0, %v5677
    %v5679 = vpop.f32.mrf.mxu0
    %5680 = vmatprep.mubr.f32.mxu0 0.0
    %5681 = vmatmul.mubr.f32.gmra.mxu0 %v5528
    %v5682 = vpop.f32.mrf.mxu0
    %v5683 = vadd.f32 0.0, %v5682
    %v5684 = vpop.f32.mrf.mxu0
    %5685 = vmatprep.mubr.f32.mxu0 0.0
    %5686 = vmatmul.mubr.f32.gmra.mxu0 %v5529
    %v5687 = vpop.f32.mrf.mxu0
    %v5688 = vadd.f32 0.0, %v5687
    %v5689 = vpop.f32.mrf.mxu0
    %5690 = vdwg.mxu0
    %v5691 = vld [vmem:[%s11] sm:$0xff]
    %v5692 = vld [vmem:[%s11 + $0x8] sm:$0xff]
    %v5693 = vld [vmem:[%s11 + $0x10] sm:$0xff]
    %v5694 = vld [vmem:[%s11 + $0x18] sm:$0xff]
    %v5695 = vld [vmem:[%s11 + $0x20] sm:$0xff]
    %v5696 = vld [vmem:[%s11 + $0x28] sm:$0xff]
    %v5697 = vld [vmem:[%s11 + $0x30] sm:$0xff]
    %v5698 = vld [vmem:[%s11 + $0x38] sm:$0xff]
    %v5699 = vld [vmem:[%s11 + $0x40] sm:$0xff]
    %v5700 = vld [vmem:[%s11 + $0x48] sm:$0xff]
    %v5701 = vld [vmem:[%s11 + $0x50] sm:$0xff]
    %v5702 = vld [vmem:[%s11 + $0x58] sm:$0xff]
    %v5703 = vld [vmem:[%s11 + $0x60] sm:$0xff]
    %v5704 = vld [vmem:[%s11 + $0x68] sm:$0xff]
    %v5705 = vld [vmem:[%s11 + $0x70] sm:$0xff]
    %v5706 = vld [vmem:[%s11 + $0x78] sm:$0xff]
    %v5707 = vmul.f32 %v5691, %v5613
    %v5708 = vmul.f32 %v5692, %v5618
    %v5709 = vmul.f32 %v5693, %v5623
    %v5710 = vmul.f32 %v5694, %v5628
    %v5711 = vmul.f32 %v5695, %v5633
    %v5712 = vmul.f32 %v5696, %v5638
    %v5713 = vmul.f32 %v5697, %v5643
    %v5714 = vmul.f32 %v5698, %v5648
    %v5715 = vmul.f32 %v5699, %v5653
    %v5716 = vmul.f32 %v5700, %v5658
    %v5717 = vmul.f32 %v5701, %v5663
    %v5718 = vmul.f32 %v5702, %v5668
    %v5719 = vmul.f32 %v5703, %v5673
    %v5720 = vmul.f32 %v5704, %v5678
    %v5721 = vmul.f32 %v5705, %v5683
    %v5722 = vmul.f32 %v5706, %v5688
    %v5723 = vadd.f32 %v5707, %v5708
    %v5724 = vadd.f32 %v5723, %v5709
    %v5725 = vadd.f32 %v5724, %v5710
    %v5726 = vadd.f32 %v5725, %v5711
    %v5727 = vadd.f32 %v5726, %v5712
    %v5728 = vadd.f32 %v5727, %v5713
    %v5729 = vadd.f32 %v5728, %v5714
    %v5730 = vrot.slane %v5729, 4
    %v5731 = vadd.f32 %v5729, %v5730
    %v5732 = vrot.slane %v5731, 2
    %v5733 = vadd.f32 %v5731, %v5732
    %v5734 = vrot.slane %v5733, 1
    %v5735 = vadd.f32 %v5733, %v5734
    %v5736 = vmul.f32 %v5735, %v5735
    %vm5737 = vcmask 1040384
    %v5738 = vsel %vm5737, %v5736, 0.0
    %5739 = vadd.xlane.f32.xlu0 %v5738
    %v5740 = vpop.xlane.xlu0 %5739
    %v5741 = vrot.slane %v5740, 4
    %v5742 = vadd.f32 %v5740, %v5741
    %v5743 = vrot.slane %v5742, 2
    %v5744 = vadd.f32 %v5742, %v5743
    %v5745 = vrot.slane %v5744, 1
    %v5746 = vadd.f32 %v5744, %v5745
    %s5747 = vtos %v5746
    %v5748 = vstv %s5747
    %v5749 = vrsqrt.pop %v5748
    %v5750 = vmul.f32 %v5735, %v5749
    %5751 = vst [vmem:[#allocation2] sm:$0xff] %v5750
    %5752 = vst [vmem:[#allocation4] sm:$0xff] %v5735
    %v5753 = vadd.f32 %v5715, %v5716
    %v5754 = vadd.f32 %v5753, %v5717
    %v5755 = vadd.f32 %v5754, %v5718
    %v5756 = vadd.f32 %v5755, %v5719
    %v5757 = vadd.f32 %v5756, %v5720
    %v5758 = vadd.f32 %v5757, %v5721
    %v5759 = vadd.f32 %v5758, %v5722
    %v5760 = vrot.slane %v5759, 4
    %v5761 = vadd.f32 %v5759, %v5760
    %v5762 = vrot.slane %v5761, 2
    %v5763 = vadd.f32 %v5761, %v5762
    %v5764 = vrot.slane %v5763, 1
    %v5765 = vadd.f32 %v5763, %v5764
    %v5766 = vmul.f32 %v5765, %v5765
    %v5767 = vsel %vm5737, %v5766, 0.0
    %5768 = vadd.xlane.f32.xlu0 %v5767
    %v5769 = vpop.xlane.xlu0 %5768
    %v5770 = vrot.slane %v5769, 4
    %v5771 = vadd.f32 %v5769, %v5770
    %v5772 = vrot.slane %v5771, 2
    %v5773 = vadd.f32 %v5771, %v5772
    %v5774 = vrot.slane %v5773, 1
    %v5775 = vadd.f32 %v5773, %v5774
    %s5776 = vtos %v5775
    %v5777 = vstv %s5776
    %v5778 = vrsqrt.pop %v5777
    %v5779 = vmul.f32 %v5765, %v5778
    %s5780 = scalar_lea.vmem [#allocation2], 8
    %5781 = vst [vmem:[%s5780] sm:$0xff] %v5779
    %s5782 = scalar_lea.vmem [#allocation4], 8
    %5783 = vst [vmem:[%s5782] sm:$0xff] %v5765
    %5792 = vrot.lane.b32.xlu0 %v5514, 64
    %v5793 = vpop.permute.xlu0 %5792
    %5794 = vrot.lane.b32.xlu0 %v5515, 64
    %v5795 = vpop.permute.xlu0 %5794
    %5796 = vrot.lane.b32.xlu0 %v5516, 64
    %v5797 = vpop.permute.xlu0 %5796
    %5798 = vrot.lane.b32.xlu0 %v5517, 64
    %v5799 = vpop.permute.xlu0 %5798
    %5800 = vrot.lane.b32.xlu0 %v5518, 64
    %v5801 = vpop.permute.xlu0 %5800
    %5802 = vrot.lane.b32.xlu0 %v5519, 64
    %v5803 = vpop.permute.xlu0 %5802
    %5804 = vrot.lane.b32.xlu0 %v5520, 64
    %v5805 = vpop.permute.xlu0 %5804
    %5806 = vrot.lane.b32.xlu0 %v5521, 64
    %v5807 = vpop.permute.xlu0 %5806
    %v5816 = vadd.f32 %v5514, %v5793
    %v5817 = vadd.f32 %v5515, %v5795
    %v5818 = vadd.f32 %v5516, %v5797
    %v5819 = vadd.f32 %v5517, %v5799
    %v5820 = vadd.f32 %v5518, %v5801
    %v5821 = vadd.f32 %v5519, %v5803
    %v5822 = vadd.f32 %v5520, %v5805
    %v5823 = vadd.f32 %v5521, %v5807
    %vm5824 = vcmask 523264
    %5825 = vst.msk [vmem:[#allocation6] sm:$0xff] %vm5824, %v5816
    %5826 = vst.msk [vmem:[#allocation6 + $0x8] sm:$0xff] %vm5824, %v5817
    %5827 = vst.msk [vmem:[#allocation6 + $0x10] sm:$0xff] %vm5824, %v5818
    %5828 = vst.msk [vmem:[#allocation6 + $0x18] sm:$0xff] %vm5824, %v5819
    %5829 = vst.msk [vmem:[#allocation6 + $0x20] sm:$0xff] %vm5824, %v5820
    %5830 = vst.msk [vmem:[#allocation6 + $0x28] sm:$0xff] %vm5824, %v5821
    %5831 = vst.msk [vmem:[#allocation6 + $0x30] sm:$0xff] %vm5824, %v5822
    %5832 = vst.msk [vmem:[#allocation6 + $0x38] sm:$0xff] %vm5824, %v5823
    // Predicated region
    $region50: #{optical_network.1} parent=1 // pred_check
      _
    $region51: #{optical_network.1} parent=1 // pred_check_branch
      %5834 = sbr.rel (0) target = $region53
    $region52: #{optical_network.1} parent=1 // pred_region
      %s5836 = ssub.s32 256, 256
      %5837 = vsyncadd [#allocation3], %s5836
      %s5838 = sshll.u32 [#allocation2], 4
      %s5839 = int_to_ptr.vmem [resolvable:$true] %s5838
      %5844 = dma.vmem_to_hbm [thread:$0]  %s5839, 256, %s12, [#allocation3], 128, 128, 8
    $region53: #{optical_network.1} parent=1 // pred_fallthru
      _
    // Predicated region
    $region54: #{optical_network.1} parent=1 // pred_check
      _
    $region55: #{optical_network.1} parent=1 // pred_check_branch
      %5846 = sbr.rel (0) target = $region57
    $region56: #{optical_network.1} parent=1 // pred_region
      %s5848 = ssub.s32 256, 256
      %5849 = vsyncadd [#allocation5], %s5848
      %s5850 = sshll.u32 [#allocation4], 4
      %s5851 = int_to_ptr.vmem [resolvable:$true] %s5850
      %5856 = dma.vmem_to_hbm [thread:$0]  %s5851, 256, %s13, [#allocation5], 128, 128, 8
    $region57: #{optical_network.1} parent=1 // pred_fallthru
      _
    // Predicated region
    $region58: #{optical_network.1} parent=1 // pred_check
      _
    $region59: #{optical_network.1} parent=1 // pred_check_branch
      %5858 = sbr.rel (0) target = $region61
    $region60: #{optical_network.1} parent=1 // pred_region
      %s5860 = ssub.s32 1024, 1024
      %5861 = vsyncadd [#allocation5], %s5860
      %s5862 = sshll.u32 [#allocation6], 4
      %s5863 = int_to_ptr.vmem [resolvable:$true] %s5862
      %5868 = dma.vmem_to_hbm [thread:$0]  %s5863, 1024, %s14, [#allocation5], 128, 128, 8
    $region61: #{optical_network.1} parent=1 // pred_fallthru
      _
    // Predicated region
    $region62: #{optical_network.1} parent=1 // pred_check
      _
    $region63: #{optical_network.1} parent=1 // pred_check_branch
      %5870 = sbr.rel (0) target = $region65
    $region64: #{optical_network.1} parent=1 // pred_region
      %5871 = dma.done [#allocation3], 256
    $region65: #{optical_network.1} parent=1 // pred_fallthru
      _
    // Predicated region
    $region66: #{optical_network.1} parent=1 // pred_check
      _
    $region67: #{optical_network.1} parent=1 // pred_check_branch
      %5873 = sbr.rel (0) target = $region69
    $region68: #{optical_network.1} parent=1 // pred_region
      %5874 = dma.done [#allocation5], 256
    $region69: #{optical_network.1} parent=1 // pred_fallthru
      _
    // Predicated region
    $region70: #{optical_network.1} parent=1 // pred_check
      _
    $region71: #{optical_network.1} parent=1 // pred_check_branch
      %5876 = sbr.rel (0) target = $region73
    $region72: #{optical_network.1} parent=1 // pred_region
      %5877 = dma.done [#allocation5], 1024
    $region73: #{optical_network.1} parent=1 // pred_fallthru
      _
    %5878 = vsyncpa [#allocation3], 1
    %5879 = vsyncpa [#allocation5], 1

</llo_original>
